<compile_context>
chip_gen: v6e
topology: v6e:2x2x1
jax: 0.10.0
libtpu: 0.0.40
codegen_flags: <defaults>
</compile_context>

<pallas_src>
import functools

import jax
import jax.numpy as jnp
from jax.experimental import pallas as pl
from jax.experimental.pallas import tpu as pltpu


# ----------------------------------------------------------------------------
# Fused Pallas kernel
# ----------------------------------------------------------------------------
def me_fused_kernel(boundary_ref, box_ref, hf_ref,
                    dw_w_ref, dw_b_ref,
                    w1_ref, b1_ref, w2_ref, b2_ref,
                    w3_ref, b3_ref, w4_ref, b4_ref,
                    out_ref, xpad_ref, *, H, W, pad_rows):
    """One batch element per grid step.  All activations are (H*W, C) slabs.

    boundary_ref/box_ref/hf_ref : (1, H*W, C_half) f32
    dw_w_ref : (Cin, Cout) bf16 block-diagonal grouped-conv weight
    dw_b_ref : (1, Cout) f32 grouped-conv bias
    wK_ref   : (kh*kw*Cin_K, Cout) bf16 conv weight with BN scale folded in
    bK_ref   : (1, Cout) f32 folded BN shift
    out_ref  : (1, H*W, Cout) f32
    xpad_ref : (H*W + 2*pad_rows, Cout) bf16 row-padded activation scratch
    """
    M = H * W
    f32 = jnp.float32
    bf16 = jnp.bfloat16

    # Zero the padded scratch: the pad rows provide the conv zero-padding.
    xpad_ref[...] = jnp.zeros_like(xpad_ref)

    # Output-row "w" coordinate; used to mask taps that wrap across rows.
    w_idx = jax.lax.broadcasted_iota(jnp.int32, (M, 1), 0) % W

    def tap_slab(dh, dw):
        # Conv tap (dh, dw) == row shift of dh*W + dw in the flattened view;
        # H out-of-range reads land in the zero pad rows, W out-of-range
        # reads are masked based on the output w coordinate.
        s = pad_rows + dh * W + dw
        slab = xpad_ref[s:s + M, :]
        if dw > 0:
            slab = jnp.where(w_idx < W - dw, slab, jnp.zeros_like(slab))
        elif dw < 0:
            slab = jnp.where(w_idx >= -dw, slab, jnp.zeros_like(slab))
        return slab

    def conv_bn_relu(taps, w_ref, b_ref):
        # In-kernel im2col: lane-concat taps -> one full-K MXU matmul.
        patch = jnp.concatenate([tap_slab(dh, dw) for (dh, dw) in taps],
                                axis=-1)
        y = jnp.dot(patch, w_ref[...], preferred_element_type=f32)
        return jnp.maximum(y + b_ref[...], 0.0)

    # ---- inputs for this batch element -------------------------------------
    dense_cat = jnp.concatenate([boundary_ref[0], box_ref[0]],
                                axis=-1).astype(bf16)            # (M, Cin)

    # grouped 1x1 conv (block-diagonal matmul) — dense_cat_tmp
    dense_cat_tmp = jnp.dot(dense_cat, dw_w_ref[...],
                            preferred_element_type=f32) + dw_b_ref[...]

    # ---- branch1 ------------------------------------------------------------
    # layer 1: 1x1 conv + BN(folded) + ReLU
    y = jnp.maximum(
        jnp.dot(dense_cat, w1_ref[...], preferred_element_type=f32)
        + b1_ref[...], 0.0)

    # layer 2: (1,3) conv, padding (0,1)
    xpad_ref[pad_rows:pad_rows + M, :] = y.astype(bf16)
    y = conv_bn_relu([(0, dw) for dw in (-1, 0, 1)], w2_ref, b2_ref)

    # layer 3: (3,1) conv, padding (1,0)
    xpad_ref[pad_rows:pad_rows + M, :] = y.astype(bf16)
    y = conv_bn_relu([(dh, 0) for dh in (-1, 0, 1)], w3_ref, b3_ref)

    # layer 4: 3x3 conv, padding 3, dilation 3
    xpad_ref[pad_rows:pad_rows + M, :] = y.astype(bf16)
    y = conv_bn_relu([(dh, dw) for dh in (-3, 0, 3) for dw in (-3, 0, 3)],
                     w4_ref, b4_ref)

    # ---- residual + second grouped conv (same shared weights as PyTorch) ----
    dense_em = y + dense_cat_tmp                                  # (M, Cout)
    cat2 = jnp.concatenate([dense_em.astype(bf16),
                            hf_ref[0].astype(bf16)], axis=-1)     # (M, Cin)
    out = jnp.dot(cat2, dw_w_ref[...],
                  preferred_element_type=f32) + dw_b_ref[...]
    out_ref[0] = out.astype(out_ref.dtype)


# ----------------------------------------------------------------------------
# Parameter construction (deterministic example weights)
# ----------------------------------------------------------------------------
def xavier_uniform(key, shape, fan_in, fan_out):
    limit = (6.0 / (fan_in + fan_out)) ** 0.5
    return jax.random.uniform(key, shape, jnp.float32, -limit, limit)


def init_params(key, in_channels, out_channels):
    groups = in_channels // 16
    cin_g = in_channels // groups
    cout_g = out_channels // groups
    eps = 1e-5
    keys = jax.random.split(key, 16)
    params = {}

    # grouped 1x1 conv: PyTorch weight (Cout, Cin//G, 1, 1) -> block-diagonal
    # (Cin, Cout) matrix so the grouped conv is one clean MXU matmul.
    dw_w = xavier_uniform(keys[0], (out_channels, cin_g, 1, 1),
                          fan_in=cin_g, fan_out=out_channels)
    w2d = dw_w[:, :, 0, 0]                       # (Cout, Cin//G)
    bd = jnp.zeros((in_channels, out_channels), jnp.float32)
    for g in range(groups):
        blk = jnp.transpose(w2d[g * cout_g:(g + 1) * cout_g, :])  # (cin_g, cout_g)
        bd = bd.at[g * cin_g:(g + 1) * cin_g,
                   g * cout_g:(g + 1) * cout_g].set(blk)
    params['dw_w_bd'] = bd.astype(jnp.bfloat16)
    params['dw_b'] = jnp.zeros((1, out_channels), jnp.float32)

    # branch1: (cin, cout, kh, kw, pad_h, pad_w, dilation)
    geoms = [
        (in_channels, out_channels, 1, 1, 0, 0, 1),
        (out_channels, out_channels, 1, 3, 0, 1, 1),
        (out_channels, out_channels, 3, 1, 1, 0, 1),
        (out_channels, out_channels, 3, 3, 3, 3, 3),
    ]
    branch = []
    k_idx = 1
    for (cin, cout, kh, kw, _ph, _pw, _dil) in geoms:
        w = xavier_uniform(keys[k_idx], (cout, cin, kh, kw),
                           fan_in=cin * kh * kw, fan_out=cout * kh * kw)
        k_idx += 1
        # conv weight -> im2col matrix (kh, kw, Cin, Cout) -> (kh*kw*Cin, Cout)
        w_mat = jnp.transpose(w, (2, 3, 1, 0)).reshape(kh * kw * cin, cout)
        # BatchNorm (inference): fold scale into the weights, keep the shift.
        gamma = 1.0 + 0.1 * jax.random.normal(keys[k_idx], (cout,)); k_idx += 1
        beta = 0.05 * jax.random.normal(keys[k_idx], (cout,)); k_idx += 1
        mean = jnp.zeros((cout,), jnp.float32)
        var = jnp.ones((cout,), jnp.float32)
        scale = gamma / jnp.sqrt(var + eps)
        shift = beta - mean * scale
        branch.append({
            'w_mat': (w_mat * scale[None, :]).astype(jnp.bfloat16),
            'shift': shift.reshape(1, cout).astype(jnp.float32),
        })
    params['branch'] = branch
    return params


# ----------------------------------------------------------------------------
# Forward pass (single fused pallas_call)
# ----------------------------------------------------------------------------
@functools.partial(jax.jit, static_argnames=("out_channels",))
def me_forward(params, dense_embeddings_boundary, dense_embeddings_box,
               high_frequency, sparse_embeddings_box, *, out_channels):
    n, _, h, w = dense_embeddings_boundary.shape
    m = h * w

    # NCHW -> (N, H*W, C) row-major slabs (lane dim = channels).
    def to_rows(t):
        return jnp.transpose(t, (0, 2, 3, 1)).reshape(n, m, t.shape[1])

    bd = to_rows(dense_embeddings_boundary)
    bx = to_rows(dense_embeddings_box)
    hf = to_rows(high_frequency)

    # Largest |dh|*W + |dw| over all taps is 3*W + 3 (3x3, dil=3, pad=3);
    # round pad rows up to the bf16 sublane tile (16) for aligned writes.
    max_shift = 3 * w + 3
    pad_rows = ((max_shift + 15) // 16) * 16

    kern = functools.partial(me_fused_kernel, H=h, W=w, pad_rows=pad_rows)

    def full(shape):
        return pl.BlockSpec(shape, lambda nidx: (0,) * len(shape))

    def per_n(ch):
        return pl.BlockSpec((1, m, ch), lambda nidx: (nidx, 0, 0))

    weight_args = [params['dw_w_bd'], params['dw_b']]
    weight_specs = [full(params['dw_w_bd'].shape), full(params['dw_b'].shape)]
    for layer in params['branch']:
        weight_args += [layer['w_mat'], layer['shift']]
        weight_specs += [full(layer['w_mat'].shape), full(layer['shift'].shape)]

    out2d = pl.pallas_call(
        kern,
        out_shape=jax.ShapeDtypeStruct((n, m, out_channels), jnp.float32),
        grid=(n,),
        in_specs=[per_n(bd.shape[-1]), per_n(bx.shape[-1]),
                  per_n(hf.shape[-1])] + weight_specs,
        out_specs=per_n(out_channels),
        scratch_shapes=[pltpu.VMEM((m + 2 * pad_rows, out_channels),
                                   jnp.bfloat16)],
        compiler_params=pltpu.CompilerParams(
            dimension_semantics=("parallel",),
            vmem_limit_bytes=32 * 1024 * 1024),
    )(bd, bx, hf, *weight_args)

    dense_embeddings = jnp.transpose(
        out2d.reshape(n, h, w, out_channels), (0, 3, 1, 2))
    sparse_embeddings = sparse_embeddings_box
    return dense_embeddings, sparse_embeddings


# ----------------------------------------------------------------------------
# Main
# ----------------------------------------------------------------------------
if __name__ == "__main__":
    in_channels, out_channels = 64, 32          # groups = in_channels // 16 = 4
    N, H, W = 2, 16, 16
    c_half = in_channels - out_channels         # boundary/box/high_freq channels

    key = jax.random.PRNGKey(0)
    k_par, k_b, k_x, k_h, k_s = jax.random.split(key, 5)

    params = init_params(k_par, in_channels, out_channels)

    dense_embeddings_boundary = jax.random.normal(
        k_b, (N, c_half, H, W), jnp.float32)
    dense_embeddings_box = jax.random.normal(
        k_x, (N, c_half, H, W), jnp.float32)
    high_frequency = jax.random.normal(
        k_h, (N, in_channels - out_channels, H, W), jnp.float32)
    sparse_embeddings_box = jax.random.normal(
        k_s, (N, 8, out_channels), jnp.float32)

    dense_embeddings, sparse_embeddings = me_forward(
        params, dense_embeddings_boundary, dense_embeddings_box,
        high_frequency, sparse_embeddings_box, out_channels=out_channels)

    jax.block_until_ready((dense_embeddings, sparse_embeddings))
    assert dense_embeddings.shape == (N, out_channels, H, W)
    assert sparse_embeddings.shape == sparse_embeddings_box.shape
    print("KERNEL_OK")
</pallas_src>

<mosaic_0001>
module attributes {stable_mosaic.version = 11 : i64} {
  func.func @me_fused_kernel(%arg0: i32, %arg1: memref<1x256x32xf32, #tpu.memory_space<vmem>>, %arg2: memref<1x256x32xf32, #tpu.memory_space<vmem>>, %arg3: memref<1x256x32xf32, #tpu.memory_space<vmem>>, %arg4: memref<64x32xbf16, #tpu.memory_space<vmem>>, %arg5: memref<1x32xf32, #tpu.memory_space<vmem>>, %arg6: memref<64x32xbf16, #tpu.memory_space<vmem>>, %arg7: memref<1x32xf32, #tpu.memory_space<vmem>>, %arg8: memref<96x32xbf16, #tpu.memory_space<vmem>>, %arg9: memref<1x32xf32, #tpu.memory_space<vmem>>, %arg10: memref<96x32xbf16, #tpu.memory_space<vmem>>, %arg11: memref<1x32xf32, #tpu.memory_space<vmem>>, %arg12: memref<288x32xbf16, #tpu.memory_space<vmem>>, %arg13: memref<1x32xf32, #tpu.memory_space<vmem>>, %arg14: memref<1x256x32xf32, #tpu.memory_space<vmem>>, %arg15: memref<384x32xbf16, #tpu.memory_space<vmem>>) attributes {dimension_semantics = [#tpu.dimension_semantics<parallel>], iteration_bounds = array<i64: 2>, scalar_prefetch = 0 : i64, scratch_operands = 1 : i64, tpu.core_type = #tpu.core_type<tc>, window_params = [{transform_indices = @transform_0, window_bounds = array<i64: 1, 256, 32>}, {transform_indices = @transform_1, window_bounds = array<i64: 1, 256, 32>}, {transform_indices = @transform_2, window_bounds = array<i64: 1, 256, 32>}, {pipeline_mode = #tpu.pipeline_mode<synchronous>, transform_indices = @transform_3, window_bounds = array<i64: 64, 32>}, {pipeline_mode = #tpu.pipeline_mode<synchronous>, transform_indices = @transform_4, window_bounds = array<i64: 1, 32>}, {pipeline_mode = #tpu.pipeline_mode<synchronous>, transform_indices = @transform_5, window_bounds = array<i64: 64, 32>}, {pipeline_mode = #tpu.pipeline_mode<synchronous>, transform_indices = @transform_6, window_bounds = array<i64: 1, 32>}, {pipeline_mode = #tpu.pipeline_mode<synchronous>, transform_indices = @transform_7, window_bounds = array<i64: 96, 32>}, {pipeline_mode = #tpu.pipeline_mode<synchronous>, transform_indices = @transform_8, window_bounds = array<i64: 1, 32>}, {pipeline_mode = #tpu.pipeline_mode<synchronous>, transform_indices = @transform_9, window_bounds = array<i64: 96, 32>}, {pipeline_mode = #tpu.pipeline_mode<synchronous>, transform_indices = @transform_10, window_bounds = array<i64: 1, 32>}, {pipeline_mode = #tpu.pipeline_mode<synchronous>, transform_indices = @transform_11, window_bounds = array<i64: 288, 32>}, {pipeline_mode = #tpu.pipeline_mode<synchronous>, transform_indices = @transform_12, window_bounds = array<i64: 1, 32>}, {transform_indices = @transform_13, window_bounds = array<i64: 1, 256, 32>}]} {
    %cst = arith.constant 0.000000e+00 : bf16
    %0 = vector.broadcast %cst : bf16 to vector<384x32xbf16>
    %c0 = arith.constant 0 : index
    %c0_0 = arith.constant 0 : index
    %1 = vector.load %arg15[%c0, %c0_0] : memref<384x32xbf16, #tpu.memory_space<vmem>>, vector<384x32xbf16>
    tpu.vector_store %arg15[%c0, %c0_0], %0 {strides = array<i32>} : memref<384x32xbf16, #tpu.memory_space<vmem>>, vector<384x32xbf16>,
    %2 = tpu.iota {dimensions = array<i32: 0>} : vector<256x1xi32>
    %c16_i32 = arith.constant 16 : i32
    %c0_i32 = arith.constant 0 : i32
    %3 = arith.cmpi eq, %c16_i32, %c0_i32 : i32
    %c1_i32 = arith.constant 1 : i32
    %4 = arith.select %3, %c1_i32, %c16_i32 : i32
    %5 = vector.broadcast %4 : i32 to vector<256x1xi32>
    %6 = arith.remsi %2, %5 : vector<256x1xi32>
    %c0_i32_1 = arith.constant 0 : i32
    %7 = vector.broadcast %c0_i32_1 : i32 to vector<256x1xi32>
    %8 = arith.cmpi ne, %6, %7 : vector<256x1xi32>
    %c0_i32_2 = arith.constant 0 : i32
    %9 = vector.broadcast %c0_i32_2 : i32 to vector<256x1xi32>
    %10 = arith.cmpi slt, %6, %9 : vector<256x1xi32>
    %c0_i32_3 = arith.constant 0 : i32
    %11 = arith.cmpi slt, %4, %c0_i32_3 : i32
    %12 = vector.broadcast %11 : i1 to vector<256x1xi1>
    %13 = vector.broadcast %12 : vector<256x1xi1> to vector<256x1xi1>
    %14 = arith.xori %10, %13 : vector<256x1xi1>
    %15 = arith.andi %14, %8 : vector<256x1xi1>
    %16 = vector.broadcast %4 : i32 to vector<256x1xi32>
    %17 = arith.addi %6, %16 : vector<256x1xi32>
    %18 = arith.select %15, %17, %6 : vector<256x1xi1>, vector<256x1xi32>
    %c0_4 = arith.constant 0 : index
    %c0_5 = arith.constant 0 : index
    %c0_6 = arith.constant 0 : index
    %19 = vector.load %arg1[%c0_4, %c0_5, %c0_6] : memref<1x256x32xf32, #tpu.memory_space<vmem>>, vector<1x256x32xf32>
    %20 = vector.shape_cast %19 : vector<1x256x32xf32> to vector<256x32xf32>
    %c0_7 = arith.constant 0 : index
    %c0_8 = arith.constant 0 : index
    %c0_9 = arith.constant 0 : index
    %21 = vector.load %arg2[%c0_7, %c0_8, %c0_9] : memref<1x256x32xf32, #tpu.memory_space<vmem>>, vector<1x256x32xf32>
    %22 = vector.shape_cast %21 : vector<1x256x32xf32> to vector<256x32xf32>
    %23 = tpu.concatenate %20, %22 in 1 : vector<256x32xf32>, vector<256x32xf32> -> vector<256x64xf32>
    %24 = arith.truncf %23 : vector<256x64xf32> to vector<256x64xbf16>
    %c0_10 = arith.constant 0 : index
    %c0_11 = arith.constant 0 : index
    %25 = vector.load %arg4[%c0_10, %c0_11] : memref<64x32xbf16, #tpu.memory_space<vmem>>, vector<64x32xbf16>
    %cst_12 = arith.constant dense<0.000000e+00> : vector<256x32xf32>
    %26 = tpu.matmul %24, %25, %cst_12 {dimension_numbers = #tpu.dot_dimension_numbers<[1], [0], [0], [1], [0, 0, 1, 1], [], []>} : vector<256x64xbf16>, vector<64x32xbf16>, vector<256x32xf32> -> vector<256x32xf32>
    %c0_13 = arith.constant 0 : index
    %c0_14 = arith.constant 0 : index
    %27 = vector.load %arg5[%c0_13, %c0_14] : memref<1x32xf32, #tpu.memory_space<vmem>>, vector<1x32xf32>
    %28 = vector.broadcast %27 : vector<1x32xf32> to vector<256x32xf32>
    %29 = arith.addf %26, %28 : vector<256x32xf32>
    %c0_15 = arith.constant 0 : index
    %c0_16 = arith.constant 0 : index
    %30 = vector.load %arg6[%c0_15, %c0_16] : memref<64x32xbf16, #tpu.memory_space<vmem>>, vector<64x32xbf16>
    %cst_17 = arith.constant dense<0.000000e+00> : vector<256x32xf32>
    %31 = tpu.matmul %24, %30, %cst_17 {dimension_numbers = #tpu.dot_dimension_numbers<[1], [0], [0], [1], [0, 0, 1, 1], [], []>} : vector<256x64xbf16>, vector<64x32xbf16>, vector<256x32xf32> -> vector<256x32xf32>
    %c0_18 = arith.constant 0 : index
    %c0_19 = arith.constant 0 : index
    %32 = vector.load %arg7[%c0_18, %c0_19] : memref<1x32xf32, #tpu.memory_space<vmem>>, vector<1x32xf32>
    %33 = vector.broadcast %32 : vector<1x32xf32> to vector<256x32xf32>
    %34 = arith.addf %31, %33 : vector<256x32xf32>
    %cst_20 = arith.constant 0.000000e+00 : f32
    %35 = vector.broadcast %cst_20 : f32 to vector<256x32xf32>
    %36 = arith.maximumf %34, %35 : vector<256x32xf32>
    %37 = arith.truncf %36 : vector<256x32xf32> to vector<256x32xbf16>
    %c64 = arith.constant 64 : index
    %c0_21 = arith.constant 0 : index
    %38 = vector.load %arg15[%c64, %c0_21] : memref<384x32xbf16, #tpu.memory_space<vmem>>, vector<256x32xbf16>
    tpu.vector_store %arg15[%c64, %c0_21], %37 {strides = array<i32>} : memref<384x32xbf16, #tpu.memory_space<vmem>>, vector<256x32xbf16>,
    %c63 = arith.constant 63 : index
    %c0_22 = arith.constant 0 : index
    %39 = vector.load %arg15[%c63, %c0_22] : memref<384x32xbf16, #tpu.memory_space<vmem>>, vector<256x32xbf16>
    %c1_i32_23 = arith.constant 1 : i32
    %40 = vector.broadcast %c1_i32_23 : i32 to vector<256x1xi32>
    %41 = arith.cmpi sge, %18, %40 : vector<256x1xi32>
    %cst_24 = arith.constant 0.000000e+00 : bf16
    %42 = vector.broadcast %cst_24 : bf16 to vector<256x32xbf16>
    %43 = vector.shape_cast %41 : vector<256x1xi1> to vector<256x1xi1>
    %44 = vector.broadcast %43 : vector<256x1xi1> to vector<256x32xi1>
    %45 = arith.select %44, %39, %42 : vector<256x32xi1>, vector<256x32xbf16>
    %c64_25 = arith.constant 64 : index
    %c0_26 = arith.constant 0 : index
    %46 = vector.load %arg15[%c64_25, %c0_26] : memref<384x32xbf16, #tpu.memory_space<vmem>>, vector<256x32xbf16>
    %c65 = arith.constant 65 : index
    %c0_27 = arith.constant 0 : index
    %47 = vector.load %arg15[%c65, %c0_27] : memref<384x32xbf16, #tpu.memory_space<vmem>>, vector<256x32xbf16>
    %c15_i32 = arith.constant 15 : i32
    %48 = vector.broadcast %c15_i32 : i32 to vector<256x1xi32>
    %49 = arith.cmpi slt, %18, %48 : vector<256x1xi32>
    %cst_28 = arith.constant 0.000000e+00 : bf16
    %50 = vector.broadcast %cst_28 : bf16 to vector<256x32xbf16>
    %51 = vector.shape_cast %49 : vector<256x1xi1> to vector<256x1xi1>
    %52 = vector.broadcast %51 : vector<256x1xi1> to vector<256x32xi1>
    %53 = arith.select %52, %47, %50 : vector<256x32xi1>, vector<256x32xbf16>
    %54 = tpu.concatenate %45, %46, %53 in 1 : vector<256x32xbf16>, vector<256x32xbf16>, vector<256x32xbf16> -> vector<256x96xbf16>
    %c0_29 = arith.constant 0 : index
    %c0_30 = arith.constant 0 : index
    %55 = vector.load %arg8[%c0_29, %c0_30] : memref<96x32xbf16, #tpu.memory_space<vmem>>, vector<96x32xbf16>
    %cst_31 = arith.constant dense<0.000000e+00> : vector<256x32xf32>
    %56 = tpu.matmul %54, %55, %cst_31 {dimension_numbers = #tpu.dot_dimension_numbers<[1], [0], [0], [1], [0, 0, 1, 1], [], []>} : vector<256x96xbf16>, vector<96x32xbf16>, vector<256x32xf32> -> vector<256x32xf32>
    %c0_32 = arith.constant 0 : index
    %c0_33 = arith.constant 0 : index
    %57 = vector.load %arg9[%c0_32, %c0_33] : memref<1x32xf32, #tpu.memory_space<vmem>>, vector<1x32xf32>
    %58 = vector.broadcast %57 : vector<1x32xf32> to vector<256x32xf32>
    %59 = arith.addf %56, %58 : vector<256x32xf32>
    %cst_34 = arith.constant 0.000000e+00 : f32
    %60 = vector.broadcast %cst_34 : f32 to vector<256x32xf32>
    %61 = arith.maximumf %59, %60 : vector<256x32xf32>
    %62 = arith.truncf %61 : vector<256x32xf32> to vector<256x32xbf16>
    %c64_35 = arith.constant 64 : index
    %c0_36 = arith.constant 0 : index
    %63 = vector.load %arg15[%c64_35, %c0_36] : memref<384x32xbf16, #tpu.memory_space<vmem>>, vector<256x32xbf16>
    tpu.vector_store %arg15[%c64_35, %c0_36], %62 {strides = array<i32>} : memref<384x32xbf16, #tpu.memory_space<vmem>>, vector<256x32xbf16>,
    %c48 = arith.constant 48 : index
    %c0_37 = arith.constant 0 : index
    %64 = vector.load %arg15[%c48, %c0_37] : memref<384x32xbf16, #tpu.memory_space<vmem>>, vector<256x32xbf16>
    %c64_38 = arith.constant 64 : index
    %c0_39 = arith.constant 0 : index
    %65 = vector.load %arg15[%c64_38, %c0_39] : memref<384x32xbf16, #tpu.memory_space<vmem>>, vector<256x32xbf16>
    %c80 = arith.constant 80 : index
    %c0_40 = arith.constant 0 : index
    %66 = vector.load %arg15[%c80, %c0_40] : memref<384x32xbf16, #tpu.memory_space<vmem>>, vector<256x32xbf16>
    %67 = tpu.concatenate %64, %65, %66 in 1 : vector<256x32xbf16>, vector<256x32xbf16>, vector<256x32xbf16> -> vector<256x96xbf16>
    %c0_41 = arith.constant 0 : index
    %c0_42 = arith.constant 0 : index
    %68 = vector.load %arg10[%c0_41, %c0_42] : memref<96x32xbf16, #tpu.memory_space<vmem>>, vector<96x32xbf16>
    %cst_43 = arith.constant dense<0.000000e+00> : vector<256x32xf32>
    %69 = tpu.matmul %67, %68, %cst_43 {dimension_numbers = #tpu.dot_dimension_numbers<[1], [0], [0], [1], [0, 0, 1, 1], [], []>} : vector<256x96xbf16>, vector<96x32xbf16>, vector<256x32xf32> -> vector<256x32xf32>
    %c0_44 = arith.constant 0 : index
    %c0_45 = arith.constant 0 : index
    %70 = vector.load %arg11[%c0_44, %c0_45] : memref<1x32xf32, #tpu.memory_space<vmem>>, vector<1x32xf32>
    %71 = vector.broadcast %70 : vector<1x32xf32> to vector<256x32xf32>
    %72 = arith.addf %69, %71 : vector<256x32xf32>
    %cst_46 = arith.constant 0.000000e+00 : f32
    %73 = vector.broadcast %cst_46 : f32 to vector<256x32xf32>
    %74 = arith.maximumf %72, %73 : vector<256x32xf32>
    %75 = arith.truncf %74 : vector<256x32xf32> to vector<256x32xbf16>
    %c64_47 = arith.constant 64 : index
    %c0_48 = arith.constant 0 : index
    %76 = vector.load %arg15[%c64_47, %c0_48] : memref<384x32xbf16, #tpu.memory_space<vmem>>, vector<256x32xbf16>
    tpu.vector_store %arg15[%c64_47, %c0_48], %75 {strides = array<i32>} : memref<384x32xbf16, #tpu.memory_space<vmem>>, vector<256x32xbf16>,
    %c13 = arith.constant 13 : index
    %c0_49 = arith.constant 0 : index
    %77 = vector.load %arg15[%c13, %c0_49] : memref<384x32xbf16, #tpu.memory_space<vmem>>, vector<256x32xbf16>
    %c3_i32 = arith.constant 3 : i32
    %78 = vector.broadcast %c3_i32 : i32 to vector<256x1xi32>
    %79 = arith.cmpi sge, %18, %78 : vector<256x1xi32>
    %cst_50 = arith.constant 0.000000e+00 : bf16
    %80 = vector.broadcast %cst_50 : bf16 to vector<256x32xbf16>
    %81 = vector.shape_cast %79 : vector<256x1xi1> to vector<256x1xi1>
    %82 = vector.broadcast %81 : vector<256x1xi1> to vector<256x32xi1>
    %83 = arith.select %82, %77, %80 : vector<256x32xi1>, vector<256x32xbf16>
    %c16 = arith.constant 16 : index
    %c0_51 = arith.constant 0 : index
    %84 = vector.load %arg15[%c16, %c0_51] : memref<384x32xbf16, #tpu.memory_space<vmem>>, vector<256x32xbf16>
    %c19 = arith.constant 19 : index
    %c0_52 = arith.constant 0 : index
    %85 = vector.load %arg15[%c19, %c0_52] : memref<384x32xbf16, #tpu.memory_space<vmem>>, vector<256x32xbf16>
    %c13_i32 = arith.constant 13 : i32
    %86 = vector.broadcast %c13_i32 : i32 to vector<256x1xi32>
    %87 = arith.cmpi slt, %18, %86 : vector<256x1xi32>
    %cst_53 = arith.constant 0.000000e+00 : bf16
    %88 = vector.broadcast %cst_53 : bf16 to vector<256x32xbf16>
    %89 = vector.shape_cast %87 : vector<256x1xi1> to vector<256x1xi1>
    %90 = vector.broadcast %89 : vector<256x1xi1> to vector<256x32xi1>
    %91 = arith.select %90, %85, %88 : vector<256x32xi1>, vector<256x32xbf16>
    %c61 = arith.constant 61 : index
    %c0_54 = arith.constant 0 : index
    %92 = vector.load %arg15[%c61, %c0_54] : memref<384x32xbf16, #tpu.memory_space<vmem>>, vector<256x32xbf16>
    %c3_i32_55 = arith.constant 3 : i32
    %93 = vector.broadcast %c3_i32_55 : i32 to vector<256x1xi32>
    %94 = arith.cmpi sge, %18, %93 : vector<256x1xi32>
    %cst_56 = arith.constant 0.000000e+00 : bf16
    %95 = vector.broadcast %cst_56 : bf16 to vector<256x32xbf16>
    %96 = vector.shape_cast %94 : vector<256x1xi1> to vector<256x1xi1>
    %97 = vector.broadcast %96 : vector<256x1xi1> to vector<256x32xi1>
    %98 = arith.select %97, %92, %95 : vector<256x32xi1>, vector<256x32xbf16>
    %c64_57 = arith.constant 64 : index
    %c0_58 = arith.constant 0 : index
    %99 = vector.load %arg15[%c64_57, %c0_58] : memref<384x32xbf16, #tpu.memory_space<vmem>>, vector<256x32xbf16>
    %c67 = arith.constant 67 : index
    %c0_59 = arith.constant 0 : index
    %100 = vector.load %arg15[%c67, %c0_59] : memref<384x32xbf16, #tpu.memory_space<vmem>>, vector<256x32xbf16>
    %c13_i32_60 = arith.constant 13 : i32
    %101 = vector.broadcast %c13_i32_60 : i32 to vector<256x1xi32>
    %102 = arith.cmpi slt, %18, %101 : vector<256x1xi32>
    %cst_61 = arith.constant 0.000000e+00 : bf16
    %103 = vector.broadcast %cst_61 : bf16 to vector<256x32xbf16>
    %104 = vector.shape_cast %102 : vector<256x1xi1> to vector<256x1xi1>
    %105 = vector.broadcast %104 : vector<256x1xi1> to vector<256x32xi1>
    %106 = arith.select %105, %100, %103 : vector<256x32xi1>, vector<256x32xbf16>
    %c109 = arith.constant 109 : index
    %c0_62 = arith.constant 0 : index
    %107 = vector.load %arg15[%c109, %c0_62] : memref<384x32xbf16, #tpu.memory_space<vmem>>, vector<256x32xbf16>
    %c3_i32_63 = arith.constant 3 : i32
    %108 = vector.broadcast %c3_i32_63 : i32 to vector<256x1xi32>
    %109 = arith.cmpi sge, %18, %108 : vector<256x1xi32>
    %cst_64 = arith.constant 0.000000e+00 : bf16
    %110 = vector.broadcast %cst_64 : bf16 to vector<256x32xbf16>
    %111 = vector.shape_cast %109 : vector<256x1xi1> to vector<256x1xi1>
    %112 = vector.broadcast %111 : vector<256x1xi1> to vector<256x32xi1>
    %113 = arith.select %112, %107, %110 : vector<256x32xi1>, vector<256x32xbf16>
    %c112 = arith.constant 112 : index
    %c0_65 = arith.constant 0 : index
    %114 = vector.load %arg15[%c112, %c0_65] : memref<384x32xbf16, #tpu.memory_space<vmem>>, vector<256x32xbf16>
    %c115 = arith.constant 115 : index
    %c0_66 = arith.constant 0 : index
    %115 = vector.load %arg15[%c115, %c0_66] : memref<384x32xbf16, #tpu.memory_space<vmem>>, vector<256x32xbf16>
    %c13_i32_67 = arith.constant 13 : i32
    %116 = vector.broadcast %c13_i32_67 : i32 to vector<256x1xi32>
    %117 = arith.cmpi slt, %18, %116 : vector<256x1xi32>
    %cst_68 = arith.constant 0.000000e+00 : bf16
    %118 = vector.broadcast %cst_68 : bf16 to vector<256x32xbf16>
    %119 = vector.shape_cast %117 : vector<256x1xi1> to vector<256x1xi1>
    %120 = vector.broadcast %119 : vector<256x1xi1> to vector<256x32xi1>
    %121 = arith.select %120, %115, %118 : vector<256x32xi1>, vector<256x32xbf16>
    %122 = tpu.concatenate %83, %84, %91, %98, %99, %106, %113, %114, %121 in 1 : vector<256x32xbf16>, vector<256x32xbf16>, vector<256x32xbf16>, vector<256x32xbf16>, vector<256x32xbf16>, vector<256x32xbf16>, vector<256x32xbf16>, vector<256x32xbf16>, vector<256x32xbf16> -> vector<256x288xbf16>
    %c0_69 = arith.constant 0 : index
    %c0_70 = arith.constant 0 : index
    %123 = vector.load %arg12[%c0_69, %c0_70] : memref<288x32xbf16, #tpu.memory_space<vmem>>, vector<288x32xbf16>
    %cst_71 = arith.constant dense<0.000000e+00> : vector<256x32xf32>
    %124 = tpu.matmul %122, %123, %cst_71 {dimension_numbers = #tpu.dot_dimension_numbers<[1], [0], [0], [1], [0, 0, 1, 1], [], []>} : vector<256x288xbf16>, vector<288x32xbf16>, vector<256x32xf32> -> vector<256x32xf32>
    %c0_72 = arith.constant 0 : index
    %c0_73 = arith.constant 0 : index
    %125 = vector.load %arg13[%c0_72, %c0_73] : memref<1x32xf32, #tpu.memory_space<vmem>>, vector<1x32xf32>
    %126 = vector.broadcast %125 : vector<1x32xf32> to vector<256x32xf32>
    %127 = arith.addf %124, %126 : vector<256x32xf32>
    %cst_74 = arith.constant 0.000000e+00 : f32
    %128 = vector.broadcast %cst_74 : f32 to vector<256x32xf32>
    %129 = arith.maximumf %127, %128 : vector<256x32xf32>
    %130 = arith.addf %129, %29 : vector<256x32xf32>
    %131 = arith.truncf %130 : vector<256x32xf32> to vector<256x32xbf16>
    %c0_75 = arith.constant 0 : index
    %c0_76 = arith.constant 0 : index
    %c0_77 = arith.constant 0 : index
    %132 = vector.load %arg3[%c0_75, %c0_76, %c0_77] : memref<1x256x32xf32, #tpu.memory_space<vmem>>, vector<1x256x32xf32>
    %133 = vector.shape_cast %132 : vector<1x256x32xf32> to vector<256x32xf32>
    %134 = arith.truncf %133 : vector<256x32xf32> to vector<256x32xbf16>
    %135 = tpu.concatenate %131, %134 in 1 : vector<256x32xbf16>, vector<256x32xbf16> -> vector<256x64xbf16>
    %c0_78 = arith.constant 0 : index
    %c0_79 = arith.constant 0 : index
    %136 = vector.load %arg4[%c0_78, %c0_79] : memref<64x32xbf16, #tpu.memory_space<vmem>>, vector<64x32xbf16>
    %cst_80 = arith.constant dense<0.000000e+00> : vector<256x32xf32>
    %137 = tpu.matmul %135, %136, %cst_80 {dimension_numbers = #tpu.dot_dimension_numbers<[1], [0], [0], [1], [0, 0, 1, 1], [], []>} : vector<256x64xbf16>, vector<64x32xbf16>, vector<256x32xf32> -> vector<256x32xf32>
    %c0_81 = arith.constant 0 : index
    %c0_82 = arith.constant 0 : index
    %138 = vector.load %arg5[%c0_81, %c0_82] : memref<1x32xf32, #tpu.memory_space<vmem>>, vector<1x32xf32>
    %139 = vector.broadcast %138 : vector<1x32xf32> to vector<256x32xf32>
    %140 = arith.addf %137, %139 : vector<256x32xf32>
    %c0_83 = arith.constant 0 : index
    %c0_84 = arith.constant 0 : index
    %c0_85 = arith.constant 0 : index
    %141 = vector.load %arg14[%c0_83, %c0_84, %c0_85] : memref<1x256x32xf32, #tpu.memory_space<vmem>>, vector<1x256x32xf32>
    %142 = vector.shape_cast %141 : vector<1x256x32xf32> to vector<256x32xf32>
    %143 = vector.shape_cast %140 : vector<256x32xf32> to vector<1x256x32xf32>
    tpu.vector_store %arg14[%c0_83, %c0_84, %c0_85], %143 {strides = array<i32>} : memref<1x256x32xf32, #tpu.memory_space<vmem>>, vector<1x256x32xf32>,
    return
  }
  func.func @transform_0(%arg0: i32) -> (i32, i32, i32) {
    %c0_i32 = arith.constant 0 : i32
    %c0_i32_0 = arith.constant 0 : i32
    %c0_i32_1 = arith.constant 0 : i32
    return %arg0, %c0_i32, %c0_i32_0 : i32, i32, i32
  }
  func.func @transform_1(%arg0: i32) -> (i32, i32, i32) {
    %c0_i32 = arith.constant 0 : i32
    %c0_i32_0 = arith.constant 0 : i32
    %c0_i32_1 = arith.constant 0 : i32
    return %arg0, %c0_i32, %c0_i32_0 : i32, i32, i32
  }
  func.func @transform_2(%arg0: i32) -> (i32, i32, i32) {
    %c0_i32 = arith.constant 0 : i32
    %c0_i32_0 = arith.constant 0 : i32
    %c0_i32_1 = arith.constant 0 : i32
    return %arg0, %c0_i32, %c0_i32_0 : i32, i32, i32
  }
  func.func @transform_3(%arg0: i32) -> (i32, i32) {
    %c0_i32 = arith.constant 0 : i32
    %c0_i32_0 = arith.constant 0 : i32
    %c0_i32_1 = arith.constant 0 : i32
    return %c0_i32, %c0_i32_0 : i32, i32
  }
  func.func @transform_4(%arg0: i32) -> (i32, i32) {
    %c0_i32 = arith.constant 0 : i32
    %c0_i32_0 = arith.constant 0 : i32
    %c0_i32_1 = arith.constant 0 : i32
    return %c0_i32, %c0_i32_0 : i32, i32
  }
  func.func @transform_5(%arg0: i32) -> (i32, i32) {
    %c0_i32 = arith.constant 0 : i32
    %c0_i32_0 = arith.constant 0 : i32
    %c0_i32_1 = arith.constant 0 : i32
    return %c0_i32, %c0_i32_0 : i32, i32
  }
  func.func @transform_6(%arg0: i32) -> (i32, i32) {
    %c0_i32 = arith.constant 0 : i32
    %c0_i32_0 = arith.constant 0 : i32
    %c0_i32_1 = arith.constant 0 : i32
    return %c0_i32, %c0_i32_0 : i32, i32
  }
  func.func @transform_7(%arg0: i32) -> (i32, i32) {
    %c0_i32 = arith.constant 0 : i32
    %c0_i32_0 = arith.constant 0 : i32
    %c0_i32_1 = arith.constant 0 : i32
    return %c0_i32, %c0_i32_0 : i32, i32
  }
  func.func @transform_8(%arg0: i32) -> (i32, i32) {
    %c0_i32 = arith.constant 0 : i32
    %c0_i32_0 = arith.constant 0 : i32
    %c0_i32_1 = arith.constant 0 : i32
    return %c0_i32, %c0_i32_0 : i32, i32
  }
  func.func @transform_9(%arg0: i32) -> (i32, i32) {
    %c0_i32 = arith.constant 0 : i32
    %c0_i32_0 = arith.constant 0 : i32
    %c0_i32_1 = arith.constant 0 : i32
    return %c0_i32, %c0_i32_0 : i32, i32
  }
  func.func @transform_10(%arg0: i32) -> (i32, i32) {
    %c0_i32 = arith.constant 0 : i32
    %c0_i32_0 = arith.constant 0 : i32
    %c0_i32_1 = arith.constant 0 : i32
    return %c0_i32, %c0_i32_0 : i32, i32
  }
  func.func @transform_11(%arg0: i32) -> (i32, i32) {
    %c0_i32 = arith.constant 0 : i32
    %c0_i32_0 = arith.constant 0 : i32
    %c0_i32_1 = arith.constant 0 : i32
    return %c0_i32, %c0_i32_0 : i32, i32
  }
  func.func @transform_12(%arg0: i32) -> (i32, i32) {
    %c0_i32 = arith.constant 0 : i32
    %c0_i32_0 = arith.constant 0 : i32
    %c0_i32_1 = arith.constant 0 : i32
    return %c0_i32, %c0_i32_0 : i32, i32
  }
  func.func @transform_13(%arg0: i32) -> (i32, i32, i32) {
    %c0_i32 = arith.constant 0 : i32
    %c0_i32_0 = arith.constant 0 : i32
    %c0_i32_1 = arith.constant 0 : i32
    return %arg0, %c0_i32, %c0_i32_0 : i32, i32, i32
  }
}

</mosaic_0001>

<llo_original>
// kernel: me_forward.1
$region0: #{me_forward.1}
  #allocation0 [shape = 'u32[]', space=smem, size = 0x4, offset = 0x4, fixed_abs, tag = 'smem constant byte address 0x4 - core index']
  #allocation1 [shape = 'u32[144,128]{1,0:T(1,128)}', space=vmem, size = 0x12000, scoped, tag = 'internal scratch']
  #allocation2 [shape = 'bf16[384,32]{1,0:T(8,128)(2,1)}', space=vmem, size = 0x18000, scoped, tag = 'scratch operand']
  %s0 = inlined_call_operand.hbm [shape: f32[2,256,32], index: 0, kind: input, shape index: {}]
  %s1 = inlined_call_operand.hbm [shape: f32[2,256,32], index: 1, kind: input, shape index: {}]
  %s2 = inlined_call_operand.hbm [shape: f32[2,256,32], index: 2, kind: input, shape index: {}]
  %s3 = inlined_call_operand.vmem [shape: bf16[64,32], index: 3, kind: input, shape index: {}]
  %s4 = inlined_call_operand.vmem [shape: f32[1,32], index: 4, kind: input, shape index: {}]
  %s5 = inlined_call_operand.vmem [shape: bf16[64,32], index: 5, kind: input, shape index: {}]
  %s6 = inlined_call_operand.vmem [shape: f32[1,32], index: 6, kind: input, shape index: {}]
  %s7 = inlined_call_operand.vmem [shape: bf16[96,32], index: 7, kind: input, shape index: {}]
  %s8 = inlined_call_operand.vmem [shape: f32[1,32], index: 8, kind: input, shape index: {}]
  %s9 = inlined_call_operand.vmem [shape: bf16[96,32], index: 9, kind: input, shape index: {}]
  %s10 = inlined_call_operand.vmem [shape: f32[1,32], index: 10, kind: input, shape index: {}]
  %s11 = inlined_call_operand.vmem [shape: bf16[288,32], index: 11, kind: input, shape index: {}]
  %s12 = inlined_call_operand.vmem [shape: f32[1,32], index: 12, kind: input, shape index: {}]
  %s13 = inlined_call_operand.hbm [shape: f32[2,256,32], index: 13, kind: output, shape index: {}]
  %s14 = sld [smem:[#allocation0]]
  $region97: #{me_forward.1} parent=0
    _
  %s16 = ssub.s32 1, %s14
  %s17 = scalar_select 0, %s16, %s14
  $region1: #{me_forward.1} parent=0
    #allocation3 [shape = 'u8[262144]{0}', space=vmem, size = 0x40000, scoped, tag = 'input window, operand 0']
    #allocation4 [shape = 's32[2]{0}', space=sflag, size = 0x8, scoped, tag = 'scoped memory for me_forward.1']
    #allocation5 [shape = 's32[2]{0}', space=sflag, size = 0x8, scoped, tag = 'scoped memory for me_forward.1']
    #allocation6 [shape = 'u8[262144]{0}', space=vmem, size = 0x40000, scoped, tag = 'input window, operand 1']
    #allocation7 [shape = 's32[2]{0}', space=sflag, size = 0x8, scoped, tag = 'scoped memory for me_forward.1']
    #allocation8 [shape = 'u8[262144]{0}', space=vmem, size = 0x40000, scoped, tag = 'input window, operand 2']
    #allocation9 [shape = 'u8[262144]{0}', space=vmem, size = 0x40000, scoped, tag = 'output window, operand 0']
    %18 = vsyncpa [#allocation4], 0
    %s19 = scalar_lea.sflag [#allocation4], 1
    %20 = vsyncpa %s19, 0
    %21 = vsyncpa [#allocation7], 0
    %s22 = scalar_lea.sflag [#allocation7], 1
    %23 = vsyncpa %s22, 0
    %24 = vsyncpa [#allocation5], 0
    %s25 = scalar_lea.sflag [#allocation5], 1
    %26 = vsyncpa %s25, 0
    loop: start=0, step=1, limit=4
    $region2: #{me_forward.1} parent=1 // loop_pre_header
      _
    $region3: #{me_forward.1} parent=1 // loop_header
      %s28 = sphi 0, %s32
      %p29 = scmp.ge.s32.totalorder %s28, 4
      %s38 = sphi 0, %s40
      %s41 = sphi 0, %s38
      %s42 = sphi 0, %s41
      %s58 = sphi 0, %s42
      %s64 = sphi 0, %s66
      %s67 = sphi 0, %s64
      %s68 = sphi 0, %s67
      %s84 = sphi 0, %s68
      %s90 = sphi 0, %s92
      %s93 = sphi 0, %s90
      %s94 = sphi 0, %s93
      %s110 = sphi 0, %s94
      %s114 = sphi 0, %s114
      %s116 = sphi 0, %s114
      %s117 = sphi 0, %s116
      %s131 = sphi 0, %s117
      %s135 = sphi 0, %s135
      %s137 = sphi 0, %s135
      %s138 = sphi 0, %s137
      %s152 = sphi 0, %s138
      %s156 = sphi 0, %s156
      %s158 = sphi 0, %s156
      %s159 = sphi 0, %s158
      %s173 = sphi 0, %s159
      %s177 = sphi 0, %s177
      %s179 = sphi 0, %s177
      %s180 = sphi 0, %s179
      %s194 = sphi 0, %s180
      %s198 = sphi 0, %s198
      %s200 = sphi 0, %s198
      %s201 = sphi 0, %s200
      %s215 = sphi 0, %s201
      %s219 = sphi 0, %s219
      %s221 = sphi 0, %s219
      %s222 = sphi 0, %s221
      %s236 = sphi 0, %s222
      %s240 = sphi 0, %s240
      %s242 = sphi 0, %s240
      %s243 = sphi 0, %s242
      %s257 = sphi 0, %s243
      %s261 = sphi 0, %s261
      %s263 = sphi 0, %s261
      %s264 = sphi 0, %s263
      %s278 = sphi 0, %s264
      %s282 = sphi 0, %s282
      %s284 = sphi 0, %s282
      %s285 = sphi 0, %s284
      %s299 = sphi 0, %s285
      %s303 = sphi 0, %s303
      %s305 = sphi 0, %s303
      %s306 = sphi 0, %s305
      %s320 = sphi 0, %s306
      %s326 = sphi 0, %s328
      %s329 = sphi 0, %s326
      %s330 = sphi 0, %s329
      %s346 = sphi 0, %s330
    $region4: #{me_forward.1} parent=1 // loop_header_branch
      %31 = sbr.rel (%p29) target = $region8
    $region5: #{me_forward.1} parent=1 // loop_body
      %s33 = ssub.s32 %s28, 1
      %s34 = ssub.s32 %s28, 2
      %s35 = sadd.s32 %s28, 1
      %s36 = ssub.s32 %s28, %s35
      %p37 = scmp.eq.s32.totalorder %s36, 0
      %s39 = sadd.s32 %s38, 1
      %s40 = scalar_select %p37, %s38, %s39
      %p43 = pneg %p37
      %p44 = scmp.eq.s32.totalorder %s28, 1
      %p45 = por %p43, %p44
      %p46 = scmp.ne.s32.totalorder %s38, %s41
      %p47 = scmp.eq.s32.totalorder %s28, 0
      %p48 = por %p46, %p47
      %p49 = scmp.ne.s32.totalorder %s38, %s41
      %p50 = scmp.eq.s32.totalorder %s33, 1
      %p51 = por %p49, %p50
      %p52 = scmp.ne.s32.totalorder %s41, %s42
      %p53 = scmp.eq.s32.totalorder %s33, 0
      %p54 = por %p52, %p53
      %p55 = scmp.ne.s32.totalorder %s41, %s42
      %p56 = scmp.eq.s32.totalorder %s34, 1
      %p57 = por %p55, %p56
      %p59 = scmp.ne.s32.totalorder %s42, %s58
      %p60 = scmp.eq.s32.totalorder %s34, 0
      %p61 = por %p59, %p60
      %s62 = ssub.s32 %s28, %s35
      %p63 = scmp.eq.s32.totalorder %s62, 0
      %s65 = sadd.s32 %s64, 1
      %s66 = scalar_select %p63, %s64, %s65
      %p69 = pneg %p63
      %p70 = scmp.eq.s32.totalorder %s28, 1
      %p71 = por %p69, %p70
      %p72 = scmp.ne.s32.totalorder %s64, %s67
      %p73 = scmp.eq.s32.totalorder %s28, 0
      %p74 = por %p72, %p73
      %p75 = scmp.ne.s32.totalorder %s64, %s67
      %p76 = scmp.eq.s32.totalorder %s33, 1
      %p77 = por %p75, %p76
      %p78 = scmp.ne.s32.totalorder %s67, %s68
      %p79 = scmp.eq.s32.totalorder %s33, 0
      %p80 = por %p78, %p79
      %p81 = scmp.ne.s32.totalorder %s67, %s68
      %p82 = scmp.eq.s32.totalorder %s34, 1
      %p83 = por %p81, %p82
      %p85 = scmp.ne.s32.totalorder %s68, %s84
      %p86 = scmp.eq.s32.totalorder %s34, 0
      %p87 = por %p85, %p86
      %s88 = ssub.s32 %s28, %s35
      %p89 = scmp.eq.s32.totalorder %s88, 0
      %s91 = sadd.s32 %s90, 1
      %s92 = scalar_select %p89, %s90, %s91
      %p95 = pneg %p89
      %p96 = scmp.eq.s32.totalorder %s28, 1
      %p97 = por %p95, %p96
      %p98 = scmp.ne.s32.totalorder %s90, %s93
      %p99 = scmp.eq.s32.totalorder %s28, 0
      %p100 = por %p98, %p99
      %p101 = scmp.ne.s32.totalorder %s90, %s93
      %p102 = scmp.eq.s32.totalorder %s33, 1
      %p103 = por %p101, %p102
      %p104 = scmp.ne.s32.totalorder %s93, %s94
      %p105 = scmp.eq.s32.totalorder %s33, 0
      %p106 = por %p104, %p105
      %p107 = scmp.ne.s32.totalorder %s93, %s94
      %p108 = scmp.eq.s32.totalorder %s34, 1
      %p109 = por %p107, %p108
      %p111 = scmp.ne.s32.totalorder %s94, %s110
      %p112 = scmp.eq.s32.totalorder %s34, 0
      %p113 = por %p111, %p112
      %s115 = sadd.s32 %s114, 1
      %p118 = scmp.eq.s32.totalorder %s28, 1
      %p119 = scmp.ne.s32.totalorder %s114, %s116
      %p120 = scmp.eq.s32.totalorder %s28, 0
      %p121 = por %p119, %p120
      %p122 = scmp.ne.s32.totalorder %s114, %s116
      %p123 = scmp.eq.s32.totalorder %s33, 1
      %p124 = por %p122, %p123
      %p125 = scmp.ne.s32.totalorder %s116, %s117
      %p126 = scmp.eq.s32.totalorder %s33, 0
      %p127 = por %p125, %p126
      %p128 = scmp.ne.s32.totalorder %s116, %s117
      %p129 = scmp.eq.s32.totalorder %s34, 1
      %p130 = por %p128, %p129
      %p132 = scmp.ne.s32.totalorder %s117, %s131
      %p133 = scmp.eq.s32.totalorder %s34, 0
      %p134 = por %p132, %p133
      %s136 = sadd.s32 %s135, 1
      %p139 = scmp.eq.s32.totalorder %s28, 1
      %p140 = scmp.ne.s32.totalorder %s135, %s137
      %p141 = scmp.eq.s32.totalorder %s28, 0
      %p142 = por %p140, %p141
      %p143 = scmp.ne.s32.totalorder %s135, %s137
      %p144 = scmp.eq.s32.totalorder %s33, 1
      %p145 = por %p143, %p144
      %p146 = scmp.ne.s32.totalorder %s137, %s138
      %p147 = scmp.eq.s32.totalorder %s33, 0
      %p148 = por %p146, %p147
      %p149 = scmp.ne.s32.totalorder %s137, %s138
      %p150 = scmp.eq.s32.totalorder %s34, 1
      %p151 = por %p149, %p150
      %p153 = scmp.ne.s32.totalorder %s138, %s152
      %p154 = scmp.eq.s32.totalorder %s34, 0
      %p155 = por %p153, %p154
      %s157 = sadd.s32 %s156, 1
      %p160 = scmp.eq.s32.totalorder %s28, 1
      %p161 = scmp.ne.s32.totalorder %s156, %s158
      %p162 = scmp.eq.s32.totalorder %s28, 0
      %p163 = por %p161, %p162
      %p164 = scmp.ne.s32.totalorder %s156, %s158
      %p165 = scmp.eq.s32.totalorder %s33, 1
      %p166 = por %p164, %p165
      %p167 = scmp.ne.s32.totalorder %s158, %s159
      %p168 = scmp.eq.s32.totalorder %s33, 0
      %p169 = por %p167, %p168
      %p170 = scmp.ne.s32.totalorder %s158, %s159
      %p171 = scmp.eq.s32.totalorder %s34, 1
      %p172 = por %p170, %p171
      %p174 = scmp.ne.s32.totalorder %s159, %s173
      %p175 = scmp.eq.s32.totalorder %s34, 0
      %p176 = por %p174, %p175
      %s178 = sadd.s32 %s177, 1
      %p181 = scmp.eq.s32.totalorder %s28, 1
      %p182 = scmp.ne.s32.totalorder %s177, %s179
      %p183 = scmp.eq.s32.totalorder %s28, 0
      %p184 = por %p182, %p183
      %p185 = scmp.ne.s32.totalorder %s177, %s179
      %p186 = scmp.eq.s32.totalorder %s33, 1
      %p187 = por %p185, %p186
      %p188 = scmp.ne.s32.totalorder %s179, %s180
      %p189 = scmp.eq.s32.totalorder %s33, 0
      %p190 = por %p188, %p189
      %p191 = scmp.ne.s32.totalorder %s179, %s180
      %p192 = scmp.eq.s32.totalorder %s34, 1
      %p193 = por %p191, %p192
      %p195 = scmp.ne.s32.totalorder %s180, %s194
      %p196 = scmp.eq.s32.totalorder %s34, 0
      %p197 = por %p195, %p196
      %s199 = sadd.s32 %s198, 1
      %p202 = scmp.eq.s32.totalorder %s28, 1
      %p203 = scmp.ne.s32.totalorder %s198, %s200
      %p204 = scmp.eq.s32.totalorder %s28, 0
      %p205 = por %p203, %p204
      %p206 = scmp.ne.s32.totalorder %s198, %s200
      %p207 = scmp.eq.s32.totalorder %s33, 1
      %p208 = por %p206, %p207
      %p209 = scmp.ne.s32.totalorder %s200, %s201
      %p210 = scmp.eq.s32.totalorder %s33, 0
      %p211 = por %p209, %p210
      %p212 = scmp.ne.s32.totalorder %s200, %s201
      %p213 = scmp.eq.s32.totalorder %s34, 1
      %p214 = por %p212, %p213
      %p216 = scmp.ne.s32.totalorder %s201, %s215
      %p217 = scmp.eq.s32.totalorder %s34, 0
      %p218 = por %p216, %p217
      %s220 = sadd.s32 %s219, 1
      %p223 = scmp.eq.s32.totalorder %s28, 1
      %p224 = scmp.ne.s32.totalorder %s219, %s221
      %p225 = scmp.eq.s32.totalorder %s28, 0
      %p226 = por %p224, %p225
      %p227 = scmp.ne.s32.totalorder %s219, %s221
      %p228 = scmp.eq.s32.totalorder %s33, 1
      %p229 = por %p227, %p228
      %p230 = scmp.ne.s32.totalorder %s221, %s222
      %p231 = scmp.eq.s32.totalorder %s33, 0
      %p232 = por %p230, %p231
      %p233 = scmp.ne.s32.totalorder %s221, %s222
      %p234 = scmp.eq.s32.totalorder %s34, 1
      %p235 = por %p233, %p234
      %p237 = scmp.ne.s32.totalorder %s222, %s236
      %p238 = scmp.eq.s32.totalorder %s34, 0
      %p239 = por %p237, %p238
      %s241 = sadd.s32 %s240, 1
      %p244 = scmp.eq.s32.totalorder %s28, 1
      %p245 = scmp.ne.s32.totalorder %s240, %s242
      %p246 = scmp.eq.s32.totalorder %s28, 0
      %p247 = por %p245, %p246
      %p248 = scmp.ne.s32.totalorder %s240, %s242
      %p249 = scmp.eq.s32.totalorder %s33, 1
      %p250 = por %p248, %p249
      %p251 = scmp.ne.s32.totalorder %s242, %s243
      %p252 = scmp.eq.s32.totalorder %s33, 0
      %p253 = por %p251, %p252
      %p254 = scmp.ne.s32.totalorder %s242, %s243
      %p255 = scmp.eq.s32.totalorder %s34, 1
      %p256 = por %p254, %p255
      %p258 = scmp.ne.s32.totalorder %s243, %s257
      %p259 = scmp.eq.s32.totalorder %s34, 0
      %p260 = por %p258, %p259
      %s262 = sadd.s32 %s261, 1
      %p265 = scmp.eq.s32.totalorder %s28, 1
      %p266 = scmp.ne.s32.totalorder %s261, %s263
      %p267 = scmp.eq.s32.totalorder %s28, 0
      %p268 = por %p266, %p267
      %p269 = scmp.ne.s32.totalorder %s261, %s263
      %p270 = scmp.eq.s32.totalorder %s33, 1
      %p271 = por %p269, %p270
      %p272 = scmp.ne.s32.totalorder %s263, %s264
      %p273 = scmp.eq.s32.totalorder %s33, 0
      %p274 = por %p272, %p273
      %p275 = scmp.ne.s32.totalorder %s263, %s264
      %p276 = scmp.eq.s32.totalorder %s34, 1
      %p277 = por %p275, %p276
      %p279 = scmp.ne.s32.totalorder %s264, %s278
      %p280 = scmp.eq.s32.totalorder %s34, 0
      %p281 = por %p279, %p280
      %s283 = sadd.s32 %s282, 1
      %p286 = scmp.eq.s32.totalorder %s28, 1
      %p287 = scmp.ne.s32.totalorder %s282, %s284
      %p288 = scmp.eq.s32.totalorder %s28, 0
      %p289 = por %p287, %p288
      %p290 = scmp.ne.s32.totalorder %s282, %s284
      %p291 = scmp.eq.s32.totalorder %s33, 1
      %p292 = por %p290, %p291
      %p293 = scmp.ne.s32.totalorder %s284, %s285
      %p294 = scmp.eq.s32.totalorder %s33, 0
      %p295 = por %p293, %p294
      %p296 = scmp.ne.s32.totalorder %s284, %s285
      %p297 = scmp.eq.s32.totalorder %s34, 1
      %p298 = por %p296, %p297
      %p300 = scmp.ne.s32.totalorder %s285, %s299
      %p301 = scmp.eq.s32.totalorder %s34, 0
      %p302 = por %p300, %p301
      %s304 = sadd.s32 %s303, 1
      %p307 = scmp.eq.s32.totalorder %s28, 1
      %p308 = scmp.ne.s32.totalorder %s303, %s305
      %p309 = scmp.eq.s32.totalorder %s28, 0
      %p310 = por %p308, %p309
      %p311 = scmp.ne.s32.totalorder %s303, %s305
      %p312 = scmp.eq.s32.totalorder %s33, 1
      %p313 = por %p311, %p312
      %p314 = scmp.ne.s32.totalorder %s305, %s306
      %p315 = scmp.eq.s32.totalorder %s33, 0
      %p316 = por %p314, %p315
      %p317 = scmp.ne.s32.totalorder %s305, %s306
      %p318 = scmp.eq.s32.totalorder %s34, 1
      %p319 = por %p317, %p318
      %p321 = scmp.ne.s32.totalorder %s306, %s320
      %p322 = scmp.eq.s32.totalorder %s34, 0
      %p323 = por %p321, %p322
      %s324 = ssub.s32 %s28, %s35
      %p325 = scmp.eq.s32.totalorder %s324, 0
      %s327 = sadd.s32 %s326, 1
      %s328 = scalar_select %p325, %s326, %s327
      %p331 = pneg %p325
      %p332 = scmp.eq.s32.totalorder %s28, 1
      %p333 = por %p331, %p332
      %p334 = scmp.ne.s32.totalorder %s326, %s329
      %p335 = scmp.eq.s32.totalorder %s28, 0
      %p336 = por %p334, %p335
      %p337 = scmp.ne.s32.totalorder %s326, %s329
      %p338 = scmp.eq.s32.totalorder %s33, 1
      %p339 = por %p337, %p338
      %p340 = scmp.ne.s32.totalorder %s329, %s330
      %p341 = scmp.eq.s32.totalorder %s33, 0
      %p342 = por %p340, %p341
      %p343 = scmp.ne.s32.totalorder %s329, %s330
      %p344 = scmp.eq.s32.totalorder %s34, 1
      %p345 = por %p343, %p344
      %p347 = scmp.ne.s32.totalorder %s330, %s346
      %p348 = scmp.eq.s32.totalorder %s34, 0
      %p349 = por %p347, %p348
      %p350 = scmp.le.s32.totalorder 1, %s28
      %p351 = scmp.lt.s32.totalorder %s28, 3
      %p352 = pnand %p350, %p351
      %p353 = pneg %p352
      // Predicated region
      $region9: #{me_forward.1} parent=5 // pred_check
        _
      $region10: #{me_forward.1} parent=5 // pred_check_branch
        %355 = sbr.rel (%p352) target = $region12
      $region11: #{me_forward.1} parent=5 // pred_region
        %s356 = ssub.s32 %s28, 1
        // Predicated region
        $region13: #{me_forward.1} parent=11 // pred_check
          %p357 = pneg %p127
        $region14: #{me_forward.1} parent=11 // pred_check_branch
          %359 = sbr.rel (%p357) target = $region16
        $region15: #{me_forward.1} parent=11 // pred_region
          _
        $region16: #{me_forward.1} parent=11 // pred_fallthru
          _
        // Predicated region
        $region17: #{me_forward.1} parent=11 // pred_check
          %p360 = pneg %p148
        $region18: #{me_forward.1} parent=11 // pred_check_branch
          %362 = sbr.rel (%p360) target = $region20
        $region19: #{me_forward.1} parent=11 // pred_region
          _
        $region20: #{me_forward.1} parent=11 // pred_fallthru
          _
        // Predicated region
        $region21: #{me_forward.1} parent=11 // pred_check
          %p363 = pneg %p169
        $region22: #{me_forward.1} parent=11 // pred_check_branch
          %365 = sbr.rel (%p363) target = $region24
        $region23: #{me_forward.1} parent=11 // pred_region
          _
        $region24: #{me_forward.1} parent=11 // pred_fallthru
          _
        // Predicated region
        $region25: #{me_forward.1} parent=11 // pred_check
          %p366 = pneg %p190
        $region26: #{me_forward.1} parent=11 // pred_check_branch
          %368 = sbr.rel (%p366) target = $region28
        $region27: #{me_forward.1} parent=11 // pred_region
          _
        $region28: #{me_forward.1} parent=11 // pred_fallthru
          _
        // Predicated region
        $region29: #{me_forward.1} parent=11 // pred_check
          %p369 = pneg %p211
        $region30: #{me_forward.1} parent=11 // pred_check_branch
          %371 = sbr.rel (%p369) target = $region32
        $region31: #{me_forward.1} parent=11 // pred_region
          _
        $region32: #{me_forward.1} parent=11 // pred_fallthru
          _
        // Predicated region
        $region33: #{me_forward.1} parent=11 // pred_check
          %p372 = pneg %p232
        $region34: #{me_forward.1} parent=11 // pred_check_branch
          %374 = sbr.rel (%p372) target = $region36
        $region35: #{me_forward.1} parent=11 // pred_region
          _
        $region36: #{me_forward.1} parent=11 // pred_fallthru
          _
        // Predicated region
        $region37: #{me_forward.1} parent=11 // pred_check
          %p375 = pneg %p253
        $region38: #{me_forward.1} parent=11 // pred_check_branch
          %377 = sbr.rel (%p375) target = $region40
        $region39: #{me_forward.1} parent=11 // pred_region
          _
        $region40: #{me_forward.1} parent=11 // pred_fallthru
          _
        // Predicated region
        $region41: #{me_forward.1} parent=11 // pred_check
          %p378 = pneg %p274
        $region42: #{me_forward.1} parent=11 // pred_check_branch
          %380 = sbr.rel (%p378) target = $region44
        $region43: #{me_forward.1} parent=11 // pred_region
          _
        $region44: #{me_forward.1} parent=11 // pred_fallthru
          _
        // Predicated region
        $region45: #{me_forward.1} parent=11 // pred_check
          %p381 = pneg %p295
        $region46: #{me_forward.1} parent=11 // pred_check_branch
          %383 = sbr.rel (%p381) target = $region48
        $region47: #{me_forward.1} parent=11 // pred_region
          _
        $region48: #{me_forward.1} parent=11 // pred_fallthru
          _
        // Predicated region
        $region49: #{me_forward.1} parent=11 // pred_check
          %p384 = pneg %p316
        $region50: #{me_forward.1} parent=11 // pred_check_branch
          %386 = sbr.rel (%p384) target = $region52
        $region51: #{me_forward.1} parent=11 // pred_region
          _
        $region52: #{me_forward.1} parent=11 // pred_fallthru
          _
      $region12: #{me_forward.1} parent=5 // pred_fallthru
        _
      %p387 = scmp.lt.s32.totalorder %s28, 2
      // Predicated region
      $region53: #{me_forward.1} parent=5 // pred_check
        %p388 = pneg %p387
      $region54: #{me_forward.1} parent=5 // pred_check_branch
        %390 = sbr.rel (%p388) target = $region56
      $region55: #{me_forward.1} parent=5 // pred_region
        // Predicated region
        $region57: #{me_forward.1} parent=55 // pred_check
          %p391 = pneg %p48
        $region58: #{me_forward.1} parent=55 // pred_check_branch
          %393 = sbr.rel (%p391) target = $region60
        $region59: #{me_forward.1} parent=55 // pred_region
          %s394 = sand.u32 %s38, 1
          %s395 = scalar_lea.sflag [#allocation4], %s394
          %s396 = sand.u32 %s38, 1
          %s397 = smul.addr %s396, 256
          %s398 = scalar_lea.vmem [#allocation3], %s397
          %s400 = ssub.s32 4096, 4096
          %401 = vsyncadd %s395, %s400
          %s402 = smul.addr %s28, 32
          %s403 = smul.addr %s402, 128
          %s404 = scalar_lea.hbm %s0, %s403
          %s405 = sshll.u32 %s398, 4
          %s406 = int_to_ptr.vmem [resolvable:$true] %s405
          %411 = dma.hbm_to_vmem [thread:$0]  %s404, 4096, %s406, %s395, 128, 128, 8
        $region60: #{me_forward.1} parent=55 // pred_fallthru
          _
        // Predicated region
        $region61: #{me_forward.1} parent=55 // pred_check
          %p412 = pneg %p74
        $region62: #{me_forward.1} parent=55 // pred_check_branch
          %414 = sbr.rel (%p412) target = $region64
        $region63: #{me_forward.1} parent=55 // pred_region
          %s415 = sand.u32 %s28, 1
          %s416 = scalar_lea.sflag [#allocation7], %s415
          %s417 = sand.u32 %s64, 1
          %s418 = smul.addr %s417, 256
          %s419 = scalar_lea.vmem [#allocation6], %s418
          %s421 = ssub.s32 4096, 4096
          %422 = vsyncadd %s416, %s421
          %s423 = smul.addr %s28, 32
          %s424 = smul.addr %s423, 128
          %s425 = scalar_lea.hbm %s1, %s424
          %s426 = sshll.u32 %s419, 4
          %s427 = int_to_ptr.vmem [resolvable:$true] %s426
          %432 = dma.hbm_to_vmem [thread:$0]  %s425, 4096, %s427, %s416, 128, 128, 8
        $region64: #{me_forward.1} parent=55 // pred_fallthru
          _
        // Predicated region
        $region65: #{me_forward.1} parent=55 // pred_check
          %p433 = pneg %p100
        $region66: #{me_forward.1} parent=55 // pred_check_branch
          %435 = sbr.rel (%p433) target = $region68
        $region67: #{me_forward.1} parent=55 // pred_region
          %s436 = sand.u32 %s28, 1
          %s437 = scalar_lea.sflag [#allocation7], %s436
          %s438 = sand.u32 %s90, 1
          %s439 = smul.addr %s438, 256
          %s440 = scalar_lea.vmem [#allocation8], %s439
          %s442 = ssub.s32 4096, 4096
          %443 = vsyncadd %s437, %s442
          %s444 = smul.addr %s28, 32
          %s445 = smul.addr %s444, 128
          %s446 = scalar_lea.hbm %s2, %s445
          %s447 = sshll.u32 %s440, 4
          %s448 = int_to_ptr.vmem [resolvable:$true] %s447
          %453 = dma.hbm_to_vmem [thread:$0]  %s446, 4096, %s448, %s437, 128, 128, 8
        $region68: #{me_forward.1} parent=55 // pred_fallthru
          _
      $region56: #{me_forward.1} parent=5 // pred_fallthru
        _
      %p454 = scmp.le.s32.totalorder 1, %s28
      %p455 = scmp.lt.s32.totalorder %s28, 3
      %p456 = pnand %p454, %p455
      %p457 = pneg %p456
      // Predicated region
      $region69: #{me_forward.1} parent=5 // pred_check
        _
      $region70: #{me_forward.1} parent=5 // pred_check_branch
        %459 = sbr.rel (%p456) target = $region72
      $region71: #{me_forward.1} parent=5 // pred_region
        %s460 = ssub.s32 %s28, 1
        %s461 = sand.u32 %s41, 1
        %s462 = scalar_lea.sflag [#allocation4], %s461
        %s463 = sand.u32 %s41, 1
        %s464 = smul.addr %s463, 256
        %s465 = scalar_lea.vmem [#allocation3], %s464
        // Predicated region
        $region73: #{me_forward.1} parent=71 // pred_check
          %p466 = pneg %p54
        $region74: #{me_forward.1} parent=71 // pred_check_branch
          %468 = sbr.rel (%p466) target = $region76
        $region75: #{me_forward.1} parent=71 // pred_region
          %469 = dma.done %s462, 4096
        $region76: #{me_forward.1} parent=71 // pred_fallthru
          _
        %s470 = sand.u32 %s33, 1
        %s471 = scalar_lea.sflag [#allocation7], %s470
        %s472 = sand.u32 %s67, 1
        %s473 = smul.addr %s472, 256
        %s474 = scalar_lea.vmem [#allocation6], %s473
        // Predicated region
        $region77: #{me_forward.1} parent=71 // pred_check
          %p475 = pneg %p80
        $region78: #{me_forward.1} parent=71 // pred_check_branch
          %477 = sbr.rel (%p475) target = $region80
        $region79: #{me_forward.1} parent=71 // pred_region
          %478 = dma.done %s471, 4096
        $region80: #{me_forward.1} parent=71 // pred_fallthru
          _
        %s479 = sand.u32 %s33, 1
        %s480 = scalar_lea.sflag [#allocation7], %s479
        %s481 = sand.u32 %s93, 1
        %s482 = smul.addr %s481, 256
        %s483 = scalar_lea.vmem [#allocation8], %s482
        // Predicated region
        $region81: #{me_forward.1} parent=71 // pred_check
          %p484 = pneg %p106
        $region82: #{me_forward.1} parent=71 // pred_check_branch
          %486 = sbr.rel (%p484) target = $region84
        $region83: #{me_forward.1} parent=71 // pred_region
          %487 = dma.done %s480, 4096
        $region84: #{me_forward.1} parent=71 // pred_fallthru
          _
        %s488 = sand.u32 %s41, 1
        %s489 = scalar_lea.sflag [#allocation4], %s488
        %s490 = sand.u32 %s41, 1
        %s491 = smul.addr %s490, 256
        %s492 = scalar_lea.vmem [#allocation3], %s491
        %p493 = pneg %p54
        %p494 = pneg %p51
        %s495 = sand.u32 %s33, 1
        %s496 = scalar_lea.sflag [#allocation7], %s495
        %s497 = sand.u32 %s67, 1
        %s498 = smul.addr %s497, 256
        %s499 = scalar_lea.vmem [#allocation6], %s498
        %p500 = pneg %p80
        %p501 = pneg %p77
        %s502 = sand.u32 %s33, 1
        %s503 = scalar_lea.sflag [#allocation7], %s502
        %s504 = sand.u32 %s93, 1
        %s505 = smul.addr %s504, 256
        %s506 = scalar_lea.vmem [#allocation8], %s505
        %p507 = pneg %p106
        %p508 = pneg %p103
        %p509 = pneg %p127
        %p510 = pneg %p124
        %p511 = pneg %p148
        %p512 = pneg %p145
        %p513 = pneg %p169
        %p514 = pneg %p166
        %p515 = pneg %p190
        %p516 = pneg %p187
        %p517 = pneg %p211
        %p518 = pneg %p208
        %p519 = pneg %p232
        %p520 = pneg %p229
        %p521 = pneg %p253
        %p522 = pneg %p250
        %p523 = pneg %p274
        %p524 = pneg %p271
        %p525 = pneg %p295
        %p526 = pneg %p292
        %p527 = pneg %p316
        %p528 = pneg %p313
        %p529 = pneg %p342
        %p530 = pneg %p339
        %s531 = sand.u32 %s329, 1
        %s532 = scalar_lea.sflag [#allocation5], %s531
        %s533 = sand.u32 %s329, 1
        %s534 = smul.addr %s533, 256
        %s535 = scalar_lea.vmem [#allocation9], %s534
        %vm539 = vcmask 257024
        %540 = vst.msk [vmem:[#allocation2] sm:$0xf] %vm539, 0
        %541 = vst.msk [vmem:[#allocation2 + $0x4] sm:$0xf] %vm539, 0
        %542 = vst.msk [vmem:[#allocation2 + $0x8] sm:$0xf] %vm539, 0
        %543 = vst.msk [vmem:[#allocation2 + $0xc] sm:$0xf] %vm539, 0
        %544 = vst.msk [vmem:[#allocation2 + $0x10] sm:$0xf] %vm539, 0
        %545 = vst.msk [vmem:[#allocation2 + $0x14] sm:$0xf] %vm539, 0
        %546 = vst.msk [vmem:[#allocation2 + $0x18] sm:$0xf] %vm539, 0
        %547 = vst.msk [vmem:[#allocation2 + $0x1c] sm:$0xf] %vm539, 0
        %548 = vst.msk [vmem:[#allocation2 + $0x20] sm:$0xf] %vm539, 0
        %549 = vst.msk [vmem:[#allocation2 + $0x24] sm:$0xf] %vm539, 0
        %550 = vst.msk [vmem:[#allocation2 + $0x28] sm:$0xf] %vm539, 0
        %551 = vst.msk [vmem:[#allocation2 + $0x2c] sm:$0xf] %vm539, 0
        %552 = vst.msk [vmem:[#allocation2 + $0x30] sm:$0xf] %vm539, 0
        %553 = vst.msk [vmem:[#allocation2 + $0x34] sm:$0xf] %vm539, 0
        %554 = vst.msk [vmem:[#allocation2 + $0x38] sm:$0xf] %vm539, 0
        %555 = vst.msk [vmem:[#allocation2 + $0x3c] sm:$0xf] %vm539, 0
        %556 = vst.msk [vmem:[#allocation2 + $0x40] sm:$0xf] %vm539, 0
        %557 = vst.msk [vmem:[#allocation2 + $0x44] sm:$0xf] %vm539, 0
        %558 = vst.msk [vmem:[#allocation2 + $0x48] sm:$0xf] %vm539, 0
        %559 = vst.msk [vmem:[#allocation2 + $0x4c] sm:$0xf] %vm539, 0
        %560 = vst.msk [vmem:[#allocation2 + $0x50] sm:$0xf] %vm539, 0
        %561 = vst.msk [vmem:[#allocation2 + $0x54] sm:$0xf] %vm539, 0
        %562 = vst.msk [vmem:[#allocation2 + $0x58] sm:$0xf] %vm539, 0
        %563 = vst.msk [vmem:[#allocation2 + $0x5c] sm:$0xf] %vm539, 0
        %564 = vst.msk [vmem:[#allocation2 + $0x60] sm:$0xf] %vm539, 0
        %565 = vst.msk [vmem:[#allocation2 + $0x64] sm:$0xf] %vm539, 0
        %566 = vst.msk [vmem:[#allocation2 + $0x68] sm:$0xf] %vm539, 0
        %567 = vst.msk [vmem:[#allocation2 + $0x6c] sm:$0xf] %vm539, 0
        %568 = vst.msk [vmem:[#allocation2 + $0x70] sm:$0xf] %vm539, 0
        %569 = vst.msk [vmem:[#allocation2 + $0x74] sm:$0xf] %vm539, 0
        %570 = vst.msk [vmem:[#allocation2 + $0x78] sm:$0xf] %vm539, 0
        %571 = vst.msk [vmem:[#allocation2 + $0x7c] sm:$0xf] %vm539, 0
        %572 = vst.msk [vmem:[#allocation2 + $0x80] sm:$0xf] %vm539, 0
        %573 = vst.msk [vmem:[#allocation2 + $0x84] sm:$0xf] %vm539, 0
        %574 = vst.msk [vmem:[#allocation2 + $0x88] sm:$0xf] %vm539, 0
        %575 = vst.msk [vmem:[#allocation2 + $0x8c] sm:$0xf] %vm539, 0
        %576 = vst.msk [vmem:[#allocation2 + $0x90] sm:$0xf] %vm539, 0
        %577 = vst.msk [vmem:[#allocation2 + $0x94] sm:$0xf] %vm539, 0
        %578 = vst.msk [vmem:[#allocation2 + $0x98] sm:$0xf] %vm539, 0
        %579 = vst.msk [vmem:[#allocation2 + $0x9c] sm:$0xf] %vm539, 0
        %580 = vst.msk [vmem:[#allocation2 + $0xa0] sm:$0xf] %vm539, 0
        %581 = vst.msk [vmem:[#allocation2 + $0xa4] sm:$0xf] %vm539, 0
        %582 = vst.msk [vmem:[#allocation2 + $0xa8] sm:$0xf] %vm539, 0
        %583 = vst.msk [vmem:[#allocation2 + $0xac] sm:$0xf] %vm539, 0
        %584 = vst.msk [vmem:[#allocation2 + $0xb0] sm:$0xf] %vm539, 0
        %585 = vst.msk [vmem:[#allocation2 + $0xb4] sm:$0xf] %vm539, 0
        %586 = vst.msk [vmem:[#allocation2 + $0xb8] sm:$0xf] %vm539, 0
        %587 = vst.msk [vmem:[#allocation2 + $0xbc] sm:$0xf] %vm539, 0
        %v588 = vlaneseq
        %v589 = vshrl.u32 %v588, 7
        %v590 = vadd.s32 %v589, 8
        %v591 = vadd.s32 %v589, 16
        %v592 = vadd.s32 %v589, 24
        %v593 = vadd.s32 %v589, 32
        %v594 = vadd.s32 %v589, 40
        %v595 = vadd.s32 %v589, 48
        %v596 = vadd.s32 %v589, 56
        %v597 = vadd.s32 %v589, 64
        %v598 = vadd.s32 %v589, 72
        %v599 = vadd.s32 %v589, 80
        %v600 = vadd.s32 %v589, 88
        %v601 = vadd.s32 %v589, 96
        %v602 = vadd.s32 %v589, 104
        %v603 = vadd.s32 %v589, 112
        %v604 = vadd.s32 %v589, 120
        %v605 = vadd.s32 %v589, 128
        %v606 = vadd.s32 %v589, 136
        %v607 = vadd.s32 %v589, 144
        %v608 = vadd.s32 %v589, 152
        %v609 = vadd.s32 %v589, 160
        %v610 = vadd.s32 %v589, 168
        %v611 = vadd.s32 %v589, 176
        %v612 = vadd.s32 %v589, 184
        %v613 = vadd.s32 %v589, 192
        %v614 = vadd.s32 %v589, 200
        %v615 = vadd.s32 %v589, 208
        %v616 = vadd.s32 %v589, 216
        %v617 = vadd.s32 %v589, 224
        %v618 = vadd.s32 %v589, 232
        %v619 = vadd.s32 %v589, 240
        %v620 = vadd.s32 %v589, 248
        %vm621 = vcmp.lt.s32.totalorder %v589, 0
        %v622 = vsub.s32 0, %v589
        %v623 = vsel %vm621, %v622, %v589
        %v624 = vshrl.u32 %v623, 4
        %v625 = vand.u32 %v623, 15
        %v626 = vsub.s32 0, %v625
        %v627 = vsel %vm621, %v626, %v625
        %vm628 = vcmp.lt.s32.totalorder %v590, 0
        %v629 = vsub.s32 0, %v590
        %v630 = vsel %vm628, %v629, %v590
        %v631 = vshrl.u32 %v630, 4
        %v632 = vand.u32 %v630, 15
        %v633 = vsub.s32 0, %v632
        %v634 = vsel %vm628, %v633, %v632
        %vm635 = vcmp.lt.s32.totalorder %v591, 0
        %v636 = vsub.s32 0, %v591
        %v637 = vsel %vm635, %v636, %v591
        %v638 = vshrl.u32 %v637, 4
        %v639 = vand.u32 %v637, 15
        %v640 = vsub.s32 0, %v639
        %v641 = vsel %vm635, %v640, %v639
        %vm642 = vcmp.lt.s32.totalorder %v592, 0
        %v643 = vsub.s32 0, %v592
        %v644 = vsel %vm642, %v643, %v592
        %v645 = vshrl.u32 %v644, 4
        %v646 = vand.u32 %v644, 15
        %v647 = vsub.s32 0, %v646
        %v648 = vsel %vm642, %v647, %v646
        %vm649 = vcmp.lt.s32.totalorder %v593, 0
        %v650 = vsub.s32 0, %v593
        %v651 = vsel %vm649, %v650, %v593
        %v652 = vshrl.u32 %v651, 4
        %v653 = vand.u32 %v651, 15
        %v654 = vsub.s32 0, %v653
        %v655 = vsel %vm649, %v654, %v653
        %vm656 = vcmp.lt.s32.totalorder %v594, 0
        %v657 = vsub.s32 0, %v594
        %v658 = vsel %vm656, %v657, %v594
        %v659 = vshrl.u32 %v658, 4
        %v660 = vand.u32 %v658, 15
        %v661 = vsub.s32 0, %v660
        %v662 = vsel %vm656, %v661, %v660
        %vm663 = vcmp.lt.s32.totalorder %v595, 0
        %v664 = vsub.s32 0, %v595
        %v665 = vsel %vm663, %v664, %v595
        %v666 = vshrl.u32 %v665, 4
        %v667 = vand.u32 %v665, 15
        %v668 = vsub.s32 0, %v667
        %v669 = vsel %vm663, %v668, %v667
        %vm670 = vcmp.lt.s32.totalorder %v596, 0
        %v671 = vsub.s32 0, %v596
        %v672 = vsel %vm670, %v671, %v596
        %v673 = vshrl.u32 %v672, 4
        %v674 = vand.u32 %v672, 15
        %v675 = vsub.s32 0, %v674
        %v676 = vsel %vm670, %v675, %v674
        %vm677 = vcmp.lt.s32.totalorder %v597, 0
        %v678 = vsub.s32 0, %v597
        %v679 = vsel %vm677, %v678, %v597
        %v680 = vshrl.u32 %v679, 4
        %v681 = vand.u32 %v679, 15
        %v682 = vsub.s32 0, %v681
        %v683 = vsel %vm677, %v682, %v681
        %vm684 = vcmp.lt.s32.totalorder %v598, 0
        %v685 = vsub.s32 0, %v598
        %v686 = vsel %vm684, %v685, %v598
        %v687 = vshrl.u32 %v686, 4
        %v688 = vand.u32 %v686, 15
        %v689 = vsub.s32 0, %v688
        %v690 = vsel %vm684, %v689, %v688
        %vm691 = vcmp.lt.s32.totalorder %v599, 0
        %v692 = vsub.s32 0, %v599
        %v693 = vsel %vm691, %v692, %v599
        %v694 = vshrl.u32 %v693, 4
        %v695 = vand.u32 %v693, 15
        %v696 = vsub.s32 0, %v695
        %v697 = vsel %vm691, %v696, %v695
        %vm698 = vcmp.lt.s32.totalorder %v600, 0
        %v699 = vsub.s32 0, %v600
        %v700 = vsel %vm698, %v699, %v600
        %v701 = vshrl.u32 %v700, 4
        %v702 = vand.u32 %v700, 15
        %v703 = vsub.s32 0, %v702
        %v704 = vsel %vm698, %v703, %v702
        %vm705 = vcmp.lt.s32.totalorder %v601, 0
        %v706 = vsub.s32 0, %v601
        %v707 = vsel %vm705, %v706, %v601
        %v708 = vshrl.u32 %v707, 4
        %v709 = vand.u32 %v707, 15
        %v710 = vsub.s32 0, %v709
        %v711 = vsel %vm705, %v710, %v709
        %vm712 = vcmp.lt.s32.totalorder %v602, 0
        %v713 = vsub.s32 0, %v602
        %v714 = vsel %vm712, %v713, %v602
        %v715 = vshrl.u32 %v714, 4
        %v716 = vand.u32 %v714, 15
        %v717 = vsub.s32 0, %v716
        %v718 = vsel %vm712, %v717, %v716
        %vm719 = vcmp.lt.s32.totalorder %v603, 0
        %v720 = vsub.s32 0, %v603
        %v721 = vsel %vm719, %v720, %v603
        %v722 = vshrl.u32 %v721, 4
        %v723 = vand.u32 %v721, 15
        %v724 = vsub.s32 0, %v723
        %v725 = vsel %vm719, %v724, %v723
        %vm726 = vcmp.lt.s32.totalorder %v604, 0
        %v727 = vsub.s32 0, %v604
        %v728 = vsel %vm726, %v727, %v604
        %v729 = vshrl.u32 %v728, 4
        %v730 = vand.u32 %v728, 15
        %v731 = vsub.s32 0, %v730
        %v732 = vsel %vm726, %v731, %v730
        %vm733 = vcmp.lt.s32.totalorder %v605, 0
        %v734 = vsub.s32 0, %v605
        %v735 = vsel %vm733, %v734, %v605
        %v736 = vshrl.u32 %v735, 4
        %v737 = vand.u32 %v735, 15
        %v738 = vsub.s32 0, %v737
        %v739 = vsel %vm733, %v738, %v737
        %vm740 = vcmp.lt.s32.totalorder %v606, 0
        %v741 = vsub.s32 0, %v606
        %v742 = vsel %vm740, %v741, %v606
        %v743 = vshrl.u32 %v742, 4
        %v744 = vand.u32 %v742, 15
        %v745 = vsub.s32 0, %v744
        %v746 = vsel %vm740, %v745, %v744
        %vm747 = vcmp.lt.s32.totalorder %v607, 0
        %v748 = vsub.s32 0, %v607
        %v749 = vsel %vm747, %v748, %v607
        %v750 = vshrl.u32 %v749, 4
        %v751 = vand.u32 %v749, 15
        %v752 = vsub.s32 0, %v751
        %v753 = vsel %vm747, %v752, %v751
        %vm754 = vcmp.lt.s32.totalorder %v608, 0
        %v755 = vsub.s32 0, %v608
        %v756 = vsel %vm754, %v755, %v608
        %v757 = vshrl.u32 %v756, 4
        %v758 = vand.u32 %v756, 15
        %v759 = vsub.s32 0, %v758
        %v760 = vsel %vm754, %v759, %v758
        %vm761 = vcmp.lt.s32.totalorder %v609, 0
        %v762 = vsub.s32 0, %v609
        %v763 = vsel %vm761, %v762, %v609
        %v764 = vshrl.u32 %v763, 4
        %v765 = vand.u32 %v763, 15
        %v766 = vsub.s32 0, %v765
        %v767 = vsel %vm761, %v766, %v765
        %vm768 = vcmp.lt.s32.totalorder %v610, 0
        %v769 = vsub.s32 0, %v610
        %v770 = vsel %vm768, %v769, %v610
        %v771 = vshrl.u32 %v770, 4
        %v772 = vand.u32 %v770, 15
        %v773 = vsub.s32 0, %v772
        %v774 = vsel %vm768, %v773, %v772
        %vm775 = vcmp.lt.s32.totalorder %v611, 0
        %v776 = vsub.s32 0, %v611
        %v777 = vsel %vm775, %v776, %v611
        %v778 = vshrl.u32 %v777, 4
        %v779 = vand.u32 %v777, 15
        %v780 = vsub.s32 0, %v779
        %v781 = vsel %vm775, %v780, %v779
        %vm782 = vcmp.lt.s32.totalorder %v612, 0
        %v783 = vsub.s32 0, %v612
        %v784 = vsel %vm782, %v783, %v612
        %v785 = vshrl.u32 %v784, 4
        %v786 = vand.u32 %v784, 15
        %v787 = vsub.s32 0, %v786
        %v788 = vsel %vm782, %v787, %v786
        %vm789 = vcmp.lt.s32.totalorder %v613, 0
        %v790 = vsub.s32 0, %v613
        %v791 = vsel %vm789, %v790, %v613
        %v792 = vshrl.u32 %v791, 4
        %v793 = vand.u32 %v791, 15
        %v794 = vsub.s32 0, %v793
        %v795 = vsel %vm789, %v794, %v793
        %vm796 = vcmp.lt.s32.totalorder %v614, 0
        %v797 = vsub.s32 0, %v614
        %v798 = vsel %vm796, %v797, %v614
        %v799 = vshrl.u32 %v798, 4
        %v800 = vand.u32 %v798, 15
        %v801 = vsub.s32 0, %v800
        %v802 = vsel %vm796, %v801, %v800
        %vm803 = vcmp.lt.s32.totalorder %v615, 0
        %v804 = vsub.s32 0, %v615
        %v805 = vsel %vm803, %v804, %v615
        %v806 = vshrl.u32 %v805, 4
        %v807 = vand.u32 %v805, 15
        %v808 = vsub.s32 0, %v807
        %v809 = vsel %vm803, %v808, %v807
        %vm810 = vcmp.lt.s32.totalorder %v616, 0
        %v811 = vsub.s32 0, %v616
        %v812 = vsel %vm810, %v811, %v616
        %v813 = vshrl.u32 %v812, 4
        %v814 = vand.u32 %v812, 15
        %v815 = vsub.s32 0, %v814
        %v816 = vsel %vm810, %v815, %v814
        %vm817 = vcmp.lt.s32.totalorder %v617, 0
        %v818 = vsub.s32 0, %v617
        %v819 = vsel %vm817, %v818, %v617
        %v820 = vshrl.u32 %v819, 4
        %v821 = vand.u32 %v819, 15
        %v822 = vsub.s32 0, %v821
        %v823 = vsel %vm817, %v822, %v821
        %vm824 = vcmp.lt.s32.totalorder %v618, 0
        %v825 = vsub.s32 0, %v618
        %v826 = vsel %vm824, %v825, %v618
        %v827 = vshrl.u32 %v826, 4
        %v828 = vand.u32 %v826, 15
        %v829 = vsub.s32 0, %v828
        %v830 = vsel %vm824, %v829, %v828
        %vm831 = vcmp.lt.s32.totalorder %v619, 0
        %v832 = vsub.s32 0, %v619
        %v833 = vsel %vm831, %v832, %v619
        %v834 = vshrl.u32 %v833, 4
        %v835 = vand.u32 %v833, 15
        %v836 = vsub.s32 0, %v835
        %v837 = vsel %vm831, %v836, %v835
        %vm838 = vcmp.lt.s32.totalorder %v620, 0
        %v839 = vsub.s32 0, %v620
        %v840 = vsel %vm838, %v839, %v620
        %v841 = vshrl.u32 %v840, 4
        %v842 = vand.u32 %v840, 15
        %v843 = vsub.s32 0, %v842
        %v844 = vsel %vm838, %v843, %v842
        %vm845 = vcmp.ne.s32.totalorder %v627, 0
        %vm846 = vcmp.ne.s32.totalorder %v634, 0
        %vm847 = vcmp.ne.s32.totalorder %v641, 0
        %vm848 = vcmp.ne.s32.totalorder %v648, 0
        %vm849 = vcmp.ne.s32.totalorder %v655, 0
        %vm850 = vcmp.ne.s32.totalorder %v662, 0
        %vm851 = vcmp.ne.s32.totalorder %v669, 0
        %vm852 = vcmp.ne.s32.totalorder %v676, 0
        %vm853 = vcmp.ne.s32.totalorder %v683, 0
        %vm854 = vcmp.ne.s32.totalorder %v690, 0
        %vm855 = vcmp.ne.s32.totalorder %v697, 0
        %vm856 = vcmp.ne.s32.totalorder %v704, 0
        %vm857 = vcmp.ne.s32.totalorder %v711, 0
        %vm858 = vcmp.ne.s32.totalorder %v718, 0
        %vm859 = vcmp.ne.s32.totalorder %v725, 0
        %vm860 = vcmp.ne.s32.totalorder %v732, 0
        %vm861 = vcmp.ne.s32.totalorder %v739, 0
        %vm862 = vcmp.ne.s32.totalorder %v746, 0
        %vm863 = vcmp.ne.s32.totalorder %v753, 0
        %vm864 = vcmp.ne.s32.totalorder %v760, 0
        %vm865 = vcmp.ne.s32.totalorder %v767, 0
        %vm866 = vcmp.ne.s32.totalorder %v774, 0
        %vm867 = vcmp.ne.s32.totalorder %v781, 0
        %vm868 = vcmp.ne.s32.totalorder %v788, 0
        %vm869 = vcmp.ne.s32.totalorder %v795, 0
        %vm870 = vcmp.ne.s32.totalorder %v802, 0
        %vm871 = vcmp.ne.s32.totalorder %v809, 0
        %vm872 = vcmp.ne.s32.totalorder %v816, 0
        %vm873 = vcmp.ne.s32.totalorder %v823, 0
        %vm874 = vcmp.ne.s32.totalorder %v830, 0
        %vm875 = vcmp.ne.s32.totalorder %v837, 0
        %vm876 = vcmp.ne.s32.totalorder %v844, 0
        %vm877 = vcmp.lt.s32.totalorder %v627, 0
        %vm878 = vcmp.lt.s32.totalorder %v634, 0
        %vm879 = vcmp.lt.s32.totalorder %v641, 0
        %vm880 = vcmp.lt.s32.totalorder %v648, 0
        %vm881 = vcmp.lt.s32.totalorder %v655, 0
        %vm882 = vcmp.lt.s32.totalorder %v662, 0
        %vm883 = vcmp.lt.s32.totalorder %v669, 0
        %vm884 = vcmp.lt.s32.totalorder %v676, 0
        %vm885 = vcmp.lt.s32.totalorder %v683, 0
        %vm886 = vcmp.lt.s32.totalorder %v690, 0
        %vm887 = vcmp.lt.s32.totalorder %v697, 0
        %vm888 = vcmp.lt.s32.totalorder %v704, 0
        %vm889 = vcmp.lt.s32.totalorder %v711, 0
        %vm890 = vcmp.lt.s32.totalorder %v718, 0
        %vm891 = vcmp.lt.s32.totalorder %v725, 0
        %vm892 = vcmp.lt.s32.totalorder %v732, 0
        %vm893 = vcmp.lt.s32.totalorder %v739, 0
        %vm894 = vcmp.lt.s32.totalorder %v746, 0
        %vm895 = vcmp.lt.s32.totalorder %v753, 0
        %vm896 = vcmp.lt.s32.totalorder %v760, 0
        %vm897 = vcmp.lt.s32.totalorder %v767, 0
        %vm898 = vcmp.lt.s32.totalorder %v774, 0
        %vm899 = vcmp.lt.s32.totalorder %v781, 0
        %vm900 = vcmp.lt.s32.totalorder %v788, 0
        %vm901 = vcmp.lt.s32.totalorder %v795, 0
        %vm902 = vcmp.lt.s32.totalorder %v802, 0
        %vm903 = vcmp.lt.s32.totalorder %v809, 0
        %vm904 = vcmp.lt.s32.totalorder %v816, 0
        %vm905 = vcmp.lt.s32.totalorder %v823, 0
        %vm906 = vcmp.lt.s32.totalorder %v830, 0
        %vm907 = vcmp.lt.s32.totalorder %v837, 0
        %vm908 = vcmp.lt.s32.totalorder %v844, 0
        %vm909 = vmand %vm877, %vm845
        %vm910 = vmand %vm878, %vm846
        %vm911 = vmand %vm879, %vm847
        %vm912 = vmand %vm880, %vm848
        %vm913 = vmand %vm881, %vm849
        %vm914 = vmand %vm882, %vm850
        %vm915 = vmand %vm883, %vm851
        %vm916 = vmand %vm884, %vm852
        %vm917 = vmand %vm885, %vm853
        %vm918 = vmand %vm886, %vm854
        %vm919 = vmand %vm887, %vm855
        %vm920 = vmand %vm888, %vm856
        %vm921 = vmand %vm889, %vm857
        %vm922 = vmand %vm890, %vm858
        %vm923 = vmand %vm891, %vm859
        %vm924 = vmand %vm892, %vm860
        %vm925 = vmand %vm893, %vm861
        %vm926 = vmand %vm894, %vm862
        %vm927 = vmand %vm895, %vm863
        %vm928 = vmand %vm896, %vm864
        %vm929 = vmand %vm897, %vm865
        %vm930 = vmand %vm898, %vm866
        %vm931 = vmand %vm899, %vm867
        %vm932 = vmand %vm900, %vm868
        %vm933 = vmand %vm901, %vm869
        %vm934 = vmand %vm902, %vm870
        %vm935 = vmand %vm903, %vm871
        %vm936 = vmand %vm904, %vm872
        %vm937 = vmand %vm905, %vm873
        %vm938 = vmand %vm906, %vm874
        %vm939 = vmand %vm907, %vm875
        %vm940 = vmand %vm908, %vm876
        %v941 = vadd.s32 %v627, 16
        %v942 = vadd.s32 %v634, 16
        %v943 = vadd.s32 %v641, 16
        %v944 = vadd.s32 %v648, 16
        %v945 = vadd.s32 %v655, 16
        %v946 = vadd.s32 %v662, 16
        %v947 = vadd.s32 %v669, 16
        %v948 = vadd.s32 %v676, 16
        %v949 = vadd.s32 %v683, 16
        %v950 = vadd.s32 %v690, 16
        %v951 = vadd.s32 %v697, 16
        %v952 = vadd.s32 %v704, 16
        %v953 = vadd.s32 %v711, 16
        %v954 = vadd.s32 %v718, 16
        %v955 = vadd.s32 %v725, 16
        %v956 = vadd.s32 %v732, 16
        %v957 = vadd.s32 %v739, 16
        %v958 = vadd.s32 %v746, 16
        %v959 = vadd.s32 %v753, 16
        %v960 = vadd.s32 %v760, 16
        %v961 = vadd.s32 %v767, 16
        %v962 = vadd.s32 %v774, 16
        %v963 = vadd.s32 %v781, 16
        %v964 = vadd.s32 %v788, 16
        %v965 = vadd.s32 %v795, 16
        %v966 = vadd.s32 %v802, 16
        %v967 = vadd.s32 %v809, 16
        %v968 = vadd.s32 %v816, 16
        %v969 = vadd.s32 %v823, 16
        %v970 = vadd.s32 %v830, 16
        %v971 = vadd.s32 %v837, 16
        %v972 = vadd.s32 %v844, 16
        %v973 = vsel %vm909, %v941, %v627
        %v974 = vsel %vm910, %v942, %v634
        %v975 = vsel %vm911, %v943, %v641
        %v976 = vsel %vm912, %v944, %v648
        %v977 = vsel %vm913, %v945, %v655
        %v978 = vsel %vm914, %v946, %v662
        %v979 = vsel %vm915, %v947, %v669
        %v980 = vsel %vm916, %v948, %v676
        %v981 = vsel %vm917, %v949, %v683
        %v982 = vsel %vm918, %v950, %v690
        %v983 = vsel %vm919, %v951, %v697
        %v984 = vsel %vm920, %v952, %v704
        %v985 = vsel %vm921, %v953, %v711
        %v986 = vsel %vm922, %v954, %v718
        %v987 = vsel %vm923, %v955, %v725
        %v988 = vsel %vm924, %v956, %v732
        %v989 = vsel %vm925, %v957, %v739
        %v990 = vsel %vm926, %v958, %v746
        %v991 = vsel %vm927, %v959, %v753
        %v992 = vsel %vm928, %v960, %v760
        %v993 = vsel %vm929, %v961, %v767
        %v994 = vsel %vm930, %v962, %v774
        %v995 = vsel %vm931, %v963, %v781
        %v996 = vsel %vm932, %v964, %v788
        %v997 = vsel %vm933, %v965, %v795
        %v998 = vsel %vm934, %v966, %v802
        %v999 = vsel %vm935, %v967, %v809
        %v1000 = vsel %vm936, %v968, %v816
        %v1001 = vsel %vm937, %v969, %v823
        %v1002 = vsel %vm938, %v970, %v830
        %v1003 = vsel %vm939, %v971, %v837
        %v1004 = vsel %vm940, %v972, %v844
        %v1005 = vld [vmem:[%s465] sm:$0xff]
        %v1006 = vld [vmem:[%s465 + $0x8] sm:$0xff]
        %v1007 = vld [vmem:[%s465 + $0x10] sm:$0xff]
        %v1008 = vld [vmem:[%s465 + $0x18] sm:$0xff]
        %v1009 = vld [vmem:[%s465 + $0x20] sm:$0xff]
        %v1010 = vld [vmem:[%s465 + $0x28] sm:$0xff]
        %v1011 = vld [vmem:[%s465 + $0x30] sm:$0xff]
        %v1012 = vld [vmem:[%s465 + $0x38] sm:$0xff]
        %v1013 = vld [vmem:[%s465 + $0x40] sm:$0xff]
        %v1014 = vld [vmem:[%s465 + $0x48] sm:$0xff]
        %v1015 = vld [vmem:[%s465 + $0x50] sm:$0xff]
        %v1016 = vld [vmem:[%s465 + $0x58] sm:$0xff]
        %v1017 = vld [vmem:[%s465 + $0x60] sm:$0xff]
        %v1018 = vld [vmem:[%s465 + $0x68] sm:$0xff]
        %v1019 = vld [vmem:[%s465 + $0x70] sm:$0xff]
        %v1020 = vld [vmem:[%s465 + $0x78] sm:$0xff]
        %v1021 = vld [vmem:[%s465 + $0x80] sm:$0xff]
        %v1022 = vld [vmem:[%s465 + $0x88] sm:$0xff]
        %v1023 = vld [vmem:[%s465 + $0x90] sm:$0xff]
        %v1024 = vld [vmem:[%s465 + $0x98] sm:$0xff]
        %v1025 = vld [vmem:[%s465 + $0xa0] sm:$0xff]
        %v1026 = vld [vmem:[%s465 + $0xa8] sm:$0xff]
        %v1027 = vld [vmem:[%s465 + $0xb0] sm:$0xff]
        %v1028 = vld [vmem:[%s465 + $0xb8] sm:$0xff]
        %v1029 = vld [vmem:[%s465 + $0xc0] sm:$0xff]
        %v1030 = vld [vmem:[%s465 + $0xc8] sm:$0xff]
        %v1031 = vld [vmem:[%s465 + $0xd0] sm:$0xff]
        %v1032 = vld [vmem:[%s465 + $0xd8] sm:$0xff]
        %v1033 = vld [vmem:[%s465 + $0xe0] sm:$0xff]
        %v1034 = vld [vmem:[%s465 + $0xe8] sm:$0xff]
        %v1035 = vld [vmem:[%s465 + $0xf0] sm:$0xff]
        %v1036 = vld [vmem:[%s465 + $0xf8] sm:$0xff]
        %v1037 = vld [vmem:[%s474] sm:$0xff]
        %v1038 = vld [vmem:[%s474 + $0x8] sm:$0xff]
        %v1039 = vld [vmem:[%s474 + $0x10] sm:$0xff]
        %v1040 = vld [vmem:[%s474 + $0x18] sm:$0xff]
        %v1041 = vld [vmem:[%s474 + $0x20] sm:$0xff]
        %v1042 = vld [vmem:[%s474 + $0x28] sm:$0xff]
        %v1043 = vld [vmem:[%s474 + $0x30] sm:$0xff]
        %v1044 = vld [vmem:[%s474 + $0x38] sm:$0xff]
        %v1045 = vld [vmem:[%s474 + $0x40] sm:$0xff]
        %v1046 = vld [vmem:[%s474 + $0x48] sm:$0xff]
        %v1047 = vld [vmem:[%s474 + $0x50] sm:$0xff]
        %v1048 = vld [vmem:[%s474 + $0x58] sm:$0xff]
        %v1049 = vld [vmem:[%s474 + $0x60] sm:$0xff]
        %v1050 = vld [vmem:[%s474 + $0x68] sm:$0xff]
        %v1051 = vld [vmem:[%s474 + $0x70] sm:$0xff]
        %v1052 = vld [vmem:[%s474 + $0x78] sm:$0xff]
        %v1053 = vld [vmem:[%s474 + $0x80] sm:$0xff]
        %v1054 = vld [vmem:[%s474 + $0x88] sm:$0xff]
        %v1055 = vld [vmem:[%s474 + $0x90] sm:$0xff]
        %v1056 = vld [vmem:[%s474 + $0x98] sm:$0xff]
        %v1057 = vld [vmem:[%s474 + $0xa0] sm:$0xff]
        %v1058 = vld [vmem:[%s474 + $0xa8] sm:$0xff]
        %v1059 = vld [vmem:[%s474 + $0xb0] sm:$0xff]
        %v1060 = vld [vmem:[%s474 + $0xb8] sm:$0xff]
        %v1061 = vld [vmem:[%s474 + $0xc0] sm:$0xff]
        %v1062 = vld [vmem:[%s474 + $0xc8] sm:$0xff]
        %v1063 = vld [vmem:[%s474 + $0xd0] sm:$0xff]
        %v1064 = vld [vmem:[%s474 + $0xd8] sm:$0xff]
        %v1065 = vld [vmem:[%s474 + $0xe0] sm:$0xff]
        %v1066 = vld [vmem:[%s474 + $0xe8] sm:$0xff]
        %v1067 = vld [vmem:[%s474 + $0xf0] sm:$0xff]
        %v1068 = vld [vmem:[%s474 + $0xf8] sm:$0xff]
        %1101 = vrot.lane.b32.xlu0 %v1037, 32
        %v1102 = vpop.permute.xlu0 %1101
        %1103 = vrot.lane.b32.xlu0 %v1038, 32
        %v1104 = vpop.permute.xlu0 %1103
        %1105 = vrot.lane.b32.xlu0 %v1039, 32
        %v1106 = vpop.permute.xlu0 %1105
        %1107 = vrot.lane.b32.xlu0 %v1040, 32
        %v1108 = vpop.permute.xlu0 %1107
        %1109 = vrot.lane.b32.xlu0 %v1041, 32
        %v1110 = vpop.permute.xlu0 %1109
        %1111 = vrot.lane.b32.xlu0 %v1042, 32
        %v1112 = vpop.permute.xlu0 %1111
        %1113 = vrot.lane.b32.xlu0 %v1043, 32
        %v1114 = vpop.permute.xlu0 %1113
        %1115 = vrot.lane.b32.xlu0 %v1044, 32
        %v1116 = vpop.permute.xlu0 %1115
        %1117 = vrot.lane.b32.xlu0 %v1045, 32
        %v1118 = vpop.permute.xlu0 %1117
        %1119 = vrot.lane.b32.xlu0 %v1046, 32
        %v1120 = vpop.permute.xlu0 %1119
        %1121 = vrot.lane.b32.xlu0 %v1047, 32
        %v1122 = vpop.permute.xlu0 %1121
        %1123 = vrot.lane.b32.xlu0 %v1048, 32
        %v1124 = vpop.permute.xlu0 %1123
        %1125 = vrot.lane.b32.xlu0 %v1049, 32
        %v1126 = vpop.permute.xlu0 %1125
        %1127 = vrot.lane.b32.xlu0 %v1050, 32
        %v1128 = vpop.permute.xlu0 %1127
        %1129 = vrot.lane.b32.xlu0 %v1051, 32
        %v1130 = vpop.permute.xlu0 %1129
        %1131 = vrot.lane.b32.xlu0 %v1052, 32
        %v1132 = vpop.permute.xlu0 %1131
        %1133 = vrot.lane.b32.xlu0 %v1053, 32
        %v1134 = vpop.permute.xlu0 %1133
        %1135 = vrot.lane.b32.xlu0 %v1054, 32
        %v1136 = vpop.permute.xlu0 %1135
        %1137 = vrot.lane.b32.xlu0 %v1055, 32
        %v1138 = vpop.permute.xlu0 %1137
        %1139 = vrot.lane.b32.xlu0 %v1056, 32
        %v1140 = vpop.permute.xlu0 %1139
        %1141 = vrot.lane.b32.xlu0 %v1057, 32
        %v1142 = vpop.permute.xlu0 %1141
        %1143 = vrot.lane.b32.xlu0 %v1058, 32
        %v1144 = vpop.permute.xlu0 %1143
        %1145 = vrot.lane.b32.xlu0 %v1059, 32
        %v1146 = vpop.permute.xlu0 %1145
        %1147 = vrot.lane.b32.xlu0 %v1060, 32
        %v1148 = vpop.permute.xlu0 %1147
        %1149 = vrot.lane.b32.xlu0 %v1061, 32
        %v1150 = vpop.permute.xlu0 %1149
        %1151 = vrot.lane.b32.xlu0 %v1062, 32
        %v1152 = vpop.permute.xlu0 %1151
        %1153 = vrot.lane.b32.xlu0 %v1063, 32
        %v1154 = vpop.permute.xlu0 %1153
        %1155 = vrot.lane.b32.xlu0 %v1064, 32
        %v1156 = vpop.permute.xlu0 %1155
        %1157 = vrot.lane.b32.xlu0 %v1065, 32
        %v1158 = vpop.permute.xlu0 %1157
        %1159 = vrot.lane.b32.xlu0 %v1066, 32
        %v1160 = vpop.permute.xlu0 %1159
        %1161 = vrot.lane.b32.xlu0 %v1067, 32
        %v1162 = vpop.permute.xlu0 %1161
        %1163 = vrot.lane.b32.xlu0 %v1068, 32
        %v1164 = vpop.permute.xlu0 %1163
        %vm1197 = vcmask 261120
        %v1198 = vsel %vm1197, %v1005, %v1102
        %v1199 = vsel %vm1197, %v1006, %v1104
        %v1200 = vsel %vm1197, %v1007, %v1106
        %v1201 = vsel %vm1197, %v1008, %v1108
        %v1202 = vsel %vm1197, %v1009, %v1110
        %v1203 = vsel %vm1197, %v1010, %v1112
        %v1204 = vsel %vm1197, %v1011, %v1114
        %v1205 = vsel %vm1197, %v1012, %v1116
        %v1206 = vsel %vm1197, %v1013, %v1118
        %v1207 = vsel %vm1197, %v1014, %v1120
        %v1208 = vsel %vm1197, %v1015, %v1122
        %v1209 = vsel %vm1197, %v1016, %v1124
        %v1210 = vsel %vm1197, %v1017, %v1126
        %v1211 = vsel %vm1197, %v1018, %v1128
        %v1212 = vsel %vm1197, %v1019, %v1130
        %v1213 = vsel %vm1197, %v1020, %v1132
        %v1214 = vsel %vm1197, %v1021, %v1134
        %v1215 = vsel %vm1197, %v1022, %v1136
        %v1216 = vsel %vm1197, %v1023, %v1138
        %v1217 = vsel %vm1197, %v1024, %v1140
        %v1218 = vsel %vm1197, %v1025, %v1142
        %v1219 = vsel %vm1197, %v1026, %v1144
        %v1220 = vsel %vm1197, %v1027, %v1146
        %v1221 = vsel %vm1197, %v1028, %v1148
        %v1222 = vsel %vm1197, %v1029, %v1150
        %v1223 = vsel %vm1197, %v1030, %v1152
        %v1224 = vsel %vm1197, %v1031, %v1154
        %v1225 = vsel %vm1197, %v1032, %v1156
        %v1226 = vsel %vm1197, %v1033, %v1158
        %v1227 = vsel %vm1197, %v1034, %v1160
        %v1228 = vsel %vm1197, %v1035, %v1162
        %v1229 = vsel %vm1197, %v1036, %v1164
        %v1230 = vpack.c.bf16 %v1199, %v1198
        %v1231 = vpack.c.bf16 %v1201, %v1200
        %v1232 = vpack.c.bf16 %v1203, %v1202
        %v1233 = vpack.c.bf16 %v1205, %v1204
        %v1234 = vpack.c.bf16 %v1207, %v1206
        %v1235 = vpack.c.bf16 %v1209, %v1208
        %v1236 = vpack.c.bf16 %v1211, %v1210
        %v1237 = vpack.c.bf16 %v1213, %v1212
        %v1238 = vpack.c.bf16 %v1215, %v1214
        %v1239 = vpack.c.bf16 %v1217, %v1216
        %v1240 = vpack.c.bf16 %v1219, %v1218
        %v1241 = vpack.c.bf16 %v1221, %v1220
        %v1242 = vpack.c.bf16 %v1223, %v1222
        %v1243 = vpack.c.bf16 %v1225, %v1224
        %v1244 = vpack.c.bf16 %v1227, %v1226
        %v1245 = vpack.c.bf16 %v1229, %v1228
        %v1246 = vld [vmem:[%s3] sm:$0xf]
        %v1247 = vld [vmem:[%s3 + $0x4] sm:$0xf]
        %v1248 = vld [vmem:[%s3 + $0x8] sm:$0xf]
        %v1249 = vld [vmem:[%s3 + $0xc] sm:$0xf]
        %v1250 = vld [vmem:[%s3 + $0x10] sm:$0xf]
        %v1251 = vld [vmem:[%s3 + $0x14] sm:$0xf]
        %v1252 = vld [vmem:[%s3 + $0x18] sm:$0xf]
        %v1253 = vld [vmem:[%s3 + $0x1c] sm:$0xf]
        %v1254 = vld [vmem:[%s4] sm:$0x1]
        %v1256 = vlaneseq
        %v1257 = vshrl.u32 %v1256, 7
        %v1258 = vsub.s32 0, %v1257
        %v1259 = vrot.slane %v1254, %v1258
        %v1269 = vunpack.c.l.b16 %v1246
        %v1270 = vunpack.c.l.b16 %v1247
        %v1271 = vunpack.c.l.b16 %v1248
        %v1272 = vunpack.c.l.b16 %v1249
        %v1273 = vunpack.c.l.b16 %v1250
        %v1274 = vunpack.c.l.b16 %v1251
        %v1275 = vunpack.c.l.b16 %v1252
        %v1276 = vunpack.c.l.b16 %v1253
        %v1277 = vpack.c.b16 %v1270, %v1269
        %v1278 = vpack.c.b16 %v1272, %v1271
        %v1279 = vpack.c.b16 %v1274, %v1273
        %v1280 = vpack.c.b16 %v1276, %v1275
        %vm1285 = vcmask 523264
        %v1287 = vsel %vm1285, %v1230, 0
        %v1290 = vsel %vm1285, %v1231, 0
        %v1293 = vsel %vm1285, %v1232, 0
        %v1296 = vsel %vm1285, %v1233, 0
        %v1299 = vsel %vm1285, %v1234, 0
        %v1302 = vsel %vm1285, %v1235, 0
        %v1305 = vsel %vm1285, %v1236, 0
        %v1308 = vsel %vm1285, %v1237, 0
        %v1311 = vsel %vm1285, %v1238, 0
        %v1314 = vsel %vm1285, %v1239, 0
        %v1317 = vsel %vm1285, %v1240, 0
        %v1320 = vsel %vm1285, %v1241, 0
        %v1323 = vsel %vm1285, %v1242, 0
        %v1326 = vsel %vm1285, %v1243, 0
        %v1329 = vsel %vm1285, %v1244, 0
        %v1332 = vsel %vm1285, %v1245, 0
        %1334 = vmatprep.subr.bf16.mxu0 0
        %1335 = vmatpush1.bf16.msra.mxu0 0
        %1336 = vmatprep.subr.bf16.mxu0 0
        %1337 = vmatpush1.bf16.msra.mxu0 0
        %1338 = vmatprep.subr.bf16.mxu0 0
        %1339 = vmatpush1.bf16.msra.mxu0 0
        %1340 = vmatprep.subr.bf16.mxu0 0
        %1341 = vmatpush1.bf16.msra.mxu0 0
        %1342 = vmatprep.subr.bf16.mxu0 0
        %1343 = vmatpush1.bf16.msra.mxu0 %v1280
        %1344 = vmatprep.subr.bf16.mxu0 0
        %1345 = vmatpush1.bf16.msra.mxu0 %v1279
        %1346 = vmatprep.subr.bf16.mxu0 0
        %1347 = vmatpush1.bf16.msra.mxu0 %v1278
        %1348 = vmatprep.subr.bf16.mxu0 0
        %1349 = vmatpush1.bf16.msra.mxu0 %v1277
        %1350 = vmatprep.subr.bf16.mxu0 0
        %1351 = vmatpush2.bf16.msra.mxu0 0
        %1352 = vmatprep.subr.bf16.mxu0 0
        %1353 = vmatpush2.bf16.msra.mxu0 0
        %1354 = vmatprep.subr.bf16.mxu0 0
        %1355 = vmatpush2.bf16.msra.mxu0 0
        %1356 = vmatprep.subr.bf16.mxu0 0
        %1357 = vmatpush2.bf16.msra.mxu0 0
        %1358 = vmatprep.subr.bf16.mxu0 0
        %1359 = vmatpush2.bf16.msra.mxu0 0
        %1360 = vmatprep.subr.bf16.mxu0 0
        %1361 = vmatpush2.bf16.msra.mxu0 0
        %1362 = vmatprep.subr.bf16.mxu0 0
        %1363 = vmatpush2.bf16.msra.mxu0 0
        %1364 = vmatprep.subr.bf16.mxu0 0
        %1365 = vmatpush2.bf16.msra.mxu0 0
        %1366 = vmatprep.mubr.bf16.mxu0 0
        %1367 = vmatmul.mubr.bf16.gmra.mxu0 %v1287
        %v1368 = vpop.f32.mrf.mxu0
        %v1369 = vadd.f32 %v1259, %v1368
        %v1370 = vpop.f32.mrf.mxu0
        %v1371 = vpop.f32.mrf.mxu0
        %v1372 = vadd.f32 %v1259, %v1371
        %v1373 = vpop.f32.mrf.mxu0
        %1374 = vmatprep.mubr.bf16.mxu0 0
        %1375 = vmatmul.mubr.bf16.gmra.mxu0 %v1290
        %v1376 = vpop.f32.mrf.mxu0
        %v1377 = vadd.f32 %v1259, %v1376
        %v1378 = vpop.f32.mrf.mxu0
        %v1379 = vpop.f32.mrf.mxu0
        %v1380 = vadd.f32 %v1259, %v1379
        %v1381 = vpop.f32.mrf.mxu0
        %1382 = vmatprep.mubr.bf16.mxu0 0
        %1383 = vmatmul.mubr.bf16.gmra.mxu0 %v1293
        %v1384 = vpop.f32.mrf.mxu0
        %v1385 = vadd.f32 %v1259, %v1384
        %v1386 = vpop.f32.mrf.mxu0
        %v1387 = vpop.f32.mrf.mxu0
        %v1388 = vadd.f32 %v1259, %v1387
        %v1389 = vpop.f32.mrf.mxu0
        %1390 = vmatprep.mubr.bf16.mxu0 0
        %1391 = vmatmul.mubr.bf16.gmra.mxu0 %v1296
        %v1392 = vpop.f32.mrf.mxu0
        %v1393 = vadd.f32 %v1259, %v1392
        %v1394 = vpop.f32.mrf.mxu0
        %v1395 = vpop.f32.mrf.mxu0
        %v1396 = vadd.f32 %v1259, %v1395
        %v1397 = vpop.f32.mrf.mxu0
        %1398 = vmatprep.mubr.bf16.mxu0 0
        %1399 = vmatmul.mubr.bf16.gmra.mxu0 %v1299
        %v1400 = vpop.f32.mrf.mxu0
        %v1401 = vadd.f32 %v1259, %v1400
        %v1402 = vpop.f32.mrf.mxu0
        %v1403 = vpop.f32.mrf.mxu0
        %v1404 = vadd.f32 %v1259, %v1403
        %v1405 = vpop.f32.mrf.mxu0
        %1406 = vmatprep.mubr.bf16.mxu0 0
        %1407 = vmatmul.mubr.bf16.gmra.mxu0 %v1302
        %v1408 = vpop.f32.mrf.mxu0
        %v1409 = vadd.f32 %v1259, %v1408
        %v1410 = vpop.f32.mrf.mxu0
        %v1411 = vpop.f32.mrf.mxu0
        %v1412 = vadd.f32 %v1259, %v1411
        %v1413 = vpop.f32.mrf.mxu0
        %1414 = vmatprep.mubr.bf16.mxu0 0
        %1415 = vmatmul.mubr.bf16.gmra.mxu0 %v1305
        %v1416 = vpop.f32.mrf.mxu0
        %v1417 = vadd.f32 %v1259, %v1416
        %v1418 = vpop.f32.mrf.mxu0
        %v1419 = vpop.f32.mrf.mxu0
        %v1420 = vadd.f32 %v1259, %v1419
        %v1421 = vpop.f32.mrf.mxu0
        %1422 = vmatprep.mubr.bf16.mxu0 0
        %1423 = vmatmul.mubr.bf16.gmra.mxu0 %v1308
        %v1424 = vpop.f32.mrf.mxu0
        %v1425 = vadd.f32 %v1259, %v1424
        %v1426 = vpop.f32.mrf.mxu0
        %v1427 = vpop.f32.mrf.mxu0
        %v1428 = vadd.f32 %v1259, %v1427
        %v1429 = vpop.f32.mrf.mxu0
        %1430 = vmatprep.mubr.bf16.mxu0 0
        %1431 = vmatmul.mubr.bf16.gmra.mxu0 %v1311
        %v1432 = vpop.f32.mrf.mxu0
        %v1433 = vadd.f32 %v1259, %v1432
        %v1434 = vpop.f32.mrf.mxu0
        %v1435 = vpop.f32.mrf.mxu0
        %v1436 = vadd.f32 %v1259, %v1435
        %v1437 = vpop.f32.mrf.mxu0
        %1438 = vmatprep.mubr.bf16.mxu0 0
        %1439 = vmatmul.mubr.bf16.gmra.mxu0 %v1314
        %v1440 = vpop.f32.mrf.mxu0
        %v1441 = vadd.f32 %v1259, %v1440
        %v1442 = vpop.f32.mrf.mxu0
        %v1443 = vpop.f32.mrf.mxu0
        %v1444 = vadd.f32 %v1259, %v1443
        %v1445 = vpop.f32.mrf.mxu0
        %1446 = vmatprep.mubr.bf16.mxu0 0
        %1447 = vmatmul.mubr.bf16.gmra.mxu0 %v1317
        %v1448 = vpop.f32.mrf.mxu0
        %v1449 = vadd.f32 %v1259, %v1448
        %v1450 = vpop.f32.mrf.mxu0
        %v1451 = vpop.f32.mrf.mxu0
        %v1452 = vadd.f32 %v1259, %v1451
        %v1453 = vpop.f32.mrf.mxu0
        %1454 = vmatprep.mubr.bf16.mxu0 0
        %1455 = vmatmul.mubr.bf16.gmra.mxu0 %v1320
        %v1456 = vpop.f32.mrf.mxu0
        %v1457 = vadd.f32 %v1259, %v1456
        %v1458 = vpop.f32.mrf.mxu0
        %v1459 = vpop.f32.mrf.mxu0
        %v1460 = vadd.f32 %v1259, %v1459
        %v1461 = vpop.f32.mrf.mxu0
        %1462 = vmatprep.mubr.bf16.mxu0 0
        %1463 = vmatmul.mubr.bf16.gmra.mxu0 %v1323
        %v1464 = vpop.f32.mrf.mxu0
        %v1465 = vadd.f32 %v1259, %v1464
        %v1466 = vpop.f32.mrf.mxu0
        %v1467 = vpop.f32.mrf.mxu0
        %v1468 = vadd.f32 %v1259, %v1467
        %v1469 = vpop.f32.mrf.mxu0
        %1470 = vmatprep.mubr.bf16.mxu0 0
        %1471 = vmatmul.mubr.bf16.gmra.mxu0 %v1326
        %v1472 = vpop.f32.mrf.mxu0
        %v1473 = vadd.f32 %v1259, %v1472
        %v1474 = vpop.f32.mrf.mxu0
        %v1475 = vpop.f32.mrf.mxu0
        %v1476 = vadd.f32 %v1259, %v1475
        %v1477 = vpop.f32.mrf.mxu0
        %1478 = vmatprep.mubr.bf16.mxu0 0
        %1479 = vmatmul.mubr.bf16.gmra.mxu0 %v1329
        %v1480 = vpop.f32.mrf.mxu0
        %v1481 = vadd.f32 %v1259, %v1480
        %v1482 = vpop.f32.mrf.mxu0
        %v1483 = vpop.f32.mrf.mxu0
        %v1484 = vadd.f32 %v1259, %v1483
        %v1485 = vpop.f32.mrf.mxu0
        %1486 = vmatprep.mubr.bf16.mxu0 0
        %1487 = vmatmul.mubr.bf16.gmra.mxu0 %v1332
        %v1488 = vpop.f32.mrf.mxu0
        %v1489 = vadd.f32 %v1259, %v1488
        %v1490 = vpop.f32.mrf.mxu0
        %v1491 = vpop.f32.mrf.mxu0
        %v1492 = vadd.f32 %v1259, %v1491
        %v1493 = vpop.f32.mrf.mxu0
        %1494 = vdwg.mxu0
        %v1495 = vld [vmem:[%s5] sm:$0xf]
        %v1496 = vld [vmem:[%s5 + $0x4] sm:$0xf]
        %v1497 = vld [vmem:[%s5 + $0x8] sm:$0xf]
        %v1498 = vld [vmem:[%s5 + $0xc] sm:$0xf]
        %v1499 = vld [vmem:[%s5 + $0x10] sm:$0xf]
        %v1500 = vld [vmem:[%s5 + $0x14] sm:$0xf]
        %v1501 = vld [vmem:[%s5 + $0x18] sm:$0xf]
        %v1502 = vld [vmem:[%s5 + $0x1c] sm:$0xf]
        %v1503 = vld [vmem:[%s6] sm:$0x1]
        %v1505 = vlaneseq
        %v1506 = vshrl.u32 %v1505, 7
        %v1507 = vsub.s32 0, %v1506
        %v1508 = vrot.slane %v1503, %v1507
        %v1518 = vunpack.c.l.b16 %v1495
        %v1519 = vunpack.c.l.b16 %v1496
        %v1520 = vunpack.c.l.b16 %v1497
        %v1521 = vunpack.c.l.b16 %v1498
        %v1522 = vunpack.c.l.b16 %v1499
        %v1523 = vunpack.c.l.b16 %v1500
        %v1524 = vunpack.c.l.b16 %v1501
        %v1525 = vunpack.c.l.b16 %v1502
        %v1526 = vpack.c.b16 %v1519, %v1518
        %v1527 = vpack.c.b16 %v1521, %v1520
        %v1528 = vpack.c.b16 %v1523, %v1522
        %v1529 = vpack.c.b16 %v1525, %v1524
        %1534 = vmatprep.subr.bf16.mxu0 0
        %1535 = vmatpush1.bf16.msra.mxu0 0
        %1536 = vmatprep.subr.bf16.mxu0 0
        %1537 = vmatpush1.bf16.msra.mxu0 0
        %1538 = vmatprep.subr.bf16.mxu0 0
        %1539 = vmatpush1.bf16.msra.mxu0 0
        %1540 = vmatprep.subr.bf16.mxu0 0
        %1541 = vmatpush1.bf16.msra.mxu0 0
        %1542 = vmatprep.subr.bf16.mxu0 0
        %1543 = vmatpush1.bf16.msra.mxu0 %v1529
        %1544 = vmatprep.subr.bf16.mxu0 0
        %1545 = vmatpush1.bf16.msra.mxu0 %v1528
        %1546 = vmatprep.subr.bf16.mxu0 0
        %1547 = vmatpush1.bf16.msra.mxu0 %v1527
        %1548 = vmatprep.subr.bf16.mxu0 0
        %1549 = vmatpush1.bf16.msra.mxu0 %v1526
        %1550 = vmatprep.subr.bf16.mxu0 0
        %1551 = vmatpush2.bf16.msra.mxu0 0
        %1552 = vmatprep.subr.bf16.mxu0 0
        %1553 = vmatpush2.bf16.msra.mxu0 0
        %1554 = vmatprep.subr.bf16.mxu0 0
        %1555 = vmatpush2.bf16.msra.mxu0 0
        %1556 = vmatprep.subr.bf16.mxu0 0
        %1557 = vmatpush2.bf16.msra.mxu0 0
        %1558 = vmatprep.subr.bf16.mxu0 0
        %1559 = vmatpush2.bf16.msra.mxu0 0
        %1560 = vmatprep.subr.bf16.mxu0 0
        %1561 = vmatpush2.bf16.msra.mxu0 0
        %1562 = vmatprep.subr.bf16.mxu0 0
        %1563 = vmatpush2.bf16.msra.mxu0 0
        %1564 = vmatprep.subr.bf16.mxu0 0
        %1565 = vmatpush2.bf16.msra.mxu0 0
        %1566 = vmatprep.mubr.bf16.mxu0 0
        %1567 = vmatmul.mubr.bf16.gmra.mxu0 %v1287
        %v1568 = vpop.f32.mrf.mxu0
        %v1569 = vadd.f32 %v1508, %v1568
        %v1570 = vpop.f32.mrf.mxu0
        %v1571 = vpop.f32.mrf.mxu0
        %v1572 = vadd.f32 %v1508, %v1571
        %v1573 = vpop.f32.mrf.mxu0
        %1574 = vmatprep.mubr.bf16.mxu0 0
        %1575 = vmatmul.mubr.bf16.gmra.mxu0 %v1290
        %v1576 = vpop.f32.mrf.mxu0
        %v1577 = vadd.f32 %v1508, %v1576
        %v1578 = vpop.f32.mrf.mxu0
        %v1579 = vpop.f32.mrf.mxu0
        %v1580 = vadd.f32 %v1508, %v1579
        %v1581 = vpop.f32.mrf.mxu0
        %1582 = vmatprep.mubr.bf16.mxu0 0
        %1583 = vmatmul.mubr.bf16.gmra.mxu0 %v1293
        %v1584 = vpop.f32.mrf.mxu0
        %v1585 = vadd.f32 %v1508, %v1584
        %v1586 = vpop.f32.mrf.mxu0
        %v1587 = vpop.f32.mrf.mxu0
        %v1588 = vadd.f32 %v1508, %v1587
        %v1589 = vpop.f32.mrf.mxu0
        %1590 = vmatprep.mubr.bf16.mxu0 0
        %1591 = vmatmul.mubr.bf16.gmra.mxu0 %v1296
        %v1592 = vpop.f32.mrf.mxu0
        %v1593 = vadd.f32 %v1508, %v1592
        %v1594 = vpop.f32.mrf.mxu0
        %v1595 = vpop.f32.mrf.mxu0
        %v1596 = vadd.f32 %v1508, %v1595
        %v1597 = vpop.f32.mrf.mxu0
        %1598 = vmatprep.mubr.bf16.mxu0 0
        %1599 = vmatmul.mubr.bf16.gmra.mxu0 %v1299
        %v1600 = vpop.f32.mrf.mxu0
        %v1601 = vadd.f32 %v1508, %v1600
        %v1602 = vpop.f32.mrf.mxu0
        %v1603 = vpop.f32.mrf.mxu0
        %v1604 = vadd.f32 %v1508, %v1603
        %v1605 = vpop.f32.mrf.mxu0
        %1606 = vmatprep.mubr.bf16.mxu0 0
        %1607 = vmatmul.mubr.bf16.gmra.mxu0 %v1302
        %v1608 = vpop.f32.mrf.mxu0
        %v1609 = vadd.f32 %v1508, %v1608
        %v1610 = vpop.f32.mrf.mxu0
        %v1611 = vpop.f32.mrf.mxu0
        %v1612 = vadd.f32 %v1508, %v1611
        %v1613 = vpop.f32.mrf.mxu0
        %1614 = vmatprep.mubr.bf16.mxu0 0
        %1615 = vmatmul.mubr.bf16.gmra.mxu0 %v1305
        %v1616 = vpop.f32.mrf.mxu0
        %v1617 = vadd.f32 %v1508, %v1616
        %v1618 = vpop.f32.mrf.mxu0
        %v1619 = vpop.f32.mrf.mxu0
        %v1620 = vadd.f32 %v1508, %v1619
        %v1621 = vpop.f32.mrf.mxu0
        %1622 = vmatprep.mubr.bf16.mxu0 0
        %1623 = vmatmul.mubr.bf16.gmra.mxu0 %v1308
        %v1624 = vpop.f32.mrf.mxu0
        %v1625 = vadd.f32 %v1508, %v1624
        %v1626 = vpop.f32.mrf.mxu0
        %v1627 = vpop.f32.mrf.mxu0
        %v1628 = vadd.f32 %v1508, %v1627
        %v1629 = vpop.f32.mrf.mxu0
        %1630 = vmatprep.mubr.bf16.mxu0 0
        %1631 = vmatmul.mubr.bf16.gmra.mxu0 %v1311
        %v1632 = vpop.f32.mrf.mxu0
        %v1633 = vadd.f32 %v1508, %v1632
        %v1634 = vpop.f32.mrf.mxu0
        %v1635 = vpop.f32.mrf.mxu0
        %v1636 = vadd.f32 %v1508, %v1635
        %v1637 = vpop.f32.mrf.mxu0
        %1638 = vmatprep.mubr.bf16.mxu0 0
        %1639 = vmatmul.mubr.bf16.gmra.mxu0 %v1314
        %v1640 = vpop.f32.mrf.mxu0
        %v1641 = vadd.f32 %v1508, %v1640
        %v1642 = vpop.f32.mrf.mxu0
        %v1643 = vpop.f32.mrf.mxu0
        %v1644 = vadd.f32 %v1508, %v1643
        %v1645 = vpop.f32.mrf.mxu0
        %1646 = vmatprep.mubr.bf16.mxu0 0
        %1647 = vmatmul.mubr.bf16.gmra.mxu0 %v1317
        %v1648 = vpop.f32.mrf.mxu0
        %v1649 = vadd.f32 %v1508, %v1648
        %v1650 = vpop.f32.mrf.mxu0
        %v1651 = vpop.f32.mrf.mxu0
        %v1652 = vadd.f32 %v1508, %v1651
        %v1653 = vpop.f32.mrf.mxu0
        %1654 = vmatprep.mubr.bf16.mxu0 0
        %1655 = vmatmul.mubr.bf16.gmra.mxu0 %v1320
        %v1656 = vpop.f32.mrf.mxu0
        %v1657 = vadd.f32 %v1508, %v1656
        %v1658 = vpop.f32.mrf.mxu0
        %v1659 = vpop.f32.mrf.mxu0
        %v1660 = vadd.f32 %v1508, %v1659
        %v1661 = vpop.f32.mrf.mxu0
        %1662 = vmatprep.mubr.bf16.mxu0 0
        %1663 = vmatmul.mubr.bf16.gmra.mxu0 %v1323
        %v1664 = vpop.f32.mrf.mxu0
        %v1665 = vadd.f32 %v1508, %v1664
        %v1666 = vpop.f32.mrf.mxu0
        %v1667 = vpop.f32.mrf.mxu0
        %v1668 = vadd.f32 %v1508, %v1667
        %v1669 = vpop.f32.mrf.mxu0
        %1670 = vmatprep.mubr.bf16.mxu0 0
        %1671 = vmatmul.mubr.bf16.gmra.mxu0 %v1326
        %v1672 = vpop.f32.mrf.mxu0
        %v1673 = vadd.f32 %v1508, %v1672
        %v1674 = vpop.f32.mrf.mxu0
        %v1675 = vpop.f32.mrf.mxu0
        %v1676 = vadd.f32 %v1508, %v1675
        %v1677 = vpop.f32.mrf.mxu0
        %1678 = vmatprep.mubr.bf16.mxu0 0
        %1679 = vmatmul.mubr.bf16.gmra.mxu0 %v1329
        %v1680 = vpop.f32.mrf.mxu0
        %v1681 = vadd.f32 %v1508, %v1680
        %v1682 = vpop.f32.mrf.mxu0
        %v1683 = vpop.f32.mrf.mxu0
        %v1684 = vadd.f32 %v1508, %v1683
        %v1685 = vpop.f32.mrf.mxu0
        %1686 = vmatprep.mubr.bf16.mxu0 0
        %1687 = vmatmul.mubr.bf16.gmra.mxu0 %v1332
        %v1688 = vpop.f32.mrf.mxu0
        %v1689 = vadd.f32 %v1508, %v1688
        %v1690 = vpop.f32.mrf.mxu0
        %v1691 = vpop.f32.mrf.mxu0
        %v1692 = vadd.f32 %v1508, %v1691
        %v1693 = vpop.f32.mrf.mxu0
        %1694 = vdwg.mxu0
        %v1695 = vmax.f32 %v1569, 0.0
        %v1696 = vmax.f32 %v1572, 0.0
        %v1697 = vmax.f32 %v1577, 0.0
        %v1698 = vmax.f32 %v1580, 0.0
        %v1699 = vmax.f32 %v1585, 0.0
        %v1700 = vmax.f32 %v1588, 0.0
        %v1701 = vmax.f32 %v1593, 0.0
        %v1702 = vmax.f32 %v1596, 0.0
        %v1703 = vmax.f32 %v1601, 0.0
        %v1704 = vmax.f32 %v1604, 0.0
        %v1705 = vmax.f32 %v1609, 0.0
        %v1706 = vmax.f32 %v1612, 0.0
        %v1707 = vmax.f32 %v1617, 0.0
        %v1708 = vmax.f32 %v1620, 0.0
        %v1709 = vmax.f32 %v1625, 0.0
        %v1710 = vmax.f32 %v1628, 0.0
        %v1711 = vmax.f32 %v1633, 0.0
        %v1712 = vmax.f32 %v1636, 0.0
        %v1713 = vmax.f32 %v1641, 0.0
        %v1714 = vmax.f32 %v1644, 0.0
        %v1715 = vmax.f32 %v1649, 0.0
        %v1716 = vmax.f32 %v1652, 0.0
        %v1717 = vmax.f32 %v1657, 0.0
        %v1718 = vmax.f32 %v1660, 0.0
        %v1719 = vmax.f32 %v1665, 0.0
        %v1720 = vmax.f32 %v1668, 0.0
        %v1721 = vmax.f32 %v1673, 0.0
        %v1722 = vmax.f32 %v1676, 0.0
        %v1723 = vmax.f32 %v1681, 0.0
        %v1724 = vmax.f32 %v1684, 0.0
        %v1725 = vmax.f32 %v1689, 0.0
        %v1726 = vmax.f32 %v1692, 0.0
        %v1727 = vpack.c.bf16 %v1696, %v1695
        %v1728 = vpack.c.bf16 %v1698, %v1697
        %v1729 = vpack.c.bf16 %v1700, %v1699
        %v1730 = vpack.c.bf16 %v1702, %v1701
        %v1731 = vpack.c.bf16 %v1704, %v1703
        %v1732 = vpack.c.bf16 %v1706, %v1705
        %v1733 = vpack.c.bf16 %v1708, %v1707
        %v1734 = vpack.c.bf16 %v1710, %v1709
        %v1735 = vpack.c.bf16 %v1712, %v1711
        %v1736 = vpack.c.bf16 %v1714, %v1713
        %v1737 = vpack.c.bf16 %v1716, %v1715
        %v1738 = vpack.c.bf16 %v1718, %v1717
        %v1739 = vpack.c.bf16 %v1720, %v1719
        %v1740 = vpack.c.bf16 %v1722, %v1721
        %v1741 = vpack.c.bf16 %v1724, %v1723
        %v1742 = vpack.c.bf16 %v1726, %v1725
        %v1759 = vunpack.c.l.b16 %v1727
        %v1760 = vunpack.c.h.b16 %v1727
        %v1761 = vunpack.c.l.b16 %v1728
        %v1762 = vunpack.c.h.b16 %v1728
        %v1763 = vunpack.c.l.b16 %v1729
        %v1764 = vunpack.c.h.b16 %v1729
        %v1765 = vunpack.c.l.b16 %v1730
        %v1766 = vunpack.c.h.b16 %v1730
        %v1767 = vunpack.c.l.b16 %v1731
        %v1768 = vunpack.c.h.b16 %v1731
        %v1769 = vunpack.c.l.b16 %v1732
        %v1770 = vunpack.c.h.b16 %v1732
        %v1771 = vunpack.c.l.b16 %v1733
        %v1772 = vunpack.c.h.b16 %v1733
        %v1773 = vunpack.c.l.b16 %v1734
        %v1774 = vunpack.c.h.b16 %v1734
        %v1775 = vunpack.c.l.b16 %v1735
        %v1776 = vunpack.c.h.b16 %v1735
        %v1777 = vunpack.c.l.b16 %v1736
        %v1778 = vunpack.c.h.b16 %v1736
        %v1779 = vunpack.c.l.b16 %v1737
        %v1780 = vunpack.c.h.b16 %v1737
        %v1781 = vunpack.c.l.b16 %v1738
        %v1782 = vunpack.c.h.b16 %v1738
        %v1783 = vunpack.c.l.b16 %v1739
        %v1784 = vunpack.c.h.b16 %v1739
        %v1785 = vunpack.c.l.b16 %v1740
        %v1786 = vunpack.c.h.b16 %v1740
        %v1787 = vunpack.c.l.b16 %v1741
        %v1788 = vunpack.c.h.b16 %v1741
        %v1789 = vunpack.c.l.b16 %v1742
        %v1790 = vunpack.c.h.b16 %v1742
        %v1791 = vpack.c.b16 %v1759, %v1759
        %v1792 = vpack.c.b16 %v1760, %v1760
        %v1793 = vpack.c.b16 %v1761, %v1761
        %v1794 = vpack.c.b16 %v1762, %v1762
        %v1795 = vpack.c.b16 %v1763, %v1763
        %v1796 = vpack.c.b16 %v1764, %v1764
        %v1797 = vpack.c.b16 %v1765, %v1765
        %v1798 = vpack.c.b16 %v1766, %v1766
        %v1799 = vpack.c.b16 %v1767, %v1767
        %v1800 = vpack.c.b16 %v1768, %v1768
        %v1801 = vpack.c.b16 %v1769, %v1769
        %v1802 = vpack.c.b16 %v1770, %v1770
        %v1803 = vpack.c.b16 %v1771, %v1771
        %v1804 = vpack.c.b16 %v1772, %v1772
        %v1805 = vpack.c.b16 %v1773, %v1773
        %v1806 = vpack.c.b16 %v1774, %v1774
        %v1807 = vpack.c.b16 %v1775, %v1775
        %v1808 = vpack.c.b16 %v1776, %v1776
        %v1809 = vpack.c.b16 %v1777, %v1777
        %v1810 = vpack.c.b16 %v1778, %v1778
        %v1811 = vpack.c.b16 %v1779, %v1779
        %v1812 = vpack.c.b16 %v1780, %v1780
        %v1813 = vpack.c.b16 %v1781, %v1781
        %v1814 = vpack.c.b16 %v1782, %v1782
        %v1815 = vpack.c.b16 %v1783, %v1783
        %v1816 = vpack.c.b16 %v1784, %v1784
        %v1817 = vpack.c.b16 %v1785, %v1785
        %v1818 = vpack.c.b16 %v1786, %v1786
        %v1819 = vpack.c.b16 %v1787, %v1787
        %v1820 = vpack.c.b16 %v1788, %v1788
        %v1821 = vpack.c.b16 %v1789, %v1789
        %v1822 = vpack.c.b16 %v1790, %v1790
        %1855 = vst.msk [vmem:[#allocation2 + $0x20] sm:$0xf] %vm539, %v1791
        %1856 = vst.msk [vmem:[#allocation2 + $0x24] sm:$0xf] %vm539, %v1792
        %1857 = vst.msk [vmem:[#allocation2 + $0x28] sm:$0xf] %vm539, %v1793
        %1858 = vst.msk [vmem:[#allocation2 + $0x2c] sm:$0xf] %vm539, %v1794
        %1859 = vst.msk [vmem:[#allocation2 + $0x30] sm:$0xf] %vm539, %v1795
        %1860 = vst.msk [vmem:[#allocation2 + $0x34] sm:$0xf] %vm539, %v1796
        %1861 = vst.msk [vmem:[#allocation2 + $0x38] sm:$0xf] %vm539, %v1797
        %1862 = vst.msk [vmem:[#allocation2 + $0x3c] sm:$0xf] %vm539, %v1798
        %1863 = vst.msk [vmem:[#allocation2 + $0x40] sm:$0xf] %vm539, %v1799
        %1864 = vst.msk [vmem:[#allocation2 + $0x44] sm:$0xf] %vm539, %v1800
        %1865 = vst.msk [vmem:[#allocation2 + $0x48] sm:$0xf] %vm539, %v1801
        %1866 = vst.msk [vmem:[#allocation2 + $0x4c] sm:$0xf] %vm539, %v1802
        %1867 = vst.msk [vmem:[#allocation2 + $0x50] sm:$0xf] %vm539, %v1803
        %1868 = vst.msk [vmem:[#allocation2 + $0x54] sm:$0xf] %vm539, %v1804
        %1869 = vst.msk [vmem:[#allocation2 + $0x58] sm:$0xf] %vm539, %v1805
        %1870 = vst.msk [vmem:[#allocation2 + $0x5c] sm:$0xf] %vm539, %v1806
        %1871 = vst.msk [vmem:[#allocation2 + $0x60] sm:$0xf] %vm539, %v1807
        %1872 = vst.msk [vmem:[#allocation2 + $0x64] sm:$0xf] %vm539, %v1808
        %1873 = vst.msk [vmem:[#allocation2 + $0x68] sm:$0xf] %vm539, %v1809
        %1874 = vst.msk [vmem:[#allocation2 + $0x6c] sm:$0xf] %vm539, %v1810
        %1875 = vst.msk [vmem:[#allocation2 + $0x70] sm:$0xf] %vm539, %v1811
        %1876 = vst.msk [vmem:[#allocation2 + $0x74] sm:$0xf] %vm539, %v1812
        %1877 = vst.msk [vmem:[#allocation2 + $0x78] sm:$0xf] %vm539, %v1813
        %1878 = vst.msk [vmem:[#allocation2 + $0x7c] sm:$0xf] %vm539, %v1814
        %1879 = vst.msk [vmem:[#allocation2 + $0x80] sm:$0xf] %vm539, %v1815
        %1880 = vst.msk [vmem:[#allocation2 + $0x84] sm:$0xf] %vm539, %v1816
        %1881 = vst.msk [vmem:[#allocation2 + $0x88] sm:$0xf] %vm539, %v1817
        %1882 = vst.msk [vmem:[#allocation2 + $0x8c] sm:$0xf] %vm539, %v1818
        %1883 = vst.msk [vmem:[#allocation2 + $0x90] sm:$0xf] %vm539, %v1819
        %1884 = vst.msk [vmem:[#allocation2 + $0x94] sm:$0xf] %vm539, %v1820
        %1885 = vst.msk [vmem:[#allocation2 + $0x98] sm:$0xf] %vm539, %v1821
        %1886 = vst.msk [vmem:[#allocation2 + $0x9c] sm:$0xf] %vm539, %v1822
        %v1887 = vld [vmem:[#allocation2 + $0x1c] sm:$0x8]
        %v1888 = vld [vmem:[#allocation2 + $0x20] sm:$0xf]
        %v1889 = vld [vmem:[#allocation2 + $0x24] sm:$0xf]
        %v1890 = vld [vmem:[#allocation2 + $0x28] sm:$0xf]
        %v1891 = vld [vmem:[#allocation2 + $0x2c] sm:$0xf]
        %v1892 = vld [vmem:[#allocation2 + $0x30] sm:$0xf]
        %v1893 = vld [vmem:[#allocation2 + $0x34] sm:$0xf]
        %v1894 = vld [vmem:[#allocation2 + $0x38] sm:$0xf]
        %v1895 = vld [vmem:[#allocation2 + $0x3c] sm:$0xf]
        %v1896 = vld [vmem:[#allocation2 + $0x40] sm:$0xf]
        %v1897 = vld [vmem:[#allocation2 + $0x44] sm:$0xf]
        %v1898 = vld [vmem:[#allocation2 + $0x48] sm:$0xf]
        %v1899 = vld [vmem:[#allocation2 + $0x4c] sm:$0xf]
        %v1900 = vld [vmem:[#allocation2 + $0x50] sm:$0xf]
        %v1901 = vld [vmem:[#allocation2 + $0x54] sm:$0xf]
        %v1902 = vld [vmem:[#allocation2 + $0x58] sm:$0xf]
        %v1903 = vld [vmem:[#allocation2 + $0x5c] sm:$0xf]
        %v1904 = vld [vmem:[#allocation2 + $0x60] sm:$0xf]
        %v1905 = vld [vmem:[#allocation2 + $0x64] sm:$0xf]
        %v1906 = vld [vmem:[#allocation2 + $0x68] sm:$0xf]
        %v1907 = vld [vmem:[#allocation2 + $0x6c] sm:$0xf]
        %v1908 = vld [vmem:[#allocation2 + $0x70] sm:$0xf]
        %v1909 = vld [vmem:[#allocation2 + $0x74] sm:$0xf]
        %v1910 = vld [vmem:[#allocation2 + $0x78] sm:$0xf]
        %v1911 = vld [vmem:[#allocation2 + $0x7c] sm:$0xf]
        %v1912 = vld [vmem:[#allocation2 + $0x80] sm:$0xf]
        %v1913 = vld [vmem:[#allocation2 + $0x84] sm:$0xf]
        %v1914 = vld [vmem:[#allocation2 + $0x88] sm:$0xf]
        %v1915 = vld [vmem:[#allocation2 + $0x8c] sm:$0xf]
        %v1916 = vld [vmem:[#allocation2 + $0x90] sm:$0xf]
        %v1917 = vld [vmem:[#allocation2 + $0x94] sm:$0xf]
        %v1918 = vld [vmem:[#allocation2 + $0x98] sm:$0xf]
        %v1919 = vld [vmem:[#allocation2 + $0x9c] sm:$0xf]
        %vm1920 = vcmp.ge.s32.totalorder %v973, 1
        %vm1921 = vcmp.ge.s32.totalorder %v974, 1
        %vm1922 = vcmp.ge.s32.totalorder %v975, 1
        %vm1923 = vcmp.ge.s32.totalorder %v976, 1
        %vm1924 = vcmp.ge.s32.totalorder %v977, 1
        %vm1925 = vcmp.ge.s32.totalorder %v978, 1
        %vm1926 = vcmp.ge.s32.totalorder %v979, 1
        %vm1927 = vcmp.ge.s32.totalorder %v980, 1
        %vm1928 = vcmp.ge.s32.totalorder %v981, 1
        %vm1929 = vcmp.ge.s32.totalorder %v982, 1
        %vm1930 = vcmp.ge.s32.totalorder %v983, 1
        %vm1931 = vcmp.ge.s32.totalorder %v984, 1
        %vm1932 = vcmp.ge.s32.totalorder %v985, 1
        %vm1933 = vcmp.ge.s32.totalorder %v986, 1
        %vm1934 = vcmp.ge.s32.totalorder %v987, 1
        %vm1935 = vcmp.ge.s32.totalorder %v988, 1
        %vm1936 = vcmp.ge.s32.totalorder %v989, 1
        %vm1937 = vcmp.ge.s32.totalorder %v990, 1
        %vm1938 = vcmp.ge.s32.totalorder %v991, 1
        %vm1939 = vcmp.ge.s32.totalorder %v992, 1
        %vm1940 = vcmp.ge.s32.totalorder %v993, 1
        %vm1941 = vcmp.ge.s32.totalorder %v994, 1
        %vm1942 = vcmp.ge.s32.totalorder %v995, 1
        %vm1943 = vcmp.ge.s32.totalorder %v996, 1
        %vm1944 = vcmp.ge.s32.totalorder %v997, 1
        %vm1945 = vcmp.ge.s32.totalorder %v998, 1
        %vm1946 = vcmp.ge.s32.totalorder %v999, 1
        %vm1947 = vcmp.ge.s32.totalorder %v1000, 1
        %vm1948 = vcmp.ge.s32.totalorder %v1001, 1
        %vm1949 = vcmp.ge.s32.totalorder %v1002, 1
        %vm1950 = vcmp.ge.s32.totalorder %v1003, 1
        %vm1951 = vcmp.ge.s32.totalorder %v1004, 1
        %v1952 = vsel %vm1920, 1, 0
        %v1953 = vsel %vm1921, 1, 0
        %v1954 = vsel %vm1922, 1, 0
        %v1955 = vsel %vm1923, 1, 0
        %v1956 = vsel %vm1924, 1, 0
        %v1957 = vsel %vm1925, 1, 0
        %v1958 = vsel %vm1926, 1, 0
        %v1959 = vsel %vm1927, 1, 0
        %v1960 = vsel %vm1928, 1, 0
        %v1961 = vsel %vm1929, 1, 0
        %v1962 = vsel %vm1930, 1, 0
        %v1963 = vsel %vm1931, 1, 0
        %v1964 = vsel %vm1932, 1, 0
        %v1965 = vsel %vm1933, 1, 0
        %v1966 = vsel %vm1934, 1, 0
        %v1967 = vsel %vm1935, 1, 0
        %v1968 = vsel %vm1936, 1, 0
        %v1969 = vsel %vm1937, 1, 0
        %v1970 = vsel %vm1938, 1, 0
        %v1971 = vsel %vm1939, 1, 0
        %v1972 = vsel %vm1940, 1, 0
        %v1973 = vsel %vm1941, 1, 0
        %v1974 = vsel %vm1942, 1, 0
        %v1975 = vsel %vm1943, 1, 0
        %v1976 = vsel %vm1944, 1, 0
        %v1977 = vsel %vm1945, 1, 0
        %v1978 = vsel %vm1946, 1, 0
        %v1979 = vsel %vm1947, 1, 0
        %v1980 = vsel %vm1948, 1, 0
        %v1981 = vsel %vm1949, 1, 0
        %v1982 = vsel %vm1950, 1, 0
        %v1983 = vsel %vm1951, 1, 0
        %vm1984 = vcmp.eq.s32.totalorder %v1952, 1
        %vm1985 = vcmp.eq.s32.totalorder %v1953, 1
        %vm1986 = vcmp.eq.s32.totalorder %v1954, 1
        %vm1987 = vcmp.eq.s32.totalorder %v1955, 1
        %vm1988 = vcmp.eq.s32.totalorder %v1956, 1
        %vm1989 = vcmp.eq.s32.totalorder %v1957, 1
        %vm1990 = vcmp.eq.s32.totalorder %v1958, 1
        %vm1991 = vcmp.eq.s32.totalorder %v1959, 1
        %vm1992 = vcmp.eq.s32.totalorder %v1960, 1
        %vm1993 = vcmp.eq.s32.totalorder %v1961, 1
        %vm1994 = vcmp.eq.s32.totalorder %v1962, 1
        %vm1995 = vcmp.eq.s32.totalorder %v1963, 1
        %vm1996 = vcmp.eq.s32.totalorder %v1964, 1
        %vm1997 = vcmp.eq.s32.totalorder %v1965, 1
        %vm1998 = vcmp.eq.s32.totalorder %v1966, 1
        %vm1999 = vcmp.eq.s32.totalorder %v1967, 1
        %vm2000 = vcmp.eq.s32.totalorder %v1968, 1
        %vm2001 = vcmp.eq.s32.totalorder %v1969, 1
        %vm2002 = vcmp.eq.s32.totalorder %v1970, 1
        %vm2003 = vcmp.eq.s32.totalorder %v1971, 1
        %vm2004 = vcmp.eq.s32.totalorder %v1972, 1
        %vm2005 = vcmp.eq.s32.totalorder %v1973, 1
        %vm2006 = vcmp.eq.s32.totalorder %v1974, 1
        %vm2007 = vcmp.eq.s32.totalorder %v1975, 1
        %vm2008 = vcmp.eq.s32.totalorder %v1976, 1
        %vm2009 = vcmp.eq.s32.totalorder %v1977, 1
        %vm2010 = vcmp.eq.s32.totalorder %v1978, 1
        %vm2011 = vcmp.eq.s32.totalorder %v1979, 1
        %vm2012 = vcmp.eq.s32.totalorder %v1980, 1
        %vm2013 = vcmp.eq.s32.totalorder %v1981, 1
        %vm2014 = vcmp.eq.s32.totalorder %v1982, 1
        %vm2015 = vcmp.eq.s32.totalorder %v1983, 1
        %vm2016 = vmpackc.low %vm1984, %vm1984
        %vm2017 = vmpackc.low %vm1985, %vm1985
        %vm2018 = vmpackc.low %vm1986, %vm1986
        %vm2019 = vmpackc.low %vm1987, %vm1987
        %vm2020 = vmpackc.low %vm1988, %vm1988
        %vm2021 = vmpackc.low %vm1989, %vm1989
        %vm2022 = vmpackc.low %vm1990, %vm1990
        %vm2023 = vmpackc.low %vm1991, %vm1991
        %vm2024 = vmpackc.low %vm1992, %vm1992
        %vm2025 = vmpackc.low %vm1993, %vm1993
        %vm2026 = vmpackc.low %vm1994, %vm1994
        %vm2027 = vmpackc.low %vm1995, %vm1995
        %vm2028 = vmpackc.low %vm1996, %vm1996
        %vm2029 = vmpackc.low %vm1997, %vm1997
        %vm2030 = vmpackc.low %vm1998, %vm1998
        %vm2031 = vmpackc.low %vm1999, %vm1999
        %vm2032 = vmpackc.low %vm2000, %vm2000
        %vm2033 = vmpackc.low %vm2001, %vm2001
        %vm2034 = vmpackc.low %vm2002, %vm2002
        %vm2035 = vmpackc.low %vm2003, %vm2003
        %vm2036 = vmpackc.low %vm2004, %vm2004
        %vm2037 = vmpackc.low %vm2005, %vm2005
        %vm2038 = vmpackc.low %vm2006, %vm2006
        %vm2039 = vmpackc.low %vm2007, %vm2007
        %vm2040 = vmpackc.low %vm2008, %vm2008
        %vm2041 = vmpackc.low %vm2009, %vm2009
        %vm2042 = vmpackc.low %vm2010, %vm2010
        %vm2043 = vmpackc.low %vm2011, %vm2011
        %vm2044 = vmpackc.low %vm2012, %vm2012
        %vm2045 = vmpackc.low %vm2013, %vm2013
        %vm2046 = vmpackc.low %vm2014, %vm2014
        %vm2047 = vmpackc.low %vm2015, %vm2015
        %v2048 = vsel %vm2016, 65537, 0
        %v2049 = vsel %vm2017, 65537, 0
        %v2050 = vsel %vm2018, 65537, 0
        %v2051 = vsel %vm2019, 65537, 0
        %v2052 = vsel %vm2020, 65537, 0
        %v2053 = vsel %vm2021, 65537, 0
        %v2054 = vsel %vm2022, 65537, 0
        %v2055 = vsel %vm2023, 65537, 0
        %v2056 = vsel %vm2024, 65537, 0
        %v2057 = vsel %vm2025, 65537, 0
        %v2058 = vsel %vm2026, 65537, 0
        %v2059 = vsel %vm2027, 65537, 0
        %v2060 = vsel %vm2028, 65537, 0
        %v2061 = vsel %vm2029, 65537, 0
        %v2062 = vsel %vm2030, 65537, 0
        %v2063 = vsel %vm2031, 65537, 0
        %v2064 = vsel %vm2032, 65537, 0
        %v2065 = vsel %vm2033, 65537, 0
        %v2066 = vsel %vm2034, 65537, 0
        %v2067 = vsel %vm2035, 65537, 0
        %v2068 = vsel %vm2036, 65537, 0
        %v2069 = vsel %vm2037, 65537, 0
        %v2070 = vsel %vm2038, 65537, 0
        %v2071 = vsel %vm2039, 65537, 0
        %v2072 = vsel %vm2040, 65537, 0
        %v2073 = vsel %vm2041, 65537, 0
        %v2074 = vsel %vm2042, 65537, 0
        %v2075 = vsel %vm2043, 65537, 0
        %v2076 = vsel %vm2044, 65537, 0
        %v2077 = vsel %vm2045, 65537, 0
        %v2078 = vsel %vm2046, 65537, 0
        %v2079 = vsel %vm2047, 65537, 0
        %vm2080 = vsmask.f32 3328
        %vm2081 = vsmask.f32 7440
        %vm2082 = vmor %vm2080, %vm2081
        %v2084 = vshll.u32 %v2048, 16
        %v2086 = vrot.slane %v2084, 5
        %v2087 = vshrl.u32 %v2048, 16
        %v2089 = vrot.slane %v2087, 4
        %v2090 = vor.u32 %v2089, %v2086
        %v2091 = vrot.slane %v2090, 4
        %v2093 = vshll.u32 %v2049, 16
        %v2095 = vrot.slane %v2093, 5
        %v2096 = vsel %vm2082, %v2091, %v2095
        %v2097 = vshrl.u32 %v2049, 16
        %v2099 = vrot.slane %v2097, 4
        %v2100 = vor.u32 %v2099, %v2095
        %v2101 = vrot.slane %v2100, 4
        %v2103 = vshll.u32 %v2050, 16
        %v2105 = vrot.slane %v2103, 5
        %v2106 = vsel %vm2082, %v2101, %v2105
        %v2107 = vshrl.u32 %v2050, 16
        %v2109 = vrot.slane %v2107, 4
        %v2110 = vor.u32 %v2109, %v2105
        %v2111 = vrot.slane %v2110, 4
        %v2113 = vshll.u32 %v2051, 16
        %v2115 = vrot.slane %v2113, 5
        %v2116 = vsel %vm2082, %v2111, %v2115
        %v2117 = vshrl.u32 %v2051, 16
        %v2119 = vrot.slane %v2117, 4
        %v2120 = vor.u32 %v2119, %v2115
        %v2121 = vrot.slane %v2120, 4
        %v2123 = vshll.u32 %v2052, 16
        %v2125 = vrot.slane %v2123, 5
        %v2126 = vsel %vm2082, %v2121, %v2125
        %v2127 = vshrl.u32 %v2052, 16
        %v2129 = vrot.slane %v2127, 4
        %v2130 = vor.u32 %v2129, %v2125
        %v2131 = vrot.slane %v2130, 4
        %v2133 = vshll.u32 %v2053, 16
        %v2135 = vrot.slane %v2133, 5
        %v2136 = vsel %vm2082, %v2131, %v2135
        %v2137 = vshrl.u32 %v2053, 16
        %v2139 = vrot.slane %v2137, 4
        %v2140 = vor.u32 %v2139, %v2135
        %v2141 = vrot.slane %v2140, 4
        %v2143 = vshll.u32 %v2054, 16
        %v2145 = vrot.slane %v2143, 5
        %v2146 = vsel %vm2082, %v2141, %v2145
        %v2147 = vshrl.u32 %v2054, 16
        %v2149 = vrot.slane %v2147, 4
        %v2150 = vor.u32 %v2149, %v2145
        %v2151 = vrot.slane %v2150, 4
        %v2153 = vshll.u32 %v2055, 16
        %v2155 = vrot.slane %v2153, 5
        %v2156 = vsel %vm2082, %v2151, %v2155
        %v2157 = vshrl.u32 %v2055, 16
        %v2159 = vrot.slane %v2157, 4
        %v2160 = vor.u32 %v2159, %v2155
        %v2161 = vrot.slane %v2160, 4
        %v2163 = vshll.u32 %v2056, 16
        %v2165 = vrot.slane %v2163, 5
        %v2166 = vsel %vm2082, %v2161, %v2165
        %v2167 = vshrl.u32 %v2056, 16
        %v2169 = vrot.slane %v2167, 4
        %v2170 = vor.u32 %v2169, %v2165
        %v2171 = vrot.slane %v2170, 4
        %v2173 = vshll.u32 %v2057, 16
        %v2175 = vrot.slane %v2173, 5
        %v2176 = vsel %vm2082, %v2171, %v2175
        %v2177 = vshrl.u32 %v2057, 16
        %v2179 = vrot.slane %v2177, 4
        %v2180 = vor.u32 %v2179, %v2175
        %v2181 = vrot.slane %v2180, 4
        %v2183 = vshll.u32 %v2058, 16
        %v2185 = vrot.slane %v2183, 5
        %v2186 = vsel %vm2082, %v2181, %v2185
        %v2187 = vshrl.u32 %v2058, 16
        %v2189 = vrot.slane %v2187, 4
        %v2190 = vor.u32 %v2189, %v2185
        %v2191 = vrot.slane %v2190, 4
        %v2193 = vshll.u32 %v2059, 16
        %v2195 = vrot.slane %v2193, 5
        %v2196 = vsel %vm2082, %v2191, %v2195
        %v2197 = vshrl.u32 %v2059, 16
        %v2199 = vrot.slane %v2197, 4
        %v2200 = vor.u32 %v2199, %v2195
        %v2201 = vrot.slane %v2200, 4
        %v2203 = vshll.u32 %v2060, 16
        %v2205 = vrot.slane %v2203, 5
        %v2206 = vsel %vm2082, %v2201, %v2205
        %v2207 = vshrl.u32 %v2060, 16
        %v2209 = vrot.slane %v2207, 4
        %v2210 = vor.u32 %v2209, %v2205
        %v2211 = vrot.slane %v2210, 4
        %v2213 = vshll.u32 %v2061, 16
        %v2215 = vrot.slane %v2213, 5
        %v2216 = vsel %vm2082, %v2211, %v2215
        %v2217 = vshrl.u32 %v2061, 16
        %v2219 = vrot.slane %v2217, 4
        %v2220 = vor.u32 %v2219, %v2215
        %v2221 = vrot.slane %v2220, 4
        %v2223 = vshll.u32 %v2062, 16
        %v2225 = vrot.slane %v2223, 5
        %v2226 = vsel %vm2082, %v2221, %v2225
        %v2227 = vshrl.u32 %v2062, 16
        %v2229 = vrot.slane %v2227, 4
        %v2230 = vor.u32 %v2229, %v2225
        %v2231 = vrot.slane %v2230, 4
        %v2233 = vshll.u32 %v2063, 16
        %v2235 = vrot.slane %v2233, 5
        %v2236 = vsel %vm2082, %v2231, %v2235
        %v2237 = vshrl.u32 %v2063, 16
        %v2239 = vrot.slane %v2237, 4
        %v2240 = vor.u32 %v2239, %v2235
        %v2241 = vrot.slane %v2240, 4
        %v2243 = vshll.u32 %v2064, 16
        %v2245 = vrot.slane %v2243, 5
        %v2246 = vsel %vm2082, %v2241, %v2245
        %v2247 = vshrl.u32 %v2064, 16
        %v2249 = vrot.slane %v2247, 4
        %v2250 = vor.u32 %v2249, %v2245
        %v2251 = vrot.slane %v2250, 4
        %v2253 = vshll.u32 %v2065, 16
        %v2255 = vrot.slane %v2253, 5
        %v2256 = vsel %vm2082, %v2251, %v2255
        %v2257 = vshrl.u32 %v2065, 16
        %v2259 = vrot.slane %v2257, 4
        %v2260 = vor.u32 %v2259, %v2255
        %v2261 = vrot.slane %v2260, 4
        %v2263 = vshll.u32 %v2066, 16
        %v2265 = vrot.slane %v2263, 5
        %v2266 = vsel %vm2082, %v2261, %v2265
        %v2267 = vshrl.u32 %v2066, 16
        %v2269 = vrot.slane %v2267, 4
        %v2270 = vor.u32 %v2269, %v2265
        %v2271 = vrot.slane %v2270, 4
        %v2273 = vshll.u32 %v2067, 16
        %v2275 = vrot.slane %v2273, 5
        %v2276 = vsel %vm2082, %v2271, %v2275
        %v2277 = vshrl.u32 %v2067, 16
        %v2279 = vrot.slane %v2277, 4
        %v2280 = vor.u32 %v2279, %v2275
        %v2281 = vrot.slane %v2280, 4
        %v2283 = vshll.u32 %v2068, 16
        %v2285 = vrot.slane %v2283, 5
        %v2286 = vsel %vm2082, %v2281, %v2285
        %v2287 = vshrl.u32 %v2068, 16
        %v2289 = vrot.slane %v2287, 4
        %v2290 = vor.u32 %v2289, %v2285
        %v2291 = vrot.slane %v2290, 4
        %v2293 = vshll.u32 %v2069, 16
        %v2295 = vrot.slane %v2293, 5
        %v2296 = vsel %vm2082, %v2291, %v2295
        %v2297 = vshrl.u32 %v2069, 16
        %v2299 = vrot.slane %v2297, 4
        %v2300 = vor.u32 %v2299, %v2295
        %v2301 = vrot.slane %v2300, 4
        %v2303 = vshll.u32 %v2070, 16
        %v2305 = vrot.slane %v2303, 5
        %v2306 = vsel %vm2082, %v2301, %v2305
        %v2307 = vshrl.u32 %v2070, 16
        %v2309 = vrot.slane %v2307, 4
        %v2310 = vor.u32 %v2309, %v2305
        %v2311 = vrot.slane %v2310, 4
        %v2313 = vshll.u32 %v2071, 16
        %v2315 = vrot.slane %v2313, 5
        %v2316 = vsel %vm2082, %v2311, %v2315
        %v2317 = vshrl.u32 %v2071, 16
        %v2319 = vrot.slane %v2317, 4
        %v2320 = vor.u32 %v2319, %v2315
        %v2321 = vrot.slane %v2320, 4
        %v2323 = vshll.u32 %v2072, 16
        %v2325 = vrot.slane %v2323, 5
        %v2326 = vsel %vm2082, %v2321, %v2325
        %v2327 = vshrl.u32 %v2072, 16
        %v2329 = vrot.slane %v2327, 4
        %v2330 = vor.u32 %v2329, %v2325
        %v2331 = vrot.slane %v2330, 4
        %v2333 = vshll.u32 %v2073, 16
        %v2335 = vrot.slane %v2333, 5
        %v2336 = vsel %vm2082, %v2331, %v2335
        %v2337 = vshrl.u32 %v2073, 16
        %v2339 = vrot.slane %v2337, 4
        %v2340 = vor.u32 %v2339, %v2335
        %v2341 = vrot.slane %v2340, 4
        %v2343 = vshll.u32 %v2074, 16
        %v2345 = vrot.slane %v2343, 5
        %v2346 = vsel %vm2082, %v2341, %v2345
        %v2347 = vshrl.u32 %v2074, 16
        %v2349 = vrot.slane %v2347, 4
        %v2350 = vor.u32 %v2349, %v2345
        %v2351 = vrot.slane %v2350, 4
        %v2353 = vshll.u32 %v2075, 16
        %v2355 = vrot.slane %v2353, 5
        %v2356 = vsel %vm2082, %v2351, %v2355
        %v2357 = vshrl.u32 %v2075, 16
        %v2359 = vrot.slane %v2357, 4
        %v2360 = vor.u32 %v2359, %v2355
        %v2361 = vrot.slane %v2360, 4
        %v2363 = vshll.u32 %v2076, 16
        %v2365 = vrot.slane %v2363, 5
        %v2366 = vsel %vm2082, %v2361, %v2365
        %v2367 = vshrl.u32 %v2076, 16
        %v2369 = vrot.slane %v2367, 4
        %v2370 = vor.u32 %v2369, %v2365
        %v2371 = vrot.slane %v2370, 4
        %v2373 = vshll.u32 %v2077, 16
        %v2375 = vrot.slane %v2373, 5
        %v2376 = vsel %vm2082, %v2371, %v2375
        %v2377 = vshrl.u32 %v2077, 16
        %v2379 = vrot.slane %v2377, 4
        %v2380 = vor.u32 %v2379, %v2375
        %v2381 = vrot.slane %v2380, 4
        %v2383 = vshll.u32 %v2078, 16
        %v2385 = vrot.slane %v2383, 5
        %v2386 = vsel %vm2082, %v2381, %v2385
        %v2387 = vshrl.u32 %v2078, 16
        %v2389 = vrot.slane %v2387, 4
        %v2390 = vor.u32 %v2389, %v2385
        %v2391 = vrot.slane %v2390, 4
        %v2393 = vshll.u32 %v2079, 16
        %v2395 = vrot.slane %v2393, 5
        %v2396 = vsel %vm2082, %v2391, %v2395
        %v2397 = vshrl.u32 %v2079, 16
        %v2399 = vrot.slane %v2397, 4
        %v2400 = vor.u32 %v2399, %v2395
        %v2401 = vrot.slane %v2400, 4
        %vm2402 = vcmp.ne.s16.totalorder %v2086, 0
        %vm2403 = vcmp.ne.s16.totalorder %v2096, 0
        %vm2404 = vcmp.ne.s16.totalorder %v2106, 0
        %vm2405 = vcmp.ne.s16.totalorder %v2116, 0
        %vm2406 = vcmp.ne.s16.totalorder %v2126, 0
        %vm2407 = vcmp.ne.s16.totalorder %v2136, 0
        %vm2408 = vcmp.ne.s16.totalorder %v2146, 0
        %vm2409 = vcmp.ne.s16.totalorder %v2156, 0
        %vm2410 = vcmp.ne.s16.totalorder %v2166, 0
        %vm2411 = vcmp.ne.s16.totalorder %v2176, 0
        %vm2412 = vcmp.ne.s16.totalorder %v2186, 0
        %vm2413 = vcmp.ne.s16.totalorder %v2196, 0
        %vm2414 = vcmp.ne.s16.totalorder %v2206, 0
        %vm2415 = vcmp.ne.s16.totalorder %v2216, 0
        %vm2416 = vcmp.ne.s16.totalorder %v2226, 0
        %vm2417 = vcmp.ne.s16.totalorder %v2236, 0
        %vm2418 = vcmp.ne.s16.totalorder %v2246, 0
        %vm2419 = vcmp.ne.s16.totalorder %v2256, 0
        %vm2420 = vcmp.ne.s16.totalorder %v2266, 0
        %vm2421 = vcmp.ne.s16.totalorder %v2276, 0
        %vm2422 = vcmp.ne.s16.totalorder %v2286, 0
        %vm2423 = vcmp.ne.s16.totalorder %v2296, 0
        %vm2424 = vcmp.ne.s16.totalorder %v2306, 0
        %vm2425 = vcmp.ne.s16.totalorder %v2316, 0
        %vm2426 = vcmp.ne.s16.totalorder %v2326, 0
        %vm2427 = vcmp.ne.s16.totalorder %v2336, 0
        %vm2428 = vcmp.ne.s16.totalorder %v2346, 0
        %vm2429 = vcmp.ne.s16.totalorder %v2356, 0
        %vm2430 = vcmp.ne.s16.totalorder %v2366, 0
        %vm2431 = vcmp.ne.s16.totalorder %v2376, 0
        %vm2432 = vcmp.ne.s16.totalorder %v2386, 0
        %vm2433 = vcmp.ne.s16.totalorder %v2396, 0
        %vm2434 = vcmp.ne.s16.totalorder %v2401, 0
        %v2435 = vsel %vm2402, %v1887, 0
        %v2436 = vsel %vm2403, %v1888, 0
        %v2437 = vsel %vm2404, %v1889, 0
        %v2438 = vsel %vm2405, %v1890, 0
        %v2439 = vsel %vm2406, %v1891, 0
        %v2440 = vsel %vm2407, %v1892, 0
        %v2441 = vsel %vm2408, %v1893, 0
        %v2442 = vsel %vm2409, %v1894, 0
        %v2443 = vsel %vm2410, %v1895, 0
        %v2444 = vsel %vm2411, %v1896, 0
        %v2445 = vsel %vm2412, %v1897, 0
        %v2446 = vsel %vm2413, %v1898, 0
        %v2447 = vsel %vm2414, %v1899, 0
        %v2448 = vsel %vm2415, %v1900, 0
        %v2449 = vsel %vm2416, %v1901, 0
        %v2450 = vsel %vm2417, %v1902, 0
        %v2451 = vsel %vm2418, %v1903, 0
        %v2452 = vsel %vm2419, %v1904, 0
        %v2453 = vsel %vm2420, %v1905, 0
        %v2454 = vsel %vm2421, %v1906, 0
        %v2455 = vsel %vm2422, %v1907, 0
        %v2456 = vsel %vm2423, %v1908, 0
        %v2457 = vsel %vm2424, %v1909, 0
        %v2458 = vsel %vm2425, %v1910, 0
        %v2459 = vsel %vm2426, %v1911, 0
        %v2460 = vsel %vm2427, %v1912, 0
        %v2461 = vsel %vm2428, %v1913, 0
        %v2462 = vsel %vm2429, %v1914, 0
        %v2463 = vsel %vm2430, %v1915, 0
        %v2464 = vsel %vm2431, %v1916, 0
        %v2465 = vsel %vm2432, %v1917, 0
        %v2466 = vsel %vm2433, %v1918, 0
        %v2467 = vsel %vm2434, %v1919, 0
        %v2468 = vld [vmem:[#allocation2 + $0xa0] sm:$0x1]
        %vm2469 = vcmp.lt.s32.totalorder %v973, 15
        %vm2470 = vcmp.lt.s32.totalorder %v974, 15
        %vm2471 = vcmp.lt.s32.totalorder %v975, 15
        %vm2472 = vcmp.lt.s32.totalorder %v976, 15
        %vm2473 = vcmp.lt.s32.totalorder %v977, 15
        %vm2474 = vcmp.lt.s32.totalorder %v978, 15
        %vm2475 = vcmp.lt.s32.totalorder %v979, 15
        %vm2476 = vcmp.lt.s32.totalorder %v980, 15
        %vm2477 = vcmp.lt.s32.totalorder %v981, 15
        %vm2478 = vcmp.lt.s32.totalorder %v982, 15
        %vm2479 = vcmp.lt.s32.totalorder %v983, 15
        %vm2480 = vcmp.lt.s32.totalorder %v984, 15
        %vm2481 = vcmp.lt.s32.totalorder %v985, 15
        %vm2482 = vcmp.lt.s32.totalorder %v986, 15
        %vm2483 = vcmp.lt.s32.totalorder %v987, 15
        %vm2484 = vcmp.lt.s32.totalorder %v988, 15
        %vm2485 = vcmp.lt.s32.totalorder %v989, 15
        %vm2486 = vcmp.lt.s32.totalorder %v990, 15
        %vm2487 = vcmp.lt.s32.totalorder %v991, 15
        %vm2488 = vcmp.lt.s32.totalorder %v992, 15
        %vm2489 = vcmp.lt.s32.totalorder %v993, 15
        %vm2490 = vcmp.lt.s32.totalorder %v994, 15
        %vm2491 = vcmp.lt.s32.totalorder %v995, 15
        %vm2492 = vcmp.lt.s32.totalorder %v996, 15
        %vm2493 = vcmp.lt.s32.totalorder %v997, 15
        %vm2494 = vcmp.lt.s32.totalorder %v998, 15
        %vm2495 = vcmp.lt.s32.totalorder %v999, 15
        %vm2496 = vcmp.lt.s32.totalorder %v1000, 15
        %vm2497 = vcmp.lt.s32.totalorder %v1001, 15
        %vm2498 = vcmp.lt.s32.totalorder %v1002, 15
        %vm2499 = vcmp.lt.s32.totalorder %v1003, 15
        %vm2500 = vcmp.lt.s32.totalorder %v1004, 15
        %v2501 = vsel %vm2469, 1, 0
        %v2502 = vsel %vm2470, 1, 0
        %v2503 = vsel %vm2471, 1, 0
        %v2504 = vsel %vm2472, 1, 0
        %v2505 = vsel %vm2473, 1, 0
        %v2506 = vsel %vm2474, 1, 0
        %v2507 = vsel %vm2475, 1, 0
        %v2508 = vsel %vm2476, 1, 0
        %v2509 = vsel %vm2477, 1, 0
        %v2510 = vsel %vm2478, 1, 0
        %v2511 = vsel %vm2479, 1, 0
        %v2512 = vsel %vm2480, 1, 0
        %v2513 = vsel %vm2481, 1, 0
        %v2514 = vsel %vm2482, 1, 0
        %v2515 = vsel %vm2483, 1, 0
        %v2516 = vsel %vm2484, 1, 0
        %v2517 = vsel %vm2485, 1, 0
        %v2518 = vsel %vm2486, 1, 0
        %v2519 = vsel %vm2487, 1, 0
        %v2520 = vsel %vm2488, 1, 0
        %v2521 = vsel %vm2489, 1, 0
        %v2522 = vsel %vm2490, 1, 0
        %v2523 = vsel %vm2491, 1, 0
        %v2524 = vsel %vm2492, 1, 0
        %v2525 = vsel %vm2493, 1, 0
        %v2526 = vsel %vm2494, 1, 0
        %v2527 = vsel %vm2495, 1, 0
        %v2528 = vsel %vm2496, 1, 0
        %v2529 = vsel %vm2497, 1, 0
        %v2530 = vsel %vm2498, 1, 0
        %v2531 = vsel %vm2499, 1, 0
        %v2532 = vsel %vm2500, 1, 0
        %vm2533 = vcmp.eq.s32.totalorder %v2501, 1
        %vm2534 = vcmp.eq.s32.totalorder %v2502, 1
        %vm2535 = vcmp.eq.s32.totalorder %v2503, 1
        %vm2536 = vcmp.eq.s32.totalorder %v2504, 1
        %vm2537 = vcmp.eq.s32.totalorder %v2505, 1
        %vm2538 = vcmp.eq.s32.totalorder %v2506, 1
        %vm2539 = vcmp.eq.s32.totalorder %v2507, 1
        %vm2540 = vcmp.eq.s32.totalorder %v2508, 1
        %vm2541 = vcmp.eq.s32.totalorder %v2509, 1
        %vm2542 = vcmp.eq.s32.totalorder %v2510, 1
        %vm2543 = vcmp.eq.s32.totalorder %v2511, 1
        %vm2544 = vcmp.eq.s32.totalorder %v2512, 1
        %vm2545 = vcmp.eq.s32.totalorder %v2513, 1
        %vm2546 = vcmp.eq.s32.totalorder %v2514, 1
        %vm2547 = vcmp.eq.s32.totalorder %v2515, 1
        %vm2548 = vcmp.eq.s32.totalorder %v2516, 1
        %vm2549 = vcmp.eq.s32.totalorder %v2517, 1
        %vm2550 = vcmp.eq.s32.totalorder %v2518, 1
        %vm2551 = vcmp.eq.s32.totalorder %v2519, 1
        %vm2552 = vcmp.eq.s32.totalorder %v2520, 1
        %vm2553 = vcmp.eq.s32.totalorder %v2521, 1
        %vm2554 = vcmp.eq.s32.totalorder %v2522, 1
        %vm2555 = vcmp.eq.s32.totalorder %v2523, 1
        %vm2556 = vcmp.eq.s32.totalorder %v2524, 1
        %vm2557 = vcmp.eq.s32.totalorder %v2525, 1
        %vm2558 = vcmp.eq.s32.totalorder %v2526, 1
        %vm2559 = vcmp.eq.s32.totalorder %v2527, 1
        %vm2560 = vcmp.eq.s32.totalorder %v2528, 1
        %vm2561 = vcmp.eq.s32.totalorder %v2529, 1
        %vm2562 = vcmp.eq.s32.totalorder %v2530, 1
        %vm2563 = vcmp.eq.s32.totalorder %v2531, 1
        %vm2564 = vcmp.eq.s32.totalorder %v2532, 1
        %vm2565 = vmpackc.low %vm2533, %vm2533
        %vm2566 = vmpackc.low %vm2534, %vm2534
        %vm2567 = vmpackc.low %vm2535, %vm2535
        %vm2568 = vmpackc.low %vm2536, %vm2536
        %vm2569 = vmpackc.low %vm2537, %vm2537
        %vm2570 = vmpackc.low %vm2538, %vm2538
        %vm2571 = vmpackc.low %vm2539, %vm2539
        %vm2572 = vmpackc.low %vm2540, %vm2540
        %vm2573 = vmpackc.low %vm2541, %vm2541
        %vm2574 = vmpackc.low %vm2542, %vm2542
        %vm2575 = vmpackc.low %vm2543, %vm2543
        %vm2576 = vmpackc.low %vm2544, %vm2544
        %vm2577 = vmpackc.low %vm2545, %vm2545
        %vm2578 = vmpackc.low %vm2546, %vm2546
        %vm2579 = vmpackc.low %vm2547, %vm2547
        %vm2580 = vmpackc.low %vm2548, %vm2548
        %vm2581 = vmpackc.low %vm2549, %vm2549
        %vm2582 = vmpackc.low %vm2550, %vm2550
        %vm2583 = vmpackc.low %vm2551, %vm2551
        %vm2584 = vmpackc.low %vm2552, %vm2552
        %vm2585 = vmpackc.low %vm2553, %vm2553
        %vm2586 = vmpackc.low %vm2554, %vm2554
        %vm2587 = vmpackc.low %vm2555, %vm2555
        %vm2588 = vmpackc.low %vm2556, %vm2556
        %vm2589 = vmpackc.low %vm2557, %vm2557
        %vm2590 = vmpackc.low %vm2558, %vm2558
        %vm2591 = vmpackc.low %vm2559, %vm2559
        %vm2592 = vmpackc.low %vm2560, %vm2560
        %vm2593 = vmpackc.low %vm2561, %vm2561
        %vm2594 = vmpackc.low %vm2562, %vm2562
        %vm2595 = vmpackc.low %vm2563, %vm2563
        %vm2596 = vmpackc.low %vm2564, %vm2564
        %v2597 = vsel %vm2565, 65537, 0
        %v2598 = vsel %vm2566, 65537, 0
        %v2599 = vsel %vm2567, 65537, 0
        %v2600 = vsel %vm2568, 65537, 0
        %v2601 = vsel %vm2569, 65537, 0
        %v2602 = vsel %vm2570, 65537, 0
        %v2603 = vsel %vm2571, 65537, 0
        %v2604 = vsel %vm2572, 65537, 0
        %v2605 = vsel %vm2573, 65537, 0
        %v2606 = vsel %vm2574, 65537, 0
        %v2607 = vsel %vm2575, 65537, 0
        %v2608 = vsel %vm2576, 65537, 0
        %v2609 = vsel %vm2577, 65537, 0
        %v2610 = vsel %vm2578, 65537, 0
        %v2611 = vsel %vm2579, 65537, 0
        %v2612 = vsel %vm2580, 65537, 0
        %v2613 = vsel %vm2581, 65537, 0
        %v2614 = vsel %vm2582, 65537, 0
        %v2615 = vsel %vm2583, 65537, 0
        %v2616 = vsel %vm2584, 65537, 0
        %v2617 = vsel %vm2585, 65537, 0
        %v2618 = vsel %vm2586, 65537, 0
        %v2619 = vsel %vm2587, 65537, 0
        %v2620 = vsel %vm2588, 65537, 0
        %v2621 = vsel %vm2589, 65537, 0
        %v2622 = vsel %vm2590, 65537, 0
        %v2623 = vsel %vm2591, 65537, 0
        %v2624 = vsel %vm2592, 65537, 0
        %v2625 = vsel %vm2593, 65537, 0
        %v2626 = vsel %vm2594, 65537, 0
        %v2627 = vsel %vm2595, 65537, 0
        %v2628 = vsel %vm2596, 65537, 0
        %vm2629 = vsmask.f32 256
        %vm2630 = vsmask.f32 4368
        %vm2631 = vmor %vm2629, %vm2630
        %v2633 = vshrl.u32 %v2597, 16
        %v2635 = vrot.slane %v2633, 7
        %v2636 = vshll.u32 %v2597, 16
        %v2638 = vor.u32 %v2635, %v2636
        %v2639 = vrot.slane %v2635, 4
        %v2641 = vshrl.u32 %v2598, 16
        %v2643 = vrot.slane %v2641, 7
        %v2644 = vshll.u32 %v2598, 16
        %v2646 = vor.u32 %v2643, %v2644
        %v2647 = vsel %vm2631, %v2639, %v2646
        %v2648 = vrot.slane %v2643, 4
        %v2650 = vshrl.u32 %v2599, 16
        %v2652 = vrot.slane %v2650, 7
        %v2653 = vshll.u32 %v2599, 16
        %v2655 = vor.u32 %v2652, %v2653
        %v2656 = vsel %vm2631, %v2648, %v2655
        %v2657 = vrot.slane %v2652, 4
        %v2659 = vshrl.u32 %v2600, 16
        %v2661 = vrot.slane %v2659, 7
        %v2662 = vshll.u32 %v2600, 16
        %v2664 = vor.u32 %v2661, %v2662
        %v2665 = vsel %vm2631, %v2657, %v2664
        %v2666 = vrot.slane %v2661, 4
        %v2668 = vshrl.u32 %v2601, 16
        %v2670 = vrot.slane %v2668, 7
        %v2671 = vshll.u32 %v2601, 16
        %v2673 = vor.u32 %v2670, %v2671
        %v2674 = vsel %vm2631, %v2666, %v2673
        %v2675 = vrot.slane %v2670, 4
        %v2677 = vshrl.u32 %v2602, 16
        %v2679 = vrot.slane %v2677, 7
        %v2680 = vshll.u32 %v2602, 16
        %v2682 = vor.u32 %v2679, %v2680
        %v2683 = vsel %vm2631, %v2675, %v2682
        %v2684 = vrot.slane %v2679, 4
        %v2686 = vshrl.u32 %v2603, 16
        %v2688 = vrot.slane %v2686, 7
        %v2689 = vshll.u32 %v2603, 16
        %v2691 = vor.u32 %v2688, %v2689
        %v2692 = vsel %vm2631, %v2684, %v2691
        %v2693 = vrot.slane %v2688, 4
        %v2695 = vshrl.u32 %v2604, 16
        %v2697 = vrot.slane %v2695, 7
        %v2698 = vshll.u32 %v2604, 16
        %v2700 = vor.u32 %v2697, %v2698
        %v2701 = vsel %vm2631, %v2693, %v2700
        %v2702 = vrot.slane %v2697, 4
        %v2704 = vshrl.u32 %v2605, 16
        %v2706 = vrot.slane %v2704, 7
        %v2707 = vshll.u32 %v2605, 16
        %v2709 = vor.u32 %v2706, %v2707
        %v2710 = vsel %vm2631, %v2702, %v2709
        %v2711 = vrot.slane %v2706, 4
        %v2713 = vshrl.u32 %v2606, 16
        %v2715 = vrot.slane %v2713, 7
        %v2716 = vshll.u32 %v2606, 16
        %v2718 = vor.u32 %v2715, %v2716
        %v2719 = vsel %vm2631, %v2711, %v2718
        %v2720 = vrot.slane %v2715, 4
        %v2722 = vshrl.u32 %v2607, 16
        %v2724 = vrot.slane %v2722, 7
        %v2725 = vshll.u32 %v2607, 16
        %v2727 = vor.u32 %v2724, %v2725
        %v2728 = vsel %vm2631, %v2720, %v2727
        %v2729 = vrot.slane %v2724, 4
        %v2731 = vshrl.u32 %v2608, 16
        %v2733 = vrot.slane %v2731, 7
        %v2734 = vshll.u32 %v2608, 16
        %v2736 = vor.u32 %v2733, %v2734
        %v2737 = vsel %vm2631, %v2729, %v2736
        %v2738 = vrot.slane %v2733, 4
        %v2740 = vshrl.u32 %v2609, 16
        %v2742 = vrot.slane %v2740, 7
        %v2743 = vshll.u32 %v2609, 16
        %v2745 = vor.u32 %v2742, %v2743
        %v2746 = vsel %vm2631, %v2738, %v2745
        %v2747 = vrot.slane %v2742, 4
        %v2749 = vshrl.u32 %v2610, 16
        %v2751 = vrot.slane %v2749, 7
        %v2752 = vshll.u32 %v2610, 16
        %v2754 = vor.u32 %v2751, %v2752
        %v2755 = vsel %vm2631, %v2747, %v2754
        %v2756 = vrot.slane %v2751, 4
        %v2758 = vshrl.u32 %v2611, 16
        %v2760 = vrot.slane %v2758, 7
        %v2761 = vshll.u32 %v2611, 16
        %v2763 = vor.u32 %v2760, %v2761
        %v2764 = vsel %vm2631, %v2756, %v2763
        %v2765 = vrot.slane %v2760, 4
        %v2767 = vshrl.u32 %v2612, 16
        %v2769 = vrot.slane %v2767, 7
        %v2770 = vshll.u32 %v2612, 16
        %v2772 = vor.u32 %v2769, %v2770
        %v2773 = vsel %vm2631, %v2765, %v2772
        %v2774 = vrot.slane %v2769, 4
        %v2776 = vshrl.u32 %v2613, 16
        %v2778 = vrot.slane %v2776, 7
        %v2779 = vshll.u32 %v2613, 16
        %v2781 = vor.u32 %v2778, %v2779
        %v2782 = vsel %vm2631, %v2774, %v2781
        %v2783 = vrot.slane %v2778, 4
        %v2785 = vshrl.u32 %v2614, 16
        %v2787 = vrot.slane %v2785, 7
        %v2788 = vshll.u32 %v2614, 16
        %v2790 = vor.u32 %v2787, %v2788
        %v2791 = vsel %vm2631, %v2783, %v2790
        %v2792 = vrot.slane %v2787, 4
        %v2794 = vshrl.u32 %v2615, 16
        %v2796 = vrot.slane %v2794, 7
        %v2797 = vshll.u32 %v2615, 16
        %v2799 = vor.u32 %v2796, %v2797
        %v2800 = vsel %vm2631, %v2792, %v2799
        %v2801 = vrot.slane %v2796, 4
        %v2803 = vshrl.u32 %v2616, 16
        %v2805 = vrot.slane %v2803, 7
        %v2806 = vshll.u32 %v2616, 16
        %v2808 = vor.u32 %v2805, %v2806
        %v2809 = vsel %vm2631, %v2801, %v2808
        %v2810 = vrot.slane %v2805, 4
        %v2812 = vshrl.u32 %v2617, 16
        %v2814 = vrot.slane %v2812, 7
        %v2815 = vshll.u32 %v2617, 16
        %v2817 = vor.u32 %v2814, %v2815
        %v2818 = vsel %vm2631, %v2810, %v2817
        %v2819 = vrot.slane %v2814, 4
        %v2821 = vshrl.u32 %v2618, 16
        %v2823 = vrot.slane %v2821, 7
        %v2824 = vshll.u32 %v2618, 16
        %v2826 = vor.u32 %v2823, %v2824
        %v2827 = vsel %vm2631, %v2819, %v2826
        %v2828 = vrot.slane %v2823, 4
        %v2830 = vshrl.u32 %v2619, 16
        %v2832 = vrot.slane %v2830, 7
        %v2833 = vshll.u32 %v2619, 16
        %v2835 = vor.u32 %v2832, %v2833
        %v2836 = vsel %vm2631, %v2828, %v2835
        %v2837 = vrot.slane %v2832, 4
        %v2839 = vshrl.u32 %v2620, 16
        %v2841 = vrot.slane %v2839, 7
        %v2842 = vshll.u32 %v2620, 16
        %v2844 = vor.u32 %v2841, %v2842
        %v2845 = vsel %vm2631, %v2837, %v2844
        %v2846 = vrot.slane %v2841, 4
        %v2848 = vshrl.u32 %v2621, 16
        %v2850 = vrot.slane %v2848, 7
        %v2851 = vshll.u32 %v2621, 16
        %v2853 = vor.u32 %v2850, %v2851
        %v2854 = vsel %vm2631, %v2846, %v2853
        %v2855 = vrot.slane %v2850, 4
        %v2857 = vshrl.u32 %v2622, 16
        %v2859 = vrot.slane %v2857, 7
        %v2860 = vshll.u32 %v2622, 16
        %v2862 = vor.u32 %v2859, %v2860
        %v2863 = vsel %vm2631, %v2855, %v2862
        %v2864 = vrot.slane %v2859, 4
        %v2866 = vshrl.u32 %v2623, 16
        %v2868 = vrot.slane %v2866, 7
        %v2869 = vshll.u32 %v2623, 16
        %v2871 = vor.u32 %v2868, %v2869
        %v2872 = vsel %vm2631, %v2864, %v2871
        %v2873 = vrot.slane %v2868, 4
        %v2875 = vshrl.u32 %v2624, 16
        %v2877 = vrot.slane %v2875, 7
        %v2878 = vshll.u32 %v2624, 16
        %v2880 = vor.u32 %v2877, %v2878
        %v2881 = vsel %vm2631, %v2873, %v2880
        %v2882 = vrot.slane %v2877, 4
        %v2884 = vshrl.u32 %v2625, 16
        %v2886 = vrot.slane %v2884, 7
        %v2887 = vshll.u32 %v2625, 16
        %v2889 = vor.u32 %v2886, %v2887
        %v2890 = vsel %vm2631, %v2882, %v2889
        %v2891 = vrot.slane %v2886, 4
        %v2893 = vshrl.u32 %v2626, 16
        %v2895 = vrot.slane %v2893, 7
        %v2896 = vshll.u32 %v2626, 16
        %v2898 = vor.u32 %v2895, %v2896
        %v2899 = vsel %vm2631, %v2891, %v2898
        %v2900 = vrot.slane %v2895, 4
        %v2902 = vshrl.u32 %v2627, 16
        %v2904 = vrot.slane %v2902, 7
        %v2905 = vshll.u32 %v2627, 16
        %v2907 = vor.u32 %v2904, %v2905
        %v2908 = vsel %vm2631, %v2900, %v2907
        %v2909 = vrot.slane %v2904, 4
        %v2911 = vshrl.u32 %v2628, 16
        %v2913 = vrot.slane %v2911, 7
        %v2914 = vshll.u32 %v2628, 16
        %v2916 = vor.u32 %v2913, %v2914
        %v2917 = vsel %vm2631, %v2909, %v2916
        %v2918 = vrot.slane %v2913, 4
        %vm2919 = vcmp.ne.s16.totalorder %v2638, 0
        %vm2920 = vcmp.ne.s16.totalorder %v2647, 0
        %vm2921 = vcmp.ne.s16.totalorder %v2656, 0
        %vm2922 = vcmp.ne.s16.totalorder %v2665, 0
        %vm2923 = vcmp.ne.s16.totalorder %v2674, 0
        %vm2924 = vcmp.ne.s16.totalorder %v2683, 0
        %vm2925 = vcmp.ne.s16.totalorder %v2692, 0
        %vm2926 = vcmp.ne.s16.totalorder %v2701, 0
        %vm2927 = vcmp.ne.s16.totalorder %v2710, 0
        %vm2928 = vcmp.ne.s16.totalorder %v2719, 0
        %vm2929 = vcmp.ne.s16.totalorder %v2728, 0
        %vm2930 = vcmp.ne.s16.totalorder %v2737, 0
        %vm2931 = vcmp.ne.s16.totalorder %v2746, 0
        %vm2932 = vcmp.ne.s16.totalorder %v2755, 0
        %vm2933 = vcmp.ne.s16.totalorder %v2764, 0
        %vm2934 = vcmp.ne.s16.totalorder %v2773, 0
        %vm2935 = vcmp.ne.s16.totalorder %v2782, 0
        %vm2936 = vcmp.ne.s16.totalorder %v2791, 0
        %vm2937 = vcmp.ne.s16.totalorder %v2800, 0
        %vm2938 = vcmp.ne.s16.totalorder %v2809, 0
        %vm2939 = vcmp.ne.s16.totalorder %v2818, 0
        %vm2940 = vcmp.ne.s16.totalorder %v2827, 0
        %vm2941 = vcmp.ne.s16.totalorder %v2836, 0
        %vm2942 = vcmp.ne.s16.totalorder %v2845, 0
        %vm2943 = vcmp.ne.s16.totalorder %v2854, 0
        %vm2944 = vcmp.ne.s16.totalorder %v2863, 0
        %vm2945 = vcmp.ne.s16.totalorder %v2872, 0
        %vm2946 = vcmp.ne.s16.totalorder %v2881, 0
        %vm2947 = vcmp.ne.s16.totalorder %v2890, 0
        %vm2948 = vcmp.ne.s16.totalorder %v2899, 0
        %vm2949 = vcmp.ne.s16.totalorder %v2908, 0
        %vm2950 = vcmp.ne.s16.totalorder %v2917, 0
        %vm2951 = vcmp.ne.s16.totalorder %v2918, 0
        %v2952 = vsel %vm2919, %v1888, 0
        %v2953 = vsel %vm2920, %v1889, 0
        %v2954 = vsel %vm2921, %v1890, 0
        %v2955 = vsel %vm2922, %v1891, 0
        %v2956 = vsel %vm2923, %v1892, 0
        %v2957 = vsel %vm2924, %v1893, 0
        %v2958 = vsel %vm2925, %v1894, 0
        %v2959 = vsel %vm2926, %v1895, 0
        %v2960 = vsel %vm2927, %v1896, 0
        %v2961 = vsel %vm2928, %v1897, 0
        %v2962 = vsel %vm2929, %v1898, 0
        %v2963 = vsel %vm2930, %v1899, 0
        %v2964 = vsel %vm2931, %v1900, 0
        %v2965 = vsel %vm2932, %v1901, 0
        %v2966 = vsel %vm2933, %v1902, 0
        %v2967 = vsel %vm2934, %v1903, 0
        %v2968 = vsel %vm2935, %v1904, 0
        %v2969 = vsel %vm2936, %v1905, 0
        %v2970 = vsel %vm2937, %v1906, 0
        %v2971 = vsel %vm2938, %v1907, 0
        %v2972 = vsel %vm2939, %v1908, 0
        %v2973 = vsel %vm2940, %v1909, 0
        %v2974 = vsel %vm2941, %v1910, 0
        %v2975 = vsel %vm2942, %v1911, 0
        %v2976 = vsel %vm2943, %v1912, 0
        %v2977 = vsel %vm2944, %v1913, 0
        %v2978 = vsel %vm2945, %v1914, 0
        %v2979 = vsel %vm2946, %v1915, 0
        %v2980 = vsel %vm2947, %v1916, 0
        %v2981 = vsel %vm2948, %v1917, 0
        %v2982 = vsel %vm2949, %v1918, 0
        %v2983 = vsel %vm2950, %v1919, 0
        %v2984 = vsel %vm2951, %v2468, 0
        %v3018 = vunpack.c.l.b16 %v2435
        %v3019 = vunpack.c.l.b16 %v2436
        %v3020 = vunpack.c.l.b16 %v2437
        %v3021 = vunpack.c.l.b16 %v2438
        %v3022 = vunpack.c.l.b16 %v2439
        %v3023 = vunpack.c.l.b16 %v2440
        %v3024 = vunpack.c.l.b16 %v2441
        %v3025 = vunpack.c.l.b16 %v2442
        %v3026 = vunpack.c.l.b16 %v2443
        %v3027 = vunpack.c.l.b16 %v2444
        %v3028 = vunpack.c.l.b16 %v2445
        %v3029 = vunpack.c.l.b16 %v2446
        %v3030 = vunpack.c.l.b16 %v2447
        %v3031 = vunpack.c.l.b16 %v2448
        %v3032 = vunpack.c.l.b16 %v2449
        %v3033 = vunpack.c.l.b16 %v2450
        %v3034 = vunpack.c.l.b16 %v2451
        %v3035 = vunpack.c.l.b16 %v2452
        %v3036 = vunpack.c.l.b16 %v2453
        %v3037 = vunpack.c.l.b16 %v2454
        %v3038 = vunpack.c.l.b16 %v2455
        %v3039 = vunpack.c.l.b16 %v2456
        %v3040 = vunpack.c.l.b16 %v2457
        %v3041 = vunpack.c.l.b16 %v2458
        %v3042 = vunpack.c.l.b16 %v2459
        %v3043 = vunpack.c.l.b16 %v2460
        %v3044 = vunpack.c.l.b16 %v2461
        %v3045 = vunpack.c.l.b16 %v2462
        %v3046 = vunpack.c.l.b16 %v2463
        %v3047 = vunpack.c.l.b16 %v2464
        %v3048 = vunpack.c.l.b16 %v2465
        %v3049 = vunpack.c.l.b16 %v2466
        %v3050 = vunpack.c.l.b16 %v2467
        %v3051 = vpack.c.b16 %v3019, %v3018
        %v3052 = vpack.c.b16 %v3021, %v3020
        %v3053 = vpack.c.b16 %v3023, %v3022
        %v3054 = vpack.c.b16 %v3025, %v3024
        %v3055 = vpack.c.b16 %v3027, %v3026
        %v3056 = vpack.c.b16 %v3029, %v3028
        %v3057 = vpack.c.b16 %v3031, %v3030
        %v3058 = vpack.c.b16 %v3033, %v3032
        %v3059 = vpack.c.b16 %v3035, %v3034
        %v3060 = vpack.c.b16 %v3037, %v3036
        %v3061 = vpack.c.b16 %v3039, %v3038
        %v3062 = vpack.c.b16 %v3041, %v3040
        %v3063 = vpack.c.b16 %v3043, %v3042
        %v3064 = vpack.c.b16 %v3045, %v3044
        %v3065 = vpack.c.b16 %v3047, %v3046
        %v3066 = vpack.c.b16 %v3049, %v3048
        %v3067 = vpack.c.b16 %v3050, %v3050
        %v3100 = vunpack.c.l.b16 %v1888
        %v3101 = vunpack.c.l.b16 %v1889
        %v3102 = vunpack.c.l.b16 %v1890
        %v3103 = vunpack.c.l.b16 %v1891
        %v3104 = vunpack.c.l.b16 %v1892
        %v3105 = vunpack.c.l.b16 %v1893
        %v3106 = vunpack.c.l.b16 %v1894
        %v3107 = vunpack.c.l.b16 %v1895
        %v3108 = vunpack.c.l.b16 %v1896
        %v3109 = vunpack.c.l.b16 %v1897
        %v3110 = vunpack.c.l.b16 %v1898
        %v3111 = vunpack.c.l.b16 %v1899
        %v3112 = vunpack.c.l.b16 %v1900
        %v3113 = vunpack.c.l.b16 %v1901
        %v3114 = vunpack.c.l.b16 %v1902
        %v3115 = vunpack.c.l.b16 %v1903
        %v3116 = vunpack.c.l.b16 %v1904
        %v3117 = vunpack.c.l.b16 %v1905
        %v3118 = vunpack.c.l.b16 %v1906
        %v3119 = vunpack.c.l.b16 %v1907
        %v3120 = vunpack.c.l.b16 %v1908
        %v3121 = vunpack.c.l.b16 %v1909
        %v3122 = vunpack.c.l.b16 %v1910
        %v3123 = vunpack.c.l.b16 %v1911
        %v3124 = vunpack.c.l.b16 %v1912
        %v3125 = vunpack.c.l.b16 %v1913
        %v3126 = vunpack.c.l.b16 %v1914
        %v3127 = vunpack.c.l.b16 %v1915
        %v3128 = vunpack.c.l.b16 %v1916
        %v3129 = vunpack.c.l.b16 %v1917
        %v3130 = vunpack.c.l.b16 %v1918
        %v3131 = vunpack.c.l.b16 %v1919
        %v3132 = vpack.c.b16 %v3101, %v3100
        %v3133 = vpack.c.b16 %v3103, %v3102
        %v3134 = vpack.c.b16 %v3105, %v3104
        %v3135 = vpack.c.b16 %v3107, %v3106
        %v3136 = vpack.c.b16 %v3109, %v3108
        %v3137 = vpack.c.b16 %v3111, %v3110
        %v3138 = vpack.c.b16 %v3113, %v3112
        %v3139 = vpack.c.b16 %v3115, %v3114
        %v3140 = vpack.c.b16 %v3117, %v3116
        %v3141 = vpack.c.b16 %v3119, %v3118
        %v3142 = vpack.c.b16 %v3121, %v3120
        %v3143 = vpack.c.b16 %v3123, %v3122
        %v3144 = vpack.c.b16 %v3125, %v3124
        %v3145 = vpack.c.b16 %v3127, %v3126
        %v3146 = vpack.c.b16 %v3129, %v3128
        %v3147 = vpack.c.b16 %v3131, %v3130
        %v3149 = vshrl.u32 %v3132, 16
        %v3151 = vrot.slane %v3149, 4
        %v3152 = vshll.u32 %v3132, 16
        %v3154 = vrot.slane %v3152, 5
        %v3155 = vor.u32 %v3151, %v3154
        %v3157 = vshrl.u32 %v3133, 16
        %v3159 = vrot.slane %v3157, 4
        %v3160 = vshll.u32 %v3133, 16
        %v3162 = vrot.slane %v3160, 5
        %v3163 = vor.u32 %v3159, %v3162
        %v3164 = vsel %vm2080, %v3155, %v3163
        %v3166 = vshrl.u32 %v3134, 16
        %v3168 = vrot.slane %v3166, 4
        %v3169 = vshll.u32 %v3134, 16
        %v3171 = vrot.slane %v3169, 5
        %v3172 = vor.u32 %v3168, %v3171
        %v3173 = vsel %vm2080, %v3163, %v3172
        %v3175 = vshrl.u32 %v3135, 16
        %v3177 = vrot.slane %v3175, 4
        %v3178 = vshll.u32 %v3135, 16
        %v3180 = vrot.slane %v3178, 5
        %v3181 = vor.u32 %v3177, %v3180
        %v3182 = vsel %vm2080, %v3172, %v3181
        %v3184 = vshrl.u32 %v3136, 16
        %v3186 = vrot.slane %v3184, 4
        %v3187 = vshll.u32 %v3136, 16
        %v3189 = vrot.slane %v3187, 5
        %v3190 = vor.u32 %v3186, %v3189
        %v3191 = vsel %vm2080, %v3181, %v3190
        %v3193 = vshrl.u32 %v3137, 16
        %v3195 = vrot.slane %v3193, 4
        %v3196 = vshll.u32 %v3137, 16
        %v3198 = vrot.slane %v3196, 5
        %v3199 = vor.u32 %v3195, %v3198
        %v3200 = vsel %vm2080, %v3190, %v3199
        %v3202 = vshrl.u32 %v3138, 16
        %v3204 = vrot.slane %v3202, 4
        %v3205 = vshll.u32 %v3138, 16
        %v3207 = vrot.slane %v3205, 5
        %v3208 = vor.u32 %v3204, %v3207
        %v3209 = vsel %vm2080, %v3199, %v3208
        %v3211 = vshrl.u32 %v3139, 16
        %v3213 = vrot.slane %v3211, 4
        %v3214 = vshll.u32 %v3139, 16
        %v3216 = vrot.slane %v3214, 5
        %v3217 = vor.u32 %v3213, %v3216
        %v3218 = vsel %vm2080, %v3208, %v3217
        %v3220 = vshrl.u32 %v3140, 16
        %v3222 = vrot.slane %v3220, 4
        %v3223 = vshll.u32 %v3140, 16
        %v3225 = vrot.slane %v3223, 5
        %v3226 = vor.u32 %v3222, %v3225
        %v3227 = vsel %vm2080, %v3217, %v3226
        %v3229 = vshrl.u32 %v3141, 16
        %v3231 = vrot.slane %v3229, 4
        %v3232 = vshll.u32 %v3141, 16
        %v3234 = vrot.slane %v3232, 5
        %v3235 = vor.u32 %v3231, %v3234
        %v3236 = vsel %vm2080, %v3226, %v3235
        %v3238 = vshrl.u32 %v3142, 16
        %v3240 = vrot.slane %v3238, 4
        %v3241 = vshll.u32 %v3142, 16
        %v3243 = vrot.slane %v3241, 5
        %v3244 = vor.u32 %v3240, %v3243
        %v3245 = vsel %vm2080, %v3235, %v3244
        %v3247 = vshrl.u32 %v3143, 16
        %v3249 = vrot.slane %v3247, 4
        %v3250 = vshll.u32 %v3143, 16
        %v3252 = vrot.slane %v3250, 5
        %v3253 = vor.u32 %v3249, %v3252
        %v3254 = vsel %vm2080, %v3244, %v3253
        %v3256 = vshrl.u32 %v3144, 16
        %v3258 = vrot.slane %v3256, 4
        %v3259 = vshll.u32 %v3144, 16
        %v3261 = vrot.slane %v3259, 5
        %v3262 = vor.u32 %v3258, %v3261
        %v3263 = vsel %vm2080, %v3253, %v3262
        %v3265 = vshrl.u32 %v3145, 16
        %v3267 = vrot.slane %v3265, 4
        %v3268 = vshll.u32 %v3145, 16
        %v3270 = vrot.slane %v3268, 5
        %v3271 = vor.u32 %v3267, %v3270
        %v3272 = vsel %vm2080, %v3262, %v3271
        %v3274 = vshrl.u32 %v3146, 16
        %v3276 = vrot.slane %v3274, 4
        %v3277 = vshll.u32 %v3146, 16
        %v3279 = vrot.slane %v3277, 5
        %v3280 = vor.u32 %v3276, %v3279
        %v3281 = vsel %vm2080, %v3271, %v3280
        %v3283 = vshrl.u32 %v3147, 16
        %v3285 = vrot.slane %v3283, 4
        %v3286 = vshll.u32 %v3147, 16
        %v3288 = vrot.slane %v3286, 5
        %v3289 = vor.u32 %v3285, %v3288
        %v3290 = vsel %vm2080, %v3280, %v3289
        %3291 = vrot.lane.b32.xlu0 %v3155, 32
        %v3292 = vpop.permute.xlu0 %3291
        %3293 = vrot.lane.b32.xlu0 %v3164, 32
        %v3294 = vpop.permute.xlu0 %3293
        %3295 = vrot.lane.b32.xlu0 %v3173, 32
        %v3296 = vpop.permute.xlu0 %3295
        %3297 = vrot.lane.b32.xlu0 %v3182, 32
        %v3298 = vpop.permute.xlu0 %3297
        %3299 = vrot.lane.b32.xlu0 %v3191, 32
        %v3300 = vpop.permute.xlu0 %3299
        %3301 = vrot.lane.b32.xlu0 %v3200, 32
        %v3302 = vpop.permute.xlu0 %3301
        %3303 = vrot.lane.b32.xlu0 %v3209, 32
        %v3304 = vpop.permute.xlu0 %3303
        %3305 = vrot.lane.b32.xlu0 %v3218, 32
        %v3306 = vpop.permute.xlu0 %3305
        %3307 = vrot.lane.b32.xlu0 %v3227, 32
        %v3308 = vpop.permute.xlu0 %3307
        %3309 = vrot.lane.b32.xlu0 %v3236, 32
        %v3310 = vpop.permute.xlu0 %3309
        %3311 = vrot.lane.b32.xlu0 %v3245, 32
        %v3312 = vpop.permute.xlu0 %3311
        %3313 = vrot.lane.b32.xlu0 %v3254, 32
        %v3314 = vpop.permute.xlu0 %3313
        %3315 = vrot.lane.b32.xlu0 %v3263, 32
        %v3316 = vpop.permute.xlu0 %3315
        %3317 = vrot.lane.b32.xlu0 %v3272, 32
        %v3318 = vpop.permute.xlu0 %3317
        %3319 = vrot.lane.b32.xlu0 %v3281, 32
        %v3320 = vpop.permute.xlu0 %3319
        %3321 = vrot.lane.b32.xlu0 %v3290, 32
        %v3322 = vpop.permute.xlu0 %3321
        %3323 = vrot.lane.b32.xlu0 %v3289, 32
        %v3324 = vpop.permute.xlu0 %3323
        %v3358 = vunpack.c.l.b16 %v2952
        %v3359 = vunpack.c.l.b16 %v2953
        %v3360 = vunpack.c.l.b16 %v2954
        %v3361 = vunpack.c.l.b16 %v2955
        %v3362 = vunpack.c.l.b16 %v2956
        %v3363 = vunpack.c.l.b16 %v2957
        %v3364 = vunpack.c.l.b16 %v2958
        %v3365 = vunpack.c.l.b16 %v2959
        %v3366 = vunpack.c.l.b16 %v2960
        %v3367 = vunpack.c.l.b16 %v2961
        %v3368 = vunpack.c.l.b16 %v2962
        %v3369 = vunpack.c.l.b16 %v2963
        %v3370 = vunpack.c.l.b16 %v2964
        %v3371 = vunpack.c.l.b16 %v2965
        %v3372 = vunpack.c.l.b16 %v2966
        %v3373 = vunpack.c.l.b16 %v2967
        %v3374 = vunpack.c.l.b16 %v2968
        %v3375 = vunpack.c.l.b16 %v2969
        %v3376 = vunpack.c.l.b16 %v2970
        %v3377 = vunpack.c.l.b16 %v2971
        %v3378 = vunpack.c.l.b16 %v2972
        %v3379 = vunpack.c.l.b16 %v2973
        %v3380 = vunpack.c.l.b16 %v2974
        %v3381 = vunpack.c.l.b16 %v2975
        %v3382 = vunpack.c.l.b16 %v2976
        %v3383 = vunpack.c.l.b16 %v2977
        %v3384 = vunpack.c.l.b16 %v2978
        %v3385 = vunpack.c.l.b16 %v2979
        %v3386 = vunpack.c.l.b16 %v2980
        %v3387 = vunpack.c.l.b16 %v2981
        %v3388 = vunpack.c.l.b16 %v2982
        %v3389 = vunpack.c.l.b16 %v2983
        %v3390 = vunpack.c.l.b16 %v2984
        %v3391 = vpack.c.b16 %v3359, %v3358
        %v3392 = vpack.c.b16 %v3361, %v3360
        %v3393 = vpack.c.b16 %v3363, %v3362
        %v3394 = vpack.c.b16 %v3365, %v3364
        %v3395 = vpack.c.b16 %v3367, %v3366
        %v3396 = vpack.c.b16 %v3369, %v3368
        %v3397 = vpack.c.b16 %v3371, %v3370
        %v3398 = vpack.c.b16 %v3373, %v3372
        %v3399 = vpack.c.b16 %v3375, %v3374
        %v3400 = vpack.c.b16 %v3377, %v3376
        %v3401 = vpack.c.b16 %v3379, %v3378
        %v3402 = vpack.c.b16 %v3381, %v3380
        %v3403 = vpack.c.b16 %v3383, %v3382
        %v3404 = vpack.c.b16 %v3385, %v3384
        %v3405 = vpack.c.b16 %v3387, %v3386
        %v3406 = vpack.c.b16 %v3389, %v3388
        %v3407 = vpack.c.b16 %v3390, %v3390
        %vm3408 = vcmask 1042432
        %v3409 = vrot.slane %v3391, 5
        %v3410 = vrot.slane %v3392, 5
        %v3411 = vsel %vm3408, %v3409, %v3410
        %v3412 = vrot.slane %v3393, 5
        %v3413 = vsel %vm3408, %v3410, %v3412
        %v3414 = vrot.slane %v3394, 5
        %v3415 = vsel %vm3408, %v3412, %v3414
        %v3416 = vrot.slane %v3395, 5
        %v3417 = vsel %vm3408, %v3414, %v3416
        %v3418 = vrot.slane %v3396, 5
        %v3419 = vsel %vm3408, %v3416, %v3418
        %v3420 = vrot.slane %v3397, 5
        %v3421 = vsel %vm3408, %v3418, %v3420
        %v3422 = vrot.slane %v3398, 5
        %v3423 = vsel %vm3408, %v3420, %v3422
        %v3424 = vrot.slane %v3399, 5
        %v3425 = vsel %vm3408, %v3422, %v3424
        %v3426 = vrot.slane %v3400, 5
        %v3427 = vsel %vm3408, %v3424, %v3426
        %v3428 = vrot.slane %v3401, 5
        %v3429 = vsel %vm3408, %v3426, %v3428
        %v3430 = vrot.slane %v3402, 5
        %v3431 = vsel %vm3408, %v3428, %v3430
        %v3432 = vrot.slane %v3403, 5
        %v3433 = vsel %vm3408, %v3430, %v3432
        %v3434 = vrot.slane %v3404, 5
        %v3435 = vsel %vm3408, %v3432, %v3434
        %v3436 = vrot.slane %v3405, 5
        %v3437 = vsel %vm3408, %v3434, %v3436
        %v3438 = vrot.slane %v3406, 5
        %v3439 = vsel %vm3408, %v3436, %v3438
        %v3440 = vrot.slane %v3407, 5
        %v3441 = vsel %vm3408, %v3438, %v3440
        %3442 = vrot.lane.b32.xlu0 %v3409, 64
        %v3443 = vpop.permute.xlu0 %3442
        %3444 = vrot.lane.b32.xlu0 %v3411, 64
        %v3445 = vpop.permute.xlu0 %3444
        %3446 = vrot.lane.b32.xlu0 %v3413, 64
        %v3447 = vpop.permute.xlu0 %3446
        %3448 = vrot.lane.b32.xlu0 %v3415, 64
        %v3449 = vpop.permute.xlu0 %3448
        %3450 = vrot.lane.b32.xlu0 %v3417, 64
        %v3451 = vpop.permute.xlu0 %3450
        %3452 = vrot.lane.b32.xlu0 %v3419, 64
        %v3453 = vpop.permute.xlu0 %3452
        %3454 = vrot.lane.b32.xlu0 %v3421, 64
        %v3455 = vpop.permute.xlu0 %3454
        %3456 = vrot.lane.b32.xlu0 %v3423, 64
        %v3457 = vpop.permute.xlu0 %3456
        %3458 = vrot.lane.b32.xlu0 %v3425, 64
        %v3459 = vpop.permute.xlu0 %3458
        %3460 = vrot.lane.b32.xlu0 %v3427, 64
        %v3461 = vpop.permute.xlu0 %3460
        %3462 = vrot.lane.b32.xlu0 %v3429, 64
        %v3463 = vpop.permute.xlu0 %3462
        %3464 = vrot.lane.b32.xlu0 %v3431, 64
        %v3465 = vpop.permute.xlu0 %3464
        %3466 = vrot.lane.b32.xlu0 %v3433, 64
        %v3467 = vpop.permute.xlu0 %3466
        %3468 = vrot.lane.b32.xlu0 %v3435, 64
        %v3469 = vpop.permute.xlu0 %3468
        %3470 = vrot.lane.b32.xlu0 %v3437, 64
        %v3471 = vpop.permute.xlu0 %3470
        %3472 = vrot.lane.b32.xlu0 %v3439, 64
        %v3473 = vpop.permute.xlu0 %3472
        %3474 = vrot.lane.b32.xlu0 %v3441, 64
        %v3475 = vpop.permute.xlu0 %3474
        %v3478 = vsel %vm1197, %v3051, %v3292
        %v3481 = vsel %vm1197, %v3052, %v3294
        %v3484 = vsel %vm1197, %v3053, %v3296
        %v3487 = vsel %vm1197, %v3054, %v3298
        %v3490 = vsel %vm1197, %v3055, %v3300
        %v3493 = vsel %vm1197, %v3056, %v3302
        %v3496 = vsel %vm1197, %v3057, %v3304
        %v3499 = vsel %vm1197, %v3058, %v3306
        %v3502 = vsel %vm1197, %v3059, %v3308
        %v3505 = vsel %vm1197, %v3060, %v3310
        %v3508 = vsel %vm1197, %v3061, %v3312
        %v3511 = vsel %vm1197, %v3062, %v3314
        %v3514 = vsel %vm1197, %v3063, %v3316
        %v3517 = vsel %vm1197, %v3064, %v3318
        %v3520 = vsel %vm1197, %v3065, %v3320
        %v3523 = vsel %vm1197, %v3066, %v3322
        %v3526 = vsel %vm1197, %v3067, %v3324
        %v3528 = vsel %vm1285, %v3478, %v3443
        %v3530 = vsel %vm1285, %v3481, %v3445
        %v3532 = vsel %vm1285, %v3484, %v3447
        %v3534 = vsel %vm1285, %v3487, %v3449
        %v3536 = vsel %vm1285, %v3490, %v3451
        %v3538 = vsel %vm1285, %v3493, %v3453
        %v3540 = vsel %vm1285, %v3496, %v3455
        %v3542 = vsel %vm1285, %v3499, %v3457
        %v3544 = vsel %vm1285, %v3502, %v3459
        %v3546 = vsel %vm1285, %v3505, %v3461
        %v3548 = vsel %vm1285, %v3508, %v3463
        %v3550 = vsel %vm1285, %v3511, %v3465
        %v3552 = vsel %vm1285, %v3514, %v3467
        %v3554 = vsel %vm1285, %v3517, %v3469
        %v3556 = vsel %vm1285, %v3520, %v3471
        %v3558 = vsel %vm1285, %v3523, %v3473
        %v3560 = vsel %vm1285, %v3526, %v3475
        %v3561 = vld [vmem:[%s7] sm:$0xf]
        %v3562 = vld [vmem:[%s7 + $0x4] sm:$0xf]
        %v3563 = vld [vmem:[%s7 + $0x8] sm:$0xf]
        %v3564 = vld [vmem:[%s7 + $0xc] sm:$0xf]
        %v3565 = vld [vmem:[%s7 + $0x10] sm:$0xf]
        %v3566 = vld [vmem:[%s7 + $0x14] sm:$0xf]
        %v3567 = vld [vmem:[%s7 + $0x18] sm:$0xf]
        %v3568 = vld [vmem:[%s7 + $0x1c] sm:$0xf]
        %v3569 = vld [vmem:[%s7 + $0x20] sm:$0xf]
        %v3570 = vld [vmem:[%s7 + $0x24] sm:$0xf]
        %v3571 = vld [vmem:[%s7 + $0x28] sm:$0xf]
        %v3572 = vld [vmem:[%s7 + $0x2c] sm:$0xf]
        %v3573 = vld [vmem:[%s8] sm:$0x1]
        %v3575 = vlaneseq
        %v3576 = vshrl.u32 %v3575, 7
        %v3577 = vsub.s32 0, %v3576
        %v3578 = vrot.slane %v3573, %v3577
        %vm3580 = vsmask.f32 4352
        %v3581 = vshrl.u32 %v3528, 16
        %v3583 = vrot.slane %v3581, 3
        %v3584 = vshll.u32 %v3528, 16
        %v3586 = vrot.slane %v3584, 4
        %v3587 = vor.u32 %v3583, %v3586
        %v3588 = vshrl.u32 %v3530, 16
        %v3590 = vrot.slane %v3588, 3
        %v3591 = vshll.u32 %v3530, 16
        %v3593 = vrot.slane %v3591, 4
        %v3594 = vor.u32 %v3590, %v3593
        %v3595 = vsel %vm3580, %v3587, %v3594
        %v3596 = vshrl.u32 %v3532, 16
        %v3598 = vrot.slane %v3596, 3
        %v3599 = vshll.u32 %v3532, 16
        %v3601 = vrot.slane %v3599, 4
        %v3602 = vor.u32 %v3598, %v3601
        %v3603 = vsel %vm3580, %v3594, %v3602
        %v3604 = vshrl.u32 %v3534, 16
        %v3606 = vrot.slane %v3604, 3
        %v3607 = vshll.u32 %v3534, 16
        %v3609 = vrot.slane %v3607, 4
        %v3610 = vor.u32 %v3606, %v3609
        %v3611 = vsel %vm3580, %v3602, %v3610
        %v3612 = vshrl.u32 %v3536, 16
        %v3614 = vrot.slane %v3612, 3
        %v3615 = vshll.u32 %v3536, 16
        %v3617 = vrot.slane %v3615, 4
        %v3618 = vor.u32 %v3614, %v3617
        %v3619 = vsel %vm3580, %v3610, %v3618
        %v3620 = vshrl.u32 %v3538, 16
        %v3622 = vrot.slane %v3620, 3
        %v3623 = vshll.u32 %v3538, 16
        %v3625 = vrot.slane %v3623, 4
        %v3626 = vor.u32 %v3622, %v3625
        %v3627 = vsel %vm3580, %v3618, %v3626
        %v3628 = vshrl.u32 %v3540, 16
        %v3630 = vrot.slane %v3628, 3
        %v3631 = vshll.u32 %v3540, 16
        %v3633 = vrot.slane %v3631, 4
        %v3634 = vor.u32 %v3630, %v3633
        %v3635 = vsel %vm3580, %v3626, %v3634
        %v3636 = vshrl.u32 %v3542, 16
        %v3638 = vrot.slane %v3636, 3
        %v3639 = vshll.u32 %v3542, 16
        %v3641 = vrot.slane %v3639, 4
        %v3642 = vor.u32 %v3638, %v3641
        %v3643 = vsel %vm3580, %v3634, %v3642
        %v3644 = vshrl.u32 %v3544, 16
        %v3646 = vrot.slane %v3644, 3
        %v3647 = vshll.u32 %v3544, 16
        %v3649 = vrot.slane %v3647, 4
        %v3650 = vor.u32 %v3646, %v3649
        %v3651 = vsel %vm3580, %v3642, %v3650
        %v3652 = vshrl.u32 %v3546, 16
        %v3654 = vrot.slane %v3652, 3
        %v3655 = vshll.u32 %v3546, 16
        %v3657 = vrot.slane %v3655, 4
        %v3658 = vor.u32 %v3654, %v3657
        %v3659 = vsel %vm3580, %v3650, %v3658
        %v3660 = vshrl.u32 %v3548, 16
        %v3662 = vrot.slane %v3660, 3
        %v3663 = vshll.u32 %v3548, 16
        %v3665 = vrot.slane %v3663, 4
        %v3666 = vor.u32 %v3662, %v3665
        %v3667 = vsel %vm3580, %v3658, %v3666
        %v3668 = vshrl.u32 %v3550, 16
        %v3670 = vrot.slane %v3668, 3
        %v3671 = vshll.u32 %v3550, 16
        %v3673 = vrot.slane %v3671, 4
        %v3674 = vor.u32 %v3670, %v3673
        %v3675 = vsel %vm3580, %v3666, %v3674
        %v3676 = vshrl.u32 %v3552, 16
        %v3678 = vrot.slane %v3676, 3
        %v3679 = vshll.u32 %v3552, 16
        %v3681 = vrot.slane %v3679, 4
        %v3682 = vor.u32 %v3678, %v3681
        %v3683 = vsel %vm3580, %v3674, %v3682
        %v3684 = vshrl.u32 %v3554, 16
        %v3686 = vrot.slane %v3684, 3
        %v3687 = vshll.u32 %v3554, 16
        %v3689 = vrot.slane %v3687, 4
        %v3690 = vor.u32 %v3686, %v3689
        %v3691 = vsel %vm3580, %v3682, %v3690
        %v3692 = vshrl.u32 %v3556, 16
        %v3694 = vrot.slane %v3692, 3
        %v3695 = vshll.u32 %v3556, 16
        %v3697 = vrot.slane %v3695, 4
        %v3698 = vor.u32 %v3694, %v3697
        %v3699 = vsel %vm3580, %v3690, %v3698
        %v3700 = vshrl.u32 %v3558, 16
        %v3702 = vrot.slane %v3700, 3
        %v3703 = vshll.u32 %v3558, 16
        %v3705 = vrot.slane %v3703, 4
        %v3706 = vor.u32 %v3702, %v3705
        %v3707 = vsel %vm3580, %v3698, %v3706
        %v3708 = vshrl.u32 %v3560, 16
        %v3710 = vrot.slane %v3708, 3
        %v3711 = vshll.u32 %v3560, 16
        %v3713 = vrot.slane %v3711, 4
        %v3714 = vor.u32 %v3710, %v3713
        %v3715 = vsel %vm3580, %v3706, %v3714
        %v3728 = vunpack.c.l.b16 %v3561
        %v3729 = vunpack.c.l.b16 %v3562
        %v3730 = vunpack.c.l.b16 %v3563
        %v3731 = vunpack.c.l.b16 %v3564
        %v3732 = vunpack.c.l.b16 %v3565
        %v3733 = vunpack.c.l.b16 %v3566
        %v3734 = vunpack.c.l.b16 %v3567
        %v3735 = vunpack.c.l.b16 %v3568
        %v3736 = vunpack.c.l.b16 %v3569
        %v3737 = vunpack.c.l.b16 %v3570
        %v3738 = vunpack.c.l.b16 %v3571
        %v3739 = vunpack.c.l.b16 %v3572
        %v3740 = vpack.c.b16 %v3729, %v3728
        %v3741 = vpack.c.b16 %v3731, %v3730
        %v3742 = vpack.c.b16 %v3733, %v3732
        %v3743 = vpack.c.b16 %v3735, %v3734
        %v3744 = vpack.c.b16 %v3737, %v3736
        %v3745 = vpack.c.b16 %v3739, %v3738
        %vm3752 = vcmask 785408
        %v3754 = vsel %vm3752, %v3595, 0
        %v3757 = vsel %vm3752, %v3603, 0
        %v3760 = vsel %vm3752, %v3611, 0
        %v3763 = vsel %vm3752, %v3619, 0
        %v3766 = vsel %vm3752, %v3627, 0
        %v3769 = vsel %vm3752, %v3635, 0
        %v3772 = vsel %vm3752, %v3643, 0
        %v3775 = vsel %vm3752, %v3651, 0
        %v3778 = vsel %vm3752, %v3659, 0
        %v3781 = vsel %vm3752, %v3667, 0
        %v3784 = vsel %vm3752, %v3675, 0
        %v3787 = vsel %vm3752, %v3683, 0
        %v3790 = vsel %vm3752, %v3691, 0
        %v3793 = vsel %vm3752, %v3699, 0
        %v3796 = vsel %vm3752, %v3707, 0
        %v3799 = vsel %vm3752, %v3715, 0
        %3801 = vmatprep.subr.bf16.mxu0 0
        %3802 = vmatpush1.bf16.msra.mxu0 0
        %3803 = vmatprep.subr.bf16.mxu0 0
        %3804 = vmatpush1.bf16.msra.mxu0 0
        %3805 = vmatprep.subr.bf16.mxu0 0
        %3806 = vmatpush1.bf16.msra.mxu0 %v3745
        %3807 = vmatprep.subr.bf16.mxu0 0
        %3808 = vmatpush1.bf16.msra.mxu0 %v3744
        %3809 = vmatprep.subr.bf16.mxu0 0
        %3810 = vmatpush1.bf16.msra.mxu0 %v3743
        %3811 = vmatprep.subr.bf16.mxu0 0
        %3812 = vmatpush1.bf16.msra.mxu0 %v3742
        %3813 = vmatprep.subr.bf16.mxu0 0
        %3814 = vmatpush1.bf16.msra.mxu0 %v3741
        %3815 = vmatprep.subr.bf16.mxu0 0
        %3816 = vmatpush1.bf16.msra.mxu0 %v3740
        %3817 = vmatprep.subr.bf16.mxu0 0
        %3818 = vmatpush2.bf16.msra.mxu0 0
        %3819 = vmatprep.subr.bf16.mxu0 0
        %3820 = vmatpush2.bf16.msra.mxu0 0
        %3821 = vmatprep.subr.bf16.mxu0 0
        %3822 = vmatpush2.bf16.msra.mxu0 0
        %3823 = vmatprep.subr.bf16.mxu0 0
        %3824 = vmatpush2.bf16.msra.mxu0 0
        %3825 = vmatprep.subr.bf16.mxu0 0
        %3826 = vmatpush2.bf16.msra.mxu0 0
        %3827 = vmatprep.subr.bf16.mxu0 0
        %3828 = vmatpush2.bf16.msra.mxu0 0
        %3829 = vmatprep.subr.bf16.mxu0 0
        %3830 = vmatpush2.bf16.msra.mxu0 0
        %3831 = vmatprep.subr.bf16.mxu0 0
        %3832 = vmatpush2.bf16.msra.mxu0 0
        %3833 = vmatprep.mubr.bf16.mxu0 0
        %3834 = vmatmul.mubr.bf16.gmra.mxu0 %v3754
        %v3835 = vpop.f32.mrf.mxu0
        %v3836 = vadd.f32 %v3578, %v3835
        %v3837 = vpop.f32.mrf.mxu0
        %v3838 = vpop.f32.mrf.mxu0
        %v3839 = vadd.f32 %v3578, %v3838
        %v3840 = vpop.f32.mrf.mxu0
        %3841 = vmatprep.mubr.bf16.mxu0 0
        %3842 = vmatmul.mubr.bf16.gmra.mxu0 %v3757
        %v3843 = vpop.f32.mrf.mxu0
        %v3844 = vadd.f32 %v3578, %v3843
        %v3845 = vpop.f32.mrf.mxu0
        %v3846 = vpop.f32.mrf.mxu0
        %v3847 = vadd.f32 %v3578, %v3846
        %v3848 = vpop.f32.mrf.mxu0
        %3849 = vmatprep.mubr.bf16.mxu0 0
        %3850 = vmatmul.mubr.bf16.gmra.mxu0 %v3760
        %v3851 = vpop.f32.mrf.mxu0
        %v3852 = vadd.f32 %v3578, %v3851
        %v3853 = vpop.f32.mrf.mxu0
        %v3854 = vpop.f32.mrf.mxu0
        %v3855 = vadd.f32 %v3578, %v3854
        %v3856 = vpop.f32.mrf.mxu0
        %3857 = vmatprep.mubr.bf16.mxu0 0
        %3858 = vmatmul.mubr.bf16.gmra.mxu0 %v3763
        %v3859 = vpop.f32.mrf.mxu0
        %v3860 = vadd.f32 %v3578, %v3859
        %v3861 = vpop.f32.mrf.mxu0
        %v3862 = vpop.f32.mrf.mxu0
        %v3863 = vadd.f32 %v3578, %v3862
        %v3864 = vpop.f32.mrf.mxu0
        %3865 = vmatprep.mubr.bf16.mxu0 0
        %3866 = vmatmul.mubr.bf16.gmra.mxu0 %v3766
        %v3867 = vpop.f32.mrf.mxu0
        %v3868 = vadd.f32 %v3578, %v3867
        %v3869 = vpop.f32.mrf.mxu0
        %v3870 = vpop.f32.mrf.mxu0
        %v3871 = vadd.f32 %v3578, %v3870
        %v3872 = vpop.f32.mrf.mxu0
        %3873 = vmatprep.mubr.bf16.mxu0 0
        %3874 = vmatmul.mubr.bf16.gmra.mxu0 %v3769
        %v3875 = vpop.f32.mrf.mxu0
        %v3876 = vadd.f32 %v3578, %v3875
        %v3877 = vpop.f32.mrf.mxu0
        %v3878 = vpop.f32.mrf.mxu0
        %v3879 = vadd.f32 %v3578, %v3878
        %v3880 = vpop.f32.mrf.mxu0
        %3881 = vmatprep.mubr.bf16.mxu0 0
        %3882 = vmatmul.mubr.bf16.gmra.mxu0 %v3772
        %v3883 = vpop.f32.mrf.mxu0
        %v3884 = vadd.f32 %v3578, %v3883
        %v3885 = vpop.f32.mrf.mxu0
        %v3886 = vpop.f32.mrf.mxu0
        %v3887 = vadd.f32 %v3578, %v3886
        %v3888 = vpop.f32.mrf.mxu0
        %3889 = vmatprep.mubr.bf16.mxu0 0
        %3890 = vmatmul.mubr.bf16.gmra.mxu0 %v3775
        %v3891 = vpop.f32.mrf.mxu0
        %v3892 = vadd.f32 %v3578, %v3891
        %v3893 = vpop.f32.mrf.mxu0
        %v3894 = vpop.f32.mrf.mxu0
        %v3895 = vadd.f32 %v3578, %v3894
        %v3896 = vpop.f32.mrf.mxu0
        %3897 = vmatprep.mubr.bf16.mxu0 0
        %3898 = vmatmul.mubr.bf16.gmra.mxu0 %v3778
        %v3899 = vpop.f32.mrf.mxu0
        %v3900 = vadd.f32 %v3578, %v3899
        %v3901 = vpop.f32.mrf.mxu0
        %v3902 = vpop.f32.mrf.mxu0
        %v3903 = vadd.f32 %v3578, %v3902
        %v3904 = vpop.f32.mrf.mxu0
        %3905 = vmatprep.mubr.bf16.mxu0 0
        %3906 = vmatmul.mubr.bf16.gmra.mxu0 %v3781
        %v3907 = vpop.f32.mrf.mxu0
        %v3908 = vadd.f32 %v3578, %v3907
        %v3909 = vpop.f32.mrf.mxu0
        %v3910 = vpop.f32.mrf.mxu0
        %v3911 = vadd.f32 %v3578, %v3910
        %v3912 = vpop.f32.mrf.mxu0
        %3913 = vmatprep.mubr.bf16.mxu0 0
        %3914 = vmatmul.mubr.bf16.gmra.mxu0 %v3784
        %v3915 = vpop.f32.mrf.mxu0
        %v3916 = vadd.f32 %v3578, %v3915
        %v3917 = vpop.f32.mrf.mxu0
        %v3918 = vpop.f32.mrf.mxu0
        %v3919 = vadd.f32 %v3578, %v3918
        %v3920 = vpop.f32.mrf.mxu0
        %3921 = vmatprep.mubr.bf16.mxu0 0
        %3922 = vmatmul.mubr.bf16.gmra.mxu0 %v3787
        %v3923 = vpop.f32.mrf.mxu0
        %v3924 = vadd.f32 %v3578, %v3923
        %v3925 = vpop.f32.mrf.mxu0
        %v3926 = vpop.f32.mrf.mxu0
        %v3927 = vadd.f32 %v3578, %v3926
        %v3928 = vpop.f32.mrf.mxu0
        %3929 = vmatprep.mubr.bf16.mxu0 0
        %3930 = vmatmul.mubr.bf16.gmra.mxu0 %v3790
        %v3931 = vpop.f32.mrf.mxu0
        %v3932 = vadd.f32 %v3578, %v3931
        %v3933 = vpop.f32.mrf.mxu0
        %v3934 = vpop.f32.mrf.mxu0
        %v3935 = vadd.f32 %v3578, %v3934
        %v3936 = vpop.f32.mrf.mxu0
        %3937 = vmatprep.mubr.bf16.mxu0 0
        %3938 = vmatmul.mubr.bf16.gmra.mxu0 %v3793
        %v3939 = vpop.f32.mrf.mxu0
        %v3940 = vadd.f32 %v3578, %v3939
        %v3941 = vpop.f32.mrf.mxu0
        %v3942 = vpop.f32.mrf.mxu0
        %v3943 = vadd.f32 %v3578, %v3942
        %v3944 = vpop.f32.mrf.mxu0
        %3945 = vmatprep.mubr.bf16.mxu0 0
        %3946 = vmatmul.mubr.bf16.gmra.mxu0 %v3796
        %v3947 = vpop.f32.mrf.mxu0
        %v3948 = vadd.f32 %v3578, %v3947
        %v3949 = vpop.f32.mrf.mxu0
        %v3950 = vpop.f32.mrf.mxu0
        %v3951 = vadd.f32 %v3578, %v3950
        %v3952 = vpop.f32.mrf.mxu0
        %3953 = vmatprep.mubr.bf16.mxu0 0
        %3954 = vmatmul.mubr.bf16.gmra.mxu0 %v3799
        %v3955 = vpop.f32.mrf.mxu0
        %v3956 = vadd.f32 %v3578, %v3955
        %v3957 = vpop.f32.mrf.mxu0
        %v3958 = vpop.f32.mrf.mxu0
        %v3959 = vadd.f32 %v3578, %v3958
        %v3960 = vpop.f32.mrf.mxu0
        %3961 = vdwg.mxu0
        %v3962 = vmax.f32 %v3836, 0.0
        %v3963 = vmax.f32 %v3839, 0.0
        %v3964 = vmax.f32 %v3844, 0.0
        %v3965 = vmax.f32 %v3847, 0.0
        %v3966 = vmax.f32 %v3852, 0.0
        %v3967 = vmax.f32 %v3855, 0.0
        %v3968 = vmax.f32 %v3860, 0.0
        %v3969 = vmax.f32 %v3863, 0.0
        %v3970 = vmax.f32 %v3868, 0.0
        %v3971 = vmax.f32 %v3871, 0.0
        %v3972 = vmax.f32 %v3876, 0.0
        %v3973 = vmax.f32 %v3879, 0.0
        %v3974 = vmax.f32 %v3884, 0.0
        %v3975 = vmax.f32 %v3887, 0.0
        %v3976 = vmax.f32 %v3892, 0.0
        %v3977 = vmax.f32 %v3895, 0.0
        %v3978 = vmax.f32 %v3900, 0.0
        %v3979 = vmax.f32 %v3903, 0.0
        %v3980 = vmax.f32 %v3908, 0.0
        %v3981 = vmax.f32 %v3911, 0.0
        %v3982 = vmax.f32 %v3916, 0.0
        %v3983 = vmax.f32 %v3919, 0.0
        %v3984 = vmax.f32 %v3924, 0.0
        %v3985 = vmax.f32 %v3927, 0.0
        %v3986 = vmax.f32 %v3932, 0.0
        %v3987 = vmax.f32 %v3935, 0.0
        %v3988 = vmax.f32 %v3940, 0.0
        %v3989 = vmax.f32 %v3943, 0.0
        %v3990 = vmax.f32 %v3948, 0.0
        %v3991 = vmax.f32 %v3951, 0.0
        %v3992 = vmax.f32 %v3956, 0.0
        %v3993 = vmax.f32 %v3959, 0.0
        %v3994 = vpack.c.bf16 %v3963, %v3962
        %v3995 = vpack.c.bf16 %v3965, %v3964
        %v3996 = vpack.c.bf16 %v3967, %v3966
        %v3997 = vpack.c.bf16 %v3969, %v3968
        %v3998 = vpack.c.bf16 %v3971, %v3970
        %v3999 = vpack.c.bf16 %v3973, %v3972
        %v4000 = vpack.c.bf16 %v3975, %v3974
        %v4001 = vpack.c.bf16 %v3977, %v3976
        %v4002 = vpack.c.bf16 %v3979, %v3978
        %v4003 = vpack.c.bf16 %v3981, %v3980
        %v4004 = vpack.c.bf16 %v3983, %v3982
        %v4005 = vpack.c.bf16 %v3985, %v3984
        %v4006 = vpack.c.bf16 %v3987, %v3986
        %v4007 = vpack.c.bf16 %v3989, %v3988
        %v4008 = vpack.c.bf16 %v3991, %v3990
        %v4009 = vpack.c.bf16 %v3993, %v3992
        %v4026 = vunpack.c.l.b16 %v3994
        %v4027 = vunpack.c.h.b16 %v3994
        %v4028 = vunpack.c.l.b16 %v3995
        %v4029 = vunpack.c.h.b16 %v3995
        %v4030 = vunpack.c.l.b16 %v3996
        %v4031 = vunpack.c.h.b16 %v3996
        %v4032 = vunpack.c.l.b16 %v3997
        %v4033 = vunpack.c.h.b16 %v3997
        %v4034 = vunpack.c.l.b16 %v3998
        %v4035 = vunpack.c.h.b16 %v3998
        %v4036 = vunpack.c.l.b16 %v3999
        %v4037 = vunpack.c.h.b16 %v3999
        %v4038 = vunpack.c.l.b16 %v4000
        %v4039 = vunpack.c.h.b16 %v4000
        %v4040 = vunpack.c.l.b16 %v4001
        %v4041 = vunpack.c.h.b16 %v4001
        %v4042 = vunpack.c.l.b16 %v4002
        %v4043 = vunpack.c.h.b16 %v4002
        %v4044 = vunpack.c.l.b16 %v4003
        %v4045 = vunpack.c.h.b16 %v4003
        %v4046 = vunpack.c.l.b16 %v4004
        %v4047 = vunpack.c.h.b16 %v4004
        %v4048 = vunpack.c.l.b16 %v4005
        %v4049 = vunpack.c.h.b16 %v4005
        %v4050 = vunpack.c.l.b16 %v4006
        %v4051 = vunpack.c.h.b16 %v4006
        %v4052 = vunpack.c.l.b16 %v4007
        %v4053 = vunpack.c.h.b16 %v4007
        %v4054 = vunpack.c.l.b16 %v4008
        %v4055 = vunpack.c.h.b16 %v4008
        %v4056 = vunpack.c.l.b16 %v4009
        %v4057 = vunpack.c.h.b16 %v4009
        %v4058 = vpack.c.b16 %v4026, %v4026
        %v4059 = vpack.c.b16 %v4027, %v4027
        %v4060 = vpack.c.b16 %v4028, %v4028
        %v4061 = vpack.c.b16 %v4029, %v4029
        %v4062 = vpack.c.b16 %v4030, %v4030
        %v4063 = vpack.c.b16 %v4031, %v4031
        %v4064 = vpack.c.b16 %v4032, %v4032
        %v4065 = vpack.c.b16 %v4033, %v4033
        %v4066 = vpack.c.b16 %v4034, %v4034
        %v4067 = vpack.c.b16 %v4035, %v4035
        %v4068 = vpack.c.b16 %v4036, %v4036
        %v4069 = vpack.c.b16 %v4037, %v4037
        %v4070 = vpack.c.b16 %v4038, %v4038
        %v4071 = vpack.c.b16 %v4039, %v4039
        %v4072 = vpack.c.b16 %v4040, %v4040
        %v4073 = vpack.c.b16 %v4041, %v4041
        %v4074 = vpack.c.b16 %v4042, %v4042
        %v4075 = vpack.c.b16 %v4043, %v4043
        %v4076 = vpack.c.b16 %v4044, %v4044
        %v4077 = vpack.c.b16 %v4045, %v4045
        %v4078 = vpack.c.b16 %v4046, %v4046
        %v4079 = vpack.c.b16 %v4047, %v4047
        %v4080 = vpack.c.b16 %v4048, %v4048
        %v4081 = vpack.c.b16 %v4049, %v4049
        %v4082 = vpack.c.b16 %v4050, %v4050
        %v4083 = vpack.c.b16 %v4051, %v4051
        %v4084 = vpack.c.b16 %v4052, %v4052
        %v4085 = vpack.c.b16 %v4053, %v4053
        %v4086 = vpack.c.b16 %v4054, %v4054
        %v4087 = vpack.c.b16 %v4055, %v4055
        %v4088 = vpack.c.b16 %v4056, %v4056
        %v4089 = vpack.c.b16 %v4057, %v4057
        %4122 = vst.msk [vmem:[#allocation2 + $0x20] sm:$0xf] %vm539, %v4058
        %4123 = vst.msk [vmem:[#allocation2 + $0x24] sm:$0xf] %vm539, %v4059
        %4124 = vst.msk [vmem:[#allocation2 + $0x28] sm:$0xf] %vm539, %v4060
        %4125 = vst.msk [vmem:[#allocation2 + $0x2c] sm:$0xf] %vm539, %v4061
        %4126 = vst.msk [vmem:[#allocation2 + $0x30] sm:$0xf] %vm539, %v4062
        %4127 = vst.msk [vmem:[#allocation2 + $0x34] sm:$0xf] %vm539, %v4063
        %4128 = vst.msk [vmem:[#allocation2 + $0x38] sm:$0xf] %vm539, %v4064
        %4129 = vst.msk [vmem:[#allocation2 + $0x3c] sm:$0xf] %vm539, %v4065
        %4130 = vst.msk [vmem:[#allocation2 + $0x40] sm:$0xf] %vm539, %v4066
        %4131 = vst.msk [vmem:[#allocation2 + $0x44] sm:$0xf] %vm539, %v4067
        %4132 = vst.msk [vmem:[#allocation2 + $0x48] sm:$0xf] %vm539, %v4068
        %4133 = vst.msk [vmem:[#allocation2 + $0x4c] sm:$0xf] %vm539, %v4069
        %4134 = vst.msk [vmem:[#allocation2 + $0x50] sm:$0xf] %vm539, %v4070
        %4135 = vst.msk [vmem:[#allocation2 + $0x54] sm:$0xf] %vm539, %v4071
        %4136 = vst.msk [vmem:[#allocation2 + $0x58] sm:$0xf] %vm539, %v4072
        %4137 = vst.msk [vmem:[#allocation2 + $0x5c] sm:$0xf] %vm539, %v4073
        %4138 = vst.msk [vmem:[#allocation2 + $0x60] sm:$0xf] %vm539, %v4074
        %4139 = vst.msk [vmem:[#allocation2 + $0x64] sm:$0xf] %vm539, %v4075
        %4140 = vst.msk [vmem:[#allocation2 + $0x68] sm:$0xf] %vm539, %v4076
        %4141 = vst.msk [vmem:[#allocation2 + $0x6c] sm:$0xf] %vm539, %v4077
        %4142 = vst.msk [vmem:[#allocation2 + $0x70] sm:$0xf] %vm539, %v4078
        %4143 = vst.msk [vmem:[#allocation2 + $0x74] sm:$0xf] %vm539, %v4079
        %4144 = vst.msk [vmem:[#allocation2 + $0x78] sm:$0xf] %vm539, %v4080
        %4145 = vst.msk [vmem:[#allocation2 + $0x7c] sm:$0xf] %vm539, %v4081
        %4146 = vst.msk [vmem:[#allocation2 + $0x80] sm:$0xf] %vm539, %v4082
        %4147 = vst.msk [vmem:[#allocation2 + $0x84] sm:$0xf] %vm539, %v4083
        %4148 = vst.msk [vmem:[#allocation2 + $0x88] sm:$0xf] %vm539, %v4084
        %4149 = vst.msk [vmem:[#allocation2 + $0x8c] sm:$0xf] %vm539, %v4085
        %4150 = vst.msk [vmem:[#allocation2 + $0x90] sm:$0xf] %vm539, %v4086
        %4151 = vst.msk [vmem:[#allocation2 + $0x94] sm:$0xf] %vm539, %v4087
        %4152 = vst.msk [vmem:[#allocation2 + $0x98] sm:$0xf] %vm539, %v4088
        %4153 = vst.msk [vmem:[#allocation2 + $0x9c] sm:$0xf] %vm539, %v4089
        %v4154 = vld [vmem:[#allocation2 + $0x18] sm:$0xf]
        %v4155 = vld [vmem:[#allocation2 + $0x1c] sm:$0xf]
        %v4156 = vld [vmem:[#allocation2 + $0x20] sm:$0xf]
        %v4157 = vld [vmem:[#allocation2 + $0x24] sm:$0xf]
        %v4158 = vld [vmem:[#allocation2 + $0x28] sm:$0xf]
        %v4159 = vld [vmem:[#allocation2 + $0x2c] sm:$0xf]
        %v4160 = vld [vmem:[#allocation2 + $0x30] sm:$0xf]
        %v4161 = vld [vmem:[#allocation2 + $0x34] sm:$0xf]
        %v4162 = vld [vmem:[#allocation2 + $0x38] sm:$0xf]
        %v4163 = vld [vmem:[#allocation2 + $0x3c] sm:$0xf]
        %v4164 = vld [vmem:[#allocation2 + $0x40] sm:$0xf]
        %v4165 = vld [vmem:[#allocation2 + $0x44] sm:$0xf]
        %v4166 = vld [vmem:[#allocation2 + $0x48] sm:$0xf]
        %v4167 = vld [vmem:[#allocation2 + $0x4c] sm:$0xf]
        %v4168 = vld [vmem:[#allocation2 + $0x50] sm:$0xf]
        %v4169 = vld [vmem:[#allocation2 + $0x54] sm:$0xf]
        %v4170 = vld [vmem:[#allocation2 + $0x58] sm:$0xf]
        %v4171 = vld [vmem:[#allocation2 + $0x5c] sm:$0xf]
        %v4172 = vld [vmem:[#allocation2 + $0x60] sm:$0xf]
        %v4173 = vld [vmem:[#allocation2 + $0x64] sm:$0xf]
        %v4174 = vld [vmem:[#allocation2 + $0x68] sm:$0xf]
        %v4175 = vld [vmem:[#allocation2 + $0x6c] sm:$0xf]
        %v4176 = vld [vmem:[#allocation2 + $0x70] sm:$0xf]
        %v4177 = vld [vmem:[#allocation2 + $0x74] sm:$0xf]
        %v4178 = vld [vmem:[#allocation2 + $0x78] sm:$0xf]
        %v4179 = vld [vmem:[#allocation2 + $0x7c] sm:$0xf]
        %v4180 = vld [vmem:[#allocation2 + $0x80] sm:$0xf]
        %v4181 = vld [vmem:[#allocation2 + $0x84] sm:$0xf]
        %v4182 = vld [vmem:[#allocation2 + $0x88] sm:$0xf]
        %v4183 = vld [vmem:[#allocation2 + $0x8c] sm:$0xf]
        %v4184 = vld [vmem:[#allocation2 + $0x90] sm:$0xf]
        %v4185 = vld [vmem:[#allocation2 + $0x94] sm:$0xf]
        %v4186 = vld [vmem:[#allocation2 + $0x98] sm:$0xf]
        %v4187 = vld [vmem:[#allocation2 + $0x9c] sm:$0xf]
        %v4188 = vld [vmem:[#allocation2 + $0xa0] sm:$0xf]
        %v4189 = vld [vmem:[#allocation2 + $0xa4] sm:$0xf]
        %v4222 = vunpack.c.l.b16 %v4154
        %v4223 = vunpack.c.l.b16 %v4155
        %v4224 = vunpack.c.l.b16 %v4156
        %v4225 = vunpack.c.l.b16 %v4157
        %v4226 = vunpack.c.l.b16 %v4158
        %v4227 = vunpack.c.l.b16 %v4159
        %v4228 = vunpack.c.l.b16 %v4160
        %v4229 = vunpack.c.l.b16 %v4161
        %v4230 = vunpack.c.l.b16 %v4162
        %v4231 = vunpack.c.l.b16 %v4163
        %v4232 = vunpack.c.l.b16 %v4164
        %v4233 = vunpack.c.l.b16 %v4165
        %v4234 = vunpack.c.l.b16 %v4166
        %v4235 = vunpack.c.l.b16 %v4167
        %v4236 = vunpack.c.l.b16 %v4168
        %v4237 = vunpack.c.l.b16 %v4169
        %v4238 = vunpack.c.l.b16 %v4170
        %v4239 = vunpack.c.l.b16 %v4171
        %v4240 = vunpack.c.l.b16 %v4172
        %v4241 = vunpack.c.l.b16 %v4173
        %v4242 = vunpack.c.l.b16 %v4174
        %v4243 = vunpack.c.l.b16 %v4175
        %v4244 = vunpack.c.l.b16 %v4176
        %v4245 = vunpack.c.l.b16 %v4177
        %v4246 = vunpack.c.l.b16 %v4178
        %v4247 = vunpack.c.l.b16 %v4179
        %v4248 = vunpack.c.l.b16 %v4180
        %v4249 = vunpack.c.l.b16 %v4181
        %v4250 = vunpack.c.l.b16 %v4182
        %v4251 = vunpack.c.l.b16 %v4183
        %v4252 = vunpack.c.l.b16 %v4184
        %v4253 = vunpack.c.l.b16 %v4185
        %v4254 = vpack.c.b16 %v4223, %v4222
        %v4255 = vpack.c.b16 %v4225, %v4224
        %v4256 = vpack.c.b16 %v4227, %v4226
        %v4257 = vpack.c.b16 %v4229, %v4228
        %v4258 = vpack.c.b16 %v4231, %v4230
        %v4259 = vpack.c.b16 %v4233, %v4232
        %v4260 = vpack.c.b16 %v4235, %v4234
        %v4261 = vpack.c.b16 %v4237, %v4236
        %v4262 = vpack.c.b16 %v4239, %v4238
        %v4263 = vpack.c.b16 %v4241, %v4240
        %v4264 = vpack.c.b16 %v4243, %v4242
        %v4265 = vpack.c.b16 %v4245, %v4244
        %v4266 = vpack.c.b16 %v4247, %v4246
        %v4267 = vpack.c.b16 %v4249, %v4248
        %v4268 = vpack.c.b16 %v4251, %v4250
        %v4269 = vpack.c.b16 %v4253, %v4252
        %v4272 = vunpack.c.l.b16 %v4186
        %v4273 = vunpack.c.l.b16 %v4187
        %v4274 = vpack.c.b16 %v4273, %v4272
        %4275 = vrot.lane.b32.xlu0 %v4255, 32
        %v4276 = vpop.permute.xlu0 %4275
        %4277 = vrot.lane.b32.xlu0 %v4256, 32
        %v4278 = vpop.permute.xlu0 %4277
        %4279 = vrot.lane.b32.xlu0 %v4257, 32
        %v4280 = vpop.permute.xlu0 %4279
        %4281 = vrot.lane.b32.xlu0 %v4258, 32
        %v4282 = vpop.permute.xlu0 %4281
        %4283 = vrot.lane.b32.xlu0 %v4259, 32
        %v4284 = vpop.permute.xlu0 %4283
        %4285 = vrot.lane.b32.xlu0 %v4260, 32
        %v4286 = vpop.permute.xlu0 %4285
        %4287 = vrot.lane.b32.xlu0 %v4261, 32
        %v4288 = vpop.permute.xlu0 %4287
        %4289 = vrot.lane.b32.xlu0 %v4262, 32
        %v4290 = vpop.permute.xlu0 %4289
        %4291 = vrot.lane.b32.xlu0 %v4263, 32
        %v4292 = vpop.permute.xlu0 %4291
        %4293 = vrot.lane.b32.xlu0 %v4264, 32
        %v4294 = vpop.permute.xlu0 %4293
        %4295 = vrot.lane.b32.xlu0 %v4265, 32
        %v4296 = vpop.permute.xlu0 %4295
        %4297 = vrot.lane.b32.xlu0 %v4266, 32
        %v4298 = vpop.permute.xlu0 %4297
        %4299 = vrot.lane.b32.xlu0 %v4267, 32
        %v4300 = vpop.permute.xlu0 %4299
        %4301 = vrot.lane.b32.xlu0 %v4268, 32
        %v4302 = vpop.permute.xlu0 %4301
        %4303 = vrot.lane.b32.xlu0 %v4269, 32
        %v4304 = vpop.permute.xlu0 %4303
        %4305 = vrot.lane.b32.xlu0 %v4274, 32
        %v4306 = vpop.permute.xlu0 %4305
        %v4309 = vunpack.c.l.b16 %v4188
        %v4310 = vunpack.c.l.b16 %v4189
        %v4311 = vpack.c.b16 %v4310, %v4309
        %4312 = vrot.lane.b32.xlu0 %v4256, 64
        %v4313 = vpop.permute.xlu0 %4312
        %4314 = vrot.lane.b32.xlu0 %v4257, 64
        %v4315 = vpop.permute.xlu0 %4314
        %4316 = vrot.lane.b32.xlu0 %v4258, 64
        %v4317 = vpop.permute.xlu0 %4316
        %4318 = vrot.lane.b32.xlu0 %v4259, 64
        %v4319 = vpop.permute.xlu0 %4318
        %4320 = vrot.lane.b32.xlu0 %v4260, 64
        %v4321 = vpop.permute.xlu0 %4320
        %4322 = vrot.lane.b32.xlu0 %v4261, 64
        %v4323 = vpop.permute.xlu0 %4322
        %4324 = vrot.lane.b32.xlu0 %v4262, 64
        %v4325 = vpop.permute.xlu0 %4324
        %4326 = vrot.lane.b32.xlu0 %v4263, 64
        %v4327 = vpop.permute.xlu0 %4326
        %4328 = vrot.lane.b32.xlu0 %v4264, 64
        %v4329 = vpop.permute.xlu0 %4328
        %4330 = vrot.lane.b32.xlu0 %v4265, 64
        %v4331 = vpop.permute.xlu0 %4330
        %4332 = vrot.lane.b32.xlu0 %v4266, 64
        %v4333 = vpop.permute.xlu0 %4332
        %4334 = vrot.lane.b32.xlu0 %v4267, 64
        %v4335 = vpop.permute.xlu0 %4334
        %4336 = vrot.lane.b32.xlu0 %v4268, 64
        %v4337 = vpop.permute.xlu0 %4336
        %4338 = vrot.lane.b32.xlu0 %v4269, 64
        %v4339 = vpop.permute.xlu0 %4338
        %4340 = vrot.lane.b32.xlu0 %v4274, 64
        %v4341 = vpop.permute.xlu0 %4340
        %4342 = vrot.lane.b32.xlu0 %v4311, 64
        %v4343 = vpop.permute.xlu0 %4342
        %v4346 = vsel %vm1197, %v4254, %v4276
        %v4349 = vsel %vm1197, %v4255, %v4278
        %v4352 = vsel %vm1197, %v4256, %v4280
        %v4355 = vsel %vm1197, %v4257, %v4282
        %v4358 = vsel %vm1197, %v4258, %v4284
        %v4361 = vsel %vm1197, %v4259, %v4286
        %v4364 = vsel %vm1197, %v4260, %v4288
        %v4367 = vsel %vm1197, %v4261, %v4290
        %v4370 = vsel %vm1197, %v4262, %v4292
        %v4373 = vsel %vm1197, %v4263, %v4294
        %v4376 = vsel %vm1197, %v4264, %v4296
        %v4379 = vsel %vm1197, %v4265, %v4298
        %v4382 = vsel %vm1197, %v4266, %v4300
        %v4385 = vsel %vm1197, %v4267, %v4302
        %v4388 = vsel %vm1197, %v4268, %v4304
        %v4391 = vsel %vm1197, %v4269, %v4306
        %v4393 = vsel %vm1285, %v4346, %v4313
        %v4395 = vsel %vm1285, %v4349, %v4315
        %v4397 = vsel %vm1285, %v4352, %v4317
        %v4399 = vsel %vm1285, %v4355, %v4319
        %v4401 = vsel %vm1285, %v4358, %v4321
        %v4403 = vsel %vm1285, %v4361, %v4323
        %v4405 = vsel %vm1285, %v4364, %v4325
        %v4407 = vsel %vm1285, %v4367, %v4327
        %v4409 = vsel %vm1285, %v4370, %v4329
        %v4411 = vsel %vm1285, %v4373, %v4331
        %v4413 = vsel %vm1285, %v4376, %v4333
        %v4415 = vsel %vm1285, %v4379, %v4335
        %v4417 = vsel %vm1285, %v4382, %v4337
        %v4419 = vsel %vm1285, %v4385, %v4339
        %v4421 = vsel %vm1285, %v4388, %v4341
        %v4423 = vsel %vm1285, %v4391, %v4343
        %v4424 = vld [vmem:[%s9] sm:$0xf]
        %v4425 = vld [vmem:[%s9 + $0x4] sm:$0xf]
        %v4426 = vld [vmem:[%s9 + $0x8] sm:$0xf]
        %v4427 = vld [vmem:[%s9 + $0xc] sm:$0xf]
        %v4428 = vld [vmem:[%s9 + $0x10] sm:$0xf]
        %v4429 = vld [vmem:[%s9 + $0x14] sm:$0xf]
        %v4430 = vld [vmem:[%s9 + $0x18] sm:$0xf]
        %v4431 = vld [vmem:[%s9 + $0x1c] sm:$0xf]
        %v4432 = vld [vmem:[%s9 + $0x20] sm:$0xf]
        %v4433 = vld [vmem:[%s9 + $0x24] sm:$0xf]
        %v4434 = vld [vmem:[%s9 + $0x28] sm:$0xf]
        %v4435 = vld [vmem:[%s9 + $0x2c] sm:$0xf]
        %v4436 = vld [vmem:[%s10] sm:$0x1]
        %v4438 = vlaneseq
        %v4439 = vshrl.u32 %v4438, 7
        %v4440 = vsub.s32 0, %v4439
        %v4441 = vrot.slane %v4436, %v4440
        %v4455 = vunpack.c.l.b16 %v4424
        %v4456 = vunpack.c.l.b16 %v4425
        %v4457 = vunpack.c.l.b16 %v4426
        %v4458 = vunpack.c.l.b16 %v4427
        %v4459 = vunpack.c.l.b16 %v4428
        %v4460 = vunpack.c.l.b16 %v4429
        %v4461 = vunpack.c.l.b16 %v4430
        %v4462 = vunpack.c.l.b16 %v4431
        %v4463 = vunpack.c.l.b16 %v4432
        %v4464 = vunpack.c.l.b16 %v4433
        %v4465 = vunpack.c.l.b16 %v4434
        %v4466 = vunpack.c.l.b16 %v4435
        %v4467 = vpack.c.b16 %v4456, %v4455
        %v4468 = vpack.c.b16 %v4458, %v4457
        %v4469 = vpack.c.b16 %v4460, %v4459
        %v4470 = vpack.c.b16 %v4462, %v4461
        %v4471 = vpack.c.b16 %v4464, %v4463
        %v4472 = vpack.c.b16 %v4466, %v4465
        %v4479 = vsel %vm3752, %v4393, 0
        %v4481 = vsel %vm3752, %v4395, 0
        %v4483 = vsel %vm3752, %v4397, 0
        %v4485 = vsel %vm3752, %v4399, 0
        %v4487 = vsel %vm3752, %v4401, 0
        %v4489 = vsel %vm3752, %v4403, 0
        %v4491 = vsel %vm3752, %v4405, 0
        %v4493 = vsel %vm3752, %v4407, 0
        %v4495 = vsel %vm3752, %v4409, 0
        %v4497 = vsel %vm3752, %v4411, 0
        %v4499 = vsel %vm3752, %v4413, 0
        %v4501 = vsel %vm3752, %v4415, 0
        %v4503 = vsel %vm3752, %v4417, 0
        %v4505 = vsel %vm3752, %v4419, 0
        %v4507 = vsel %vm3752, %v4421, 0
        %v4509 = vsel %vm3752, %v4423, 0
        %4511 = vmatprep.subr.bf16.mxu0 0
        %4512 = vmatpush1.bf16.msra.mxu0 0
        %4513 = vmatprep.subr.bf16.mxu0 0
        %4514 = vmatpush1.bf16.msra.mxu0 0
        %4515 = vmatprep.subr.bf16.mxu0 0
        %4516 = vmatpush1.bf16.msra.mxu0 %v4472
        %4517 = vmatprep.subr.bf16.mxu0 0
        %4518 = vmatpush1.bf16.msra.mxu0 %v4471
        %4519 = vmatprep.subr.bf16.mxu0 0
        %4520 = vmatpush1.bf16.msra.mxu0 %v4470
        %4521 = vmatprep.subr.bf16.mxu0 0
        %4522 = vmatpush1.bf16.msra.mxu0 %v4469
        %4523 = vmatprep.subr.bf16.mxu0 0
        %4524 = vmatpush1.bf16.msra.mxu0 %v4468
        %4525 = vmatprep.subr.bf16.mxu0 0
        %4526 = vmatpush1.bf16.msra.mxu0 %v4467
        %4527 = vmatprep.subr.bf16.mxu0 0
        %4528 = vmatpush2.bf16.msra.mxu0 0
        %4529 = vmatprep.subr.bf16.mxu0 0
        %4530 = vmatpush2.bf16.msra.mxu0 0
        %4531 = vmatprep.subr.bf16.mxu0 0
        %4532 = vmatpush2.bf16.msra.mxu0 0
        %4533 = vmatprep.subr.bf16.mxu0 0
        %4534 = vmatpush2.bf16.msra.mxu0 0
        %4535 = vmatprep.subr.bf16.mxu0 0
        %4536 = vmatpush2.bf16.msra.mxu0 0
        %4537 = vmatprep.subr.bf16.mxu0 0
        %4538 = vmatpush2.bf16.msra.mxu0 0
        %4539 = vmatprep.subr.bf16.mxu0 0
        %4540 = vmatpush2.bf16.msra.mxu0 0
        %4541 = vmatprep.subr.bf16.mxu0 0
        %4542 = vmatpush2.bf16.msra.mxu0 0
        %4543 = vmatprep.mubr.bf16.mxu0 0
        %4544 = vmatmul.mubr.bf16.gmra.mxu0 %v4479
        %v4545 = vpop.f32.mrf.mxu0
        %v4546 = vadd.f32 %v4441, %v4545
        %v4547 = vpop.f32.mrf.mxu0
        %v4548 = vpop.f32.mrf.mxu0
        %v4549 = vadd.f32 %v4441, %v4548
        %v4550 = vpop.f32.mrf.mxu0
        %4551 = vmatprep.mubr.bf16.mxu0 0
        %4552 = vmatmul.mubr.bf16.gmra.mxu0 %v4481
        %v4553 = vpop.f32.mrf.mxu0
        %v4554 = vadd.f32 %v4441, %v4553
        %v4555 = vpop.f32.mrf.mxu0
        %v4556 = vpop.f32.mrf.mxu0
        %v4557 = vadd.f32 %v4441, %v4556
        %v4558 = vpop.f32.mrf.mxu0
        %4559 = vmatprep.mubr.bf16.mxu0 0
        %4560 = vmatmul.mubr.bf16.gmra.mxu0 %v4483
        %v4561 = vpop.f32.mrf.mxu0
        %v4562 = vadd.f32 %v4441, %v4561
        %v4563 = vpop.f32.mrf.mxu0
        %v4564 = vpop.f32.mrf.mxu0
        %v4565 = vadd.f32 %v4441, %v4564
        %v4566 = vpop.f32.mrf.mxu0
        %4567 = vmatprep.mubr.bf16.mxu0 0
        %4568 = vmatmul.mubr.bf16.gmra.mxu0 %v4485
        %v4569 = vpop.f32.mrf.mxu0
        %v4570 = vadd.f32 %v4441, %v4569
        %v4571 = vpop.f32.mrf.mxu0
        %v4572 = vpop.f32.mrf.mxu0
        %v4573 = vadd.f32 %v4441, %v4572
        %v4574 = vpop.f32.mrf.mxu0
        %4575 = vmatprep.mubr.bf16.mxu0 0
        %4576 = vmatmul.mubr.bf16.gmra.mxu0 %v4487
        %v4577 = vpop.f32.mrf.mxu0
        %v4578 = vadd.f32 %v4441, %v4577
        %v4579 = vpop.f32.mrf.mxu0
        %v4580 = vpop.f32.mrf.mxu0
        %v4581 = vadd.f32 %v4441, %v4580
        %v4582 = vpop.f32.mrf.mxu0
        %4583 = vmatprep.mubr.bf16.mxu0 0
        %4584 = vmatmul.mubr.bf16.gmra.mxu0 %v4489
        %v4585 = vpop.f32.mrf.mxu0
        %v4586 = vadd.f32 %v4441, %v4585
        %v4587 = vpop.f32.mrf.mxu0
        %v4588 = vpop.f32.mrf.mxu0
        %v4589 = vadd.f32 %v4441, %v4588
        %v4590 = vpop.f32.mrf.mxu0
        %4591 = vmatprep.mubr.bf16.mxu0 0
        %4592 = vmatmul.mubr.bf16.gmra.mxu0 %v4491
        %v4593 = vpop.f32.mrf.mxu0
        %v4594 = vadd.f32 %v4441, %v4593
        %v4595 = vpop.f32.mrf.mxu0
        %v4596 = vpop.f32.mrf.mxu0
        %v4597 = vadd.f32 %v4441, %v4596
        %v4598 = vpop.f32.mrf.mxu0
        %4599 = vmatprep.mubr.bf16.mxu0 0
        %4600 = vmatmul.mubr.bf16.gmra.mxu0 %v4493
        %v4601 = vpop.f32.mrf.mxu0
        %v4602 = vadd.f32 %v4441, %v4601
        %v4603 = vpop.f32.mrf.mxu0
        %v4604 = vpop.f32.mrf.mxu0
        %v4605 = vadd.f32 %v4441, %v4604
        %v4606 = vpop.f32.mrf.mxu0
        %4607 = vmatprep.mubr.bf16.mxu0 0
        %4608 = vmatmul.mubr.bf16.gmra.mxu0 %v4495
        %v4609 = vpop.f32.mrf.mxu0
        %v4610 = vadd.f32 %v4441, %v4609
        %v4611 = vpop.f32.mrf.mxu0
        %v4612 = vpop.f32.mrf.mxu0
        %v4613 = vadd.f32 %v4441, %v4612
        %v4614 = vpop.f32.mrf.mxu0
        %4615 = vmatprep.mubr.bf16.mxu0 0
        %4616 = vmatmul.mubr.bf16.gmra.mxu0 %v4497
        %v4617 = vpop.f32.mrf.mxu0
        %v4618 = vadd.f32 %v4441, %v4617
        %v4619 = vpop.f32.mrf.mxu0
        %v4620 = vpop.f32.mrf.mxu0
        %v4621 = vadd.f32 %v4441, %v4620
        %v4622 = vpop.f32.mrf.mxu0
        %4623 = vmatprep.mubr.bf16.mxu0 0
        %4624 = vmatmul.mubr.bf16.gmra.mxu0 %v4499
        %v4625 = vpop.f32.mrf.mxu0
        %v4626 = vadd.f32 %v4441, %v4625
        %v4627 = vpop.f32.mrf.mxu0
        %v4628 = vpop.f32.mrf.mxu0
        %v4629 = vadd.f32 %v4441, %v4628
        %v4630 = vpop.f32.mrf.mxu0
        %4631 = vmatprep.mubr.bf16.mxu0 0
        %4632 = vmatmul.mubr.bf16.gmra.mxu0 %v4501
        %v4633 = vpop.f32.mrf.mxu0
        %v4634 = vadd.f32 %v4441, %v4633
        %v4635 = vpop.f32.mrf.mxu0
        %v4636 = vpop.f32.mrf.mxu0
        %v4637 = vadd.f32 %v4441, %v4636
        %v4638 = vpop.f32.mrf.mxu0
        %4639 = vmatprep.mubr.bf16.mxu0 0
        %4640 = vmatmul.mubr.bf16.gmra.mxu0 %v4503
        %v4641 = vpop.f32.mrf.mxu0
        %v4642 = vadd.f32 %v4441, %v4641
        %v4643 = vpop.f32.mrf.mxu0
        %v4644 = vpop.f32.mrf.mxu0
        %v4645 = vadd.f32 %v4441, %v4644
        %v4646 = vpop.f32.mrf.mxu0
        %4647 = vmatprep.mubr.bf16.mxu0 0
        %4648 = vmatmul.mubr.bf16.gmra.mxu0 %v4505
        %v4649 = vpop.f32.mrf.mxu0
        %v4650 = vadd.f32 %v4441, %v4649
        %v4651 = vpop.f32.mrf.mxu0
        %v4652 = vpop.f32.mrf.mxu0
        %v4653 = vadd.f32 %v4441, %v4652
        %v4654 = vpop.f32.mrf.mxu0
        %4655 = vmatprep.mubr.bf16.mxu0 0
        %4656 = vmatmul.mubr.bf16.gmra.mxu0 %v4507
        %v4657 = vpop.f32.mrf.mxu0
        %v4658 = vadd.f32 %v4441, %v4657
        %v4659 = vpop.f32.mrf.mxu0
        %v4660 = vpop.f32.mrf.mxu0
        %v4661 = vadd.f32 %v4441, %v4660
        %v4662 = vpop.f32.mrf.mxu0
        %4663 = vmatprep.mubr.bf16.mxu0 0
        %4664 = vmatmul.mubr.bf16.gmra.mxu0 %v4509
        %v4665 = vpop.f32.mrf.mxu0
        %v4666 = vadd.f32 %v4441, %v4665
        %v4667 = vpop.f32.mrf.mxu0
        %v4668 = vpop.f32.mrf.mxu0
        %v4669 = vadd.f32 %v4441, %v4668
        %v4670 = vpop.f32.mrf.mxu0
        %4671 = vdwg.mxu0
        %v4672 = vmax.f32 %v4546, 0.0
        %v4673 = vmax.f32 %v4549, 0.0
        %v4674 = vmax.f32 %v4554, 0.0
        %v4675 = vmax.f32 %v4557, 0.0
        %v4676 = vmax.f32 %v4562, 0.0
        %v4677 = vmax.f32 %v4565, 0.0
        %v4678 = vmax.f32 %v4570, 0.0
        %v4679 = vmax.f32 %v4573, 0.0
        %v4680 = vmax.f32 %v4578, 0.0
        %v4681 = vmax.f32 %v4581, 0.0
        %v4682 = vmax.f32 %v4586, 0.0
        %v4683 = vmax.f32 %v4589, 0.0
        %v4684 = vmax.f32 %v4594, 0.0
        %v4685 = vmax.f32 %v4597, 0.0
        %v4686 = vmax.f32 %v4602, 0.0
        %v4687 = vmax.f32 %v4605, 0.0
        %v4688 = vmax.f32 %v4610, 0.0
        %v4689 = vmax.f32 %v4613, 0.0
        %v4690 = vmax.f32 %v4618, 0.0
        %v4691 = vmax.f32 %v4621, 0.0
        %v4692 = vmax.f32 %v4626, 0.0
        %v4693 = vmax.f32 %v4629, 0.0
        %v4694 = vmax.f32 %v4634, 0.0
        %v4695 = vmax.f32 %v4637, 0.0
        %v4696 = vmax.f32 %v4642, 0.0
        %v4697 = vmax.f32 %v4645, 0.0
        %v4698 = vmax.f32 %v4650, 0.0
        %v4699 = vmax.f32 %v4653, 0.0
        %v4700 = vmax.f32 %v4658, 0.0
        %v4701 = vmax.f32 %v4661, 0.0
        %v4702 = vmax.f32 %v4666, 0.0
        %v4703 = vmax.f32 %v4669, 0.0
        %v4704 = vpack.c.bf16 %v4673, %v4672
        %v4705 = vpack.c.bf16 %v4675, %v4674
        %v4706 = vpack.c.bf16 %v4677, %v4676
        %v4707 = vpack.c.bf16 %v4679, %v4678
        %v4708 = vpack.c.bf16 %v4681, %v4680
        %v4709 = vpack.c.bf16 %v4683, %v4682
        %v4710 = vpack.c.bf16 %v4685, %v4684
        %v4711 = vpack.c.bf16 %v4687, %v4686
        %v4712 = vpack.c.bf16 %v4689, %v4688
        %v4713 = vpack.c.bf16 %v4691, %v4690
        %v4714 = vpack.c.bf16 %v4693, %v4692
        %v4715 = vpack.c.bf16 %v4695, %v4694
        %v4716 = vpack.c.bf16 %v4697, %v4696
        %v4717 = vpack.c.bf16 %v4699, %v4698
        %v4718 = vpack.c.bf16 %v4701, %v4700
        %v4719 = vpack.c.bf16 %v4703, %v4702
        %v4736 = vunpack.c.l.b16 %v4704
        %v4737 = vunpack.c.h.b16 %v4704
        %v4738 = vunpack.c.l.b16 %v4705
        %v4739 = vunpack.c.h.b16 %v4705
        %v4740 = vunpack.c.l.b16 %v4706
        %v4741 = vunpack.c.h.b16 %v4706
        %v4742 = vunpack.c.l.b16 %v4707
        %v4743 = vunpack.c.h.b16 %v4707
        %v4744 = vunpack.c.l.b16 %v4708
        %v4745 = vunpack.c.h.b16 %v4708
        %v4746 = vunpack.c.l.b16 %v4709
        %v4747 = vunpack.c.h.b16 %v4709
        %v4748 = vunpack.c.l.b16 %v4710
        %v4749 = vunpack.c.h.b16 %v4710
        %v4750 = vunpack.c.l.b16 %v4711
        %v4751 = vunpack.c.h.b16 %v4711
        %v4752 = vunpack.c.l.b16 %v4712
        %v4753 = vunpack.c.h.b16 %v4712
        %v4754 = vunpack.c.l.b16 %v4713
        %v4755 = vunpack.c.h.b16 %v4713
        %v4756 = vunpack.c.l.b16 %v4714
        %v4757 = vunpack.c.h.b16 %v4714
        %v4758 = vunpack.c.l.b16 %v4715
        %v4759 = vunpack.c.h.b16 %v4715
        %v4760 = vunpack.c.l.b16 %v4716
        %v4761 = vunpack.c.h.b16 %v4716
        %v4762 = vunpack.c.l.b16 %v4717
        %v4763 = vunpack.c.h.b16 %v4717
        %v4764 = vunpack.c.l.b16 %v4718
        %v4765 = vunpack.c.h.b16 %v4718
        %v4766 = vunpack.c.l.b16 %v4719
        %v4767 = vunpack.c.h.b16 %v4719
        %v4768 = vpack.c.b16 %v4736, %v4736
        %v4769 = vpack.c.b16 %v4737, %v4737
        %v4770 = vpack.c.b16 %v4738, %v4738
        %v4771 = vpack.c.b16 %v4739, %v4739
        %v4772 = vpack.c.b16 %v4740, %v4740
        %v4773 = vpack.c.b16 %v4741, %v4741
        %v4774 = vpack.c.b16 %v4742, %v4742
        %v4775 = vpack.c.b16 %v4743, %v4743
        %v4776 = vpack.c.b16 %v4744, %v4744
        %v4777 = vpack.c.b16 %v4745, %v4745
        %v4778 = vpack.c.b16 %v4746, %v4746
        %v4779 = vpack.c.b16 %v4747, %v4747
        %v4780 = vpack.c.b16 %v4748, %v4748
        %v4781 = vpack.c.b16 %v4749, %v4749
        %v4782 = vpack.c.b16 %v4750, %v4750
        %v4783 = vpack.c.b16 %v4751, %v4751
        %v4784 = vpack.c.b16 %v4752, %v4752
        %v4785 = vpack.c.b16 %v4753, %v4753
        %v4786 = vpack.c.b16 %v4754, %v4754
        %v4787 = vpack.c.b16 %v4755, %v4755
        %v4788 = vpack.c.b16 %v4756, %v4756
        %v4789 = vpack.c.b16 %v4757, %v4757
        %v4790 = vpack.c.b16 %v4758, %v4758
        %v4791 = vpack.c.b16 %v4759, %v4759
        %v4792 = vpack.c.b16 %v4760, %v4760
        %v4793 = vpack.c.b16 %v4761, %v4761
        %v4794 = vpack.c.b16 %v4762, %v4762
        %v4795 = vpack.c.b16 %v4763, %v4763
        %v4796 = vpack.c.b16 %v4764, %v4764
        %v4797 = vpack.c.b16 %v4765, %v4765
        %v4798 = vpack.c.b16 %v4766, %v4766
        %v4799 = vpack.c.b16 %v4767, %v4767
        %4832 = vst.msk [vmem:[#allocation2 + $0x20] sm:$0xf] %vm539, %v4768
        %4833 = vst.msk [vmem:[#allocation2 + $0x24] sm:$0xf] %vm539, %v4769
        %4834 = vst.msk [vmem:[#allocation2 + $0x28] sm:$0xf] %vm539, %v4770
        %4835 = vst.msk [vmem:[#allocation2 + $0x2c] sm:$0xf] %vm539, %v4771
        %4836 = vst.msk [vmem:[#allocation2 + $0x30] sm:$0xf] %vm539, %v4772
        %4837 = vst.msk [vmem:[#allocation2 + $0x34] sm:$0xf] %vm539, %v4773
        %4838 = vst.msk [vmem:[#allocation2 + $0x38] sm:$0xf] %vm539, %v4774
        %4839 = vst.msk [vmem:[#allocation2 + $0x3c] sm:$0xf] %vm539, %v4775
        %4840 = vst.msk [vmem:[#allocation2 + $0x40] sm:$0xf] %vm539, %v4776
        %4841 = vst.msk [vmem:[#allocation2 + $0x44] sm:$0xf] %vm539, %v4777
        %4842 = vst.msk [vmem:[#allocation2 + $0x48] sm:$0xf] %vm539, %v4778
        %4843 = vst.msk [vmem:[#allocation2 + $0x4c] sm:$0xf] %vm539, %v4779
        %4844 = vst.msk [vmem:[#allocation2 + $0x50] sm:$0xf] %vm539, %v4780
        %4845 = vst.msk [vmem:[#allocation2 + $0x54] sm:$0xf] %vm539, %v4781
        %4846 = vst.msk [vmem:[#allocation2 + $0x58] sm:$0xf] %vm539, %v4782
        %4847 = vst.msk [vmem:[#allocation2 + $0x5c] sm:$0xf] %vm539, %v4783
        %4848 = vst.msk [vmem:[#allocation2 + $0x60] sm:$0xf] %vm539, %v4784
        %4849 = vst.msk [vmem:[#allocation2 + $0x64] sm:$0xf] %vm539, %v4785
        %4850 = vst.msk [vmem:[#allocation2 + $0x68] sm:$0xf] %vm539, %v4786
        %4851 = vst.msk [vmem:[#allocation2 + $0x6c] sm:$0xf] %vm539, %v4787
        %4852 = vst.msk [vmem:[#allocation2 + $0x70] sm:$0xf] %vm539, %v4788
        %4853 = vst.msk [vmem:[#allocation2 + $0x74] sm:$0xf] %vm539, %v4789
        %4854 = vst.msk [vmem:[#allocation2 + $0x78] sm:$0xf] %vm539, %v4790
        %4855 = vst.msk [vmem:[#allocation2 + $0x7c] sm:$0xf] %vm539, %v4791
        %4856 = vst.msk [vmem:[#allocation2 + $0x80] sm:$0xf] %vm539, %v4792
        %4857 = vst.msk [vmem:[#allocation2 + $0x84] sm:$0xf] %vm539, %v4793
        %4858 = vst.msk [vmem:[#allocation2 + $0x88] sm:$0xf] %vm539, %v4794
        %4859 = vst.msk [vmem:[#allocation2 + $0x8c] sm:$0xf] %vm539, %v4795
        %4860 = vst.msk [vmem:[#allocation2 + $0x90] sm:$0xf] %vm539, %v4796
        %4861 = vst.msk [vmem:[#allocation2 + $0x94] sm:$0xf] %vm539, %v4797
        %4862 = vst.msk [vmem:[#allocation2 + $0x98] sm:$0xf] %vm539, %v4798
        %4863 = vst.msk [vmem:[#allocation2 + $0x9c] sm:$0xf] %vm539, %v4799
        %v4864 = vld [vmem:[#allocation2 + $0x4] sm:$0xc]
        %v4865 = vld [vmem:[#allocation2 + $0x8] sm:$0xf]
        %v4866 = vld [vmem:[#allocation2 + $0xc] sm:$0xf]
        %v4867 = vld [vmem:[#allocation2 + $0x10] sm:$0xf]
        %v4868 = vld [vmem:[#allocation2 + $0x14] sm:$0xf]
        %v4869 = vld [vmem:[#allocation2 + $0x18] sm:$0xf]
        %v4870 = vld [vmem:[#allocation2 + $0x1c] sm:$0xf]
        %v4871 = vld [vmem:[#allocation2 + $0x20] sm:$0xf]
        %v4872 = vld [vmem:[#allocation2 + $0x24] sm:$0xf]
        %v4873 = vld [vmem:[#allocation2 + $0x28] sm:$0xf]
        %v4874 = vld [vmem:[#allocation2 + $0x2c] sm:$0xf]
        %v4875 = vld [vmem:[#allocation2 + $0x30] sm:$0xf]
        %v4876 = vld [vmem:[#allocation2 + $0x34] sm:$0xf]
        %v4877 = vld [vmem:[#allocation2 + $0x38] sm:$0xf]
        %v4878 = vld [vmem:[#allocation2 + $0x3c] sm:$0xf]
        %v4879 = vld [vmem:[#allocation2 + $0x40] sm:$0xf]
        %v4880 = vld [vmem:[#allocation2 + $0x44] sm:$0xf]
        %v4881 = vld [vmem:[#allocation2 + $0x48] sm:$0xf]
        %v4882 = vld [vmem:[#allocation2 + $0x4c] sm:$0xf]
        %v4883 = vld [vmem:[#allocation2 + $0x50] sm:$0xf]
        %v4884 = vld [vmem:[#allocation2 + $0x54] sm:$0xf]
        %v4885 = vld [vmem:[#allocation2 + $0x58] sm:$0xf]
        %v4886 = vld [vmem:[#allocation2 + $0x5c] sm:$0xf]
        %v4887 = vld [vmem:[#allocation2 + $0x60] sm:$0xf]
        %v4888 = vld [vmem:[#allocation2 + $0x64] sm:$0xf]
        %v4889 = vld [vmem:[#allocation2 + $0x68] sm:$0xf]
        %v4890 = vld [vmem:[#allocation2 + $0x6c] sm:$0xf]
        %v4891 = vld [vmem:[#allocation2 + $0x70] sm:$0xf]
        %v4892 = vld [vmem:[#allocation2 + $0x74] sm:$0xf]
        %v4893 = vld [vmem:[#allocation2 + $0x78] sm:$0xf]
        %v4894 = vld [vmem:[#allocation2 + $0x7c] sm:$0xf]
        %v4895 = vld [vmem:[#allocation2 + $0x80] sm:$0xf]
        %v4896 = vld [vmem:[#allocation2 + $0x84] sm:$0x7]
        %vm4897 = vcmp.ge.s32.totalorder %v973, 3
        %vm4898 = vcmp.ge.s32.totalorder %v974, 3
        %vm4899 = vcmp.ge.s32.totalorder %v975, 3
        %vm4900 = vcmp.ge.s32.totalorder %v976, 3
        %vm4901 = vcmp.ge.s32.totalorder %v977, 3
        %vm4902 = vcmp.ge.s32.totalorder %v978, 3
        %vm4903 = vcmp.ge.s32.totalorder %v979, 3
        %vm4904 = vcmp.ge.s32.totalorder %v980, 3
        %vm4905 = vcmp.ge.s32.totalorder %v981, 3
        %vm4906 = vcmp.ge.s32.totalorder %v982, 3
        %vm4907 = vcmp.ge.s32.totalorder %v983, 3
        %vm4908 = vcmp.ge.s32.totalorder %v984, 3
        %vm4909 = vcmp.ge.s32.totalorder %v985, 3
        %vm4910 = vcmp.ge.s32.totalorder %v986, 3
        %vm4911 = vcmp.ge.s32.totalorder %v987, 3
        %vm4912 = vcmp.ge.s32.totalorder %v988, 3
        %vm4913 = vcmp.ge.s32.totalorder %v989, 3
        %vm4914 = vcmp.ge.s32.totalorder %v990, 3
        %vm4915 = vcmp.ge.s32.totalorder %v991, 3
        %vm4916 = vcmp.ge.s32.totalorder %v992, 3
        %vm4917 = vcmp.ge.s32.totalorder %v993, 3
        %vm4918 = vcmp.ge.s32.totalorder %v994, 3
        %vm4919 = vcmp.ge.s32.totalorder %v995, 3
        %vm4920 = vcmp.ge.s32.totalorder %v996, 3
        %vm4921 = vcmp.ge.s32.totalorder %v997, 3
        %vm4922 = vcmp.ge.s32.totalorder %v998, 3
        %vm4923 = vcmp.ge.s32.totalorder %v999, 3
        %vm4924 = vcmp.ge.s32.totalorder %v1000, 3
        %vm4925 = vcmp.ge.s32.totalorder %v1001, 3
        %vm4926 = vcmp.ge.s32.totalorder %v1002, 3
        %vm4927 = vcmp.ge.s32.totalorder %v1003, 3
        %vm4928 = vcmp.ge.s32.totalorder %v1004, 3
        %v4929 = vsel %vm4897, 1, 0
        %v4930 = vsel %vm4898, 1, 0
        %v4931 = vsel %vm4899, 1, 0
        %v4932 = vsel %vm4900, 1, 0
        %v4933 = vsel %vm4901, 1, 0
        %v4934 = vsel %vm4902, 1, 0
        %v4935 = vsel %vm4903, 1, 0
        %v4936 = vsel %vm4904, 1, 0
        %v4937 = vsel %vm4905, 1, 0
        %v4938 = vsel %vm4906, 1, 0
        %v4939 = vsel %vm4907, 1, 0
        %v4940 = vsel %vm4908, 1, 0
        %v4941 = vsel %vm4909, 1, 0
        %v4942 = vsel %vm4910, 1, 0
        %v4943 = vsel %vm4911, 1, 0
        %v4944 = vsel %vm4912, 1, 0
        %v4945 = vsel %vm4913, 1, 0
        %v4946 = vsel %vm4914, 1, 0
        %v4947 = vsel %vm4915, 1, 0
        %v4948 = vsel %vm4916, 1, 0
        %v4949 = vsel %vm4917, 1, 0
        %v4950 = vsel %vm4918, 1, 0
        %v4951 = vsel %vm4919, 1, 0
        %v4952 = vsel %vm4920, 1, 0
        %v4953 = vsel %vm4921, 1, 0
        %v4954 = vsel %vm4922, 1, 0
        %v4955 = vsel %vm4923, 1, 0
        %v4956 = vsel %vm4924, 1, 0
        %v4957 = vsel %vm4925, 1, 0
        %v4958 = vsel %vm4926, 1, 0
        %v4959 = vsel %vm4927, 1, 0
        %v4960 = vsel %vm4928, 1, 0
        %vm4961 = vcmp.eq.s32.totalorder %v4929, 1
        %vm4962 = vcmp.eq.s32.totalorder %v4930, 1
        %vm4963 = vcmp.eq.s32.totalorder %v4931, 1
        %vm4964 = vcmp.eq.s32.totalorder %v4932, 1
        %vm4965 = vcmp.eq.s32.totalorder %v4933, 1
        %vm4966 = vcmp.eq.s32.totalorder %v4934, 1
        %vm4967 = vcmp.eq.s32.totalorder %v4935, 1
        %vm4968 = vcmp.eq.s32.totalorder %v4936, 1
        %vm4969 = vcmp.eq.s32.totalorder %v4937, 1
        %vm4970 = vcmp.eq.s32.totalorder %v4938, 1
        %vm4971 = vcmp.eq.s32.totalorder %v4939, 1
        %vm4972 = vcmp.eq.s32.totalorder %v4940, 1
        %vm4973 = vcmp.eq.s32.totalorder %v4941, 1
        %vm4974 = vcmp.eq.s32.totalorder %v4942, 1
        %vm4975 = vcmp.eq.s32.totalorder %v4943, 1
        %vm4976 = vcmp.eq.s32.totalorder %v4944, 1
        %vm4977 = vcmp.eq.s32.totalorder %v4945, 1
        %vm4978 = vcmp.eq.s32.totalorder %v4946, 1
        %vm4979 = vcmp.eq.s32.totalorder %v4947, 1
        %vm4980 = vcmp.eq.s32.totalorder %v4948, 1
        %vm4981 = vcmp.eq.s32.totalorder %v4949, 1
        %vm4982 = vcmp.eq.s32.totalorder %v4950, 1
        %vm4983 = vcmp.eq.s32.totalorder %v4951, 1
        %vm4984 = vcmp.eq.s32.totalorder %v4952, 1
        %vm4985 = vcmp.eq.s32.totalorder %v4953, 1
        %vm4986 = vcmp.eq.s32.totalorder %v4954, 1
        %vm4987 = vcmp.eq.s32.totalorder %v4955, 1
        %vm4988 = vcmp.eq.s32.totalorder %v4956, 1
        %vm4989 = vcmp.eq.s32.totalorder %v4957, 1
        %vm4990 = vcmp.eq.s32.totalorder %v4958, 1
        %vm4991 = vcmp.eq.s32.totalorder %v4959, 1
        %vm4992 = vcmp.eq.s32.totalorder %v4960, 1
        %vm4993 = vmpackc.low %vm4961, %vm4961
        %vm4994 = vmpackc.low %vm4962, %vm4962
        %vm4995 = vmpackc.low %vm4963, %vm4963
        %vm4996 = vmpackc.low %vm4964, %vm4964
        %vm4997 = vmpackc.low %vm4965, %vm4965
        %vm4998 = vmpackc.low %vm4966, %vm4966
        %vm4999 = vmpackc.low %vm4967, %vm4967
        %vm5000 = vmpackc.low %vm4968, %vm4968
        %vm5001 = vmpackc.low %vm4969, %vm4969
        %vm5002 = vmpackc.low %vm4970, %vm4970
        %vm5003 = vmpackc.low %vm4971, %vm4971
        %vm5004 = vmpackc.low %vm4972, %vm4972
        %vm5005 = vmpackc.low %vm4973, %vm4973
        %vm5006 = vmpackc.low %vm4974, %vm4974
        %vm5007 = vmpackc.low %vm4975, %vm4975
        %vm5008 = vmpackc.low %vm4976, %vm4976
        %vm5009 = vmpackc.low %vm4977, %vm4977
        %vm5010 = vmpackc.low %vm4978, %vm4978
        %vm5011 = vmpackc.low %vm4979, %vm4979
        %vm5012 = vmpackc.low %vm4980, %vm4980
        %vm5013 = vmpackc.low %vm4981, %vm4981
        %vm5014 = vmpackc.low %vm4982, %vm4982
        %vm5015 = vmpackc.low %vm4983, %vm4983
        %vm5016 = vmpackc.low %vm4984, %vm4984
        %vm5017 = vmpackc.low %vm4985, %vm4985
        %vm5018 = vmpackc.low %vm4986, %vm4986
        %vm5019 = vmpackc.low %vm4987, %vm4987
        %vm5020 = vmpackc.low %vm4988, %vm4988
        %vm5021 = vmpackc.low %vm4989, %vm4989
        %vm5022 = vmpackc.low %vm4990, %vm4990
        %vm5023 = vmpackc.low %vm4991, %vm4991
        %vm5024 = vmpackc.low %vm4992, %vm4992
        %v5025 = vsel %vm4993, 65537, 0
        %v5026 = vsel %vm4994, 65537, 0
        %v5027 = vsel %vm4995, 65537, 0
        %v5028 = vsel %vm4996, 65537, 0
        %v5029 = vsel %vm4997, 65537, 0
        %v5030 = vsel %vm4998, 65537, 0
        %v5031 = vsel %vm4999, 65537, 0
        %v5032 = vsel %vm5000, 65537, 0
        %v5033 = vsel %vm5001, 65537, 0
        %v5034 = vsel %vm5002, 65537, 0
        %v5035 = vsel %vm5003, 65537, 0
        %v5036 = vsel %vm5004, 65537, 0
        %v5037 = vsel %vm5005, 65537, 0
        %v5038 = vsel %vm5006, 65537, 0
        %v5039 = vsel %vm5007, 65537, 0
        %v5040 = vsel %vm5008, 65537, 0
        %v5041 = vsel %vm5009, 65537, 0
        %v5042 = vsel %vm5010, 65537, 0
        %v5043 = vsel %vm5011, 65537, 0
        %v5044 = vsel %vm5012, 65537, 0
        %v5045 = vsel %vm5013, 65537, 0
        %v5046 = vsel %vm5014, 65537, 0
        %v5047 = vsel %vm5015, 65537, 0
        %v5048 = vsel %vm5016, 65537, 0
        %v5049 = vsel %vm5017, 65537, 0
        %v5050 = vsel %vm5018, 65537, 0
        %v5051 = vsel %vm5019, 65537, 0
        %v5052 = vsel %vm5020, 65537, 0
        %v5053 = vsel %vm5021, 65537, 0
        %v5054 = vsel %vm5022, 65537, 0
        %v5055 = vsel %vm5023, 65537, 0
        %v5056 = vsel %vm5024, 65537, 0
        %vm5057 = vsmask.f32 2304
        %vm5058 = vsmask.f32 6416
        %vm5059 = vmor %vm5057, %vm5058
        %v5061 = vshrl.u32 %v5025, 16
        %v5063 = vrot.slane %v5061, 5
        %v5064 = vshll.u32 %v5025, 16
        %v5066 = vrot.slane %v5064, 6
        %v5067 = vor.u32 %v5063, %v5066
        %v5068 = vrot.slane %v5067, 4
        %v5070 = vshrl.u32 %v5026, 16
        %v5072 = vrot.slane %v5070, 5
        %v5073 = vshll.u32 %v5026, 16
        %v5075 = vrot.slane %v5073, 6
        %v5076 = vor.u32 %v5072, %v5075
        %v5077 = vsel %vm5059, %v5068, %v5076
        %v5078 = vrot.slane %v5076, 4
        %v5080 = vshrl.u32 %v5027, 16
        %v5082 = vrot.slane %v5080, 5
        %v5083 = vshll.u32 %v5027, 16
        %v5085 = vrot.slane %v5083, 6
        %v5086 = vor.u32 %v5082, %v5085
        %v5087 = vsel %vm5059, %v5078, %v5086
        %v5088 = vrot.slane %v5086, 4
        %v5090 = vshrl.u32 %v5028, 16
        %v5092 = vrot.slane %v5090, 5
        %v5093 = vshll.u32 %v5028, 16
        %v5095 = vrot.slane %v5093, 6
        %v5096 = vor.u32 %v5092, %v5095
        %v5097 = vsel %vm5059, %v5088, %v5096
        %v5098 = vrot.slane %v5096, 4
        %v5100 = vshrl.u32 %v5029, 16
        %v5102 = vrot.slane %v5100, 5
        %v5103 = vshll.u32 %v5029, 16
        %v5105 = vrot.slane %v5103, 6
        %v5106 = vor.u32 %v5102, %v5105
        %v5107 = vsel %vm5059, %v5098, %v5106
        %v5108 = vrot.slane %v5106, 4
        %v5110 = vshrl.u32 %v5030, 16
        %v5112 = vrot.slane %v5110, 5
        %v5113 = vshll.u32 %v5030, 16
        %v5115 = vrot.slane %v5113, 6
        %v5116 = vor.u32 %v5112, %v5115
        %v5117 = vsel %vm5059, %v5108, %v5116
        %v5118 = vrot.slane %v5116, 4
        %v5120 = vshrl.u32 %v5031, 16
        %v5122 = vrot.slane %v5120, 5
        %v5123 = vshll.u32 %v5031, 16
        %v5125 = vrot.slane %v5123, 6
        %v5126 = vor.u32 %v5122, %v5125
        %v5127 = vsel %vm5059, %v5118, %v5126
        %v5128 = vrot.slane %v5126, 4
        %v5130 = vshrl.u32 %v5032, 16
        %v5132 = vrot.slane %v5130, 5
        %v5133 = vshll.u32 %v5032, 16
        %v5135 = vrot.slane %v5133, 6
        %v5136 = vor.u32 %v5132, %v5135
        %v5137 = vsel %vm5059, %v5128, %v5136
        %v5138 = vrot.slane %v5136, 4
        %v5140 = vshrl.u32 %v5033, 16
        %v5142 = vrot.slane %v5140, 5
        %v5143 = vshll.u32 %v5033, 16
        %v5145 = vrot.slane %v5143, 6
        %v5146 = vor.u32 %v5142, %v5145
        %v5147 = vsel %vm5059, %v5138, %v5146
        %v5148 = vrot.slane %v5146, 4
        %v5150 = vshrl.u32 %v5034, 16
        %v5152 = vrot.slane %v5150, 5
        %v5153 = vshll.u32 %v5034, 16
        %v5155 = vrot.slane %v5153, 6
        %v5156 = vor.u32 %v5152, %v5155
        %v5157 = vsel %vm5059, %v5148, %v5156
        %v5158 = vrot.slane %v5156, 4
        %v5160 = vshrl.u32 %v5035, 16
        %v5162 = vrot.slane %v5160, 5
        %v5163 = vshll.u32 %v5035, 16
        %v5165 = vrot.slane %v5163, 6
        %v5166 = vor.u32 %v5162, %v5165
        %v5167 = vsel %vm5059, %v5158, %v5166
        %v5168 = vrot.slane %v5166, 4
        %v5170 = vshrl.u32 %v5036, 16
        %v5172 = vrot.slane %v5170, 5
        %v5173 = vshll.u32 %v5036, 16
        %v5175 = vrot.slane %v5173, 6
        %v5176 = vor.u32 %v5172, %v5175
        %v5177 = vsel %vm5059, %v5168, %v5176
        %v5178 = vrot.slane %v5176, 4
        %v5180 = vshrl.u32 %v5037, 16
        %v5182 = vrot.slane %v5180, 5
        %v5183 = vshll.u32 %v5037, 16
        %v5185 = vrot.slane %v5183, 6
        %v5186 = vor.u32 %v5182, %v5185
        %v5187 = vsel %vm5059, %v5178, %v5186
        %v5188 = vrot.slane %v5186, 4
        %v5190 = vshrl.u32 %v5038, 16
        %v5192 = vrot.slane %v5190, 5
        %v5193 = vshll.u32 %v5038, 16
        %v5195 = vrot.slane %v5193, 6
        %v5196 = vor.u32 %v5192, %v5195
        %v5197 = vsel %vm5059, %v5188, %v5196
        %v5198 = vrot.slane %v5196, 4
        %v5200 = vshrl.u32 %v5039, 16
        %v5202 = vrot.slane %v5200, 5
        %v5203 = vshll.u32 %v5039, 16
        %v5205 = vrot.slane %v5203, 6
        %v5206 = vor.u32 %v5202, %v5205
        %v5207 = vsel %vm5059, %v5198, %v5206
        %v5208 = vrot.slane %v5206, 4
        %v5210 = vshrl.u32 %v5040, 16
        %v5212 = vrot.slane %v5210, 5
        %v5213 = vshll.u32 %v5040, 16
        %v5215 = vrot.slane %v5213, 6
        %v5216 = vor.u32 %v5212, %v5215
        %v5217 = vsel %vm5059, %v5208, %v5216
        %v5218 = vrot.slane %v5216, 4
        %v5220 = vshrl.u32 %v5041, 16
        %v5222 = vrot.slane %v5220, 5
        %v5223 = vshll.u32 %v5041, 16
        %v5225 = vrot.slane %v5223, 6
        %v5226 = vor.u32 %v5222, %v5225
        %v5227 = vsel %vm5059, %v5218, %v5226
        %v5228 = vrot.slane %v5226, 4
        %v5230 = vshrl.u32 %v5042, 16
        %v5232 = vrot.slane %v5230, 5
        %v5233 = vshll.u32 %v5042, 16
        %v5235 = vrot.slane %v5233, 6
        %v5236 = vor.u32 %v5232, %v5235
        %v5237 = vsel %vm5059, %v5228, %v5236
        %v5238 = vrot.slane %v5236, 4
        %v5240 = vshrl.u32 %v5043, 16
        %v5242 = vrot.slane %v5240, 5
        %v5243 = vshll.u32 %v5043, 16
        %v5245 = vrot.slane %v5243, 6
        %v5246 = vor.u32 %v5242, %v5245
        %v5247 = vsel %vm5059, %v5238, %v5246
        %v5248 = vrot.slane %v5246, 4
        %v5250 = vshrl.u32 %v5044, 16
        %v5252 = vrot.slane %v5250, 5
        %v5253 = vshll.u32 %v5044, 16
        %v5255 = vrot.slane %v5253, 6
        %v5256 = vor.u32 %v5252, %v5255
        %v5257 = vsel %vm5059, %v5248, %v5256
        %v5258 = vrot.slane %v5256, 4
        %v5260 = vshrl.u32 %v5045, 16
        %v5262 = vrot.slane %v5260, 5
        %v5263 = vshll.u32 %v5045, 16
        %v5265 = vrot.slane %v5263, 6
        %v5266 = vor.u32 %v5262, %v5265
        %v5267 = vsel %vm5059, %v5258, %v5266
        %v5268 = vrot.slane %v5266, 4
        %v5270 = vshrl.u32 %v5046, 16
        %v5272 = vrot.slane %v5270, 5
        %v5273 = vshll.u32 %v5046, 16
        %v5275 = vrot.slane %v5273, 6
        %v5276 = vor.u32 %v5272, %v5275
        %v5277 = vsel %vm5059, %v5268, %v5276
        %v5278 = vrot.slane %v5276, 4
        %v5280 = vshrl.u32 %v5047, 16
        %v5282 = vrot.slane %v5280, 5
        %v5283 = vshll.u32 %v5047, 16
        %v5285 = vrot.slane %v5283, 6
        %v5286 = vor.u32 %v5282, %v5285
        %v5287 = vsel %vm5059, %v5278, %v5286
        %v5288 = vrot.slane %v5286, 4
        %v5290 = vshrl.u32 %v5048, 16
        %v5292 = vrot.slane %v5290, 5
        %v5293 = vshll.u32 %v5048, 16
        %v5295 = vrot.slane %v5293, 6
        %v5296 = vor.u32 %v5292, %v5295
        %v5297 = vsel %vm5059, %v5288, %v5296
        %v5298 = vrot.slane %v5296, 4
        %v5300 = vshrl.u32 %v5049, 16
        %v5302 = vrot.slane %v5300, 5
        %v5303 = vshll.u32 %v5049, 16
        %v5305 = vrot.slane %v5303, 6
        %v5306 = vor.u32 %v5302, %v5305
        %v5307 = vsel %vm5059, %v5298, %v5306
        %v5308 = vrot.slane %v5306, 4
        %v5310 = vshrl.u32 %v5050, 16
        %v5312 = vrot.slane %v5310, 5
        %v5313 = vshll.u32 %v5050, 16
        %v5315 = vrot.slane %v5313, 6
        %v5316 = vor.u32 %v5312, %v5315
        %v5317 = vsel %vm5059, %v5308, %v5316
        %v5318 = vrot.slane %v5316, 4
        %v5320 = vshrl.u32 %v5051, 16
        %v5322 = vrot.slane %v5320, 5
        %v5323 = vshll.u32 %v5051, 16
        %v5325 = vrot.slane %v5323, 6
        %v5326 = vor.u32 %v5322, %v5325
        %v5327 = vsel %vm5059, %v5318, %v5326
        %v5328 = vrot.slane %v5326, 4
        %v5330 = vshrl.u32 %v5052, 16
        %v5332 = vrot.slane %v5330, 5
        %v5333 = vshll.u32 %v5052, 16
        %v5335 = vrot.slane %v5333, 6
        %v5336 = vor.u32 %v5332, %v5335
        %v5337 = vsel %vm5059, %v5328, %v5336
        %v5338 = vrot.slane %v5336, 4
        %v5340 = vshrl.u32 %v5053, 16
        %v5342 = vrot.slane %v5340, 5
        %v5343 = vshll.u32 %v5053, 16
        %v5345 = vrot.slane %v5343, 6
        %v5346 = vor.u32 %v5342, %v5345
        %v5347 = vsel %vm5059, %v5338, %v5346
        %v5348 = vrot.slane %v5346, 4
        %v5350 = vshrl.u32 %v5054, 16
        %v5352 = vrot.slane %v5350, 5
        %v5353 = vshll.u32 %v5054, 16
        %v5355 = vrot.slane %v5353, 6
        %v5356 = vor.u32 %v5352, %v5355
        %v5357 = vsel %vm5059, %v5348, %v5356
        %v5358 = vrot.slane %v5356, 4
        %v5360 = vshrl.u32 %v5055, 16
        %v5362 = vrot.slane %v5360, 5
        %v5363 = vshll.u32 %v5055, 16
        %v5365 = vrot.slane %v5363, 6
        %v5366 = vor.u32 %v5362, %v5365
        %v5367 = vsel %vm5059, %v5358, %v5366
        %v5368 = vrot.slane %v5366, 4
        %v5370 = vshrl.u32 %v5056, 16
        %v5372 = vrot.slane %v5370, 5
        %v5373 = vshll.u32 %v5056, 16
        %v5375 = vrot.slane %v5373, 6
        %v5376 = vor.u32 %v5372, %v5375
        %v5377 = vsel %vm5059, %v5368, %v5376
        %v5378 = vrot.slane %v5376, 4
        %vm5379 = vcmp.ne.s16.totalorder %v5067, 0
        %vm5380 = vcmp.ne.s16.totalorder %v5077, 0
        %vm5381 = vcmp.ne.s16.totalorder %v5087, 0
        %vm5382 = vcmp.ne.s16.totalorder %v5097, 0
        %vm5383 = vcmp.ne.s16.totalorder %v5107, 0
        %vm5384 = vcmp.ne.s16.totalorder %v5117, 0
        %vm5385 = vcmp.ne.s16.totalorder %v5127, 0
        %vm5386 = vcmp.ne.s16.totalorder %v5137, 0
        %vm5387 = vcmp.ne.s16.totalorder %v5147, 0
        %vm5388 = vcmp.ne.s16.totalorder %v5157, 0
        %vm5389 = vcmp.ne.s16.totalorder %v5167, 0
        %vm5390 = vcmp.ne.s16.totalorder %v5177, 0
        %vm5391 = vcmp.ne.s16.totalorder %v5187, 0
        %vm5392 = vcmp.ne.s16.totalorder %v5197, 0
        %vm5393 = vcmp.ne.s16.totalorder %v5207, 0
        %vm5394 = vcmp.ne.s16.totalorder %v5217, 0
        %vm5395 = vcmp.ne.s16.totalorder %v5227, 0
        %vm5396 = vcmp.ne.s16.totalorder %v5237, 0
        %vm5397 = vcmp.ne.s16.totalorder %v5247, 0
        %vm5398 = vcmp.ne.s16.totalorder %v5257, 0
        %vm5399 = vcmp.ne.s16.totalorder %v5267, 0
        %vm5400 = vcmp.ne.s16.totalorder %v5277, 0
        %vm5401 = vcmp.ne.s16.totalorder %v5287, 0
        %vm5402 = vcmp.ne.s16.totalorder %v5297, 0
        %vm5403 = vcmp.ne.s16.totalorder %v5307, 0
        %vm5404 = vcmp.ne.s16.totalorder %v5317, 0
        %vm5405 = vcmp.ne.s16.totalorder %v5327, 0
        %vm5406 = vcmp.ne.s16.totalorder %v5337, 0
        %vm5407 = vcmp.ne.s16.totalorder %v5347, 0
        %vm5408 = vcmp.ne.s16.totalorder %v5357, 0
        %vm5409 = vcmp.ne.s16.totalorder %v5367, 0
        %vm5410 = vcmp.ne.s16.totalorder %v5377, 0
        %vm5411 = vcmp.ne.s16.totalorder %v5378, 0
        %v5412 = vsel %vm5379, %v4864, 0
        %v5413 = vsel %vm5380, %v4865, 0
        %v5414 = vsel %vm5381, %v4866, 0
        %v5415 = vsel %vm5382, %v4867, 0
        %v5416 = vsel %vm5383, %v4868, 0
        %v5417 = vsel %vm5384, %v4869, 0
        %v5418 = vsel %vm5385, %v4870, 0
        %v5419 = vsel %vm5386, %v4871, 0
        %v5420 = vsel %vm5387, %v4872, 0
        %v5421 = vsel %vm5388, %v4873, 0
        %v5422 = vsel %vm5389, %v4874, 0
        %v5423 = vsel %vm5390, %v4875, 0
        %v5424 = vsel %vm5391, %v4876, 0
        %v5425 = vsel %vm5392, %v4877, 0
        %v5426 = vsel %vm5393, %v4878, 0
        %v5427 = vsel %vm5394, %v4879, 0
        %v5428 = vsel %vm5395, %v4880, 0
        %v5429 = vsel %vm5396, %v4881, 0
        %v5430 = vsel %vm5397, %v4882, 0
        %v5431 = vsel %vm5398, %v4883, 0
        %v5432 = vsel %vm5399, %v4884, 0
        %v5433 = vsel %vm5400, %v4885, 0
        %v5434 = vsel %vm5401, %v4886, 0
        %v5435 = vsel %vm5402, %v4887, 0
        %v5436 = vsel %vm5403, %v4888, 0
        %v5437 = vsel %vm5404, %v4889, 0
        %v5438 = vsel %vm5405, %v4890, 0
        %v5439 = vsel %vm5406, %v4891, 0
        %v5440 = vsel %vm5407, %v4892, 0
        %v5441 = vsel %vm5408, %v4893, 0
        %v5442 = vsel %vm5409, %v4894, 0
        %v5443 = vsel %vm5410, %v4895, 0
        %v5444 = vsel %vm5411, %v4896, 0
        %v5445 = vld [vmem:[#allocation2 + $0x84] sm:$0xf]
        %v5446 = vld [vmem:[#allocation2 + $0x8] sm:$0xe]
        %v5447 = vld [vmem:[#allocation2 + $0x88] sm:$0x3]
        %vm5448 = vcmp.lt.s32.totalorder %v973, 13
        %vm5449 = vcmp.lt.s32.totalorder %v974, 13
        %vm5450 = vcmp.lt.s32.totalorder %v975, 13
        %vm5451 = vcmp.lt.s32.totalorder %v976, 13
        %vm5452 = vcmp.lt.s32.totalorder %v977, 13
        %vm5453 = vcmp.lt.s32.totalorder %v978, 13
        %vm5454 = vcmp.lt.s32.totalorder %v979, 13
        %vm5455 = vcmp.lt.s32.totalorder %v980, 13
        %vm5456 = vcmp.lt.s32.totalorder %v981, 13
        %vm5457 = vcmp.lt.s32.totalorder %v982, 13
        %vm5458 = vcmp.lt.s32.totalorder %v983, 13
        %vm5459 = vcmp.lt.s32.totalorder %v984, 13
        %vm5460 = vcmp.lt.s32.totalorder %v985, 13
        %vm5461 = vcmp.lt.s32.totalorder %v986, 13
        %vm5462 = vcmp.lt.s32.totalorder %v987, 13
        %vm5463 = vcmp.lt.s32.totalorder %v988, 13
        %vm5464 = vcmp.lt.s32.totalorder %v989, 13
        %vm5465 = vcmp.lt.s32.totalorder %v990, 13
        %vm5466 = vcmp.lt.s32.totalorder %v991, 13
        %vm5467 = vcmp.lt.s32.totalorder %v992, 13
        %vm5468 = vcmp.lt.s32.totalorder %v993, 13
        %vm5469 = vcmp.lt.s32.totalorder %v994, 13
        %vm5470 = vcmp.lt.s32.totalorder %v995, 13
        %vm5471 = vcmp.lt.s32.totalorder %v996, 13
        %vm5472 = vcmp.lt.s32.totalorder %v997, 13
        %vm5473 = vcmp.lt.s32.totalorder %v998, 13
        %vm5474 = vcmp.lt.s32.totalorder %v999, 13
        %vm5475 = vcmp.lt.s32.totalorder %v1000, 13
        %vm5476 = vcmp.lt.s32.totalorder %v1001, 13
        %vm5477 = vcmp.lt.s32.totalorder %v1002, 13
        %vm5478 = vcmp.lt.s32.totalorder %v1003, 13
        %vm5479 = vcmp.lt.s32.totalorder %v1004, 13
        %v5480 = vsel %vm5448, 1, 0
        %v5481 = vsel %vm5449, 1, 0
        %v5482 = vsel %vm5450, 1, 0
        %v5483 = vsel %vm5451, 1, 0
        %v5484 = vsel %vm5452, 1, 0
        %v5485 = vsel %vm5453, 1, 0
        %v5486 = vsel %vm5454, 1, 0
        %v5487 = vsel %vm5455, 1, 0
        %v5488 = vsel %vm5456, 1, 0
        %v5489 = vsel %vm5457, 1, 0
        %v5490 = vsel %vm5458, 1, 0
        %v5491 = vsel %vm5459, 1, 0
        %v5492 = vsel %vm5460, 1, 0
        %v5493 = vsel %vm5461, 1, 0
        %v5494 = vsel %vm5462, 1, 0
        %v5495 = vsel %vm5463, 1, 0
        %v5496 = vsel %vm5464, 1, 0
        %v5497 = vsel %vm5465, 1, 0
        %v5498 = vsel %vm5466, 1, 0
        %v5499 = vsel %vm5467, 1, 0
        %v5500 = vsel %vm5468, 1, 0
        %v5501 = vsel %vm5469, 1, 0
        %v5502 = vsel %vm5470, 1, 0
        %v5503 = vsel %vm5471, 1, 0
        %v5504 = vsel %vm5472, 1, 0
        %v5505 = vsel %vm5473, 1, 0
        %v5506 = vsel %vm5474, 1, 0
        %v5507 = vsel %vm5475, 1, 0
        %v5508 = vsel %vm5476, 1, 0
        %v5509 = vsel %vm5477, 1, 0
        %v5510 = vsel %vm5478, 1, 0
        %v5511 = vsel %vm5479, 1, 0
        %vm5512 = vcmp.eq.s32.totalorder %v5480, 1
        %vm5513 = vcmp.eq.s32.totalorder %v5481, 1
        %vm5514 = vcmp.eq.s32.totalorder %v5482, 1
        %vm5515 = vcmp.eq.s32.totalorder %v5483, 1
        %vm5516 = vcmp.eq.s32.totalorder %v5484, 1
        %vm5517 = vcmp.eq.s32.totalorder %v5485, 1
        %vm5518 = vcmp.eq.s32.totalorder %v5486, 1
        %vm5519 = vcmp.eq.s32.totalorder %v5487, 1
        %vm5520 = vcmp.eq.s32.totalorder %v5488, 1
        %vm5521 = vcmp.eq.s32.totalorder %v5489, 1
        %vm5522 = vcmp.eq.s32.totalorder %v5490, 1
        %vm5523 = vcmp.eq.s32.totalorder %v5491, 1
        %vm5524 = vcmp.eq.s32.totalorder %v5492, 1
        %vm5525 = vcmp.eq.s32.totalorder %v5493, 1
        %vm5526 = vcmp.eq.s32.totalorder %v5494, 1
        %vm5527 = vcmp.eq.s32.totalorder %v5495, 1
        %vm5528 = vcmp.eq.s32.totalorder %v5496, 1
        %vm5529 = vcmp.eq.s32.totalorder %v5497, 1
        %vm5530 = vcmp.eq.s32.totalorder %v5498, 1
        %vm5531 = vcmp.eq.s32.totalorder %v5499, 1
        %vm5532 = vcmp.eq.s32.totalorder %v5500, 1
        %vm5533 = vcmp.eq.s32.totalorder %v5501, 1
        %vm5534 = vcmp.eq.s32.totalorder %v5502, 1
        %vm5535 = vcmp.eq.s32.totalorder %v5503, 1
        %vm5536 = vcmp.eq.s32.totalorder %v5504, 1
        %vm5537 = vcmp.eq.s32.totalorder %v5505, 1
        %vm5538 = vcmp.eq.s32.totalorder %v5506, 1
        %vm5539 = vcmp.eq.s32.totalorder %v5507, 1
        %vm5540 = vcmp.eq.s32.totalorder %v5508, 1
        %vm5541 = vcmp.eq.s32.totalorder %v5509, 1
        %vm5542 = vcmp.eq.s32.totalorder %v5510, 1
        %vm5543 = vcmp.eq.s32.totalorder %v5511, 1
        %vm5544 = vmpackc.low %vm5512, %vm5512
        %vm5545 = vmpackc.low %vm5513, %vm5513
        %vm5546 = vmpackc.low %vm5514, %vm5514
        %vm5547 = vmpackc.low %vm5515, %vm5515
        %vm5548 = vmpackc.low %vm5516, %vm5516
        %vm5549 = vmpackc.low %vm5517, %vm5517
        %vm5550 = vmpackc.low %vm5518, %vm5518
        %vm5551 = vmpackc.low %vm5519, %vm5519
        %vm5552 = vmpackc.low %vm5520, %vm5520
        %vm5553 = vmpackc.low %vm5521, %vm5521
        %vm5554 = vmpackc.low %vm5522, %vm5522
        %vm5555 = vmpackc.low %vm5523, %vm5523
        %vm5556 = vmpackc.low %vm5524, %vm5524
        %vm5557 = vmpackc.low %vm5525, %vm5525
        %vm5558 = vmpackc.low %vm5526, %vm5526
        %vm5559 = vmpackc.low %vm5527, %vm5527
        %vm5560 = vmpackc.low %vm5528, %vm5528
        %vm5561 = vmpackc.low %vm5529, %vm5529
        %vm5562 = vmpackc.low %vm5530, %vm5530
        %vm5563 = vmpackc.low %vm5531, %vm5531
        %vm5564 = vmpackc.low %vm5532, %vm5532
        %vm5565 = vmpackc.low %vm5533, %vm5533
        %vm5566 = vmpackc.low %vm5534, %vm5534
        %vm5567 = vmpackc.low %vm5535, %vm5535
        %vm5568 = vmpackc.low %vm5536, %vm5536
        %vm5569 = vmpackc.low %vm5537, %vm5537
        %vm5570 = vmpackc.low %vm5538, %vm5538
        %vm5571 = vmpackc.low %vm5539, %vm5539
        %vm5572 = vmpackc.low %vm5540, %vm5540
        %vm5573 = vmpackc.low %vm5541, %vm5541
        %vm5574 = vmpackc.low %vm5542, %vm5542
        %vm5575 = vmpackc.low %vm5543, %vm5543
        %v5576 = vsel %vm5544, 65537, 0
        %v5577 = vsel %vm5545, 65537, 0
        %v5578 = vsel %vm5546, 65537, 0
        %v5579 = vsel %vm5547, 65537, 0
        %v5580 = vsel %vm5548, 65537, 0
        %v5581 = vsel %vm5549, 65537, 0
        %v5582 = vsel %vm5550, 65537, 0
        %v5583 = vsel %vm5551, 65537, 0
        %v5584 = vsel %vm5552, 65537, 0
        %v5585 = vsel %vm5553, 65537, 0
        %v5586 = vsel %vm5554, 65537, 0
        %v5587 = vsel %vm5555, 65537, 0
        %v5588 = vsel %vm5556, 65537, 0
        %v5589 = vsel %vm5557, 65537, 0
        %v5590 = vsel %vm5558, 65537, 0
        %v5591 = vsel %vm5559, 65537, 0
        %v5592 = vsel %vm5560, 65537, 0
        %v5593 = vsel %vm5561, 65537, 0
        %v5594 = vsel %vm5562, 65537, 0
        %v5595 = vsel %vm5563, 65537, 0
        %v5596 = vsel %vm5564, 65537, 0
        %v5597 = vsel %vm5565, 65537, 0
        %v5598 = vsel %vm5566, 65537, 0
        %v5599 = vsel %vm5567, 65537, 0
        %v5600 = vsel %vm5568, 65537, 0
        %v5601 = vsel %vm5569, 65537, 0
        %v5602 = vsel %vm5570, 65537, 0
        %v5603 = vsel %vm5571, 65537, 0
        %v5604 = vsel %vm5572, 65537, 0
        %v5605 = vsel %vm5573, 65537, 0
        %v5606 = vsel %vm5574, 65537, 0
        %v5607 = vsel %vm5575, 65537, 0
        %vm5608 = vsmask.f32 1280
        %vm5609 = vsmask.f32 5392
        %vm5610 = vmor %vm5608, %vm5609
        %v5612 = vshrl.u32 %v5576, 16
        %v5614 = vrot.slane %v5612, 6
        %v5615 = vshll.u32 %v5576, 16
        %v5617 = vrot.slane %v5615, 7
        %v5618 = vor.u32 %v5614, %v5617
        %v5619 = vrot.slane %v5618, 4
        %v5621 = vshrl.u32 %v5577, 16
        %v5623 = vrot.slane %v5621, 6
        %v5624 = vshll.u32 %v5577, 16
        %v5626 = vrot.slane %v5624, 7
        %v5627 = vor.u32 %v5623, %v5626
        %v5628 = vsel %vm5610, %v5619, %v5627
        %v5629 = vrot.slane %v5627, 4
        %v5631 = vshrl.u32 %v5578, 16
        %v5633 = vrot.slane %v5631, 6
        %v5634 = vshll.u32 %v5578, 16
        %v5636 = vrot.slane %v5634, 7
        %v5637 = vor.u32 %v5633, %v5636
        %v5638 = vsel %vm5610, %v5629, %v5637
        %v5639 = vrot.slane %v5637, 4
        %v5641 = vshrl.u32 %v5579, 16
        %v5643 = vrot.slane %v5641, 6
        %v5644 = vshll.u32 %v5579, 16
        %v5646 = vrot.slane %v5644, 7
        %v5647 = vor.u32 %v5643, %v5646
        %v5648 = vsel %vm5610, %v5639, %v5647
        %v5649 = vrot.slane %v5647, 4
        %v5651 = vshrl.u32 %v5580, 16
        %v5653 = vrot.slane %v5651, 6
        %v5654 = vshll.u32 %v5580, 16
        %v5656 = vrot.slane %v5654, 7
        %v5657 = vor.u32 %v5653, %v5656
        %v5658 = vsel %vm5610, %v5649, %v5657
        %v5659 = vrot.slane %v5657, 4
        %v5661 = vshrl.u32 %v5581, 16
        %v5663 = vrot.slane %v5661, 6
        %v5664 = vshll.u32 %v5581, 16
        %v5666 = vrot.slane %v5664, 7
        %v5667 = vor.u32 %v5663, %v5666
        %v5668 = vsel %vm5610, %v5659, %v5667
        %v5669 = vrot.slane %v5667, 4
        %v5671 = vshrl.u32 %v5582, 16
        %v5673 = vrot.slane %v5671, 6
        %v5674 = vshll.u32 %v5582, 16
        %v5676 = vrot.slane %v5674, 7
        %v5677 = vor.u32 %v5673, %v5676
        %v5678 = vsel %vm5610, %v5669, %v5677
        %v5679 = vrot.slane %v5677, 4
        %v5681 = vshrl.u32 %v5583, 16
        %v5683 = vrot.slane %v5681, 6
        %v5684 = vshll.u32 %v5583, 16
        %v5686 = vrot.slane %v5684, 7
        %v5687 = vor.u32 %v5683, %v5686
        %v5688 = vsel %vm5610, %v5679, %v5687
        %v5689 = vrot.slane %v5687, 4
        %v5691 = vshrl.u32 %v5584, 16
        %v5693 = vrot.slane %v5691, 6
        %v5694 = vshll.u32 %v5584, 16
        %v5696 = vrot.slane %v5694, 7
        %v5697 = vor.u32 %v5693, %v5696
        %v5698 = vsel %vm5610, %v5689, %v5697
        %v5699 = vrot.slane %v5697, 4
        %v5701 = vshrl.u32 %v5585, 16
        %v5703 = vrot.slane %v5701, 6
        %v5704 = vshll.u32 %v5585, 16
        %v5706 = vrot.slane %v5704, 7
        %v5707 = vor.u32 %v5703, %v5706
        %v5708 = vsel %vm5610, %v5699, %v5707
        %v5709 = vrot.slane %v5707, 4
        %v5711 = vshrl.u32 %v5586, 16
        %v5713 = vrot.slane %v5711, 6
        %v5714 = vshll.u32 %v5586, 16
        %v5716 = vrot.slane %v5714, 7
        %v5717 = vor.u32 %v5713, %v5716
        %v5718 = vsel %vm5610, %v5709, %v5717
        %v5719 = vrot.slane %v5717, 4
        %v5721 = vshrl.u32 %v5587, 16
        %v5723 = vrot.slane %v5721, 6
        %v5724 = vshll.u32 %v5587, 16
        %v5726 = vrot.slane %v5724, 7
        %v5727 = vor.u32 %v5723, %v5726
        %v5728 = vsel %vm5610, %v5719, %v5727
        %v5729 = vrot.slane %v5727, 4
        %v5731 = vshrl.u32 %v5588, 16
        %v5733 = vrot.slane %v5731, 6
        %v5734 = vshll.u32 %v5588, 16
        %v5736 = vrot.slane %v5734, 7
        %v5737 = vor.u32 %v5733, %v5736
        %v5738 = vsel %vm5610, %v5729, %v5737
        %v5739 = vrot.slane %v5737, 4
        %v5741 = vshrl.u32 %v5589, 16
        %v5743 = vrot.slane %v5741, 6
        %v5744 = vshll.u32 %v5589, 16
        %v5746 = vrot.slane %v5744, 7
        %v5747 = vor.u32 %v5743, %v5746
        %v5748 = vsel %vm5610, %v5739, %v5747
        %v5749 = vrot.slane %v5747, 4
        %v5751 = vshrl.u32 %v5590, 16
        %v5753 = vrot.slane %v5751, 6
        %v5754 = vshll.u32 %v5590, 16
        %v5756 = vrot.slane %v5754, 7
        %v5757 = vor.u32 %v5753, %v5756
        %v5758 = vsel %vm5610, %v5749, %v5757
        %v5759 = vrot.slane %v5757, 4
        %v5761 = vshrl.u32 %v5591, 16
        %v5763 = vrot.slane %v5761, 6
        %v5764 = vshll.u32 %v5591, 16
        %v5766 = vrot.slane %v5764, 7
        %v5767 = vor.u32 %v5763, %v5766
        %v5768 = vsel %vm5610, %v5759, %v5767
        %v5769 = vrot.slane %v5767, 4
        %v5771 = vshrl.u32 %v5592, 16
        %v5773 = vrot.slane %v5771, 6
        %v5774 = vshll.u32 %v5592, 16
        %v5776 = vrot.slane %v5774, 7
        %v5777 = vor.u32 %v5773, %v5776
        %v5778 = vsel %vm5610, %v5769, %v5777
        %v5779 = vrot.slane %v5777, 4
        %v5781 = vshrl.u32 %v5593, 16
        %v5783 = vrot.slane %v5781, 6
        %v5784 = vshll.u32 %v5593, 16
        %v5786 = vrot.slane %v5784, 7
        %v5787 = vor.u32 %v5783, %v5786
        %v5788 = vsel %vm5610, %v5779, %v5787
        %v5789 = vrot.slane %v5787, 4
        %v5791 = vshrl.u32 %v5594, 16
        %v5793 = vrot.slane %v5791, 6
        %v5794 = vshll.u32 %v5594, 16
        %v5796 = vrot.slane %v5794, 7
        %v5797 = vor.u32 %v5793, %v5796
        %v5798 = vsel %vm5610, %v5789, %v5797
        %v5799 = vrot.slane %v5797, 4
        %v5801 = vshrl.u32 %v5595, 16
        %v5803 = vrot.slane %v5801, 6
        %v5804 = vshll.u32 %v5595, 16
        %v5806 = vrot.slane %v5804, 7
        %v5807 = vor.u32 %v5803, %v5806
        %v5808 = vsel %vm5610, %v5799, %v5807
        %v5809 = vrot.slane %v5807, 4
        %v5811 = vshrl.u32 %v5596, 16
        %v5813 = vrot.slane %v5811, 6
        %v5814 = vshll.u32 %v5596, 16
        %v5816 = vrot.slane %v5814, 7
        %v5817 = vor.u32 %v5813, %v5816
        %v5818 = vsel %vm5610, %v5809, %v5817
        %v5819 = vrot.slane %v5817, 4
        %v5821 = vshrl.u32 %v5597, 16
        %v5823 = vrot.slane %v5821, 6
        %v5824 = vshll.u32 %v5597, 16
        %v5826 = vrot.slane %v5824, 7
        %v5827 = vor.u32 %v5823, %v5826
        %v5828 = vsel %vm5610, %v5819, %v5827
        %v5829 = vrot.slane %v5827, 4
        %v5831 = vshrl.u32 %v5598, 16
        %v5833 = vrot.slane %v5831, 6
        %v5834 = vshll.u32 %v5598, 16
        %v5836 = vrot.slane %v5834, 7
        %v5837 = vor.u32 %v5833, %v5836
        %v5838 = vsel %vm5610, %v5829, %v5837
        %v5839 = vrot.slane %v5837, 4
        %v5841 = vshrl.u32 %v5599, 16
        %v5843 = vrot.slane %v5841, 6
        %v5844 = vshll.u32 %v5599, 16
        %v5846 = vrot.slane %v5844, 7
        %v5847 = vor.u32 %v5843, %v5846
        %v5848 = vsel %vm5610, %v5839, %v5847
        %v5849 = vrot.slane %v5847, 4
        %v5851 = vshrl.u32 %v5600, 16
        %v5853 = vrot.slane %v5851, 6
        %v5854 = vshll.u32 %v5600, 16
        %v5856 = vrot.slane %v5854, 7
        %v5857 = vor.u32 %v5853, %v5856
        %v5858 = vsel %vm5610, %v5849, %v5857
        %v5859 = vrot.slane %v5857, 4
        %v5861 = vshrl.u32 %v5601, 16
        %v5863 = vrot.slane %v5861, 6
        %v5864 = vshll.u32 %v5601, 16
        %v5866 = vrot.slane %v5864, 7
        %v5867 = vor.u32 %v5863, %v5866
        %v5868 = vsel %vm5610, %v5859, %v5867
        %v5869 = vrot.slane %v5867, 4
        %v5871 = vshrl.u32 %v5602, 16
        %v5873 = vrot.slane %v5871, 6
        %v5874 = vshll.u32 %v5602, 16
        %v5876 = vrot.slane %v5874, 7
        %v5877 = vor.u32 %v5873, %v5876
        %v5878 = vsel %vm5610, %v5869, %v5877
        %v5879 = vrot.slane %v5877, 4
        %v5881 = vshrl.u32 %v5603, 16
        %v5883 = vrot.slane %v5881, 6
        %v5884 = vshll.u32 %v5603, 16
        %v5886 = vrot.slane %v5884, 7
        %v5887 = vor.u32 %v5883, %v5886
        %v5888 = vsel %vm5610, %v5879, %v5887
        %v5889 = vrot.slane %v5887, 4
        %v5891 = vshrl.u32 %v5604, 16
        %v5893 = vrot.slane %v5891, 6
        %v5894 = vshll.u32 %v5604, 16
        %v5896 = vrot.slane %v5894, 7
        %v5897 = vor.u32 %v5893, %v5896
        %v5898 = vsel %vm5610, %v5889, %v5897
        %v5899 = vrot.slane %v5897, 4
        %v5901 = vshrl.u32 %v5605, 16
        %v5903 = vrot.slane %v5901, 6
        %v5904 = vshll.u32 %v5605, 16
        %v5906 = vrot.slane %v5904, 7
        %v5907 = vor.u32 %v5903, %v5906
        %v5908 = vsel %vm5610, %v5899, %v5907
        %v5909 = vrot.slane %v5907, 4
        %v5911 = vshrl.u32 %v5606, 16
        %v5913 = vrot.slane %v5911, 6
        %v5914 = vshll.u32 %v5606, 16
        %v5916 = vrot.slane %v5914, 7
        %v5917 = vor.u32 %v5913, %v5916
        %v5918 = vsel %vm5610, %v5909, %v5917
        %v5919 = vrot.slane %v5917, 4
        %v5921 = vshrl.u32 %v5607, 16
        %v5923 = vrot.slane %v5921, 6
        %v5924 = vshll.u32 %v5607, 16
        %v5926 = vrot.slane %v5924, 7
        %v5927 = vor.u32 %v5923, %v5926
        %v5928 = vsel %vm5610, %v5919, %v5927
        %v5929 = vrot.slane %v5927, 4
        %vm5930 = vcmp.ne.s16.totalorder %v5618, 0
        %vm5931 = vcmp.ne.s16.totalorder %v5628, 0
        %vm5932 = vcmp.ne.s16.totalorder %v5638, 0
        %vm5933 = vcmp.ne.s16.totalorder %v5648, 0
        %vm5934 = vcmp.ne.s16.totalorder %v5658, 0
        %vm5935 = vcmp.ne.s16.totalorder %v5668, 0
        %vm5936 = vcmp.ne.s16.totalorder %v5678, 0
        %vm5937 = vcmp.ne.s16.totalorder %v5688, 0
        %vm5938 = vcmp.ne.s16.totalorder %v5698, 0
        %vm5939 = vcmp.ne.s16.totalorder %v5708, 0
        %vm5940 = vcmp.ne.s16.totalorder %v5718, 0
        %vm5941 = vcmp.ne.s16.totalorder %v5728, 0
        %vm5942 = vcmp.ne.s16.totalorder %v5738, 0
        %vm5943 = vcmp.ne.s16.totalorder %v5748, 0
        %vm5944 = vcmp.ne.s16.totalorder %v5758, 0
        %vm5945 = vcmp.ne.s16.totalorder %v5768, 0
        %vm5946 = vcmp.ne.s16.totalorder %v5778, 0
        %vm5947 = vcmp.ne.s16.totalorder %v5788, 0
        %vm5948 = vcmp.ne.s16.totalorder %v5798, 0
        %vm5949 = vcmp.ne.s16.totalorder %v5808, 0
        %vm5950 = vcmp.ne.s16.totalorder %v5818, 0
        %vm5951 = vcmp.ne.s16.totalorder %v5828, 0
        %vm5952 = vcmp.ne.s16.totalorder %v5838, 0
        %vm5953 = vcmp.ne.s16.totalorder %v5848, 0
        %vm5954 = vcmp.ne.s16.totalorder %v5858, 0
        %vm5955 = vcmp.ne.s16.totalorder %v5868, 0
        %vm5956 = vcmp.ne.s16.totalorder %v5878, 0
        %vm5957 = vcmp.ne.s16.totalorder %v5888, 0
        %vm5958 = vcmp.ne.s16.totalorder %v5898, 0
        %vm5959 = vcmp.ne.s16.totalorder %v5908, 0
        %vm5960 = vcmp.ne.s16.totalorder %v5918, 0
        %vm5961 = vcmp.ne.s16.totalorder %v5928, 0
        %vm5962 = vcmp.ne.s16.totalorder %v5929, 0
        %v5963 = vsel %vm5930, %v5446, 0
        %v5964 = vsel %vm5931, %v4866, 0
        %v5965 = vsel %vm5932, %v4867, 0
        %v5966 = vsel %vm5933, %v4868, 0
        %v5967 = vsel %vm5934, %v4869, 0
        %v5968 = vsel %vm5935, %v4870, 0
        %v5969 = vsel %vm5936, %v4871, 0
        %v5970 = vsel %vm5937, %v4872, 0
        %v5971 = vsel %vm5938, %v4873, 0
        %v5972 = vsel %vm5939, %v4874, 0
        %v5973 = vsel %vm5940, %v4875, 0
        %v5974 = vsel %vm5941, %v4876, 0
        %v5975 = vsel %vm5942, %v4877, 0
        %v5976 = vsel %vm5943, %v4878, 0
        %v5977 = vsel %vm5944, %v4879, 0
        %v5978 = vsel %vm5945, %v4880, 0
        %v5979 = vsel %vm5946, %v4881, 0
        %v5980 = vsel %vm5947, %v4882, 0
        %v5981 = vsel %vm5948, %v4883, 0
        %v5982 = vsel %vm5949, %v4884, 0
        %v5983 = vsel %vm5950, %v4885, 0
        %v5984 = vsel %vm5951, %v4886, 0
        %v5985 = vsel %vm5952, %v4887, 0
        %v5986 = vsel %vm5953, %v4888, 0
        %v5987 = vsel %vm5954, %v4889, 0
        %v5988 = vsel %vm5955, %v4890, 0
        %v5989 = vsel %vm5956, %v4891, 0
        %v5990 = vsel %vm5957, %v4892, 0
        %v5991 = vsel %vm5958, %v4893, 0
        %v5992 = vsel %vm5959, %v4894, 0
        %v5993 = vsel %vm5960, %v4895, 0
        %v5994 = vsel %vm5961, %v5445, 0
        %v5995 = vsel %vm5962, %v5447, 0
        %v5996 = vld [vmem:[#allocation2 + $0x1c] sm:$0xc]
        %v5997 = vld [vmem:[#allocation2 + $0x88] sm:$0xf]
        %v5998 = vld [vmem:[#allocation2 + $0x8c] sm:$0xf]
        %v5999 = vld [vmem:[#allocation2 + $0x90] sm:$0xf]
        %v6000 = vld [vmem:[#allocation2 + $0x94] sm:$0xf]
        %v6001 = vld [vmem:[#allocation2 + $0x98] sm:$0xf]
        %v6002 = vld [vmem:[#allocation2 + $0x9c] sm:$0x7]
        %v6003 = vsel %vm5379, %v5996, 0
        %v6004 = vsel %vm5380, %v4871, 0
        %v6005 = vsel %vm5381, %v4872, 0
        %v6006 = vsel %vm5382, %v4873, 0
        %v6007 = vsel %vm5383, %v4874, 0
        %v6008 = vsel %vm5384, %v4875, 0
        %v6009 = vsel %vm5385, %v4876, 0
        %v6010 = vsel %vm5386, %v4877, 0
        %v6011 = vsel %vm5387, %v4878, 0
        %v6012 = vsel %vm5388, %v4879, 0
        %v6013 = vsel %vm5389, %v4880, 0
        %v6014 = vsel %vm5390, %v4881, 0
        %v6015 = vsel %vm5391, %v4882, 0
        %v6016 = vsel %vm5392, %v4883, 0
        %v6017 = vsel %vm5393, %v4884, 0
        %v6018 = vsel %vm5394, %v4885, 0
        %v6019 = vsel %vm5395, %v4886, 0
        %v6020 = vsel %vm5396, %v4887, 0
        %v6021 = vsel %vm5397, %v4888, 0
        %v6022 = vsel %vm5398, %v4889, 0
        %v6023 = vsel %vm5399, %v4890, 0
        %v6024 = vsel %vm5400, %v4891, 0
        %v6025 = vsel %vm5401, %v4892, 0
        %v6026 = vsel %vm5402, %v4893, 0
        %v6027 = vsel %vm5403, %v4894, 0
        %v6028 = vsel %vm5404, %v4895, 0
        %v6029 = vsel %vm5405, %v5445, 0
        %v6030 = vsel %vm5406, %v5997, 0
        %v6031 = vsel %vm5407, %v5998, 0
        %v6032 = vsel %vm5408, %v5999, 0
        %v6033 = vsel %vm5409, %v6000, 0
        %v6034 = vsel %vm5410, %v6001, 0
        %v6035 = vsel %vm5411, %v6002, 0
        %v6036 = vld [vmem:[#allocation2 + $0x9c] sm:$0xf]
        %v6037 = vld [vmem:[#allocation2 + $0x20] sm:$0xe]
        %v6038 = vld [vmem:[#allocation2 + $0xa0] sm:$0x3]
        %v6039 = vsel %vm5930, %v6037, 0
        %v6040 = vsel %vm5931, %v4872, 0
        %v6041 = vsel %vm5932, %v4873, 0
        %v6042 = vsel %vm5933, %v4874, 0
        %v6043 = vsel %vm5934, %v4875, 0
        %v6044 = vsel %vm5935, %v4876, 0
        %v6045 = vsel %vm5936, %v4877, 0
        %v6046 = vsel %vm5937, %v4878, 0
        %v6047 = vsel %vm5938, %v4879, 0
        %v6048 = vsel %vm5939, %v4880, 0
        %v6049 = vsel %vm5940, %v4881, 0
        %v6050 = vsel %vm5941, %v4882, 0
        %v6051 = vsel %vm5942, %v4883, 0
        %v6052 = vsel %vm5943, %v4884, 0
        %v6053 = vsel %vm5944, %v4885, 0
        %v6054 = vsel %vm5945, %v4886, 0
        %v6055 = vsel %vm5946, %v4887, 0
        %v6056 = vsel %vm5947, %v4888, 0
        %v6057 = vsel %vm5948, %v4889, 0
        %v6058 = vsel %vm5949, %v4890, 0
        %v6059 = vsel %vm5950, %v4891, 0
        %v6060 = vsel %vm5951, %v4892, 0
        %v6061 = vsel %vm5952, %v4893, 0
        %v6062 = vsel %vm5953, %v4894, 0
        %v6063 = vsel %vm5954, %v4895, 0
        %v6064 = vsel %vm5955, %v5445, 0
        %v6065 = vsel %vm5956, %v5997, 0
        %v6066 = vsel %vm5957, %v5998, 0
        %v6067 = vsel %vm5958, %v5999, 0
        %v6068 = vsel %vm5959, %v6000, 0
        %v6069 = vsel %vm5960, %v6001, 0
        %v6070 = vsel %vm5961, %v6036, 0
        %v6071 = vsel %vm5962, %v6038, 0
        %v6072 = vld [vmem:[#allocation2 + $0x34] sm:$0xc]
        %v6073 = vld [vmem:[#allocation2 + $0xa0] sm:$0xf]
        %v6074 = vld [vmem:[#allocation2 + $0xa4] sm:$0xf]
        %v6075 = vld [vmem:[#allocation2 + $0xa8] sm:$0xf]
        %v6076 = vld [vmem:[#allocation2 + $0xac] sm:$0xf]
        %v6077 = vld [vmem:[#allocation2 + $0xb0] sm:$0xf]
        %v6078 = vld [vmem:[#allocation2 + $0xb4] sm:$0x7]
        %v6079 = vsel %vm5379, %v6072, 0
        %v6080 = vsel %vm5380, %v4877, 0
        %v6081 = vsel %vm5381, %v4878, 0
        %v6082 = vsel %vm5382, %v4879, 0
        %v6083 = vsel %vm5383, %v4880, 0
        %v6084 = vsel %vm5384, %v4881, 0
        %v6085 = vsel %vm5385, %v4882, 0
        %v6086 = vsel %vm5386, %v4883, 0
        %v6087 = vsel %vm5387, %v4884, 0
        %v6088 = vsel %vm5388, %v4885, 0
        %v6089 = vsel %vm5389, %v4886, 0
        %v6090 = vsel %vm5390, %v4887, 0
        %v6091 = vsel %vm5391, %v4888, 0
        %v6092 = vsel %vm5392, %v4889, 0
        %v6093 = vsel %vm5393, %v4890, 0
        %v6094 = vsel %vm5394, %v4891, 0
        %v6095 = vsel %vm5395, %v4892, 0
        %v6096 = vsel %vm5396, %v4893, 0
        %v6097 = vsel %vm5397, %v4894, 0
        %v6098 = vsel %vm5398, %v4895, 0
        %v6099 = vsel %vm5399, %v5445, 0
        %v6100 = vsel %vm5400, %v5997, 0
        %v6101 = vsel %vm5401, %v5998, 0
        %v6102 = vsel %vm5402, %v5999, 0
        %v6103 = vsel %vm5403, %v6000, 0
        %v6104 = vsel %vm5404, %v6001, 0
        %v6105 = vsel %vm5405, %v6036, 0
        %v6106 = vsel %vm5406, %v6073, 0
        %v6107 = vsel %vm5407, %v6074, 0
        %v6108 = vsel %vm5408, %v6075, 0
        %v6109 = vsel %vm5409, %v6076, 0
        %v6110 = vsel %vm5410, %v6077, 0
        %v6111 = vsel %vm5411, %v6078, 0
        %v6112 = vld [vmem:[#allocation2 + $0xb4] sm:$0xf]
        %v6113 = vld [vmem:[#allocation2 + $0x38] sm:$0xe]
        %v6114 = vld [vmem:[#allocation2 + $0xb8] sm:$0x3]
        %v6115 = vsel %vm5930, %v6113, 0
        %v6116 = vsel %vm5931, %v4878, 0
        %v6117 = vsel %vm5932, %v4879, 0
        %v6118 = vsel %vm5933, %v4880, 0
        %v6119 = vsel %vm5934, %v4881, 0
        %v6120 = vsel %vm5935, %v4882, 0
        %v6121 = vsel %vm5936, %v4883, 0
        %v6122 = vsel %vm5937, %v4884, 0
        %v6123 = vsel %vm5938, %v4885, 0
        %v6124 = vsel %vm5939, %v4886, 0
        %v6125 = vsel %vm5940, %v4887, 0
        %v6126 = vsel %vm5941, %v4888, 0
        %v6127 = vsel %vm5942, %v4889, 0
        %v6128 = vsel %vm5943, %v4890, 0
        %v6129 = vsel %vm5944, %v4891, 0
        %v6130 = vsel %vm5945, %v4892, 0
        %v6131 = vsel %vm5946, %v4893, 0
        %v6132 = vsel %vm5947, %v4894, 0
        %v6133 = vsel %vm5948, %v4895, 0
        %v6134 = vsel %vm5949, %v5445, 0
        %v6135 = vsel %vm5950, %v5997, 0
        %v6136 = vsel %vm5951, %v5998, 0
        %v6137 = vsel %vm5952, %v5999, 0
        %v6138 = vsel %vm5953, %v6000, 0
        %v6139 = vsel %vm5954, %v6001, 0
        %v6140 = vsel %vm5955, %v6036, 0
        %v6141 = vsel %vm5956, %v6073, 0
        %v6142 = vsel %vm5957, %v6074, 0
        %v6143 = vsel %vm5958, %v6075, 0
        %v6144 = vsel %vm5959, %v6076, 0
        %v6145 = vsel %vm5960, %v6077, 0
        %v6146 = vsel %vm5961, %v6112, 0
        %v6147 = vsel %vm5962, %v6114, 0
        %v6181 = vunpack.c.l.b16 %v5412
        %v6182 = vunpack.c.l.b16 %v5413
        %v6183 = vunpack.c.l.b16 %v5414
        %v6184 = vunpack.c.l.b16 %v5415
        %v6185 = vunpack.c.l.b16 %v5416
        %v6186 = vunpack.c.l.b16 %v5417
        %v6187 = vunpack.c.l.b16 %v5418
        %v6188 = vunpack.c.l.b16 %v5419
        %v6189 = vunpack.c.l.b16 %v5420
        %v6190 = vunpack.c.l.b16 %v5421
        %v6191 = vunpack.c.l.b16 %v5422
        %v6192 = vunpack.c.l.b16 %v5423
        %v6193 = vunpack.c.l.b16 %v5424
        %v6194 = vunpack.c.l.b16 %v5425
        %v6195 = vunpack.c.l.b16 %v5426
        %v6196 = vunpack.c.l.b16 %v5427
        %v6197 = vunpack.c.l.b16 %v5428
        %v6198 = vunpack.c.l.b16 %v5429
        %v6199 = vunpack.c.l.b16 %v5430
        %v6200 = vunpack.c.l.b16 %v5431
        %v6201 = vunpack.c.l.b16 %v5432
        %v6202 = vunpack.c.l.b16 %v5433
        %v6203 = vunpack.c.l.b16 %v5434
        %v6204 = vunpack.c.l.b16 %v5435
        %v6205 = vunpack.c.l.b16 %v5436
        %v6206 = vunpack.c.l.b16 %v5437
        %v6207 = vunpack.c.l.b16 %v5438
        %v6208 = vunpack.c.l.b16 %v5439
        %v6209 = vunpack.c.l.b16 %v5440
        %v6210 = vunpack.c.l.b16 %v5441
        %v6211 = vunpack.c.l.b16 %v5442
        %v6212 = vunpack.c.l.b16 %v5443
        %v6213 = vunpack.c.l.b16 %v5444
        %v6214 = vpack.c.b16 %v6182, %v6181
        %v6215 = vpack.c.b16 %v6184, %v6183
        %v6216 = vpack.c.b16 %v6186, %v6185
        %v6217 = vpack.c.b16 %v6188, %v6187
        %v6218 = vpack.c.b16 %v6190, %v6189
        %v6219 = vpack.c.b16 %v6192, %v6191
        %v6220 = vpack.c.b16 %v6194, %v6193
        %v6221 = vpack.c.b16 %v6196, %v6195
        %v6222 = vpack.c.b16 %v6198, %v6197
        %v6223 = vpack.c.b16 %v6200, %v6199
        %v6224 = vpack.c.b16 %v6202, %v6201
        %v6225 = vpack.c.b16 %v6204, %v6203
        %v6226 = vpack.c.b16 %v6206, %v6205
        %v6227 = vpack.c.b16 %v6208, %v6207
        %v6228 = vpack.c.b16 %v6210, %v6209
        %v6229 = vpack.c.b16 %v6212, %v6211
        %v6230 = vpack.c.b16 %v6213, %v6213
        %v6263 = vunpack.c.l.b16 %v4865
        %v6264 = vunpack.c.l.b16 %v4866
        %v6265 = vunpack.c.l.b16 %v4867
        %v6266 = vunpack.c.l.b16 %v4868
        %v6267 = vunpack.c.l.b16 %v4869
        %v6268 = vunpack.c.l.b16 %v4870
        %v6269 = vunpack.c.l.b16 %v4871
        %v6270 = vunpack.c.l.b16 %v4872
        %v6271 = vunpack.c.l.b16 %v4873
        %v6272 = vunpack.c.l.b16 %v4874
        %v6273 = vunpack.c.l.b16 %v4875
        %v6274 = vunpack.c.l.b16 %v4876
        %v6275 = vunpack.c.l.b16 %v4877
        %v6276 = vunpack.c.l.b16 %v4878
        %v6277 = vunpack.c.l.b16 %v4879
        %v6278 = vunpack.c.l.b16 %v4880
        %v6279 = vunpack.c.l.b16 %v4881
        %v6280 = vunpack.c.l.b16 %v4882
        %v6281 = vunpack.c.l.b16 %v4883
        %v6282 = vunpack.c.l.b16 %v4884
        %v6283 = vunpack.c.l.b16 %v4885
        %v6284 = vunpack.c.l.b16 %v4886
        %v6285 = vunpack.c.l.b16 %v4887
        %v6286 = vunpack.c.l.b16 %v4888
        %v6287 = vunpack.c.l.b16 %v4889
        %v6288 = vunpack.c.l.b16 %v4890
        %v6289 = vunpack.c.l.b16 %v4891
        %v6290 = vunpack.c.l.b16 %v4892
        %v6291 = vunpack.c.l.b16 %v4893
        %v6292 = vunpack.c.l.b16 %v4894
        %v6293 = vunpack.c.l.b16 %v4895
        %v6294 = vunpack.c.l.b16 %v5445
        %v6295 = vpack.c.b16 %v6264, %v6263
        %v6296 = vpack.c.b16 %v6266, %v6265
        %v6297 = vpack.c.b16 %v6268, %v6267
        %v6298 = vpack.c.b16 %v6270, %v6269
        %v6299 = vpack.c.b16 %v6272, %v6271
        %v6300 = vpack.c.b16 %v6274, %v6273
        %v6301 = vpack.c.b16 %v6276, %v6275
        %v6302 = vpack.c.b16 %v6278, %v6277
        %v6303 = vpack.c.b16 %v6280, %v6279
        %v6304 = vpack.c.b16 %v6282, %v6281
        %v6305 = vpack.c.b16 %v6284, %v6283
        %v6306 = vpack.c.b16 %v6286, %v6285
        %v6307 = vpack.c.b16 %v6288, %v6287
        %v6308 = vpack.c.b16 %v6290, %v6289
        %v6309 = vpack.c.b16 %v6292, %v6291
        %v6310 = vpack.c.b16 %v6294, %v6293
        %v6312 = vshrl.u32 %v6295, 16
        %v6314 = vrot.slane %v6312, 5
        %v6315 = vshll.u32 %v6295, 16
        %v6317 = vrot.slane %v6315, 6
        %v6318 = vor.u32 %v6314, %v6317
        %v6320 = vshrl.u32 %v6296, 16
        %v6322 = vrot.slane %v6320, 5
        %v6323 = vshll.u32 %v6296, 16
        %v6325 = vrot.slane %v6323, 6
        %v6326 = vor.u32 %v6322, %v6325
        %v6327 = vsel %vm5057, %v6318, %v6326
        %v6329 = vshrl.u32 %v6297, 16
        %v6331 = vrot.slane %v6329, 5
        %v6332 = vshll.u32 %v6297, 16
        %v6334 = vrot.slane %v6332, 6
        %v6335 = vor.u32 %v6331, %v6334
        %v6336 = vsel %vm5057, %v6326, %v6335
        %v6338 = vshrl.u32 %v6298, 16
        %v6340 = vrot.slane %v6338, 5
        %v6341 = vshll.u32 %v6298, 16
        %v6343 = vrot.slane %v6341, 6
        %v6344 = vor.u32 %v6340, %v6343
        %v6345 = vsel %vm5057, %v6335, %v6344
        %v6347 = vshrl.u32 %v6299, 16
        %v6349 = vrot.slane %v6347, 5
        %v6350 = vshll.u32 %v6299, 16
        %v6352 = vrot.slane %v6350, 6
        %v6353 = vor.u32 %v6349, %v6352
        %v6354 = vsel %vm5057, %v6344, %v6353
        %v6356 = vshrl.u32 %v6300, 16
        %v6358 = vrot.slane %v6356, 5
        %v6359 = vshll.u32 %v6300, 16
        %v6361 = vrot.slane %v6359, 6
        %v6362 = vor.u32 %v6358, %v6361
        %v6363 = vsel %vm5057, %v6353, %v6362
        %v6365 = vshrl.u32 %v6301, 16
        %v6367 = vrot.slane %v6365, 5
        %v6368 = vshll.u32 %v6301, 16
        %v6370 = vrot.slane %v6368, 6
        %v6371 = vor.u32 %v6367, %v6370
        %v6372 = vsel %vm5057, %v6362, %v6371
        %v6374 = vshrl.u32 %v6302, 16
        %v6376 = vrot.slane %v6374, 5
        %v6377 = vshll.u32 %v6302, 16
        %v6379 = vrot.slane %v6377, 6
        %v6380 = vor.u32 %v6376, %v6379
        %v6381 = vsel %vm5057, %v6371, %v6380
        %v6383 = vshrl.u32 %v6303, 16
        %v6385 = vrot.slane %v6383, 5
        %v6386 = vshll.u32 %v6303, 16
        %v6388 = vrot.slane %v6386, 6
        %v6389 = vor.u32 %v6385, %v6388
        %v6390 = vsel %vm5057, %v6380, %v6389
        %v6392 = vshrl.u32 %v6304, 16
        %v6394 = vrot.slane %v6392, 5
        %v6395 = vshll.u32 %v6304, 16
        %v6397 = vrot.slane %v6395, 6
        %v6398 = vor.u32 %v6394, %v6397
        %v6399 = vsel %vm5057, %v6389, %v6398
        %v6401 = vshrl.u32 %v6305, 16
        %v6403 = vrot.slane %v6401, 5
        %v6404 = vshll.u32 %v6305, 16
        %v6406 = vrot.slane %v6404, 6
        %v6407 = vor.u32 %v6403, %v6406
        %v6408 = vsel %vm5057, %v6398, %v6407
        %v6410 = vshrl.u32 %v6306, 16
        %v6412 = vrot.slane %v6410, 5
        %v6413 = vshll.u32 %v6306, 16
        %v6415 = vrot.slane %v6413, 6
        %v6416 = vor.u32 %v6412, %v6415
        %v6417 = vsel %vm5057, %v6407, %v6416
        %v6419 = vshrl.u32 %v6307, 16
        %v6421 = vrot.slane %v6419, 5
        %v6422 = vshll.u32 %v6307, 16
        %v6424 = vrot.slane %v6422, 6
        %v6425 = vor.u32 %v6421, %v6424
        %v6426 = vsel %vm5057, %v6416, %v6425
        %v6428 = vshrl.u32 %v6308, 16
        %v6430 = vrot.slane %v6428, 5
        %v6431 = vshll.u32 %v6308, 16
        %v6433 = vrot.slane %v6431, 6
        %v6434 = vor.u32 %v6430, %v6433
        %v6435 = vsel %vm5057, %v6425, %v6434
        %v6437 = vshrl.u32 %v6309, 16
        %v6439 = vrot.slane %v6437, 5
        %v6440 = vshll.u32 %v6309, 16
        %v6442 = vrot.slane %v6440, 6
        %v6443 = vor.u32 %v6439, %v6442
        %v6444 = vsel %vm5057, %v6434, %v6443
        %v6446 = vshrl.u32 %v6310, 16
        %v6448 = vrot.slane %v6446, 5
        %v6449 = vshll.u32 %v6310, 16
        %v6451 = vrot.slane %v6449, 6
        %v6452 = vor.u32 %v6448, %v6451
        %v6453 = vsel %vm5057, %v6443, %v6452
        %6454 = vrot.lane.b32.xlu0 %v6318, 32
        %v6455 = vpop.permute.xlu0 %6454
        %6456 = vrot.lane.b32.xlu0 %v6327, 32
        %v6457 = vpop.permute.xlu0 %6456
        %6458 = vrot.lane.b32.xlu0 %v6336, 32
        %v6459 = vpop.permute.xlu0 %6458
        %6460 = vrot.lane.b32.xlu0 %v6345, 32
        %v6461 = vpop.permute.xlu0 %6460
        %6462 = vrot.lane.b32.xlu0 %v6354, 32
        %v6463 = vpop.permute.xlu0 %6462
        %6464 = vrot.lane.b32.xlu0 %v6363, 32
        %v6465 = vpop.permute.xlu0 %6464
        %6466 = vrot.lane.b32.xlu0 %v6372, 32
        %v6467 = vpop.permute.xlu0 %6466
        %6468 = vrot.lane.b32.xlu0 %v6381, 32
        %v6469 = vpop.permute.xlu0 %6468
        %6470 = vrot.lane.b32.xlu0 %v6390, 32
        %v6471 = vpop.permute.xlu0 %6470
        %6472 = vrot.lane.b32.xlu0 %v6399, 32
        %v6473 = vpop.permute.xlu0 %6472
        %6474 = vrot.lane.b32.xlu0 %v6408, 32
        %v6475 = vpop.permute.xlu0 %6474
        %6476 = vrot.lane.b32.xlu0 %v6417, 32
        %v6477 = vpop.permute.xlu0 %6476
        %6478 = vrot.lane.b32.xlu0 %v6426, 32
        %v6479 = vpop.permute.xlu0 %6478
        %6480 = vrot.lane.b32.xlu0 %v6435, 32
        %v6481 = vpop.permute.xlu0 %6480
        %6482 = vrot.lane.b32.xlu0 %v6444, 32
        %v6483 = vpop.permute.xlu0 %6482
        %6484 = vrot.lane.b32.xlu0 %v6453, 32
        %v6485 = vpop.permute.xlu0 %6484
        %6486 = vrot.lane.b32.xlu0 %v6452, 32
        %v6487 = vpop.permute.xlu0 %6486
        %v6521 = vunpack.c.l.b16 %v5963
        %v6522 = vunpack.c.l.b16 %v5964
        %v6523 = vunpack.c.l.b16 %v5965
        %v6524 = vunpack.c.l.b16 %v5966
        %v6525 = vunpack.c.l.b16 %v5967
        %v6526 = vunpack.c.l.b16 %v5968
        %v6527 = vunpack.c.l.b16 %v5969
        %v6528 = vunpack.c.l.b16 %v5970
        %v6529 = vunpack.c.l.b16 %v5971
        %v6530 = vunpack.c.l.b16 %v5972
        %v6531 = vunpack.c.l.b16 %v5973
        %v6532 = vunpack.c.l.b16 %v5974
        %v6533 = vunpack.c.l.b16 %v5975
        %v6534 = vunpack.c.l.b16 %v5976
        %v6535 = vunpack.c.l.b16 %v5977
        %v6536 = vunpack.c.l.b16 %v5978
        %v6537 = vunpack.c.l.b16 %v5979
        %v6538 = vunpack.c.l.b16 %v5980
        %v6539 = vunpack.c.l.b16 %v5981
        %v6540 = vunpack.c.l.b16 %v5982
        %v6541 = vunpack.c.l.b16 %v5983
        %v6542 = vunpack.c.l.b16 %v5984
        %v6543 = vunpack.c.l.b16 %v5985
        %v6544 = vunpack.c.l.b16 %v5986
        %v6545 = vunpack.c.l.b16 %v5987
        %v6546 = vunpack.c.l.b16 %v5988
        %v6547 = vunpack.c.l.b16 %v5989
        %v6548 = vunpack.c.l.b16 %v5990
        %v6549 = vunpack.c.l.b16 %v5991
        %v6550 = vunpack.c.l.b16 %v5992
        %v6551 = vunpack.c.l.b16 %v5993
        %v6552 = vunpack.c.l.b16 %v5994
        %v6553 = vunpack.c.l.b16 %v5995
        %v6554 = vpack.c.b16 %v6522, %v6521
        %v6555 = vpack.c.b16 %v6524, %v6523
        %v6556 = vpack.c.b16 %v6526, %v6525
        %v6557 = vpack.c.b16 %v6528, %v6527
        %v6558 = vpack.c.b16 %v6530, %v6529
        %v6559 = vpack.c.b16 %v6532, %v6531
        %v6560 = vpack.c.b16 %v6534, %v6533
        %v6561 = vpack.c.b16 %v6536, %v6535
        %v6562 = vpack.c.b16 %v6538, %v6537
        %v6563 = vpack.c.b16 %v6540, %v6539
        %v6564 = vpack.c.b16 %v6542, %v6541
        %v6565 = vpack.c.b16 %v6544, %v6543
        %v6566 = vpack.c.b16 %v6546, %v6545
        %v6567 = vpack.c.b16 %v6548, %v6547
        %v6568 = vpack.c.b16 %v6550, %v6549
        %v6569 = vpack.c.b16 %v6552, %v6551
        %v6570 = vpack.c.b16 %v6553, %v6553
        %vm6571 = vcmask 1040384
        %v6572 = vrot.slane %v6554, 7
        %v6573 = vrot.slane %v6555, 7
        %v6574 = vsel %vm6571, %v6572, %v6573
        %v6575 = vrot.slane %v6556, 7
        %v6576 = vsel %vm6571, %v6573, %v6575
        %v6577 = vrot.slane %v6557, 7
        %v6578 = vsel %vm6571, %v6575, %v6577
        %v6579 = vrot.slane %v6558, 7
        %v6580 = vsel %vm6571, %v6577, %v6579
        %v6581 = vrot.slane %v6559, 7
        %v6582 = vsel %vm6571, %v6579, %v6581
        %v6583 = vrot.slane %v6560, 7
        %v6584 = vsel %vm6571, %v6581, %v6583
        %v6585 = vrot.slane %v6561, 7
        %v6586 = vsel %vm6571, %v6583, %v6585
        %v6587 = vrot.slane %v6562, 7
        %v6588 = vsel %vm6571, %v6585, %v6587
        %v6589 = vrot.slane %v6563, 7
        %v6590 = vsel %vm6571, %v6587, %v6589
        %v6591 = vrot.slane %v6564, 7
        %v6592 = vsel %vm6571, %v6589, %v6591
        %v6593 = vrot.slane %v6565, 7
        %v6594 = vsel %vm6571, %v6591, %v6593
        %v6595 = vrot.slane %v6566, 7
        %v6596 = vsel %vm6571, %v6593, %v6595
        %v6597 = vrot.slane %v6567, 7
        %v6598 = vsel %vm6571, %v6595, %v6597
        %v6599 = vrot.slane %v6568, 7
        %v6600 = vsel %vm6571, %v6597, %v6599
        %v6601 = vrot.slane %v6569, 7
        %v6602 = vsel %vm6571, %v6599, %v6601
        %v6603 = vrot.slane %v6570, 7
        %v6604 = vsel %vm6571, %v6601, %v6603
        %6605 = vrot.lane.b32.xlu0 %v6572, 64
        %v6606 = vpop.permute.xlu0 %6605
        %6607 = vrot.lane.b32.xlu0 %v6574, 64
        %v6608 = vpop.permute.xlu0 %6607
        %6609 = vrot.lane.b32.xlu0 %v6576, 64
        %v6610 = vpop.permute.xlu0 %6609
        %6611 = vrot.lane.b32.xlu0 %v6578, 64
        %v6612 = vpop.permute.xlu0 %6611
        %6613 = vrot.lane.b32.xlu0 %v6580, 64
        %v6614 = vpop.permute.xlu0 %6613
        %6615 = vrot.lane.b32.xlu0 %v6582, 64
        %v6616 = vpop.permute.xlu0 %6615
        %6617 = vrot.lane.b32.xlu0 %v6584, 64
        %v6618 = vpop.permute.xlu0 %6617
        %6619 = vrot.lane.b32.xlu0 %v6586, 64
        %v6620 = vpop.permute.xlu0 %6619
        %6621 = vrot.lane.b32.xlu0 %v6588, 64
        %v6622 = vpop.permute.xlu0 %6621
        %6623 = vrot.lane.b32.xlu0 %v6590, 64
        %v6624 = vpop.permute.xlu0 %6623
        %6625 = vrot.lane.b32.xlu0 %v6592, 64
        %v6626 = vpop.permute.xlu0 %6625
        %6627 = vrot.lane.b32.xlu0 %v6594, 64
        %v6628 = vpop.permute.xlu0 %6627
        %6629 = vrot.lane.b32.xlu0 %v6596, 64
        %v6630 = vpop.permute.xlu0 %6629
        %6631 = vrot.lane.b32.xlu0 %v6598, 64
        %v6632 = vpop.permute.xlu0 %6631
        %6633 = vrot.lane.b32.xlu0 %v6600, 64
        %v6634 = vpop.permute.xlu0 %6633
        %6635 = vrot.lane.b32.xlu0 %v6602, 64
        %v6636 = vpop.permute.xlu0 %6635
        %6637 = vrot.lane.b32.xlu0 %v6604, 64
        %v6638 = vpop.permute.xlu0 %6637
        %v6672 = vunpack.c.l.b16 %v6003
        %v6673 = vunpack.c.l.b16 %v6004
        %v6674 = vunpack.c.l.b16 %v6005
        %v6675 = vunpack.c.l.b16 %v6006
        %v6676 = vunpack.c.l.b16 %v6007
        %v6677 = vunpack.c.l.b16 %v6008
        %v6678 = vunpack.c.l.b16 %v6009
        %v6679 = vunpack.c.l.b16 %v6010
        %v6680 = vunpack.c.l.b16 %v6011
        %v6681 = vunpack.c.l.b16 %v6012
        %v6682 = vunpack.c.l.b16 %v6013
        %v6683 = vunpack.c.l.b16 %v6014
        %v6684 = vunpack.c.l.b16 %v6015
        %v6685 = vunpack.c.l.b16 %v6016
        %v6686 = vunpack.c.l.b16 %v6017
        %v6687 = vunpack.c.l.b16 %v6018
        %v6688 = vunpack.c.l.b16 %v6019
        %v6689 = vunpack.c.l.b16 %v6020
        %v6690 = vunpack.c.l.b16 %v6021
        %v6691 = vunpack.c.l.b16 %v6022
        %v6692 = vunpack.c.l.b16 %v6023
        %v6693 = vunpack.c.l.b16 %v6024
        %v6694 = vunpack.c.l.b16 %v6025
        %v6695 = vunpack.c.l.b16 %v6026
        %v6696 = vunpack.c.l.b16 %v6027
        %v6697 = vunpack.c.l.b16 %v6028
        %v6698 = vunpack.c.l.b16 %v6029
        %v6699 = vunpack.c.l.b16 %v6030
        %v6700 = vunpack.c.l.b16 %v6031
        %v6701 = vunpack.c.l.b16 %v6032
        %v6702 = vunpack.c.l.b16 %v6033
        %v6703 = vunpack.c.l.b16 %v6034
        %v6704 = vunpack.c.l.b16 %v6035
        %v6705 = vpack.c.b16 %v6673, %v6672
        %v6706 = vpack.c.b16 %v6675, %v6674
        %v6707 = vpack.c.b16 %v6677, %v6676
        %v6708 = vpack.c.b16 %v6679, %v6678
        %v6709 = vpack.c.b16 %v6681, %v6680
        %v6710 = vpack.c.b16 %v6683, %v6682
        %v6711 = vpack.c.b16 %v6685, %v6684
        %v6712 = vpack.c.b16 %v6687, %v6686
        %v6713 = vpack.c.b16 %v6689, %v6688
        %v6714 = vpack.c.b16 %v6691, %v6690
        %v6715 = vpack.c.b16 %v6693, %v6692
        %v6716 = vpack.c.b16 %v6695, %v6694
        %v6717 = vpack.c.b16 %v6697, %v6696
        %v6718 = vpack.c.b16 %v6699, %v6698
        %v6719 = vpack.c.b16 %v6701, %v6700
        %v6720 = vpack.c.b16 %v6703, %v6702
        %v6721 = vpack.c.b16 %v6704, %v6704
        %6722 = vrot.lane.b32.xlu0 %v6705, 96
        %v6723 = vpop.permute.xlu0 %6722
        %6724 = vrot.lane.b32.xlu0 %v6706, 96
        %v6725 = vpop.permute.xlu0 %6724
        %6726 = vrot.lane.b32.xlu0 %v6707, 96
        %v6727 = vpop.permute.xlu0 %6726
        %6728 = vrot.lane.b32.xlu0 %v6708, 96
        %v6729 = vpop.permute.xlu0 %6728
        %6730 = vrot.lane.b32.xlu0 %v6709, 96
        %v6731 = vpop.permute.xlu0 %6730
        %6732 = vrot.lane.b32.xlu0 %v6710, 96
        %v6733 = vpop.permute.xlu0 %6732
        %6734 = vrot.lane.b32.xlu0 %v6711, 96
        %v6735 = vpop.permute.xlu0 %6734
        %6736 = vrot.lane.b32.xlu0 %v6712, 96
        %v6737 = vpop.permute.xlu0 %6736
        %6738 = vrot.lane.b32.xlu0 %v6713, 96
        %v6739 = vpop.permute.xlu0 %6738
        %6740 = vrot.lane.b32.xlu0 %v6714, 96
        %v6741 = vpop.permute.xlu0 %6740
        %6742 = vrot.lane.b32.xlu0 %v6715, 96
        %v6743 = vpop.permute.xlu0 %6742
        %6744 = vrot.lane.b32.xlu0 %v6716, 96
        %v6745 = vpop.permute.xlu0 %6744
        %6746 = vrot.lane.b32.xlu0 %v6717, 96
        %v6747 = vpop.permute.xlu0 %6746
        %6748 = vrot.lane.b32.xlu0 %v6718, 96
        %v6749 = vpop.permute.xlu0 %6748
        %6750 = vrot.lane.b32.xlu0 %v6719, 96
        %v6751 = vpop.permute.xlu0 %6750
        %6752 = vrot.lane.b32.xlu0 %v6720, 96
        %v6753 = vpop.permute.xlu0 %6752
        %6754 = vrot.lane.b32.xlu0 %v6721, 96
        %v6755 = vpop.permute.xlu0 %6754
        %v6762 = vunpack.c.l.b16 %v5997
        %v6763 = vunpack.c.l.b16 %v5998
        %v6764 = vunpack.c.l.b16 %v5999
        %v6765 = vunpack.c.l.b16 %v6000
        %v6766 = vunpack.c.l.b16 %v6001
        %v6767 = vunpack.c.l.b16 %v6036
        %v6768 = vpack.c.b16 %v6763, %v6762
        %v6769 = vpack.c.b16 %v6765, %v6764
        %v6770 = vpack.c.b16 %v6767, %v6766
        %v6772 = vshrl.u32 %v6768, 16
        %v6774 = vrot.slane %v6772, 5
        %v6775 = vshll.u32 %v6768, 16
        %v6777 = vrot.slane %v6775, 6
        %v6778 = vor.u32 %v6774, %v6777
        %v6779 = vsel %vm5057, %v6452, %v6778
        %v6781 = vshrl.u32 %v6769, 16
        %v6783 = vrot.slane %v6781, 5
        %v6784 = vshll.u32 %v6769, 16
        %v6786 = vrot.slane %v6784, 6
        %v6787 = vor.u32 %v6783, %v6786
        %v6788 = vsel %vm5057, %v6778, %v6787
        %v6790 = vshrl.u32 %v6770, 16
        %v6792 = vrot.slane %v6790, 5
        %v6793 = vshll.u32 %v6770, 16
        %v6795 = vrot.slane %v6793, 6
        %v6796 = vor.u32 %v6792, %v6795
        %v6797 = vsel %vm5057, %v6787, %v6796
        %v6831 = vunpack.c.l.b16 %v6039
        %v6832 = vunpack.c.l.b16 %v6040
        %v6833 = vunpack.c.l.b16 %v6041
        %v6834 = vunpack.c.l.b16 %v6042
        %v6835 = vunpack.c.l.b16 %v6043
        %v6836 = vunpack.c.l.b16 %v6044
        %v6837 = vunpack.c.l.b16 %v6045
        %v6838 = vunpack.c.l.b16 %v6046
        %v6839 = vunpack.c.l.b16 %v6047
        %v6840 = vunpack.c.l.b16 %v6048
        %v6841 = vunpack.c.l.b16 %v6049
        %v6842 = vunpack.c.l.b16 %v6050
        %v6843 = vunpack.c.l.b16 %v6051
        %v6844 = vunpack.c.l.b16 %v6052
        %v6845 = vunpack.c.l.b16 %v6053
        %v6846 = vunpack.c.l.b16 %v6054
        %v6847 = vunpack.c.l.b16 %v6055
        %v6848 = vunpack.c.l.b16 %v6056
        %v6849 = vunpack.c.l.b16 %v6057
        %v6850 = vunpack.c.l.b16 %v6058
        %v6851 = vunpack.c.l.b16 %v6059
        %v6852 = vunpack.c.l.b16 %v6060
        %v6853 = vunpack.c.l.b16 %v6061
        %v6854 = vunpack.c.l.b16 %v6062
        %v6855 = vunpack.c.l.b16 %v6063
        %v6856 = vunpack.c.l.b16 %v6064
        %v6857 = vunpack.c.l.b16 %v6065
        %v6858 = vunpack.c.l.b16 %v6066
        %v6859 = vunpack.c.l.b16 %v6067
        %v6860 = vunpack.c.l.b16 %v6068
        %v6861 = vunpack.c.l.b16 %v6069
        %v6862 = vunpack.c.l.b16 %v6070
        %v6863 = vunpack.c.l.b16 %v6071
        %v6864 = vpack.c.b16 %v6832, %v6831
        %v6865 = vpack.c.b16 %v6834, %v6833
        %v6866 = vpack.c.b16 %v6836, %v6835
        %v6867 = vpack.c.b16 %v6838, %v6837
        %v6868 = vpack.c.b16 %v6840, %v6839
        %v6869 = vpack.c.b16 %v6842, %v6841
        %v6870 = vpack.c.b16 %v6844, %v6843
        %v6871 = vpack.c.b16 %v6846, %v6845
        %v6872 = vpack.c.b16 %v6848, %v6847
        %v6873 = vpack.c.b16 %v6850, %v6849
        %v6874 = vpack.c.b16 %v6852, %v6851
        %v6875 = vpack.c.b16 %v6854, %v6853
        %v6876 = vpack.c.b16 %v6856, %v6855
        %v6877 = vpack.c.b16 %v6858, %v6857
        %v6878 = vpack.c.b16 %v6860, %v6859
        %v6879 = vpack.c.b16 %v6862, %v6861
        %v6880 = vpack.c.b16 %v6863, %v6863
        %v6881 = vrot.slane %v6864, 7
        %v6882 = vrot.slane %v6865, 7
        %v6883 = vsel %vm6571, %v6881, %v6882
        %v6884 = vrot.slane %v6866, 7
        %v6885 = vsel %vm6571, %v6882, %v6884
        %v6886 = vrot.slane %v6867, 7
        %v6887 = vsel %vm6571, %v6884, %v6886
        %v6888 = vrot.slane %v6868, 7
        %v6889 = vsel %vm6571, %v6886, %v6888
        %v6890 = vrot.slane %v6869, 7
        %v6891 = vsel %vm6571, %v6888, %v6890
        %v6892 = vrot.slane %v6870, 7
        %v6893 = vsel %vm6571, %v6890, %v6892
        %v6894 = vrot.slane %v6871, 7
        %v6895 = vsel %vm6571, %v6892, %v6894
        %v6896 = vrot.slane %v6872, 7
        %v6897 = vsel %vm6571, %v6894, %v6896
        %v6898 = vrot.slane %v6873, 7
        %v6899 = vsel %vm6571, %v6896, %v6898
        %v6900 = vrot.slane %v6874, 7
        %v6901 = vsel %vm6571, %v6898, %v6900
        %v6902 = vrot.slane %v6875, 7
        %v6903 = vsel %vm6571, %v6900, %v6902
        %v6904 = vrot.slane %v6876, 7
        %v6905 = vsel %vm6571, %v6902, %v6904
        %v6906 = vrot.slane %v6877, 7
        %v6907 = vsel %vm6571, %v6904, %v6906
        %v6908 = vrot.slane %v6878, 7
        %v6909 = vsel %vm6571, %v6906, %v6908
        %v6910 = vrot.slane %v6879, 7
        %v6911 = vsel %vm6571, %v6908, %v6910
        %v6912 = vrot.slane %v6880, 7
        %v6913 = vsel %vm6571, %v6910, %v6912
        %6914 = vrot.lane.b32.xlu0 %v6881, 32
        %v6915 = vpop.permute.xlu0 %6914
        %6916 = vrot.lane.b32.xlu0 %v6883, 32
        %v6917 = vpop.permute.xlu0 %6916
        %6918 = vrot.lane.b32.xlu0 %v6885, 32
        %v6919 = vpop.permute.xlu0 %6918
        %6920 = vrot.lane.b32.xlu0 %v6887, 32
        %v6921 = vpop.permute.xlu0 %6920
        %6922 = vrot.lane.b32.xlu0 %v6889, 32
        %v6923 = vpop.permute.xlu0 %6922
        %6924 = vrot.lane.b32.xlu0 %v6891, 32
        %v6925 = vpop.permute.xlu0 %6924
        %6926 = vrot.lane.b32.xlu0 %v6893, 32
        %v6927 = vpop.permute.xlu0 %6926
        %6928 = vrot.lane.b32.xlu0 %v6895, 32
        %v6929 = vpop.permute.xlu0 %6928
        %6930 = vrot.lane.b32.xlu0 %v6897, 32
        %v6931 = vpop.permute.xlu0 %6930
        %6932 = vrot.lane.b32.xlu0 %v6899, 32
        %v6933 = vpop.permute.xlu0 %6932
        %6934 = vrot.lane.b32.xlu0 %v6901, 32
        %v6935 = vpop.permute.xlu0 %6934
        %6936 = vrot.lane.b32.xlu0 %v6903, 32
        %v6937 = vpop.permute.xlu0 %6936
        %6938 = vrot.lane.b32.xlu0 %v6905, 32
        %v6939 = vpop.permute.xlu0 %6938
        %6940 = vrot.lane.b32.xlu0 %v6907, 32
        %v6941 = vpop.permute.xlu0 %6940
        %6942 = vrot.lane.b32.xlu0 %v6909, 32
        %v6943 = vpop.permute.xlu0 %6942
        %6944 = vrot.lane.b32.xlu0 %v6911, 32
        %v6945 = vpop.permute.xlu0 %6944
        %6946 = vrot.lane.b32.xlu0 %v6913, 32
        %v6947 = vpop.permute.xlu0 %6946
        %v6981 = vunpack.c.l.b16 %v6079
        %v6982 = vunpack.c.l.b16 %v6080
        %v6983 = vunpack.c.l.b16 %v6081
        %v6984 = vunpack.c.l.b16 %v6082
        %v6985 = vunpack.c.l.b16 %v6083
        %v6986 = vunpack.c.l.b16 %v6084
        %v6987 = vunpack.c.l.b16 %v6085
        %v6988 = vunpack.c.l.b16 %v6086
        %v6989 = vunpack.c.l.b16 %v6087
        %v6990 = vunpack.c.l.b16 %v6088
        %v6991 = vunpack.c.l.b16 %v6089
        %v6992 = vunpack.c.l.b16 %v6090
        %v6993 = vunpack.c.l.b16 %v6091
        %v6994 = vunpack.c.l.b16 %v6092
        %v6995 = vunpack.c.l.b16 %v6093
        %v6996 = vunpack.c.l.b16 %v6094
        %v6997 = vunpack.c.l.b16 %v6095
        %v6998 = vunpack.c.l.b16 %v6096
        %v6999 = vunpack.c.l.b16 %v6097
        %v7000 = vunpack.c.l.b16 %v6098
        %v7001 = vunpack.c.l.b16 %v6099
        %v7002 = vunpack.c.l.b16 %v6100
        %v7003 = vunpack.c.l.b16 %v6101
        %v7004 = vunpack.c.l.b16 %v6102
        %v7005 = vunpack.c.l.b16 %v6103
        %v7006 = vunpack.c.l.b16 %v6104
        %v7007 = vunpack.c.l.b16 %v6105
        %v7008 = vunpack.c.l.b16 %v6106
        %v7009 = vunpack.c.l.b16 %v6107
        %v7010 = vunpack.c.l.b16 %v6108
        %v7011 = vunpack.c.l.b16 %v6109
        %v7012 = vunpack.c.l.b16 %v6110
        %v7013 = vunpack.c.l.b16 %v6111
        %v7014 = vpack.c.b16 %v6982, %v6981
        %v7015 = vpack.c.b16 %v6984, %v6983
        %v7016 = vpack.c.b16 %v6986, %v6985
        %v7017 = vpack.c.b16 %v6988, %v6987
        %v7018 = vpack.c.b16 %v6990, %v6989
        %v7019 = vpack.c.b16 %v6992, %v6991
        %v7020 = vpack.c.b16 %v6994, %v6993
        %v7021 = vpack.c.b16 %v6996, %v6995
        %v7022 = vpack.c.b16 %v6998, %v6997
        %v7023 = vpack.c.b16 %v7000, %v6999
        %v7024 = vpack.c.b16 %v7002, %v7001
        %v7025 = vpack.c.b16 %v7004, %v7003
        %v7026 = vpack.c.b16 %v7006, %v7005
        %v7027 = vpack.c.b16 %v7008, %v7007
        %v7028 = vpack.c.b16 %v7010, %v7009
        %v7029 = vpack.c.b16 %v7012, %v7011
        %v7030 = vpack.c.b16 %v7013, %v7013
        %7031 = vrot.lane.b32.xlu0 %v7014, 64
        %v7032 = vpop.permute.xlu0 %7031
        %7033 = vrot.lane.b32.xlu0 %v7015, 64
        %v7034 = vpop.permute.xlu0 %7033
        %7035 = vrot.lane.b32.xlu0 %v7016, 64
        %v7036 = vpop.permute.xlu0 %7035
        %7037 = vrot.lane.b32.xlu0 %v7017, 64
        %v7038 = vpop.permute.xlu0 %7037
        %7039 = vrot.lane.b32.xlu0 %v7018, 64
        %v7040 = vpop.permute.xlu0 %7039
        %7041 = vrot.lane.b32.xlu0 %v7019, 64
        %v7042 = vpop.permute.xlu0 %7041
        %7043 = vrot.lane.b32.xlu0 %v7020, 64
        %v7044 = vpop.permute.xlu0 %7043
        %7045 = vrot.lane.b32.xlu0 %v7021, 64
        %v7046 = vpop.permute.xlu0 %7045
        %7047 = vrot.lane.b32.xlu0 %v7022, 64
        %v7048 = vpop.permute.xlu0 %7047
        %7049 = vrot.lane.b32.xlu0 %v7023, 64
        %v7050 = vpop.permute.xlu0 %7049
        %7051 = vrot.lane.b32.xlu0 %v7024, 64
        %v7052 = vpop.permute.xlu0 %7051
        %7053 = vrot.lane.b32.xlu0 %v7025, 64
        %v7054 = vpop.permute.xlu0 %7053
        %7055 = vrot.lane.b32.xlu0 %v7026, 64
        %v7056 = vpop.permute.xlu0 %7055
        %7057 = vrot.lane.b32.xlu0 %v7027, 64
        %v7058 = vpop.permute.xlu0 %7057
        %7059 = vrot.lane.b32.xlu0 %v7028, 64
        %v7060 = vpop.permute.xlu0 %7059
        %7061 = vrot.lane.b32.xlu0 %v7029, 64
        %v7062 = vpop.permute.xlu0 %7061
        %7063 = vrot.lane.b32.xlu0 %v7030, 64
        %v7064 = vpop.permute.xlu0 %7063
        %v7071 = vunpack.c.l.b16 %v6073
        %v7072 = vunpack.c.l.b16 %v6074
        %v7073 = vunpack.c.l.b16 %v6075
        %v7074 = vunpack.c.l.b16 %v6076
        %v7075 = vunpack.c.l.b16 %v6077
        %v7076 = vunpack.c.l.b16 %v6112
        %v7077 = vpack.c.b16 %v7072, %v7071
        %v7078 = vpack.c.b16 %v7074, %v7073
        %v7079 = vpack.c.b16 %v7076, %v7075
        %v7081 = vshrl.u32 %v7077, 16
        %v7083 = vrot.slane %v7081, 5
        %v7084 = vshll.u32 %v7077, 16
        %v7086 = vrot.slane %v7084, 6
        %v7087 = vor.u32 %v7083, %v7086
        %v7088 = vsel %vm5057, %v6796, %v7087
        %v7090 = vshrl.u32 %v7078, 16
        %v7092 = vrot.slane %v7090, 5
        %v7093 = vshll.u32 %v7078, 16
        %v7095 = vrot.slane %v7093, 6
        %v7096 = vor.u32 %v7092, %v7095
        %v7097 = vsel %vm5057, %v7087, %v7096
        %v7099 = vshrl.u32 %v7079, 16
        %v7101 = vrot.slane %v7099, 5
        %v7102 = vshll.u32 %v7079, 16
        %v7104 = vrot.slane %v7102, 6
        %v7105 = vor.u32 %v7101, %v7104
        %v7106 = vsel %vm5057, %v7096, %v7105
        %7107 = vrot.lane.b32.xlu0 %v6371, 96
        %v7108 = vpop.permute.xlu0 %7107
        %7109 = vrot.lane.b32.xlu0 %v6381, 96
        %v7110 = vpop.permute.xlu0 %7109
        %7111 = vrot.lane.b32.xlu0 %v6390, 96
        %v7112 = vpop.permute.xlu0 %7111
        %7113 = vrot.lane.b32.xlu0 %v6399, 96
        %v7114 = vpop.permute.xlu0 %7113
        %7115 = vrot.lane.b32.xlu0 %v6408, 96
        %v7116 = vpop.permute.xlu0 %7115
        %7117 = vrot.lane.b32.xlu0 %v6417, 96
        %v7118 = vpop.permute.xlu0 %7117
        %7119 = vrot.lane.b32.xlu0 %v6426, 96
        %v7120 = vpop.permute.xlu0 %7119
        %7121 = vrot.lane.b32.xlu0 %v6435, 96
        %v7122 = vpop.permute.xlu0 %7121
        %7123 = vrot.lane.b32.xlu0 %v6444, 96
        %v7124 = vpop.permute.xlu0 %7123
        %7125 = vrot.lane.b32.xlu0 %v6453, 96
        %v7126 = vpop.permute.xlu0 %7125
        %7127 = vrot.lane.b32.xlu0 %v6779, 96
        %v7128 = vpop.permute.xlu0 %7127
        %7129 = vrot.lane.b32.xlu0 %v6788, 96
        %v7130 = vpop.permute.xlu0 %7129
        %7131 = vrot.lane.b32.xlu0 %v6797, 96
        %v7132 = vpop.permute.xlu0 %7131
        %7133 = vrot.lane.b32.xlu0 %v7088, 96
        %v7134 = vpop.permute.xlu0 %7133
        %7135 = vrot.lane.b32.xlu0 %v7097, 96
        %v7136 = vpop.permute.xlu0 %7135
        %7137 = vrot.lane.b32.xlu0 %v7106, 96
        %v7138 = vpop.permute.xlu0 %7137
        %7139 = vrot.lane.b32.xlu0 %v7105, 96
        %v7140 = vpop.permute.xlu0 %7139
        %v7174 = vunpack.c.l.b16 %v6115
        %v7175 = vunpack.c.l.b16 %v6116
        %v7176 = vunpack.c.l.b16 %v6117
        %v7177 = vunpack.c.l.b16 %v6118
        %v7178 = vunpack.c.l.b16 %v6119
        %v7179 = vunpack.c.l.b16 %v6120
        %v7180 = vunpack.c.l.b16 %v6121
        %v7181 = vunpack.c.l.b16 %v6122
        %v7182 = vunpack.c.l.b16 %v6123
        %v7183 = vunpack.c.l.b16 %v6124
        %v7184 = vunpack.c.l.b16 %v6125
        %v7185 = vunpack.c.l.b16 %v6126
        %v7186 = vunpack.c.l.b16 %v6127
        %v7187 = vunpack.c.l.b16 %v6128
        %v7188 = vunpack.c.l.b16 %v6129
        %v7189 = vunpack.c.l.b16 %v6130
        %v7190 = vunpack.c.l.b16 %v6131
        %v7191 = vunpack.c.l.b16 %v6132
        %v7192 = vunpack.c.l.b16 %v6133
        %v7193 = vunpack.c.l.b16 %v6134
        %v7194 = vunpack.c.l.b16 %v6135
        %v7195 = vunpack.c.l.b16 %v6136
        %v7196 = vunpack.c.l.b16 %v6137
        %v7197 = vunpack.c.l.b16 %v6138
        %v7198 = vunpack.c.l.b16 %v6139
        %v7199 = vunpack.c.l.b16 %v6140
        %v7200 = vunpack.c.l.b16 %v6141
        %v7201 = vunpack.c.l.b16 %v6142
        %v7202 = vunpack.c.l.b16 %v6143
        %v7203 = vunpack.c.l.b16 %v6144
        %v7204 = vunpack.c.l.b16 %v6145
        %v7205 = vunpack.c.l.b16 %v6146
        %v7206 = vunpack.c.l.b16 %v6147
        %v7207 = vpack.c.b16 %v7175, %v7174
        %v7208 = vpack.c.b16 %v7177, %v7176
        %v7209 = vpack.c.b16 %v7179, %v7178
        %v7210 = vpack.c.b16 %v7181, %v7180
        %v7211 = vpack.c.b16 %v7183, %v7182
        %v7212 = vpack.c.b16 %v7185, %v7184
        %v7213 = vpack.c.b16 %v7187, %v7186
        %v7214 = vpack.c.b16 %v7189, %v7188
        %v7215 = vpack.c.b16 %v7191, %v7190
        %v7216 = vpack.c.b16 %v7193, %v7192
        %v7217 = vpack.c.b16 %v7195, %v7194
        %v7218 = vpack.c.b16 %v7197, %v7196
        %v7219 = vpack.c.b16 %v7199, %v7198
        %v7220 = vpack.c.b16 %v7201, %v7200
        %v7221 = vpack.c.b16 %v7203, %v7202
        %v7222 = vpack.c.b16 %v7205, %v7204
        %v7223 = vpack.c.b16 %v7206, %v7206
        %v7224 = vrot.slane %v7207, 7
        %v7225 = vrot.slane %v7208, 7
        %v7226 = vsel %vm6571, %v7224, %v7225
        %v7227 = vrot.slane %v7209, 7
        %v7228 = vsel %vm6571, %v7225, %v7227
        %v7229 = vrot.slane %v7210, 7
        %v7230 = vsel %vm6571, %v7227, %v7229
        %v7231 = vrot.slane %v7211, 7
        %v7232 = vsel %vm6571, %v7229, %v7231
        %v7233 = vrot.slane %v7212, 7
        %v7234 = vsel %vm6571, %v7231, %v7233
        %v7235 = vrot.slane %v7213, 7
        %v7236 = vsel %vm6571, %v7233, %v7235
        %v7237 = vrot.slane %v7214, 7
        %v7238 = vsel %vm6571, %v7235, %v7237
        %v7239 = vrot.slane %v7215, 7
        %v7240 = vsel %vm6571, %v7237, %v7239
        %v7241 = vrot.slane %v7216, 7
        %v7242 = vsel %vm6571, %v7239, %v7241
        %v7243 = vrot.slane %v7217, 7
        %v7244 = vsel %vm6571, %v7241, %v7243
        %v7245 = vrot.slane %v7218, 7
        %v7246 = vsel %vm6571, %v7243, %v7245
        %v7247 = vrot.slane %v7219, 7
        %v7248 = vsel %vm6571, %v7245, %v7247
        %v7249 = vrot.slane %v7220, 7
        %v7250 = vsel %vm6571, %v7247, %v7249
        %v7251 = vrot.slane %v7221, 7
        %v7252 = vsel %vm6571, %v7249, %v7251
        %v7253 = vrot.slane %v7222, 7
        %v7254 = vsel %vm6571, %v7251, %v7253
        %v7255 = vrot.slane %v7223, 7
        %v7256 = vsel %vm6571, %v7253, %v7255
        %v7259 = vsel %vm1197, %v6214, %v6455
        %v7262 = vsel %vm1197, %v6215, %v6457
        %v7265 = vsel %vm1197, %v6216, %v6459
        %v7268 = vsel %vm1197, %v6217, %v6461
        %v7271 = vsel %vm1197, %v6218, %v6463
        %v7274 = vsel %vm1197, %v6219, %v6465
        %v7277 = vsel %vm1197, %v6220, %v6467
        %v7280 = vsel %vm1197, %v6221, %v6469
        %v7283 = vsel %vm1197, %v6222, %v6471
        %v7286 = vsel %vm1197, %v6223, %v6473
        %v7289 = vsel %vm1197, %v6224, %v6475
        %v7292 = vsel %vm1197, %v6225, %v6477
        %v7295 = vsel %vm1197, %v6226, %v6479
        %v7298 = vsel %vm1197, %v6227, %v6481
        %v7301 = vsel %vm1197, %v6228, %v6483
        %v7304 = vsel %vm1197, %v6229, %v6485
        %v7307 = vsel %vm1197, %v6230, %v6487
        %v7309 = vsel %vm1285, %v7259, %v6606
        %v7311 = vsel %vm1285, %v7262, %v6608
        %v7313 = vsel %vm1285, %v7265, %v6610
        %v7315 = vsel %vm1285, %v7268, %v6612
        %v7317 = vsel %vm1285, %v7271, %v6614
        %v7319 = vsel %vm1285, %v7274, %v6616
        %v7321 = vsel %vm1285, %v7277, %v6618
        %v7323 = vsel %vm1285, %v7280, %v6620
        %v7325 = vsel %vm1285, %v7283, %v6622
        %v7327 = vsel %vm1285, %v7286, %v6624
        %v7329 = vsel %vm1285, %v7289, %v6626
        %v7331 = vsel %vm1285, %v7292, %v6628
        %v7333 = vsel %vm1285, %v7295, %v6630
        %v7335 = vsel %vm1285, %v7298, %v6632
        %v7337 = vsel %vm1285, %v7301, %v6634
        %v7339 = vsel %vm1285, %v7304, %v6636
        %v7341 = vsel %vm1285, %v7307, %v6638
        %v7343 = vsel %vm3752, %v7309, %v6723
        %v7345 = vsel %vm3752, %v7311, %v6725
        %v7347 = vsel %vm3752, %v7313, %v6727
        %v7349 = vsel %vm3752, %v7315, %v6729
        %v7351 = vsel %vm3752, %v7317, %v6731
        %v7353 = vsel %vm3752, %v7319, %v6733
        %v7355 = vsel %vm3752, %v7321, %v6735
        %v7357 = vsel %vm3752, %v7323, %v6737
        %v7359 = vsel %vm3752, %v7325, %v6739
        %v7361 = vsel %vm3752, %v7327, %v6741
        %v7363 = vsel %vm3752, %v7329, %v6743
        %v7365 = vsel %vm3752, %v7331, %v6745
        %v7367 = vsel %vm3752, %v7333, %v6747
        %v7369 = vsel %vm3752, %v7335, %v6749
        %v7371 = vsel %vm3752, %v7337, %v6751
        %v7373 = vsel %vm3752, %v7339, %v6753
        %v7375 = vsel %vm3752, %v7341, %v6755
        %v7378 = vsel %vm1197, %v6344, %v6915
        %v7381 = vsel %vm1197, %v6354, %v6917
        %v7384 = vsel %vm1197, %v6363, %v6919
        %v7387 = vsel %vm1197, %v6372, %v6921
        %v7390 = vsel %vm1197, %v6381, %v6923
        %v7393 = vsel %vm1197, %v6390, %v6925
        %v7396 = vsel %vm1197, %v6399, %v6927
        %v7399 = vsel %vm1197, %v6408, %v6929
        %v7402 = vsel %vm1197, %v6417, %v6931
        %v7405 = vsel %vm1197, %v6426, %v6933
        %v7408 = vsel %vm1197, %v6435, %v6935
        %v7411 = vsel %vm1197, %v6444, %v6937
        %v7414 = vsel %vm1197, %v6453, %v6939
        %v7417 = vsel %vm1197, %v6779, %v6941
        %v7420 = vsel %vm1197, %v6788, %v6943
        %v7423 = vsel %vm1197, %v6797, %v6945
        %v7426 = vsel %vm1197, %v6796, %v6947
        %v7428 = vsel %vm1285, %v7378, %v7032
        %v7430 = vsel %vm1285, %v7381, %v7034
        %v7432 = vsel %vm1285, %v7384, %v7036
        %v7434 = vsel %vm1285, %v7387, %v7038
        %v7436 = vsel %vm1285, %v7390, %v7040
        %v7438 = vsel %vm1285, %v7393, %v7042
        %v7440 = vsel %vm1285, %v7396, %v7044
        %v7442 = vsel %vm1285, %v7399, %v7046
        %v7444 = vsel %vm1285, %v7402, %v7048
        %v7446 = vsel %vm1285, %v7405, %v7050
        %v7448 = vsel %vm1285, %v7408, %v7052
        %v7450 = vsel %vm1285, %v7411, %v7054
        %v7452 = vsel %vm1285, %v7414, %v7056
        %v7454 = vsel %vm1285, %v7417, %v7058
        %v7456 = vsel %vm1285, %v7420, %v7060
        %v7458 = vsel %vm1285, %v7423, %v7062
        %v7460 = vsel %vm1285, %v7426, %v7064
        %v7462 = vsel %vm3752, %v7428, %v7108
        %v7464 = vsel %vm3752, %v7430, %v7110
        %v7466 = vsel %vm3752, %v7432, %v7112
        %v7468 = vsel %vm3752, %v7434, %v7114
        %v7470 = vsel %vm3752, %v7436, %v7116
        %v7472 = vsel %vm3752, %v7438, %v7118
        %v7474 = vsel %vm3752, %v7440, %v7120
        %v7476 = vsel %vm3752, %v7442, %v7122
        %v7478 = vsel %vm3752, %v7444, %v7124
        %v7480 = vsel %vm3752, %v7446, %v7126
        %v7482 = vsel %vm3752, %v7448, %v7128
        %v7484 = vsel %vm3752, %v7450, %v7130
        %v7486 = vsel %vm3752, %v7452, %v7132
        %v7488 = vsel %vm3752, %v7454, %v7134
        %v7490 = vsel %vm3752, %v7456, %v7136
        %v7492 = vsel %vm3752, %v7458, %v7138
        %v7494 = vsel %vm3752, %v7460, %v7140
        %v7495 = vld [vmem:[%s11] sm:$0xf]
        %v7496 = vld [vmem:[%s11 + $0x4] sm:$0xf]
        %v7497 = vld [vmem:[%s11 + $0x8] sm:$0xf]
        %v7498 = vld [vmem:[%s11 + $0xc] sm:$0xf]
        %v7499 = vld [vmem:[%s11 + $0x10] sm:$0xf]
        %v7500 = vld [vmem:[%s11 + $0x14] sm:$0xf]
        %v7501 = vld [vmem:[%s11 + $0x18] sm:$0xf]
        %v7502 = vld [vmem:[%s11 + $0x1c] sm:$0xf]
        %v7503 = vld [vmem:[%s11 + $0x20] sm:$0xf]
        %v7504 = vld [vmem:[%s11 + $0x24] sm:$0xf]
        %v7505 = vld [vmem:[%s11 + $0x28] sm:$0xf]
        %v7506 = vld [vmem:[%s11 + $0x2c] sm:$0xf]
        %v7507 = vld [vmem:[%s11 + $0x30] sm:$0xf]
        %v7508 = vld [vmem:[%s11 + $0x34] sm:$0xf]
        %v7509 = vld [vmem:[%s11 + $0x38] sm:$0xf]
        %v7510 = vld [vmem:[%s11 + $0x3c] sm:$0xf]
        %v7511 = vld [vmem:[%s11 + $0x40] sm:$0xf]
        %v7512 = vld [vmem:[%s11 + $0x44] sm:$0xf]
        %v7513 = vld [vmem:[%s11 + $0x48] sm:$0xf]
        %v7514 = vld [vmem:[%s11 + $0x4c] sm:$0xf]
        %v7515 = vld [vmem:[%s11 + $0x50] sm:$0xf]
        %v7516 = vld [vmem:[%s11 + $0x54] sm:$0xf]
        %v7517 = vld [vmem:[%s11 + $0x58] sm:$0xf]
        %v7518 = vld [vmem:[%s11 + $0x5c] sm:$0xf]
        %v7519 = vld [vmem:[%s11 + $0x60] sm:$0xf]
        %v7520 = vld [vmem:[%s11 + $0x64] sm:$0xf]
        %v7521 = vld [vmem:[%s11 + $0x68] sm:$0xf]
        %v7522 = vld [vmem:[%s11 + $0x6c] sm:$0xf]
        %v7523 = vld [vmem:[%s11 + $0x70] sm:$0xf]
        %v7524 = vld [vmem:[%s11 + $0x74] sm:$0xf]
        %v7525 = vld [vmem:[%s11 + $0x78] sm:$0xf]
        %v7526 = vld [vmem:[%s11 + $0x7c] sm:$0xf]
        %v7527 = vld [vmem:[%s11 + $0x80] sm:$0xf]
        %v7528 = vld [vmem:[%s11 + $0x84] sm:$0xf]
        %v7529 = vld [vmem:[%s11 + $0x88] sm:$0xf]
        %v7530 = vld [vmem:[%s11 + $0x8c] sm:$0xf]
        %v7531 = vld [vmem:[%s12] sm:$0x1]
        %v7533 = vlaneseq
        %v7534 = vshrl.u32 %v7533, 7
        %v7535 = vsub.s32 0, %v7534
        %v7536 = vrot.slane %v7531, %v7535
        %vm7538 = vsmask.f32 5376
        %v7539 = vshrl.u32 %v7343, 16
        %v7541 = vrot.slane %v7539, 2
        %v7542 = vshll.u32 %v7343, 16
        %v7544 = vrot.slane %v7542, 3
        %v7545 = vor.u32 %v7541, %v7544
        %v7546 = vshrl.u32 %v7345, 16
        %v7548 = vrot.slane %v7546, 2
        %v7549 = vshll.u32 %v7345, 16
        %v7551 = vrot.slane %v7549, 3
        %v7552 = vor.u32 %v7548, %v7551
        %v7553 = vsel %vm7538, %v7545, %v7552
        %v7554 = vshrl.u32 %v7462, 16
        %v7556 = vrot.slane %v7554, 2
        %v7557 = vshll.u32 %v7462, 16
        %v7559 = vrot.slane %v7557, 3
        %v7560 = vor.u32 %v7556, %v7559
        %v7561 = vshrl.u32 %v7464, 16
        %v7563 = vrot.slane %v7561, 2
        %v7564 = vshll.u32 %v7464, 16
        %v7566 = vrot.slane %v7564, 3
        %v7567 = vor.u32 %v7563, %v7566
        %v7568 = vsel %vm7538, %v7560, %v7567
        %v7570 = vshrl.u32 %v7224, 16
        %v7572 = vrot.slane %v7570, 2
        %v7573 = vshll.u32 %v7224, 16
        %v7575 = vrot.slane %v7573, 3
        %v7576 = vor.u32 %v7572, %v7575
        %v7578 = vshrl.u32 %v7226, 16
        %v7580 = vrot.slane %v7578, 2
        %v7581 = vshll.u32 %v7226, 16
        %v7583 = vrot.slane %v7581, 3
        %v7584 = vor.u32 %v7580, %v7583
        %v7585 = vsel %vm7538, %v7576, %v7584
        %v7586 = vshrl.u32 %v7347, 16
        %v7588 = vrot.slane %v7586, 2
        %v7589 = vshll.u32 %v7347, 16
        %v7591 = vrot.slane %v7589, 3
        %v7592 = vor.u32 %v7588, %v7591
        %v7593 = vsel %vm7538, %v7552, %v7592
        %v7594 = vshrl.u32 %v7466, 16
        %v7596 = vrot.slane %v7594, 2
        %v7597 = vshll.u32 %v7466, 16
        %v7599 = vrot.slane %v7597, 3
        %v7600 = vor.u32 %v7596, %v7599
        %v7601 = vsel %vm7538, %v7567, %v7600
        %v7603 = vshrl.u32 %v7228, 16
        %v7605 = vrot.slane %v7603, 2
        %v7606 = vshll.u32 %v7228, 16
        %v7608 = vrot.slane %v7606, 3
        %v7609 = vor.u32 %v7605, %v7608
        %v7610 = vsel %vm7538, %v7584, %v7609
        %v7611 = vshrl.u32 %v7349, 16
        %v7613 = vrot.slane %v7611, 2
        %v7614 = vshll.u32 %v7349, 16
        %v7616 = vrot.slane %v7614, 3
        %v7617 = vor.u32 %v7613, %v7616
        %v7618 = vsel %vm7538, %v7592, %v7617
        %v7619 = vshrl.u32 %v7468, 16
        %v7621 = vrot.slane %v7619, 2
        %v7622 = vshll.u32 %v7468, 16
        %v7624 = vrot.slane %v7622, 3
        %v7625 = vor.u32 %v7621, %v7624
        %v7626 = vsel %vm7538, %v7600, %v7625
        %v7628 = vshrl.u32 %v7230, 16
        %v7630 = vrot.slane %v7628, 2
        %v7631 = vshll.u32 %v7230, 16
        %v7633 = vrot.slane %v7631, 3
        %v7634 = vor.u32 %v7630, %v7633
        %v7635 = vsel %vm7538, %v7609, %v7634
        %v7636 = vshrl.u32 %v7351, 16
        %v7638 = vrot.slane %v7636, 2
        %v7639 = vshll.u32 %v7351, 16
        %v7641 = vrot.slane %v7639, 3
        %v7642 = vor.u32 %v7638, %v7641
        %v7643 = vsel %vm7538, %v7617, %v7642
        %v7644 = vshrl.u32 %v7470, 16
        %v7646 = vrot.slane %v7644, 2
        %v7647 = vshll.u32 %v7470, 16
        %v7649 = vrot.slane %v7647, 3
        %v7650 = vor.u32 %v7646, %v7649
        %v7651 = vsel %vm7538, %v7625, %v7650
        %v7653 = vshrl.u32 %v7232, 16
        %v7655 = vrot.slane %v7653, 2
        %v7656 = vshll.u32 %v7232, 16
        %v7658 = vrot.slane %v7656, 3
        %v7659 = vor.u32 %v7655, %v7658
        %v7660 = vsel %vm7538, %v7634, %v7659
        %v7661 = vshrl.u32 %v7353, 16
        %v7663 = vrot.slane %v7661, 2
        %v7664 = vshll.u32 %v7353, 16
        %v7666 = vrot.slane %v7664, 3
        %v7667 = vor.u32 %v7663, %v7666
        %v7668 = vsel %vm7538, %v7642, %v7667
        %v7669 = vshrl.u32 %v7472, 16
        %v7671 = vrot.slane %v7669, 2
        %v7672 = vshll.u32 %v7472, 16
        %v7674 = vrot.slane %v7672, 3
        %v7675 = vor.u32 %v7671, %v7674
        %v7676 = vsel %vm7538, %v7650, %v7675
        %v7678 = vshrl.u32 %v7234, 16
        %v7680 = vrot.slane %v7678, 2
        %v7681 = vshll.u32 %v7234, 16
        %v7683 = vrot.slane %v7681, 3
        %v7684 = vor.u32 %v7680, %v7683
        %v7685 = vsel %vm7538, %v7659, %v7684
        %v7686 = vshrl.u32 %v7355, 16
        %v7688 = vrot.slane %v7686, 2
        %v7689 = vshll.u32 %v7355, 16
        %v7691 = vrot.slane %v7689, 3
        %v7692 = vor.u32 %v7688, %v7691
        %v7693 = vsel %vm7538, %v7667, %v7692
        %v7694 = vshrl.u32 %v7474, 16
        %v7696 = vrot.slane %v7694, 2
        %v7697 = vshll.u32 %v7474, 16
        %v7699 = vrot.slane %v7697, 3
        %v7700 = vor.u32 %v7696, %v7699
        %v7701 = vsel %vm7538, %v7675, %v7700
        %v7703 = vshrl.u32 %v7236, 16
        %v7705 = vrot.slane %v7703, 2
        %v7706 = vshll.u32 %v7236, 16
        %v7708 = vrot.slane %v7706, 3
        %v7709 = vor.u32 %v7705, %v7708
        %v7710 = vsel %vm7538, %v7684, %v7709
        %v7711 = vshrl.u32 %v7357, 16
        %v7713 = vrot.slane %v7711, 2
        %v7714 = vshll.u32 %v7357, 16
        %v7716 = vrot.slane %v7714, 3
        %v7717 = vor.u32 %v7713, %v7716
        %v7718 = vsel %vm7538, %v7692, %v7717
        %v7719 = vshrl.u32 %v7476, 16
        %v7721 = vrot.slane %v7719, 2
        %v7722 = vshll.u32 %v7476, 16
        %v7724 = vrot.slane %v7722, 3
        %v7725 = vor.u32 %v7721, %v7724
        %v7726 = vsel %vm7538, %v7700, %v7725
        %v7728 = vshrl.u32 %v7238, 16
        %v7730 = vrot.slane %v7728, 2
        %v7731 = vshll.u32 %v7238, 16
        %v7733 = vrot.slane %v7731, 3
        %v7734 = vor.u32 %v7730, %v7733
        %v7735 = vsel %vm7538, %v7709, %v7734
        %v7736 = vshrl.u32 %v7359, 16
        %v7738 = vrot.slane %v7736, 2
        %v7739 = vshll.u32 %v7359, 16
        %v7741 = vrot.slane %v7739, 3
        %v7742 = vor.u32 %v7738, %v7741
        %v7743 = vsel %vm7538, %v7717, %v7742
        %v7744 = vshrl.u32 %v7478, 16
        %v7746 = vrot.slane %v7744, 2
        %v7747 = vshll.u32 %v7478, 16
        %v7749 = vrot.slane %v7747, 3
        %v7750 = vor.u32 %v7746, %v7749
        %v7751 = vsel %vm7538, %v7725, %v7750
        %v7753 = vshrl.u32 %v7240, 16
        %v7755 = vrot.slane %v7753, 2
        %v7756 = vshll.u32 %v7240, 16
        %v7758 = vrot.slane %v7756, 3
        %v7759 = vor.u32 %v7755, %v7758
        %v7760 = vsel %vm7538, %v7734, %v7759
        %v7761 = vshrl.u32 %v7361, 16
        %v7763 = vrot.slane %v7761, 2
        %v7764 = vshll.u32 %v7361, 16
        %v7766 = vrot.slane %v7764, 3
        %v7767 = vor.u32 %v7763, %v7766
        %v7768 = vsel %vm7538, %v7742, %v7767
        %v7769 = vshrl.u32 %v7480, 16
        %v7771 = vrot.slane %v7769, 2
        %v7772 = vshll.u32 %v7480, 16
        %v7774 = vrot.slane %v7772, 3
        %v7775 = vor.u32 %v7771, %v7774
        %v7776 = vsel %vm7538, %v7750, %v7775
        %v7778 = vshrl.u32 %v7242, 16
        %v7780 = vrot.slane %v7778, 2
        %v7781 = vshll.u32 %v7242, 16
        %v7783 = vrot.slane %v7781, 3
        %v7784 = vor.u32 %v7780, %v7783
        %v7785 = vsel %vm7538, %v7759, %v7784
        %v7786 = vshrl.u32 %v7363, 16
        %v7788 = vrot.slane %v7786, 2
        %v7789 = vshll.u32 %v7363, 16
        %v7791 = vrot.slane %v7789, 3
        %v7792 = vor.u32 %v7788, %v7791
        %v7793 = vsel %vm7538, %v7767, %v7792
        %v7794 = vshrl.u32 %v7482, 16
        %v7796 = vrot.slane %v7794, 2
        %v7797 = vshll.u32 %v7482, 16
        %v7799 = vrot.slane %v7797, 3
        %v7800 = vor.u32 %v7796, %v7799
        %v7801 = vsel %vm7538, %v7775, %v7800
        %v7803 = vshrl.u32 %v7244, 16
        %v7805 = vrot.slane %v7803, 2
        %v7806 = vshll.u32 %v7244, 16
        %v7808 = vrot.slane %v7806, 3
        %v7809 = vor.u32 %v7805, %v7808
        %v7810 = vsel %vm7538, %v7784, %v7809
        %v7811 = vshrl.u32 %v7365, 16
        %v7813 = vrot.slane %v7811, 2
        %v7814 = vshll.u32 %v7365, 16
        %v7816 = vrot.slane %v7814, 3
        %v7817 = vor.u32 %v7813, %v7816
        %v7818 = vsel %vm7538, %v7792, %v7817
        %v7819 = vshrl.u32 %v7484, 16
        %v7821 = vrot.slane %v7819, 2
        %v7822 = vshll.u32 %v7484, 16
        %v7824 = vrot.slane %v7822, 3
        %v7825 = vor.u32 %v7821, %v7824
        %v7826 = vsel %vm7538, %v7800, %v7825
        %v7828 = vshrl.u32 %v7246, 16
        %v7830 = vrot.slane %v7828, 2
        %v7831 = vshll.u32 %v7246, 16
        %v7833 = vrot.slane %v7831, 3
        %v7834 = vor.u32 %v7830, %v7833
        %v7835 = vsel %vm7538, %v7809, %v7834
        %v7836 = vshrl.u32 %v7367, 16
        %v7838 = vrot.slane %v7836, 2
        %v7839 = vshll.u32 %v7367, 16
        %v7841 = vrot.slane %v7839, 3
        %v7842 = vor.u32 %v7838, %v7841
        %v7843 = vsel %vm7538, %v7817, %v7842
        %v7844 = vshrl.u32 %v7486, 16
        %v7846 = vrot.slane %v7844, 2
        %v7847 = vshll.u32 %v7486, 16
        %v7849 = vrot.slane %v7847, 3
        %v7850 = vor.u32 %v7846, %v7849
        %v7851 = vsel %vm7538, %v7825, %v7850
        %v7853 = vshrl.u32 %v7248, 16
        %v7855 = vrot.slane %v7853, 2
        %v7856 = vshll.u32 %v7248, 16
        %v7858 = vrot.slane %v7856, 3
        %v7859 = vor.u32 %v7855, %v7858
        %v7860 = vsel %vm7538, %v7834, %v7859
        %v7861 = vshrl.u32 %v7369, 16
        %v7863 = vrot.slane %v7861, 2
        %v7864 = vshll.u32 %v7369, 16
        %v7866 = vrot.slane %v7864, 3
        %v7867 = vor.u32 %v7863, %v7866
        %v7868 = vsel %vm7538, %v7842, %v7867
        %v7869 = vshrl.u32 %v7488, 16
        %v7871 = vrot.slane %v7869, 2
        %v7872 = vshll.u32 %v7488, 16
        %v7874 = vrot.slane %v7872, 3
        %v7875 = vor.u32 %v7871, %v7874
        %v7876 = vsel %vm7538, %v7850, %v7875
        %v7878 = vshrl.u32 %v7250, 16
        %v7880 = vrot.slane %v7878, 2
        %v7881 = vshll.u32 %v7250, 16
        %v7883 = vrot.slane %v7881, 3
        %v7884 = vor.u32 %v7880, %v7883
        %v7885 = vsel %vm7538, %v7859, %v7884
        %v7886 = vshrl.u32 %v7371, 16
        %v7888 = vrot.slane %v7886, 2
        %v7889 = vshll.u32 %v7371, 16
        %v7891 = vrot.slane %v7889, 3
        %v7892 = vor.u32 %v7888, %v7891
        %v7893 = vsel %vm7538, %v7867, %v7892
        %v7894 = vshrl.u32 %v7490, 16
        %v7896 = vrot.slane %v7894, 2
        %v7897 = vshll.u32 %v7490, 16
        %v7899 = vrot.slane %v7897, 3
        %v7900 = vor.u32 %v7896, %v7899
        %v7901 = vsel %vm7538, %v7875, %v7900
        %v7903 = vshrl.u32 %v7252, 16
        %v7905 = vrot.slane %v7903, 2
        %v7906 = vshll.u32 %v7252, 16
        %v7908 = vrot.slane %v7906, 3
        %v7909 = vor.u32 %v7905, %v7908
        %v7910 = vsel %vm7538, %v7884, %v7909
        %v7911 = vshrl.u32 %v7373, 16
        %v7913 = vrot.slane %v7911, 2
        %v7914 = vshll.u32 %v7373, 16
        %v7916 = vrot.slane %v7914, 3
        %v7917 = vor.u32 %v7913, %v7916
        %v7918 = vsel %vm7538, %v7892, %v7917
        %v7919 = vshrl.u32 %v7492, 16
        %v7921 = vrot.slane %v7919, 2
        %v7922 = vshll.u32 %v7492, 16
        %v7924 = vrot.slane %v7922, 3
        %v7925 = vor.u32 %v7921, %v7924
        %v7926 = vsel %vm7538, %v7900, %v7925
        %v7928 = vshrl.u32 %v7254, 16
        %v7930 = vrot.slane %v7928, 2
        %v7931 = vshll.u32 %v7254, 16
        %v7933 = vrot.slane %v7931, 3
        %v7934 = vor.u32 %v7930, %v7933
        %v7935 = vsel %vm7538, %v7909, %v7934
        %v7936 = vshrl.u32 %v7375, 16
        %v7938 = vrot.slane %v7936, 2
        %v7939 = vshll.u32 %v7375, 16
        %v7941 = vrot.slane %v7939, 3
        %v7942 = vor.u32 %v7938, %v7941
        %v7943 = vsel %vm7538, %v7917, %v7942
        %v7944 = vshrl.u32 %v7494, 16
        %v7946 = vrot.slane %v7944, 2
        %v7947 = vshll.u32 %v7494, 16
        %v7949 = vrot.slane %v7947, 3
        %v7950 = vor.u32 %v7946, %v7949
        %v7951 = vsel %vm7538, %v7925, %v7950
        %v7953 = vshrl.u32 %v7256, 16
        %v7955 = vrot.slane %v7953, 2
        %v7956 = vshll.u32 %v7256, 16
        %v7958 = vrot.slane %v7956, 3
        %v7959 = vor.u32 %v7955, %v7958
        %v7960 = vsel %vm7538, %v7934, %v7959
        %v8029 = vunpack.c.l.b16 %v7495
        %v8030 = vunpack.c.l.b16 %v7496
        %v8031 = vunpack.c.l.b16 %v7497
        %v8032 = vunpack.c.l.b16 %v7498
        %v8033 = vunpack.c.l.b16 %v7499
        %v8034 = vunpack.c.l.b16 %v7500
        %v8035 = vunpack.c.l.b16 %v7501
        %v8036 = vunpack.c.l.b16 %v7502
        %v8037 = vunpack.c.l.b16 %v7503
        %v8038 = vunpack.c.l.b16 %v7504
        %v8039 = vunpack.c.l.b16 %v7505
        %v8040 = vunpack.c.l.b16 %v7506
        %v8041 = vunpack.c.l.b16 %v7507
        %v8042 = vunpack.c.l.b16 %v7508
        %v8043 = vunpack.c.l.b16 %v7509
        %v8044 = vunpack.c.l.b16 %v7510
        %v8045 = vunpack.c.l.b16 %v7511
        %v8046 = vunpack.c.l.b16 %v7512
        %v8047 = vunpack.c.l.b16 %v7513
        %v8048 = vunpack.c.l.b16 %v7514
        %v8049 = vunpack.c.l.b16 %v7515
        %v8050 = vunpack.c.l.b16 %v7516
        %v8051 = vunpack.c.l.b16 %v7517
        %v8052 = vunpack.c.l.b16 %v7518
        %v8053 = vunpack.c.l.b16 %v7519
        %v8054 = vunpack.c.l.b16 %v7520
        %v8055 = vunpack.c.l.b16 %v7521
        %v8056 = vunpack.c.l.b16 %v7522
        %v8057 = vunpack.c.l.b16 %v7523
        %v8058 = vunpack.c.l.b16 %v7524
        %v8059 = vunpack.c.l.b16 %v7525
        %v8060 = vunpack.c.l.b16 %v7526
        %v8061 = vunpack.c.l.b16 %v7527
        %v8062 = vunpack.c.l.b16 %v7528
        %v8063 = vunpack.c.l.b16 %v7529
        %v8064 = vunpack.c.l.b16 %v7530
        %v8065 = vpack.c.b16 %v8030, %v8029
        %v8066 = vpack.c.b16 %v8032, %v8031
        %v8067 = vpack.c.b16 %v8034, %v8033
        %v8068 = vpack.c.b16 %v8036, %v8035
        %v8069 = vpack.c.b16 %v8038, %v8037
        %v8070 = vpack.c.b16 %v8040, %v8039
        %v8071 = vpack.c.b16 %v8042, %v8041
        %v8072 = vpack.c.b16 %v8044, %v8043
        %v8073 = vpack.c.b16 %v8046, %v8045
        %v8074 = vpack.c.b16 %v8048, %v8047
        %v8075 = vpack.c.b16 %v8050, %v8049
        %v8076 = vpack.c.b16 %v8052, %v8051
        %v8077 = vpack.c.b16 %v8054, %v8053
        %v8078 = vpack.c.b16 %v8056, %v8055
        %v8079 = vpack.c.b16 %v8058, %v8057
        %v8080 = vpack.c.b16 %v8060, %v8059
        %v8081 = vpack.c.b16 %v8062, %v8061
        %v8082 = vpack.c.b16 %v8064, %v8063
        %v8102 = vsel %vm1197, %v7585, 0
        %v8105 = vsel %vm1197, %v7610, 0
        %v8108 = vsel %vm1197, %v7635, 0
        %v8111 = vsel %vm1197, %v7660, 0
        %v8114 = vsel %vm1197, %v7685, 0
        %v8117 = vsel %vm1197, %v7710, 0
        %v8120 = vsel %vm1197, %v7735, 0
        %v8123 = vsel %vm1197, %v7760, 0
        %v8126 = vsel %vm1197, %v7785, 0
        %v8129 = vsel %vm1197, %v7810, 0
        %v8132 = vsel %vm1197, %v7835, 0
        %v8135 = vsel %vm1197, %v7860, 0
        %v8138 = vsel %vm1197, %v7885, 0
        %v8141 = vsel %vm1197, %v7910, 0
        %v8144 = vsel %vm1197, %v7935, 0
        %v8147 = vsel %vm1197, %v7960, 0
        %8149 = vmatprep.subr.bf16.mxu0 0
        %8150 = vmatpush1.bf16.msra.mxu0 %v8072
        %8151 = vmatprep.subr.bf16.mxu0 0
        %8152 = vmatpush1.bf16.msra.mxu0 %v8071
        %8153 = vmatprep.subr.bf16.mxu0 0
        %8154 = vmatpush1.bf16.msra.mxu0 %v8070
        %8155 = vmatprep.subr.bf16.mxu0 0
        %8156 = vmatpush1.bf16.msra.mxu0 %v8069
        %8157 = vmatprep.subr.bf16.mxu0 0
        %8158 = vmatpush1.bf16.msra.mxu0 %v8068
        %8159 = vmatprep.subr.bf16.mxu0 0
        %8160 = vmatpush1.bf16.msra.mxu0 %v8067
        %8161 = vmatprep.subr.bf16.mxu0 0
        %8162 = vmatpush1.bf16.msra.mxu0 %v8066
        %8163 = vmatprep.subr.bf16.mxu0 0
        %8164 = vmatpush1.bf16.msra.mxu0 %v8065
        %8165 = vmatprep.subr.bf16.mxu0 0
        %8166 = vmatpush2.bf16.msra.mxu0 %v8080
        %8167 = vmatprep.subr.bf16.mxu0 0
        %8168 = vmatpush2.bf16.msra.mxu0 %v8079
        %8169 = vmatprep.subr.bf16.mxu0 0
        %8170 = vmatpush2.bf16.msra.mxu0 %v8078
        %8171 = vmatprep.subr.bf16.mxu0 0
        %8172 = vmatpush2.bf16.msra.mxu0 %v8077
        %8173 = vmatprep.subr.bf16.mxu0 0
        %8174 = vmatpush2.bf16.msra.mxu0 %v8076
        %8175 = vmatprep.subr.bf16.mxu0 0
        %8176 = vmatpush2.bf16.msra.mxu0 %v8075
        %8177 = vmatprep.subr.bf16.mxu0 0
        %8178 = vmatpush2.bf16.msra.mxu0 %v8074
        %8179 = vmatprep.subr.bf16.mxu0 0
        %8180 = vmatpush2.bf16.msra.mxu0 %v8073
        %8181 = vmatprep.mubr.bf16.mxu0 %v7568
        %8182 = vmatmul.mubr.bf16.gmra.mxu0 %v7553
        %v8183 = vpop.f32.mrf.mxu0
        %v8184 = vadd.f32 %v7536, %v8183
        %v8185 = vpop.f32.mrf.mxu0
        %v8186 = vpop.f32.mrf.mxu0
        %v8187 = vadd.f32 %v7536, %v8186
        %v8188 = vpop.f32.mrf.mxu0
        %8189 = vmatprep.mubr.bf16.mxu0 %v7601
        %8190 = vmatmul.mubr.bf16.gmra.mxu0 %v7593
        %v8191 = vpop.f32.mrf.mxu0
        %v8192 = vadd.f32 %v7536, %v8191
        %v8193 = vpop.f32.mrf.mxu0
        %v8194 = vpop.f32.mrf.mxu0
        %v8195 = vadd.f32 %v7536, %v8194
        %v8196 = vpop.f32.mrf.mxu0
        %8197 = vmatprep.mubr.bf16.mxu0 %v7626
        %8198 = vmatmul.mubr.bf16.gmra.mxu0 %v7618
        %v8199 = vpop.f32.mrf.mxu0
        %v8200 = vadd.f32 %v7536, %v8199
        %v8201 = vpop.f32.mrf.mxu0
        %v8202 = vpop.f32.mrf.mxu0
        %v8203 = vadd.f32 %v7536, %v8202
        %v8204 = vpop.f32.mrf.mxu0
        %8205 = vmatprep.mubr.bf16.mxu0 %v7651
        %8206 = vmatmul.mubr.bf16.gmra.mxu0 %v7643
        %v8207 = vpop.f32.mrf.mxu0
        %v8208 = vadd.f32 %v7536, %v8207
        %v8209 = vpop.f32.mrf.mxu0
        %v8210 = vpop.f32.mrf.mxu0
        %v8211 = vadd.f32 %v7536, %v8210
        %v8212 = vpop.f32.mrf.mxu0
        %8213 = vmatprep.mubr.bf16.mxu0 %v7676
        %8214 = vmatmul.mubr.bf16.gmra.mxu0 %v7668
        %v8215 = vpop.f32.mrf.mxu0
        %v8216 = vadd.f32 %v7536, %v8215
        %v8217 = vpop.f32.mrf.mxu0
        %v8218 = vpop.f32.mrf.mxu0
        %v8219 = vadd.f32 %v7536, %v8218
        %v8220 = vpop.f32.mrf.mxu0
        %8221 = vmatprep.mubr.bf16.mxu0 %v7701
        %8222 = vmatmul.mubr.bf16.gmra.mxu0 %v7693
        %v8223 = vpop.f32.mrf.mxu0
        %v8224 = vadd.f32 %v7536, %v8223
        %v8225 = vpop.f32.mrf.mxu0
        %v8226 = vpop.f32.mrf.mxu0
        %v8227 = vadd.f32 %v7536, %v8226
        %v8228 = vpop.f32.mrf.mxu0
        %8229 = vmatprep.mubr.bf16.mxu0 %v7726
        %8230 = vmatmul.mubr.bf16.gmra.mxu0 %v7718
        %v8231 = vpop.f32.mrf.mxu0
        %v8232 = vadd.f32 %v7536, %v8231
        %v8233 = vpop.f32.mrf.mxu0
        %v8234 = vpop.f32.mrf.mxu0
        %v8235 = vadd.f32 %v7536, %v8234
        %v8236 = vpop.f32.mrf.mxu0
        %8237 = vmatprep.mubr.bf16.mxu0 %v7751
        %8238 = vmatmul.mubr.bf16.gmra.mxu0 %v7743
        %v8239 = vpop.f32.mrf.mxu0
        %v8240 = vadd.f32 %v7536, %v8239
        %v8241 = vpop.f32.mrf.mxu0
        %v8242 = vpop.f32.mrf.mxu0
        %v8243 = vadd.f32 %v7536, %v8242
        %v8244 = vpop.f32.mrf.mxu0
        %8245 = vmatprep.mubr.bf16.mxu0 %v7776
        %8246 = vmatmul.mubr.bf16.gmra.mxu0 %v7768
        %v8247 = vpop.f32.mrf.mxu0
        %v8248 = vadd.f32 %v7536, %v8247
        %v8249 = vpop.f32.mrf.mxu0
        %v8250 = vpop.f32.mrf.mxu0
        %v8251 = vadd.f32 %v7536, %v8250
        %v8252 = vpop.f32.mrf.mxu0
        %8253 = vmatprep.mubr.bf16.mxu0 %v7801
        %8254 = vmatmul.mubr.bf16.gmra.mxu0 %v7793
        %v8255 = vpop.f32.mrf.mxu0
        %v8256 = vadd.f32 %v7536, %v8255
        %v8257 = vpop.f32.mrf.mxu0
        %v8258 = vpop.f32.mrf.mxu0
        %v8259 = vadd.f32 %v7536, %v8258
        %v8260 = vpop.f32.mrf.mxu0
        %8261 = vmatprep.mubr.bf16.mxu0 %v7826
        %8262 = vmatmul.mubr.bf16.gmra.mxu0 %v7818
        %v8263 = vpop.f32.mrf.mxu0
        %v8264 = vadd.f32 %v7536, %v8263
        %v8265 = vpop.f32.mrf.mxu0
        %v8266 = vpop.f32.mrf.mxu0
        %v8267 = vadd.f32 %v7536, %v8266
        %v8268 = vpop.f32.mrf.mxu0
        %8269 = vmatprep.mubr.bf16.mxu0 %v7851
        %8270 = vmatmul.mubr.bf16.gmra.mxu0 %v7843
        %v8271 = vpop.f32.mrf.mxu0
        %v8272 = vadd.f32 %v7536, %v8271
        %v8273 = vpop.f32.mrf.mxu0
        %v8274 = vpop.f32.mrf.mxu0
        %v8275 = vadd.f32 %v7536, %v8274
        %v8276 = vpop.f32.mrf.mxu0
        %8277 = vmatprep.mubr.bf16.mxu0 %v7876
        %8278 = vmatmul.mubr.bf16.gmra.mxu0 %v7868
        %v8279 = vpop.f32.mrf.mxu0
        %v8280 = vadd.f32 %v7536, %v8279
        %v8281 = vpop.f32.mrf.mxu0
        %v8282 = vpop.f32.mrf.mxu0
        %v8283 = vadd.f32 %v7536, %v8282
        %v8284 = vpop.f32.mrf.mxu0
        %8285 = vmatprep.mubr.bf16.mxu0 %v7901
        %8286 = vmatmul.mubr.bf16.gmra.mxu0 %v7893
        %v8287 = vpop.f32.mrf.mxu0
        %v8288 = vadd.f32 %v7536, %v8287
        %v8289 = vpop.f32.mrf.mxu0
        %v8290 = vpop.f32.mrf.mxu0
        %v8291 = vadd.f32 %v7536, %v8290
        %v8292 = vpop.f32.mrf.mxu0
        %8293 = vmatprep.mubr.bf16.mxu0 %v7926
        %8294 = vmatmul.mubr.bf16.gmra.mxu0 %v7918
        %v8295 = vpop.f32.mrf.mxu0
        %v8296 = vadd.f32 %v7536, %v8295
        %v8297 = vpop.f32.mrf.mxu0
        %v8298 = vpop.f32.mrf.mxu0
        %v8299 = vadd.f32 %v7536, %v8298
        %v8300 = vpop.f32.mrf.mxu0
        %8301 = vmatprep.mubr.bf16.mxu0 %v7951
        %8302 = vmatmul.mubr.bf16.gmra.mxu0 %v7943
        %v8303 = vpop.f32.mrf.mxu0
        %v8304 = vadd.f32 %v7536, %v8303
        %v8305 = vpop.f32.mrf.mxu0
        %v8306 = vpop.f32.mrf.mxu0
        %v8307 = vadd.f32 %v7536, %v8306
        %v8308 = vpop.f32.mrf.mxu0
        %8309 = vdwg.mxu0
        %8310 = vmatprep.subr.bf16.mxu0 0
        %8311 = vmatpush1.bf16.msra.mxu0 0
        %8312 = vmatprep.subr.bf16.mxu0 0
        %8313 = vmatpush1.bf16.msra.mxu0 0
        %8314 = vmatprep.subr.bf16.mxu0 0
        %8315 = vmatpush1.bf16.msra.mxu0 0
        %8316 = vmatprep.subr.bf16.mxu0 0
        %8317 = vmatpush1.bf16.msra.mxu0 0
        %8318 = vmatprep.subr.bf16.mxu0 0
        %8319 = vmatpush1.bf16.msra.mxu0 0
        %8320 = vmatprep.subr.bf16.mxu0 0
        %8321 = vmatpush1.bf16.msra.mxu0 0
        %8322 = vmatprep.subr.bf16.mxu0 0
        %8323 = vmatpush1.bf16.msra.mxu0 %v8082
        %8324 = vmatprep.subr.bf16.mxu0 0
        %8325 = vmatpush1.bf16.msra.mxu0 %v8081
        %8326 = vmatprep.subr.bf16.mxu0 0
        %8327 = vmatpush2.bf16.msra.mxu0 0
        %8328 = vmatprep.subr.bf16.mxu0 0
        %8329 = vmatpush2.bf16.msra.mxu0 0
        %8330 = vmatprep.subr.bf16.mxu0 0
        %8331 = vmatpush2.bf16.msra.mxu0 0
        %8332 = vmatprep.subr.bf16.mxu0 0
        %8333 = vmatpush2.bf16.msra.mxu0 0
        %8334 = vmatprep.subr.bf16.mxu0 0
        %8335 = vmatpush2.bf16.msra.mxu0 0
        %8336 = vmatprep.subr.bf16.mxu0 0
        %8337 = vmatpush2.bf16.msra.mxu0 0
        %8338 = vmatprep.subr.bf16.mxu0 0
        %8339 = vmatpush2.bf16.msra.mxu0 0
        %8340 = vmatprep.subr.bf16.mxu0 0
        %8341 = vmatpush2.bf16.msra.mxu0 0
        %8342 = vmatprep.mubr.bf16.mxu0 0
        %8343 = vmatmul.mubr.bf16.gmra.mxu0 %v8102
        %v8344 = vpop.f32.mrf.mxu0
        %v8345 = vadd.f32 %v8184, %v8344
        %v8346 = vpop.f32.mrf.mxu0
        %v8347 = vpop.f32.mrf.mxu0
        %v8348 = vadd.f32 %v8187, %v8347
        %v8349 = vpop.f32.mrf.mxu0
        %8350 = vmatprep.mubr.bf16.mxu0 0
        %8351 = vmatmul.mubr.bf16.gmra.mxu0 %v8105
        %v8352 = vpop.f32.mrf.mxu0
        %v8353 = vadd.f32 %v8192, %v8352
        %v8354 = vpop.f32.mrf.mxu0
        %v8355 = vpop.f32.mrf.mxu0
        %v8356 = vadd.f32 %v8195, %v8355
        %v8357 = vpop.f32.mrf.mxu0
        %8358 = vmatprep.mubr.bf16.mxu0 0
        %8359 = vmatmul.mubr.bf16.gmra.mxu0 %v8108
        %v8360 = vpop.f32.mrf.mxu0
        %v8361 = vadd.f32 %v8200, %v8360
        %v8362 = vpop.f32.mrf.mxu0
        %v8363 = vpop.f32.mrf.mxu0
        %v8364 = vadd.f32 %v8203, %v8363
        %v8365 = vpop.f32.mrf.mxu0
        %8366 = vmatprep.mubr.bf16.mxu0 0
        %8367 = vmatmul.mubr.bf16.gmra.mxu0 %v8111
        %v8368 = vpop.f32.mrf.mxu0
        %v8369 = vadd.f32 %v8208, %v8368
        %v8370 = vpop.f32.mrf.mxu0
        %v8371 = vpop.f32.mrf.mxu0
        %v8372 = vadd.f32 %v8211, %v8371
        %v8373 = vpop.f32.mrf.mxu0
        %8374 = vmatprep.mubr.bf16.mxu0 0
        %8375 = vmatmul.mubr.bf16.gmra.mxu0 %v8114
        %v8376 = vpop.f32.mrf.mxu0
        %v8377 = vadd.f32 %v8216, %v8376
        %v8378 = vpop.f32.mrf.mxu0
        %v8379 = vpop.f32.mrf.mxu0
        %v8380 = vadd.f32 %v8219, %v8379
        %v8381 = vpop.f32.mrf.mxu0
        %8382 = vmatprep.mubr.bf16.mxu0 0
        %8383 = vmatmul.mubr.bf16.gmra.mxu0 %v8117
        %v8384 = vpop.f32.mrf.mxu0
        %v8385 = vadd.f32 %v8224, %v8384
        %v8386 = vpop.f32.mrf.mxu0
        %v8387 = vpop.f32.mrf.mxu0
        %v8388 = vadd.f32 %v8227, %v8387
        %v8389 = vpop.f32.mrf.mxu0
        %8390 = vmatprep.mubr.bf16.mxu0 0
        %8391 = vmatmul.mubr.bf16.gmra.mxu0 %v8120
        %v8392 = vpop.f32.mrf.mxu0
        %v8393 = vadd.f32 %v8232, %v8392
        %v8394 = vpop.f32.mrf.mxu0
        %v8395 = vpop.f32.mrf.mxu0
        %v8396 = vadd.f32 %v8235, %v8395
        %v8397 = vpop.f32.mrf.mxu0
        %8398 = vmatprep.mubr.bf16.mxu0 0
        %8399 = vmatmul.mubr.bf16.gmra.mxu0 %v8123
        %v8400 = vpop.f32.mrf.mxu0
        %v8401 = vadd.f32 %v8240, %v8400
        %v8402 = vpop.f32.mrf.mxu0
        %v8403 = vpop.f32.mrf.mxu0
        %v8404 = vadd.f32 %v8243, %v8403
        %v8405 = vpop.f32.mrf.mxu0
        %8406 = vmatprep.mubr.bf16.mxu0 0
        %8407 = vmatmul.mubr.bf16.gmra.mxu0 %v8126
        %v8408 = vpop.f32.mrf.mxu0
        %v8409 = vadd.f32 %v8248, %v8408
        %v8410 = vpop.f32.mrf.mxu0
        %v8411 = vpop.f32.mrf.mxu0
        %v8412 = vadd.f32 %v8251, %v8411
        %v8413 = vpop.f32.mrf.mxu0
        %8414 = vmatprep.mubr.bf16.mxu0 0
        %8415 = vmatmul.mubr.bf16.gmra.mxu0 %v8129
        %v8416 = vpop.f32.mrf.mxu0
        %v8417 = vadd.f32 %v8256, %v8416
        %v8418 = vpop.f32.mrf.mxu0
        %v8419 = vpop.f32.mrf.mxu0
        %v8420 = vadd.f32 %v8259, %v8419
        %v8421 = vpop.f32.mrf.mxu0
        %8422 = vmatprep.mubr.bf16.mxu0 0
        %8423 = vmatmul.mubr.bf16.gmra.mxu0 %v8132
        %v8424 = vpop.f32.mrf.mxu0
        %v8425 = vadd.f32 %v8264, %v8424
        %v8426 = vpop.f32.mrf.mxu0
        %v8427 = vpop.f32.mrf.mxu0
        %v8428 = vadd.f32 %v8267, %v8427
        %v8429 = vpop.f32.mrf.mxu0
        %8430 = vmatprep.mubr.bf16.mxu0 0
        %8431 = vmatmul.mubr.bf16.gmra.mxu0 %v8135
        %v8432 = vpop.f32.mrf.mxu0
        %v8433 = vadd.f32 %v8272, %v8432
        %v8434 = vpop.f32.mrf.mxu0
        %v8435 = vpop.f32.mrf.mxu0
        %v8436 = vadd.f32 %v8275, %v8435
        %v8437 = vpop.f32.mrf.mxu0
        %8438 = vmatprep.mubr.bf16.mxu0 0
        %8439 = vmatmul.mubr.bf16.gmra.mxu0 %v8138
        %v8440 = vpop.f32.mrf.mxu0
        %v8441 = vadd.f32 %v8280, %v8440
        %v8442 = vpop.f32.mrf.mxu0
        %v8443 = vpop.f32.mrf.mxu0
        %v8444 = vadd.f32 %v8283, %v8443
        %v8445 = vpop.f32.mrf.mxu0
        %8446 = vmatprep.mubr.bf16.mxu0 0
        %8447 = vmatmul.mubr.bf16.gmra.mxu0 %v8141
        %v8448 = vpop.f32.mrf.mxu0
        %v8449 = vadd.f32 %v8288, %v8448
        %v8450 = vpop.f32.mrf.mxu0
        %v8451 = vpop.f32.mrf.mxu0
        %v8452 = vadd.f32 %v8291, %v8451
        %v8453 = vpop.f32.mrf.mxu0
        %8454 = vmatprep.mubr.bf16.mxu0 0
        %8455 = vmatmul.mubr.bf16.gmra.mxu0 %v8144
        %v8456 = vpop.f32.mrf.mxu0
        %v8457 = vadd.f32 %v8296, %v8456
        %v8458 = vpop.f32.mrf.mxu0
        %v8459 = vpop.f32.mrf.mxu0
        %v8460 = vadd.f32 %v8299, %v8459
        %v8461 = vpop.f32.mrf.mxu0
        %8462 = vmatprep.mubr.bf16.mxu0 0
        %8463 = vmatmul.mubr.bf16.gmra.mxu0 %v8147
        %v8464 = vpop.f32.mrf.mxu0
        %v8465 = vadd.f32 %v8304, %v8464
        %v8466 = vpop.f32.mrf.mxu0
        %v8467 = vpop.f32.mrf.mxu0
        %v8468 = vadd.f32 %v8307, %v8467
        %v8469 = vpop.f32.mrf.mxu0
        %8470 = vdwg.mxu0
        %v8471 = vmax.f32 %v8345, 0.0
        %v8472 = vmax.f32 %v8348, 0.0
        %v8473 = vmax.f32 %v8353, 0.0
        %v8474 = vmax.f32 %v8356, 0.0
        %v8475 = vmax.f32 %v8361, 0.0
        %v8476 = vmax.f32 %v8364, 0.0
        %v8477 = vmax.f32 %v8369, 0.0
        %v8478 = vmax.f32 %v8372, 0.0
        %v8479 = vmax.f32 %v8377, 0.0
        %v8480 = vmax.f32 %v8380, 0.0
        %v8481 = vmax.f32 %v8385, 0.0
        %v8482 = vmax.f32 %v8388, 0.0
        %v8483 = vmax.f32 %v8393, 0.0
        %v8484 = vmax.f32 %v8396, 0.0
        %v8485 = vmax.f32 %v8401, 0.0
        %v8486 = vmax.f32 %v8404, 0.0
        %v8487 = vmax.f32 %v8409, 0.0
        %v8488 = vmax.f32 %v8412, 0.0
        %v8489 = vmax.f32 %v8417, 0.0
        %v8490 = vmax.f32 %v8420, 0.0
        %v8491 = vmax.f32 %v8425, 0.0
        %v8492 = vmax.f32 %v8428, 0.0
        %v8493 = vmax.f32 %v8433, 0.0
        %v8494 = vmax.f32 %v8436, 0.0
        %v8495 = vmax.f32 %v8441, 0.0
        %v8496 = vmax.f32 %v8444, 0.0
        %v8497 = vmax.f32 %v8449, 0.0
        %v8498 = vmax.f32 %v8452, 0.0
        %v8499 = vmax.f32 %v8457, 0.0
        %v8500 = vmax.f32 %v8460, 0.0
        %v8501 = vmax.f32 %v8465, 0.0
        %v8502 = vmax.f32 %v8468, 0.0
        %v8503 = vadd.f32 %v8471, %v1369
        %v8504 = vadd.f32 %v8472, %v1372
        %v8505 = vadd.f32 %v8473, %v1377
        %v8506 = vadd.f32 %v8474, %v1380
        %v8507 = vadd.f32 %v8475, %v1385
        %v8508 = vadd.f32 %v8476, %v1388
        %v8509 = vadd.f32 %v8477, %v1393
        %v8510 = vadd.f32 %v8478, %v1396
        %v8511 = vadd.f32 %v8479, %v1401
        %v8512 = vadd.f32 %v8480, %v1404
        %v8513 = vadd.f32 %v8481, %v1409
        %v8514 = vadd.f32 %v8482, %v1412
        %v8515 = vadd.f32 %v8483, %v1417
        %v8516 = vadd.f32 %v8484, %v1420
        %v8517 = vadd.f32 %v8485, %v1425
        %v8518 = vadd.f32 %v8486, %v1428
        %v8519 = vadd.f32 %v8487, %v1433
        %v8520 = vadd.f32 %v8488, %v1436
        %v8521 = vadd.f32 %v8489, %v1441
        %v8522 = vadd.f32 %v8490, %v1444
        %v8523 = vadd.f32 %v8491, %v1449
        %v8524 = vadd.f32 %v8492, %v1452
        %v8525 = vadd.f32 %v8493, %v1457
        %v8526 = vadd.f32 %v8494, %v1460
        %v8527 = vadd.f32 %v8495, %v1465
        %v8528 = vadd.f32 %v8496, %v1468
        %v8529 = vadd.f32 %v8497, %v1473
        %v8530 = vadd.f32 %v8498, %v1476
        %v8531 = vadd.f32 %v8499, %v1481
        %v8532 = vadd.f32 %v8500, %v1484
        %v8533 = vadd.f32 %v8501, %v1489
        %v8534 = vadd.f32 %v8502, %v1492
        %v8535 = vpack.c.bf16 %v8504, %v8503
        %v8536 = vpack.c.bf16 %v8506, %v8505
        %v8537 = vpack.c.bf16 %v8508, %v8507
        %v8538 = vpack.c.bf16 %v8510, %v8509
        %v8539 = vpack.c.bf16 %v8512, %v8511
        %v8540 = vpack.c.bf16 %v8514, %v8513
        %v8541 = vpack.c.bf16 %v8516, %v8515
        %v8542 = vpack.c.bf16 %v8518, %v8517
        %v8543 = vpack.c.bf16 %v8520, %v8519
        %v8544 = vpack.c.bf16 %v8522, %v8521
        %v8545 = vpack.c.bf16 %v8524, %v8523
        %v8546 = vpack.c.bf16 %v8526, %v8525
        %v8547 = vpack.c.bf16 %v8528, %v8527
        %v8548 = vpack.c.bf16 %v8530, %v8529
        %v8549 = vpack.c.bf16 %v8532, %v8531
        %v8550 = vpack.c.bf16 %v8534, %v8533
        %v8551 = vld [vmem:[%s483] sm:$0xff]
        %v8552 = vld [vmem:[%s483 + $0x8] sm:$0xff]
        %v8553 = vld [vmem:[%s483 + $0x10] sm:$0xff]
        %v8554 = vld [vmem:[%s483 + $0x18] sm:$0xff]
        %v8555 = vld [vmem:[%s483 + $0x20] sm:$0xff]
        %v8556 = vld [vmem:[%s483 + $0x28] sm:$0xff]
        %v8557 = vld [vmem:[%s483 + $0x30] sm:$0xff]
        %v8558 = vld [vmem:[%s483 + $0x38] sm:$0xff]
        %v8559 = vld [vmem:[%s483 + $0x40] sm:$0xff]
        %v8560 = vld [vmem:[%s483 + $0x48] sm:$0xff]
        %v8561 = vld [vmem:[%s483 + $0x50] sm:$0xff]
        %v8562 = vld [vmem:[%s483 + $0x58] sm:$0xff]
        %v8563 = vld [vmem:[%s483 + $0x60] sm:$0xff]
        %v8564 = vld [vmem:[%s483 + $0x68] sm:$0xff]
        %v8565 = vld [vmem:[%s483 + $0x70] sm:$0xff]
        %v8566 = vld [vmem:[%s483 + $0x78] sm:$0xff]
        %v8567 = vld [vmem:[%s483 + $0x80] sm:$0xff]
        %v8568 = vld [vmem:[%s483 + $0x88] sm:$0xff]
        %v8569 = vld [vmem:[%s483 + $0x90] sm:$0xff]
        %v8570 = vld [vmem:[%s483 + $0x98] sm:$0xff]
        %v8571 = vld [vmem:[%s483 + $0xa0] sm:$0xff]
        %v8572 = vld [vmem:[%s483 + $0xa8] sm:$0xff]
        %v8573 = vld [vmem:[%s483 + $0xb0] sm:$0xff]
        %v8574 = vld [vmem:[%s483 + $0xb8] sm:$0xff]
        %v8575 = vld [vmem:[%s483 + $0xc0] sm:$0xff]
        %v8576 = vld [vmem:[%s483 + $0xc8] sm:$0xff]
        %v8577 = vld [vmem:[%s483 + $0xd0] sm:$0xff]
        %v8578 = vld [vmem:[%s483 + $0xd8] sm:$0xff]
        %v8579 = vld [vmem:[%s483 + $0xe0] sm:$0xff]
        %v8580 = vld [vmem:[%s483 + $0xe8] sm:$0xff]
        %v8581 = vld [vmem:[%s483 + $0xf0] sm:$0xff]
        %v8582 = vld [vmem:[%s483 + $0xf8] sm:$0xff]
        %v8583 = vpack.c.bf16 %v8552, %v8551
        %v8584 = vpack.c.bf16 %v8554, %v8553
        %v8585 = vpack.c.bf16 %v8556, %v8555
        %v8586 = vpack.c.bf16 %v8558, %v8557
        %v8587 = vpack.c.bf16 %v8560, %v8559
        %v8588 = vpack.c.bf16 %v8562, %v8561
        %v8589 = vpack.c.bf16 %v8564, %v8563
        %v8590 = vpack.c.bf16 %v8566, %v8565
        %v8591 = vpack.c.bf16 %v8568, %v8567
        %v8592 = vpack.c.bf16 %v8570, %v8569
        %v8593 = vpack.c.bf16 %v8572, %v8571
        %v8594 = vpack.c.bf16 %v8574, %v8573
        %v8595 = vpack.c.bf16 %v8576, %v8575
        %v8596 = vpack.c.bf16 %v8578, %v8577
        %v8597 = vpack.c.bf16 %v8580, %v8579
        %v8598 = vpack.c.bf16 %v8582, %v8581
        %8615 = vrot.lane.b32.xlu0 %v8583, 32
        %v8616 = vpop.permute.xlu0 %8615
        %8617 = vrot.lane.b32.xlu0 %v8584, 32
        %v8618 = vpop.permute.xlu0 %8617
        %8619 = vrot.lane.b32.xlu0 %v8585, 32
        %v8620 = vpop.permute.xlu0 %8619
        %8621 = vrot.lane.b32.xlu0 %v8586, 32
        %v8622 = vpop.permute.xlu0 %8621
        %8623 = vrot.lane.b32.xlu0 %v8587, 32
        %v8624 = vpop.permute.xlu0 %8623
        %8625 = vrot.lane.b32.xlu0 %v8588, 32
        %v8626 = vpop.permute.xlu0 %8625
        %8627 = vrot.lane.b32.xlu0 %v8589, 32
        %v8628 = vpop.permute.xlu0 %8627
        %8629 = vrot.lane.b32.xlu0 %v8590, 32
        %v8630 = vpop.permute.xlu0 %8629
        %8631 = vrot.lane.b32.xlu0 %v8591, 32
        %v8632 = vpop.permute.xlu0 %8631
        %8633 = vrot.lane.b32.xlu0 %v8592, 32
        %v8634 = vpop.permute.xlu0 %8633
        %8635 = vrot.lane.b32.xlu0 %v8593, 32
        %v8636 = vpop.permute.xlu0 %8635
        %8637 = vrot.lane.b32.xlu0 %v8594, 32
        %v8638 = vpop.permute.xlu0 %8637
        %8639 = vrot.lane.b32.xlu0 %v8595, 32
        %v8640 = vpop.permute.xlu0 %8639
        %8641 = vrot.lane.b32.xlu0 %v8596, 32
        %v8642 = vpop.permute.xlu0 %8641
        %8643 = vrot.lane.b32.xlu0 %v8597, 32
        %v8644 = vpop.permute.xlu0 %8643
        %8645 = vrot.lane.b32.xlu0 %v8598, 32
        %v8646 = vpop.permute.xlu0 %8645
        %v8649 = vsel %vm1197, %v8535, %v8616
        %v8652 = vsel %vm1197, %v8536, %v8618
        %v8655 = vsel %vm1197, %v8537, %v8620
        %v8658 = vsel %vm1197, %v8538, %v8622
        %v8661 = vsel %vm1197, %v8539, %v8624
        %v8664 = vsel %vm1197, %v8540, %v8626
        %v8667 = vsel %vm1197, %v8541, %v8628
        %v8670 = vsel %vm1197, %v8542, %v8630
        %v8673 = vsel %vm1197, %v8543, %v8632
        %v8676 = vsel %vm1197, %v8544, %v8634
        %v8679 = vsel %vm1197, %v8545, %v8636
        %v8682 = vsel %vm1197, %v8546, %v8638
        %v8685 = vsel %vm1197, %v8547, %v8640
        %v8688 = vsel %vm1197, %v8548, %v8642
        %v8691 = vsel %vm1197, %v8549, %v8644
        %v8694 = vsel %vm1197, %v8550, %v8646
        %v8695 = vld [vmem:[%s3] sm:$0xf]
        %v8696 = vld [vmem:[%s3 + $0x4] sm:$0xf]
        %v8697 = vld [vmem:[%s3 + $0x8] sm:$0xf]
        %v8698 = vld [vmem:[%s3 + $0xc] sm:$0xf]
        %v8699 = vld [vmem:[%s3 + $0x10] sm:$0xf]
        %v8700 = vld [vmem:[%s3 + $0x14] sm:$0xf]
        %v8701 = vld [vmem:[%s3 + $0x18] sm:$0xf]
        %v8702 = vld [vmem:[%s3 + $0x1c] sm:$0xf]
        %v8703 = vld [vmem:[%s4] sm:$0x1]
        %v8705 = vlaneseq
        %v8706 = vshrl.u32 %v8705, 7
        %v8707 = vsub.s32 0, %v8706
        %v8708 = vrot.slane %v8703, %v8707
        %v8718 = vunpack.c.l.b16 %v8695
        %v8719 = vunpack.c.l.b16 %v8696
        %v8720 = vunpack.c.l.b16 %v8697
        %v8721 = vunpack.c.l.b16 %v8698
        %v8722 = vunpack.c.l.b16 %v8699
        %v8723 = vunpack.c.l.b16 %v8700
        %v8724 = vunpack.c.l.b16 %v8701
        %v8725 = vunpack.c.l.b16 %v8702
        %v8726 = vpack.c.b16 %v8719, %v8718
        %v8727 = vpack.c.b16 %v8721, %v8720
        %v8728 = vpack.c.b16 %v8723, %v8722
        %v8729 = vpack.c.b16 %v8725, %v8724
        %v8734 = vsel %vm1285, %v8649, 0
        %v8736 = vsel %vm1285, %v8652, 0
        %v8738 = vsel %vm1285, %v8655, 0
        %v8740 = vsel %vm1285, %v8658, 0
        %v8742 = vsel %vm1285, %v8661, 0
        %v8744 = vsel %vm1285, %v8664, 0
        %v8746 = vsel %vm1285, %v8667, 0
        %v8748 = vsel %vm1285, %v8670, 0
        %v8750 = vsel %vm1285, %v8673, 0
        %v8752 = vsel %vm1285, %v8676, 0
        %v8754 = vsel %vm1285, %v8679, 0
        %v8756 = vsel %vm1285, %v8682, 0
        %v8758 = vsel %vm1285, %v8685, 0
        %v8760 = vsel %vm1285, %v8688, 0
        %v8762 = vsel %vm1285, %v8691, 0
        %v8764 = vsel %vm1285, %v8694, 0
        %8766 = vmatprep.subr.bf16.mxu0 0
        %8767 = vmatpush1.bf16.msra.mxu0 0
        %8768 = vmatprep.subr.bf16.mxu0 0
        %8769 = vmatpush1.bf16.msra.mxu0 0
        %8770 = vmatprep.subr.bf16.mxu0 0
        %8771 = vmatpush1.bf16.msra.mxu0 0
        %8772 = vmatprep.subr.bf16.mxu0 0
        %8773 = vmatpush1.bf16.msra.mxu0 0
        %8774 = vmatprep.subr.bf16.mxu0 0
        %8775 = vmatpush1.bf16.msra.mxu0 %v8729
        %8776 = vmatprep.subr.bf16.mxu0 0
        %8777 = vmatpush1.bf16.msra.mxu0 %v8728
        %8778 = vmatprep.subr.bf16.mxu0 0
        %8779 = vmatpush1.bf16.msra.mxu0 %v8727
        %8780 = vmatprep.subr.bf16.mxu0 0
        %8781 = vmatpush1.bf16.msra.mxu0 %v8726
        %8782 = vmatprep.subr.bf16.mxu0 0
        %8783 = vmatpush2.bf16.msra.mxu0 0
        %8784 = vmatprep.subr.bf16.mxu0 0
        %8785 = vmatpush2.bf16.msra.mxu0 0
        %8786 = vmatprep.subr.bf16.mxu0 0
        %8787 = vmatpush2.bf16.msra.mxu0 0
        %8788 = vmatprep.subr.bf16.mxu0 0
        %8789 = vmatpush2.bf16.msra.mxu0 0
        %8790 = vmatprep.subr.bf16.mxu0 0
        %8791 = vmatpush2.bf16.msra.mxu0 0
        %8792 = vmatprep.subr.bf16.mxu0 0
        %8793 = vmatpush2.bf16.msra.mxu0 0
        %8794 = vmatprep.subr.bf16.mxu0 0
        %8795 = vmatpush2.bf16.msra.mxu0 0
        %8796 = vmatprep.subr.bf16.mxu0 0
        %8797 = vmatpush2.bf16.msra.mxu0 0
        %8798 = vmatprep.mubr.bf16.mxu0 0
        %8799 = vmatmul.mubr.bf16.gmra.mxu0 %v8734
        %v8800 = vpop.f32.mrf.mxu0
        %v8801 = vadd.f32 %v8708, %v8800
        %v8802 = vpop.f32.mrf.mxu0
        %v8803 = vpop.f32.mrf.mxu0
        %v8804 = vadd.f32 %v8708, %v8803
        %v8805 = vpop.f32.mrf.mxu0
        %8806 = vmatprep.mubr.bf16.mxu0 0
        %8807 = vmatmul.mubr.bf16.gmra.mxu0 %v8736
        %v8808 = vpop.f32.mrf.mxu0
        %v8809 = vadd.f32 %v8708, %v8808
        %v8810 = vpop.f32.mrf.mxu0
        %v8811 = vpop.f32.mrf.mxu0
        %v8812 = vadd.f32 %v8708, %v8811
        %v8813 = vpop.f32.mrf.mxu0
        %8814 = vmatprep.mubr.bf16.mxu0 0
        %8815 = vmatmul.mubr.bf16.gmra.mxu0 %v8738
        %v8816 = vpop.f32.mrf.mxu0
        %v8817 = vadd.f32 %v8708, %v8816
        %v8818 = vpop.f32.mrf.mxu0
        %v8819 = vpop.f32.mrf.mxu0
        %v8820 = vadd.f32 %v8708, %v8819
        %v8821 = vpop.f32.mrf.mxu0
        %8822 = vmatprep.mubr.bf16.mxu0 0
        %8823 = vmatmul.mubr.bf16.gmra.mxu0 %v8740
        %v8824 = vpop.f32.mrf.mxu0
        %v8825 = vadd.f32 %v8708, %v8824
        %v8826 = vpop.f32.mrf.mxu0
        %v8827 = vpop.f32.mrf.mxu0
        %v8828 = vadd.f32 %v8708, %v8827
        %v8829 = vpop.f32.mrf.mxu0
        %8830 = vmatprep.mubr.bf16.mxu0 0
        %8831 = vmatmul.mubr.bf16.gmra.mxu0 %v8742
        %v8832 = vpop.f32.mrf.mxu0
        %v8833 = vadd.f32 %v8708, %v8832
        %v8834 = vpop.f32.mrf.mxu0
        %v8835 = vpop.f32.mrf.mxu0
        %v8836 = vadd.f32 %v8708, %v8835
        %v8837 = vpop.f32.mrf.mxu0
        %8838 = vmatprep.mubr.bf16.mxu0 0
        %8839 = vmatmul.mubr.bf16.gmra.mxu0 %v8744
        %v8840 = vpop.f32.mrf.mxu0
        %v8841 = vadd.f32 %v8708, %v8840
        %v8842 = vpop.f32.mrf.mxu0
        %v8843 = vpop.f32.mrf.mxu0
        %v8844 = vadd.f32 %v8708, %v8843
        %v8845 = vpop.f32.mrf.mxu0
        %8846 = vmatprep.mubr.bf16.mxu0 0
        %8847 = vmatmul.mubr.bf16.gmra.mxu0 %v8746
        %v8848 = vpop.f32.mrf.mxu0
        %v8849 = vadd.f32 %v8708, %v8848
        %v8850 = vpop.f32.mrf.mxu0
        %v8851 = vpop.f32.mrf.mxu0
        %v8852 = vadd.f32 %v8708, %v8851
        %v8853 = vpop.f32.mrf.mxu0
        %8854 = vmatprep.mubr.bf16.mxu0 0
        %8855 = vmatmul.mubr.bf16.gmra.mxu0 %v8748
        %v8856 = vpop.f32.mrf.mxu0
        %v8857 = vadd.f32 %v8708, %v8856
        %v8858 = vpop.f32.mrf.mxu0
        %v8859 = vpop.f32.mrf.mxu0
        %v8860 = vadd.f32 %v8708, %v8859
        %v8861 = vpop.f32.mrf.mxu0
        %8862 = vmatprep.mubr.bf16.mxu0 0
        %8863 = vmatmul.mubr.bf16.gmra.mxu0 %v8750
        %v8864 = vpop.f32.mrf.mxu0
        %v8865 = vadd.f32 %v8708, %v8864
        %v8866 = vpop.f32.mrf.mxu0
        %v8867 = vpop.f32.mrf.mxu0
        %v8868 = vadd.f32 %v8708, %v8867
        %v8869 = vpop.f32.mrf.mxu0
        %8870 = vmatprep.mubr.bf16.mxu0 0
        %8871 = vmatmul.mubr.bf16.gmra.mxu0 %v8752
        %v8872 = vpop.f32.mrf.mxu0
        %v8873 = vadd.f32 %v8708, %v8872
        %v8874 = vpop.f32.mrf.mxu0
        %v8875 = vpop.f32.mrf.mxu0
        %v8876 = vadd.f32 %v8708, %v8875
        %v8877 = vpop.f32.mrf.mxu0
        %8878 = vmatprep.mubr.bf16.mxu0 0
        %8879 = vmatmul.mubr.bf16.gmra.mxu0 %v8754
        %v8880 = vpop.f32.mrf.mxu0
        %v8881 = vadd.f32 %v8708, %v8880
        %v8882 = vpop.f32.mrf.mxu0
        %v8883 = vpop.f32.mrf.mxu0
        %v8884 = vadd.f32 %v8708, %v8883
        %v8885 = vpop.f32.mrf.mxu0
        %8886 = vmatprep.mubr.bf16.mxu0 0
        %8887 = vmatmul.mubr.bf16.gmra.mxu0 %v8756
        %v8888 = vpop.f32.mrf.mxu0
        %v8889 = vadd.f32 %v8708, %v8888
        %v8890 = vpop.f32.mrf.mxu0
        %v8891 = vpop.f32.mrf.mxu0
        %v8892 = vadd.f32 %v8708, %v8891
        %v8893 = vpop.f32.mrf.mxu0
        %8894 = vmatprep.mubr.bf16.mxu0 0
        %8895 = vmatmul.mubr.bf16.gmra.mxu0 %v8758
        %v8896 = vpop.f32.mrf.mxu0
        %v8897 = vadd.f32 %v8708, %v8896
        %v8898 = vpop.f32.mrf.mxu0
        %v8899 = vpop.f32.mrf.mxu0
        %v8900 = vadd.f32 %v8708, %v8899
        %v8901 = vpop.f32.mrf.mxu0
        %8902 = vmatprep.mubr.bf16.mxu0 0
        %8903 = vmatmul.mubr.bf16.gmra.mxu0 %v8760
        %v8904 = vpop.f32.mrf.mxu0
        %v8905 = vadd.f32 %v8708, %v8904
        %v8906 = vpop.f32.mrf.mxu0
        %v8907 = vpop.f32.mrf.mxu0
        %v8908 = vadd.f32 %v8708, %v8907
        %v8909 = vpop.f32.mrf.mxu0
        %8910 = vmatprep.mubr.bf16.mxu0 0
        %8911 = vmatmul.mubr.bf16.gmra.mxu0 %v8762
        %v8912 = vpop.f32.mrf.mxu0
        %v8913 = vadd.f32 %v8708, %v8912
        %v8914 = vpop.f32.mrf.mxu0
        %v8915 = vpop.f32.mrf.mxu0
        %v8916 = vadd.f32 %v8708, %v8915
        %v8917 = vpop.f32.mrf.mxu0
        %8918 = vmatprep.mubr.bf16.mxu0 0
        %8919 = vmatmul.mubr.bf16.gmra.mxu0 %v8764
        %v8920 = vpop.f32.mrf.mxu0
        %v8921 = vadd.f32 %v8708, %v8920
        %v8922 = vpop.f32.mrf.mxu0
        %v8923 = vpop.f32.mrf.mxu0
        %v8924 = vadd.f32 %v8708, %v8923
        %v8925 = vpop.f32.mrf.mxu0
        %8926 = vdwg.mxu0
        %8927 = vst.msk [vmem:[%s535] sm:$0xff] %vm1197, %v8801
        %8928 = vst.msk [vmem:[%s535 + $0x8] sm:$0xff] %vm1197, %v8804
        %8929 = vst.msk [vmem:[%s535 + $0x10] sm:$0xff] %vm1197, %v8809
        %8930 = vst.msk [vmem:[%s535 + $0x18] sm:$0xff] %vm1197, %v8812
        %8931 = vst.msk [vmem:[%s535 + $0x20] sm:$0xff] %vm1197, %v8817
        %8932 = vst.msk [vmem:[%s535 + $0x28] sm:$0xff] %vm1197, %v8820
        %8933 = vst.msk [vmem:[%s535 + $0x30] sm:$0xff] %vm1197, %v8825
        %8934 = vst.msk [vmem:[%s535 + $0x38] sm:$0xff] %vm1197, %v8828
        %8935 = vst.msk [vmem:[%s535 + $0x40] sm:$0xff] %vm1197, %v8833
        %8936 = vst.msk [vmem:[%s535 + $0x48] sm:$0xff] %vm1197, %v8836
        %8937 = vst.msk [vmem:[%s535 + $0x50] sm:$0xff] %vm1197, %v8841
        %8938 = vst.msk [vmem:[%s535 + $0x58] sm:$0xff] %vm1197, %v8844
        %8939 = vst.msk [vmem:[%s535 + $0x60] sm:$0xff] %vm1197, %v8849
        %8940 = vst.msk [vmem:[%s535 + $0x68] sm:$0xff] %vm1197, %v8852
        %8941 = vst.msk [vmem:[%s535 + $0x70] sm:$0xff] %vm1197, %v8857
        %8942 = vst.msk [vmem:[%s535 + $0x78] sm:$0xff] %vm1197, %v8860
        %8943 = vst.msk [vmem:[%s535 + $0x80] sm:$0xff] %vm1197, %v8865
        %8944 = vst.msk [vmem:[%s535 + $0x88] sm:$0xff] %vm1197, %v8868
        %8945 = vst.msk [vmem:[%s535 + $0x90] sm:$0xff] %vm1197, %v8873
        %8946 = vst.msk [vmem:[%s535 + $0x98] sm:$0xff] %vm1197, %v8876
        %8947 = vst.msk [vmem:[%s535 + $0xa0] sm:$0xff] %vm1197, %v8881
        %8948 = vst.msk [vmem:[%s535 + $0xa8] sm:$0xff] %vm1197, %v8884
        %8949 = vst.msk [vmem:[%s535 + $0xb0] sm:$0xff] %vm1197, %v8889
        %8950 = vst.msk [vmem:[%s535 + $0xb8] sm:$0xff] %vm1197, %v8892
        %8951 = vst.msk [vmem:[%s535 + $0xc0] sm:$0xff] %vm1197, %v8897
        %8952 = vst.msk [vmem:[%s535 + $0xc8] sm:$0xff] %vm1197, %v8900
        %8953 = vst.msk [vmem:[%s535 + $0xd0] sm:$0xff] %vm1197, %v8905
        %8954 = vst.msk [vmem:[%s535 + $0xd8] sm:$0xff] %vm1197, %v8908
        %8955 = vst.msk [vmem:[%s535 + $0xe0] sm:$0xff] %vm1197, %v8913
        %8956 = vst.msk [vmem:[%s535 + $0xe8] sm:$0xff] %vm1197, %v8916
        %8957 = vst.msk [vmem:[%s535 + $0xf0] sm:$0xff] %vm1197, %v8921
        %8958 = vst.msk [vmem:[%s535 + $0xf8] sm:$0xff] %vm1197, %v8924
        %s8959 = sand.u32 %s329, 1
        %s8960 = scalar_lea.sflag [#allocation5], %s8959
        %s8961 = sand.u32 %s329, 1
        %s8962 = smul.addr %s8961, 256
        %s8963 = scalar_lea.vmem [#allocation9], %s8962
        // Predicated region
        $region85: #{me_forward.1} parent=71 // pred_check
          %p8964 = pneg %p339
        $region86: #{me_forward.1} parent=71 // pred_check_branch
          %8966 = sbr.rel (%p8964) target = $region88
        $region87: #{me_forward.1} parent=71 // pred_region
          %s8968 = ssub.s32 4096, 4096
          %8969 = vsyncadd %s8960, %s8968
          %s8970 = smul.addr %s33, 32
          %s8971 = smul.addr %s8970, 128
          %s8972 = scalar_lea.hbm %s13, %s8971
          %s8973 = sshll.u32 %s8963, 4
          %s8974 = int_to_ptr.vmem [resolvable:$true] %s8973
          %8979 = dma.vmem_to_hbm [thread:$0]  %s8974, 4096, %s8972, %s8960, 128, 128, 8
        $region88: #{me_forward.1} parent=71 // pred_fallthru
          _
      $region72: #{me_forward.1} parent=5 // pred_fallthru
        _
      %p8980 = scmp.le.s32.totalorder 2, %s28
      // Predicated region
      $region89: #{me_forward.1} parent=5 // pred_check
        %p8981 = pneg %p8980
      $region90: #{me_forward.1} parent=5 // pred_check_branch
        %8983 = sbr.rel (%p8981) target = $region92
      $region91: #{me_forward.1} parent=5 // pred_region
        %s8984 = ssub.s32 %s28, 2
        // Predicated region
        $region93: #{me_forward.1} parent=91 // pred_check
          %p8985 = pneg %p345
        $region94: #{me_forward.1} parent=91 // pred_check_branch
          %8987 = sbr.rel (%p8985) target = $region96
        $region95: #{me_forward.1} parent=91 // pred_region
          %s8988 = sand.u32 %s330, 1
          %s8989 = scalar_lea.sflag [#allocation5], %s8988
          %s8990 = sand.u32 %s330, 1
          %s8991 = smul.addr %s8990, 256
          %s8992 = scalar_lea.vmem [#allocation9], %s8991
          %8993 = dma.done %s8989, 4096
        $region96: #{me_forward.1} parent=91 // pred_fallthru
          _
      $region92: #{me_forward.1} parent=5 // pred_fallthru
        _
    $region6: #{me_forward.1} parent=1 // loop_footer
      %s32 = sadd.s32 1, %s28
    $region7: #{me_forward.1} parent=1 // loop_footer_branch
      %27 = sbr.rel target = $region3
    $region8: #{me_forward.1} parent=1 // loop_exit
      _
    %8994 = vsyncpa [#allocation4], 1
    %s8995 = scalar_lea.sflag [#allocation4], 1
    %8996 = vsyncpa %s8995, 1
    %8997 = vsyncpa [#allocation7], 1
    %s8998 = scalar_lea.sflag [#allocation7], 1
    %8999 = vsyncpa %s8998, 1
    %9000 = vsyncpa [#allocation5], 1
    %s9001 = scalar_lea.sflag [#allocation5], 1
    %9002 = vsyncpa %s9001, 1

</llo_original>
